<compile_context>
chip_gen: v7x
topology: tpu7x:2x2x1
jax: 0.10.0
libtpu: 0.0.40
codegen_flags: <defaults>
</compile_context>

<pallas_src>
import functools
import math

import jax
import jax.numpy as jnp
from jax.experimental import pallas as pl
from jax.experimental.pallas import tpu as pltpu


# ------------------------------ fused kernel -------------------------------

def _actor_fused_kernel(*refs, n_batch, num_layers, action_dim,
                        log_std_min, log_std_max, ln_eps):
    it = iter(refs)
    xp_ref = next(it)                       # (4, H/2, (W/2)*N, Cin) f32
    conv_w, conv_b = [], []
    for _ in range(num_layers):
        conv_w.append(next(it))             # (9, Cin_l, F) bf16 (tap-major)
        conv_b.append(next(it))             # (1, F) f32
    fcw_ref = next(it)                      # (Hf*Wf, F, feat) bf16 (row-permuted)
    fcb_ref = next(it)                      # (1, feat) f32
    lng_ref = next(it)                      # (1, feat) f32
    lnb_ref = next(it)                      # (1, feat) f32
    tw1_ref, tb1_ref = next(it), next(it)
    tw2_ref, tb2_ref = next(it), next(it)
    twmu_ref, tbmu_ref = next(it), next(it)
    twls_ref, tbls_ref = next(it), next(it)
    noise_ref = next(it)                    # (N, A) f32
    mu_o, pi_o, lp_o, lstd_o = next(it), next(it), next(it), next(it)
    conv_scr = [next(it) for _ in range(num_layers)]   # f32 VMEM scratch

    n = n_batch
    _, hp, wpn, _ = xp_ref.shape            # parity-split geometry

    def mxu(x, w):                          # bf16 MXU matmul, f32 accumulate
        return jnp.dot(x.astype(jnp.bfloat16), w,
                       preferred_element_type=jnp.float32)

    # ---- conv stack: per-output-row im2col gathered with static VMEM slices;
    #      activations stay in VMEM scratch (never round-trip to HBM) --------
    h_out, w_out = hp - 1, wpn // n - 1     # conv 0: 3x3, stride 2
    w0_taps = [conv_w[0][t] for t in range(9)]
    b0 = conv_b[0][...]
    for ho in range(h_out):
        acc = None
        for dh in range(3):
            for dw in range(3):
                pq = (dh % 2) * 2 + (dw % 2)          # parity plane of this tap
                piece = xp_ref[pq, ho + dh // 2,
                               n * (dw // 2): n * (dw // 2 + w_out), :]
                term = mxu(piece, w0_taps[dh * 3 + dw])
                acc = term if acc is None else acc + term
        conv_scr[0][ho] = jnp.maximum(acc + b0, 0.0)

    for layer in range(1, num_layers):      # remaining convs: 3x3, stride 1
        wl_taps = [conv_w[layer][t] for t in range(9)]
        bl = conv_b[layer][...]
        h_out, w_out = h_out - 2, w_out - 2
        for ho in range(h_out):
            acc = None
            for dh in range(3):
                for dw in range(3):
                    piece = conv_scr[layer - 1][ho + dh,
                                                n * dw: n * (dw + w_out), :]
                    term = mxu(piece, wl_taps[dh * 3 + dw])
                    acc = term if acc is None else acc + term
            conv_scr[layer][ho] = jnp.maximum(acc + bl, 0.0)

    # ---- encoder FC: PyTorch's NCHW flatten + matmul becomes a sum over
    #      spatial positions with pre-permuted weight blocks (no transpose) --
    feat = None
    for ho in range(h_out):
        for wo in range(w_out):
            blk = conv_scr[num_layers - 1][ho, n * wo: n * (wo + 1), :]  # (N, F)
            term = mxu(blk, fcw_ref[ho * w_out + wo])
            feat = term if feat is None else feat + term
    feat = feat + fcb_ref[...]              # output_logits=True -> no tanh

    # ---- LayerNorm (biased variance, like torch.nn.LayerNorm) --------------
    mean = jnp.mean(feat, axis=-1, keepdims=True)
    xc = feat - mean
    var = jnp.mean(xc * xc, axis=-1, keepdims=True)
    feat = xc * jax.lax.rsqrt(var + ln_eps) * lng_ref[...] + lnb_ref[...]

    # ---- trunk MLP (last layer pre-split into mu / log_std halves) ---------
    t = jnp.maximum(mxu(feat, tw1_ref[...]) + tb1_ref[...], 0.0)
    t = jnp.maximum(mxu(t, tw2_ref[...]) + tb2_ref[...], 0.0)
    mu = mxu(t, twmu_ref[...]) + tbmu_ref[...]
    ls = mxu(t, twls_ref[...]) + tbls_ref[...]

    # ---- SAC head: log_std squash/rescale, reparam sample, logprob, squash --
    log_std = jnp.tanh(ls)
    log_std = log_std_min + 0.5 * (log_std_max - log_std_min) * (log_std + 1.0)
    std = jnp.exp(log_std)
    noise = noise_ref[...]
    pi = mu + noise * std
    residual = jnp.sum(-0.5 * noise * noise - log_std, axis=-1, keepdims=True)
    log_pi = residual - 0.5 * math.log(2.0 * math.pi) * action_dim
    mu_t = jnp.tanh(mu)
    pi_t = jnp.tanh(pi)
    log_pi = log_pi - jnp.sum(
        jnp.log(jnp.maximum(1.0 - pi_t * pi_t, 0.0) + 1e-6),
        axis=-1, keepdims=True)

    mu_o[...] = mu_t
    pi_o[...] = pi_t
    lp_o[...] = log_pi
    lstd_o[...] = log_std


# ------------------------------ parameters ---------------------------------

def _dense_init(key, fan_in, shape):
    return (1.0 / jnp.sqrt(float(fan_in))) * jax.random.normal(
        key, shape, dtype=jnp.float32)


def init_actor_params(key, obs_shape, action_dim, hidden_dim, feature_dim,
                      num_layers, num_filters):
    """Parameters in the same logical layout as the PyTorch module."""
    C, H, W = obs_shape
    keys = jax.random.split(key, num_layers + 8)
    ki = iter(keys)
    convs = []
    cin = C
    for _ in range(num_layers):
        w = _dense_init(next(ki), 3 * 3 * cin, (3, 3, cin, num_filters))
        b = jnp.zeros((num_filters,), jnp.float32)
        convs.append((w, b))
        cin = num_filters
    out = (H - 3) // 2 + 1                 # first conv: stride 2
    for _ in range(num_layers - 1):        # remaining convs: stride 1
        out -= 2
    flat = num_filters * out * out
    fc = (_dense_init(next(ki), flat, (flat, feature_dim)),
          jnp.zeros((feature_dim,), jnp.float32))
    ln = (jnp.ones((feature_dim,), jnp.float32),
          jnp.zeros((feature_dim,), jnp.float32))
    trunk = [
        (_dense_init(next(ki), feature_dim, (feature_dim, hidden_dim)),
         jnp.zeros((hidden_dim,), jnp.float32)),
        (_dense_init(next(ki), hidden_dim, (hidden_dim, hidden_dim)),
         jnp.zeros((hidden_dim,), jnp.float32)),
        (_dense_init(next(ki), hidden_dim, (hidden_dim, 2 * action_dim)),
         jnp.zeros((2 * action_dim,), jnp.float32)),
    ]
    return dict(convs=convs, fc=fc, ln=ln, trunk=trunk)


def prepare_actor_params(params, *, obs_shape, num_layers):
    """One-time parameter prep for the fused kernel:
       * fold obs/255 into conv1's weights,
       * flatten conv kernels to per-tap (9, Cin, F) blocks,
       * permute encoder-FC rows from PyTorch's channel-major (C,H,W) flatten
         order to the kernel's position-major (H,W,C) order (kills the
         transpose + HBM round-trip),
       * split the last trunk layer into mu / log_std halves (chunk(2, -1)),
       * cast all matmul weights to bf16 (f32 accumulation in-kernel)."""
    C, H, W = obs_shape
    out = (H - 3) // 2 + 1
    for _ in range(num_layers - 1):
        out -= 2

    convs = []
    for i, (w, b) in enumerate(params["convs"]):
        kh, kw, ci, co = w.shape
        wt = w.reshape(kh * kw, ci, co)
        if i == 0:
            wt = wt * (1.0 / 255.0)                      # fold obs/255 here
        convs.append((wt.astype(jnp.bfloat16),
                      b.reshape(1, co).astype(jnp.float32)))

    fc_w, fc_b = params["fc"]
    nf = params["convs"][-1][0].shape[-1]
    feat = fc_w.shape[-1]
    fc_wp = (fc_w.reshape(nf, out, out, feat)
             .transpose(1, 2, 0, 3)
             .reshape(out * out, nf, feat)).astype(jnp.bfloat16)

    ln_g, ln_b = params["ln"]
    (w1, b1), (w2, b2), (w3, b3) = params["trunk"]
    a_dim = w3.shape[-1] // 2
    trunk = [
        (w1.astype(jnp.bfloat16), b1.reshape(1, -1)),
        (w2.astype(jnp.bfloat16), b2.reshape(1, -1)),
        (w3[:, :a_dim].astype(jnp.bfloat16), b3[:a_dim].reshape(1, -1)),
        (w3[:, a_dim:].astype(jnp.bfloat16), b3[a_dim:].reshape(1, -1)),
    ]
    return dict(
        convs=convs,
        fc=(fc_wp, fc_b.reshape(1, feat)),
        ln=(ln_g.reshape(1, feat), ln_b.reshape(1, feat)),
        trunk=trunk,
    )


# ------------------------------- forward ------------------------------------

def actor_forward(prepped, obs, noise, *, num_layers, action_dim,
                  log_std_min, log_std_max):
    """Returns (mu, pi, log_pi, log_std) == Actor.forward(obs) with
    compute_pi=compute_log_pi=True; `noise` plays torch.randn_like(mu)."""
    # TODO(synk): detach_encoder / detach_mlp are autograd-only flags and
    # self.outputs is a logging dict -- neither changes forward values.
    obs = obs.astype(jnp.float32)
    N, C, H, W = obs.shape
    assert H % 2 == 0 and W % 2 == 0, "even spatial dims expected"

    # Parity-split layout prep: a pure permutation of the raw image (same byte
    # count, NOT a 9x im2col copy).  xp[2*ph+pw, h, w*N+n, c] =
    # obs[n, c, 2h+ph, 2w+pw], so every 3x3/stride-2 window the kernel needs
    # is one contiguous static slice of VMEM.
    nhwc = jnp.transpose(obs, (0, 2, 3, 1))
    splits = []
    for ph in range(2):
        for pw in range(2):
            s = nhwc[:, ph::2, pw::2, :]                      # (N, H/2, W/2, C)
            splits.append(jnp.transpose(s, (1, 2, 0, 3))
                          .reshape(H // 2, (W // 2) * N, C))
    xp = jnp.stack(splits, axis=0)                            # (4, H/2, W/2*N, C)

    fc_w, fc_b = prepped["fc"]
    ln_g, ln_b = prepped["ln"]
    (tw1, tb1), (tw2, tb2), (twmu, tbmu), (twls, tbls) = prepped["trunk"]
    nf = prepped["convs"][0][1].shape[-1]
    feat_dim = fc_b.shape[-1]
    hid = tb1.shape[-1]

    inputs = [xp]
    for (w, b) in prepped["convs"]:
        inputs += [w, b]
    inputs += [fc_w, fc_b, ln_g, ln_b,
               tw1, tb1, tw2, tb2, twmu, tbmu, twls, tbls,
               noise.astype(jnp.float32)]

    # Conv output geometry, VMEM scratch for conv activations, cost estimate.
    h_out, w_out = H // 2 - 1, W // 2 - 1
    scratch = [pltpu.VMEM((h_out, w_out * N, nf), jnp.float32)]
    flops = 2 * N * h_out * w_out * 9 * C * nf
    for _ in range(1, num_layers):
        h_out, w_out = h_out - 2, w_out - 2
        assert h_out > 0 and w_out > 0
        scratch.append(pltpu.VMEM((h_out, w_out * N, nf), jnp.float32))
        flops += 2 * N * h_out * w_out * 9 * nf * nf
    flops += 2 * N * (h_out * w_out * nf * feat_dim + feat_dim * hid
                      + hid * hid + 2 * hid * action_dim)
    transcendentals = N * (5 * action_dim + 2)
    bytes_accessed = sum(math.prod(a.shape) * a.dtype.itemsize for a in inputs)
    bytes_accessed += 4 * N * (3 * action_dim + 1)

    def full_spec(shape):
        nd = len(shape)
        return pl.BlockSpec(shape, lambda i, _nd=nd: (0,) * _nd)

    out_shapes = (
        jax.ShapeDtypeStruct((N, action_dim), jnp.float32),   # mu (squashed)
        jax.ShapeDtypeStruct((N, action_dim), jnp.float32),   # pi (squashed)
        jax.ShapeDtypeStruct((N, 1), jnp.float32),            # log_pi
        jax.ShapeDtypeStruct((N, action_dim), jnp.float32),   # log_std
    )

    kernel = functools.partial(
        _actor_fused_kernel, n_batch=N, num_layers=num_layers,
        action_dim=action_dim, log_std_min=log_std_min,
        log_std_max=log_std_max, ln_eps=1e-5)

    return pl.pallas_call(
        kernel,
        out_shape=out_shapes,
        grid=(1,),
        in_specs=[full_spec(a.shape) for a in inputs],
        out_specs=tuple(full_spec(s.shape) for s in out_shapes),
        scratch_shapes=scratch,
        compiler_params=pltpu.CompilerParams(
            dimension_semantics=("arbitrary",)),
        cost_estimate=pl.CostEstimate(
            flops=int(flops), transcendentals=int(transcendentals),
            bytes_accessed=int(bytes_accessed)),
    )(*inputs)


# --------------------------------- main ------------------------------------

if __name__ == "__main__":
    B, C, H, W = 2, 4, 16, 16
    num_layers, num_filters = 2, 8
    encoder_feature_dim, hidden_dim, action_dim = 32, 32, 4
    log_std_min, log_std_max = -10.0, 2.0

    key = jax.random.PRNGKey(0)
    k_obs, k_noise, k_params = jax.random.split(key, 3)

    obs = jax.random.uniform(k_obs, (B, C, H, W), dtype=jnp.float32,
                             minval=0.0, maxval=255.0)
    # torch.randn_like(mu) equivalent (RNG differs from PyTorch by design)
    noise = jax.random.normal(k_noise, (B, action_dim), dtype=jnp.float32)

    params = init_actor_params(
        k_params, (C, H, W), action_dim, hidden_dim, encoder_feature_dim,
        num_layers, num_filters)
    prepped = prepare_actor_params(
        params, obs_shape=(C, H, W), num_layers=num_layers)

    fwd = jax.jit(functools.partial(
        actor_forward, num_layers=num_layers, action_dim=action_dim,
        log_std_min=log_std_min, log_std_max=log_std_max))

    mu, pi, log_pi, log_std = fwd(prepped, obs, noise)
    for out in (mu, pi, log_pi, log_std):
        jax.block_until_ready(out)

    assert mu.shape == (B, action_dim)
    assert pi.shape == (B, action_dim)
    assert log_pi.shape == (B, 1)
    assert log_std.shape == (B, action_dim)
    assert bool(jnp.all(jnp.isfinite(mu)))
    assert bool(jnp.all(jnp.isfinite(pi)))
    assert bool(jnp.all(jnp.isfinite(log_pi)))
    assert bool(jnp.all(jnp.isfinite(log_std)))
    print("KERNEL_OK")
</pallas_src>

<mosaic_0001>
module attributes {stable_mosaic.version = 11 : i64} {
  func.func @_actor_fused_kernel(%arg0: i32, %arg1: memref<4x8x16x4xf32, #tpu.memory_space<vmem>>, %arg2: memref<9x4x8xbf16, #tpu.memory_space<vmem>>, %arg3: memref<1x8xf32, #tpu.memory_space<vmem>>, %arg4: memref<9x8x8xbf16, #tpu.memory_space<vmem>>, %arg5: memref<1x8xf32, #tpu.memory_space<vmem>>, %arg6: memref<25x8x32xbf16, #tpu.memory_space<vmem>>, %arg7: memref<1x32xf32, #tpu.memory_space<vmem>>, %arg8: memref<1x32xf32, #tpu.memory_space<vmem>>, %arg9: memref<1x32xf32, #tpu.memory_space<vmem>>, %arg10: memref<32x32xbf16, #tpu.memory_space<vmem>>, %arg11: memref<1x32xf32, #tpu.memory_space<vmem>>, %arg12: memref<32x32xbf16, #tpu.memory_space<vmem>>, %arg13: memref<1x32xf32, #tpu.memory_space<vmem>>, %arg14: memref<32x4xbf16, #tpu.memory_space<vmem>>, %arg15: memref<1x4xf32, #tpu.memory_space<vmem>>, %arg16: memref<32x4xbf16, #tpu.memory_space<vmem>>, %arg17: memref<1x4xf32, #tpu.memory_space<vmem>>, %arg18: memref<2x4xf32, #tpu.memory_space<vmem>>, %arg19: memref<2x4xf32, #tpu.memory_space<vmem>>, %arg20: memref<2x4xf32, #tpu.memory_space<vmem>>, %arg21: memref<2x1xf32, #tpu.memory_space<vmem>>, %arg22: memref<2x4xf32, #tpu.memory_space<vmem>>, %arg23: memref<7x14x8xf32, #tpu.memory_space<vmem>>, %arg24: memref<5x10x8xf32, #tpu.memory_space<vmem>>) attributes {dimension_semantics = [#tpu.dimension_semantics<arbitrary>], iteration_bounds = array<i64: 1>, scalar_prefetch = 0 : i64, scratch_operands = 2 : i64, tpu.core_type = #tpu.core_type<tc>, window_params = [{pipeline_mode = #tpu.pipeline_mode<synchronous>, transform_indices = @transform_0, window_bounds = array<i64: 4, 8, 16, 4>}, {pipeline_mode = #tpu.pipeline_mode<synchronous>, transform_indices = @transform_1, window_bounds = array<i64: 9, 4, 8>}, {pipeline_mode = #tpu.pipeline_mode<synchronous>, transform_indices = @transform_2, window_bounds = array<i64: 1, 8>}, {pipeline_mode = #tpu.pipeline_mode<synchronous>, transform_indices = @transform_3, window_bounds = array<i64: 9, 8, 8>}, {pipeline_mode = #tpu.pipeline_mode<synchronous>, transform_indices = @transform_4, window_bounds = array<i64: 1, 8>}, {pipeline_mode = #tpu.pipeline_mode<synchronous>, transform_indices = @transform_5, window_bounds = array<i64: 25, 8, 32>}, {pipeline_mode = #tpu.pipeline_mode<synchronous>, transform_indices = @transform_6, window_bounds = array<i64: 1, 32>}, {pipeline_mode = #tpu.pipeline_mode<synchronous>, transform_indices = @transform_7, window_bounds = array<i64: 1, 32>}, {pipeline_mode = #tpu.pipeline_mode<synchronous>, transform_indices = @transform_8, window_bounds = array<i64: 1, 32>}, {pipeline_mode = #tpu.pipeline_mode<synchronous>, transform_indices = @transform_9, window_bounds = array<i64: 32, 32>}, {pipeline_mode = #tpu.pipeline_mode<synchronous>, transform_indices = @transform_10, window_bounds = array<i64: 1, 32>}, {pipeline_mode = #tpu.pipeline_mode<synchronous>, transform_indices = @transform_11, window_bounds = array<i64: 32, 32>}, {pipeline_mode = #tpu.pipeline_mode<synchronous>, transform_indices = @transform_12, window_bounds = array<i64: 1, 32>}, {pipeline_mode = #tpu.pipeline_mode<synchronous>, transform_indices = @transform_13, window_bounds = array<i64: 32, 4>}, {pipeline_mode = #tpu.pipeline_mode<synchronous>, transform_indices = @transform_14, window_bounds = array<i64: 1, 4>}, {pipeline_mode = #tpu.pipeline_mode<synchronous>, transform_indices = @transform_15, window_bounds = array<i64: 32, 4>}, {pipeline_mode = #tpu.pipeline_mode<synchronous>, transform_indices = @transform_16, window_bounds = array<i64: 1, 4>}, {pipeline_mode = #tpu.pipeline_mode<synchronous>, transform_indices = @transform_17, window_bounds = array<i64: 2, 4>}, {pipeline_mode = #tpu.pipeline_mode<synchronous>, transform_indices = @transform_18, window_bounds = array<i64: 2, 4>}, {pipeline_mode = #tpu.pipeline_mode<synchronous>, transform_indices = @transform_19, window_bounds = array<i64: 2, 4>}, {pipeline_mode = #tpu.pipeline_mode<synchronous>, transform_indices = @transform_20, window_bounds = array<i64: 2, 1>}, {pipeline_mode = #tpu.pipeline_mode<synchronous>, transform_indices = @transform_21, window_bounds = array<i64: 2, 4>}]} {
    %c0 = arith.constant 0 : index
    %c0_0 = arith.constant 0 : index
    %c0_1 = arith.constant 0 : index
    %0 = vector.load %arg2[%c0, %c0_0, %c0_1] : memref<9x4x8xbf16, #tpu.memory_space<vmem>>, vector<1x4x8xbf16>
    %1 = vector.shape_cast %0 : vector<1x4x8xbf16> to vector<4x8xbf16>
    %c1 = arith.constant 1 : index
    %c0_2 = arith.constant 0 : index
    %c0_3 = arith.constant 0 : index
    %2 = vector.load %arg2[%c1, %c0_2, %c0_3] : memref<9x4x8xbf16, #tpu.memory_space<vmem>>, vector<1x4x8xbf16>
    %3 = vector.shape_cast %2 : vector<1x4x8xbf16> to vector<4x8xbf16>
    %c2 = arith.constant 2 : index
    %c0_4 = arith.constant 0 : index
    %c0_5 = arith.constant 0 : index
    %4 = vector.load %arg2[%c2, %c0_4, %c0_5] : memref<9x4x8xbf16, #tpu.memory_space<vmem>>, vector<1x4x8xbf16>
    %5 = vector.shape_cast %4 : vector<1x4x8xbf16> to vector<4x8xbf16>
    %c3 = arith.constant 3 : index
    %c0_6 = arith.constant 0 : index
    %c0_7 = arith.constant 0 : index
    %6 = vector.load %arg2[%c3, %c0_6, %c0_7] : memref<9x4x8xbf16, #tpu.memory_space<vmem>>, vector<1x4x8xbf16>
    %7 = vector.shape_cast %6 : vector<1x4x8xbf16> to vector<4x8xbf16>
    %c4 = arith.constant 4 : index
    %c0_8 = arith.constant 0 : index
    %c0_9 = arith.constant 0 : index
    %8 = vector.load %arg2[%c4, %c0_8, %c0_9] : memref<9x4x8xbf16, #tpu.memory_space<vmem>>, vector<1x4x8xbf16>
    %9 = vector.shape_cast %8 : vector<1x4x8xbf16> to vector<4x8xbf16>
    %c5 = arith.constant 5 : index
    %c0_10 = arith.constant 0 : index
    %c0_11 = arith.constant 0 : index
    %10 = vector.load %arg2[%c5, %c0_10, %c0_11] : memref<9x4x8xbf16, #tpu.memory_space<vmem>>, vector<1x4x8xbf16>
    %11 = vector.shape_cast %10 : vector<1x4x8xbf16> to vector<4x8xbf16>
    %c6 = arith.constant 6 : index
    %c0_12 = arith.constant 0 : index
    %c0_13 = arith.constant 0 : index
    %12 = vector.load %arg2[%c6, %c0_12, %c0_13] : memref<9x4x8xbf16, #tpu.memory_space<vmem>>, vector<1x4x8xbf16>
    %13 = vector.shape_cast %12 : vector<1x4x8xbf16> to vector<4x8xbf16>
    %c7 = arith.constant 7 : index
    %c0_14 = arith.constant 0 : index
    %c0_15 = arith.constant 0 : index
    %14 = vector.load %arg2[%c7, %c0_14, %c0_15] : memref<9x4x8xbf16, #tpu.memory_space<vmem>>, vector<1x4x8xbf16>
    %15 = vector.shape_cast %14 : vector<1x4x8xbf16> to vector<4x8xbf16>
    %c8 = arith.constant 8 : index
    %c0_16 = arith.constant 0 : index
    %c0_17 = arith.constant 0 : index
    %16 = vector.load %arg2[%c8, %c0_16, %c0_17] : memref<9x4x8xbf16, #tpu.memory_space<vmem>>, vector<1x4x8xbf16>
    %17 = vector.shape_cast %16 : vector<1x4x8xbf16> to vector<4x8xbf16>
    %c0_18 = arith.constant 0 : index
    %c0_19 = arith.constant 0 : index
    %18 = vector.load %arg3[%c0_18, %c0_19] : memref<1x8xf32, #tpu.memory_space<vmem>>, vector<1x8xf32>
    %c0_20 = arith.constant 0 : index
    %c0_21 = arith.constant 0 : index
    %c0_22 = arith.constant 0 : index
    %c0_23 = arith.constant 0 : index
    %19 = vector.load %arg1[%c0_20, %c0_21, %c0_22, %c0_23] : memref<4x8x16x4xf32, #tpu.memory_space<vmem>>, vector<1x1x14x4xf32>
    %20 = vector.shape_cast %19 : vector<1x1x14x4xf32> to vector<14x4xf32>
    %21 = arith.truncf %20 : vector<14x4xf32> to vector<14x4xbf16>
    %cst = arith.constant dense<0.000000e+00> : vector<14x8xf32>
    %22 = tpu.matmul %21, %1, %cst {dimension_numbers = #tpu.dot_dimension_numbers<[1], [0], [0], [1], [0, 0, 1, 1], [], []>} : vector<14x4xbf16>, vector<4x8xbf16>, vector<14x8xf32> -> vector<14x8xf32>
    %c1_24 = arith.constant 1 : index
    %c0_25 = arith.constant 0 : index
    %c0_26 = arith.constant 0 : index
    %c0_27 = arith.constant 0 : index
    %23 = vector.load %arg1[%c1_24, %c0_25, %c0_26, %c0_27] : memref<4x8x16x4xf32, #tpu.memory_space<vmem>>, vector<1x1x14x4xf32>
    %24 = vector.shape_cast %23 : vector<1x1x14x4xf32> to vector<14x4xf32>
    %25 = arith.truncf %24 : vector<14x4xf32> to vector<14x4xbf16>
    %cst_28 = arith.constant dense<0.000000e+00> : vector<14x8xf32>
    %26 = tpu.matmul %25, %3, %cst_28 {dimension_numbers = #tpu.dot_dimension_numbers<[1], [0], [0], [1], [0, 0, 1, 1], [], []>} : vector<14x4xbf16>, vector<4x8xbf16>, vector<14x8xf32> -> vector<14x8xf32>
    %27 = arith.addf %22, %26 : vector<14x8xf32>
    %c0_29 = arith.constant 0 : index
    %c0_30 = arith.constant 0 : index
    %c2_31 = arith.constant 2 : index
    %c0_32 = arith.constant 0 : index
    %28 = vector.load %arg1[%c0_29, %c0_30, %c2_31, %c0_32] : memref<4x8x16x4xf32, #tpu.memory_space<vmem>>, vector<1x1x14x4xf32>
    %29 = vector.shape_cast %28 : vector<1x1x14x4xf32> to vector<14x4xf32>
    %30 = arith.truncf %29 : vector<14x4xf32> to vector<14x4xbf16>
    %cst_33 = arith.constant dense<0.000000e+00> : vector<14x8xf32>
    %31 = tpu.matmul %30, %5, %cst_33 {dimension_numbers = #tpu.dot_dimension_numbers<[1], [0], [0], [1], [0, 0, 1, 1], [], []>} : vector<14x4xbf16>, vector<4x8xbf16>, vector<14x8xf32> -> vector<14x8xf32>
    %32 = arith.addf %27, %31 : vector<14x8xf32>
    %c2_34 = arith.constant 2 : index
    %c0_35 = arith.constant 0 : index
    %c0_36 = arith.constant 0 : index
    %c0_37 = arith.constant 0 : index
    %33 = vector.load %arg1[%c2_34, %c0_35, %c0_36, %c0_37] : memref<4x8x16x4xf32, #tpu.memory_space<vmem>>, vector<1x1x14x4xf32>
    %34 = vector.shape_cast %33 : vector<1x1x14x4xf32> to vector<14x4xf32>
    %35 = arith.truncf %34 : vector<14x4xf32> to vector<14x4xbf16>
    %cst_38 = arith.constant dense<0.000000e+00> : vector<14x8xf32>
    %36 = tpu.matmul %35, %7, %cst_38 {dimension_numbers = #tpu.dot_dimension_numbers<[1], [0], [0], [1], [0, 0, 1, 1], [], []>} : vector<14x4xbf16>, vector<4x8xbf16>, vector<14x8xf32> -> vector<14x8xf32>
    %37 = arith.addf %32, %36 : vector<14x8xf32>
    %c3_39 = arith.constant 3 : index
    %c0_40 = arith.constant 0 : index
    %c0_41 = arith.constant 0 : index
    %c0_42 = arith.constant 0 : index
    %38 = vector.load %arg1[%c3_39, %c0_40, %c0_41, %c0_42] : memref<4x8x16x4xf32, #tpu.memory_space<vmem>>, vector<1x1x14x4xf32>
    %39 = vector.shape_cast %38 : vector<1x1x14x4xf32> to vector<14x4xf32>
    %40 = arith.truncf %39 : vector<14x4xf32> to vector<14x4xbf16>
    %cst_43 = arith.constant dense<0.000000e+00> : vector<14x8xf32>
    %41 = tpu.matmul %40, %9, %cst_43 {dimension_numbers = #tpu.dot_dimension_numbers<[1], [0], [0], [1], [0, 0, 1, 1], [], []>} : vector<14x4xbf16>, vector<4x8xbf16>, vector<14x8xf32> -> vector<14x8xf32>
    %42 = arith.addf %37, %41 : vector<14x8xf32>
    %c2_44 = arith.constant 2 : index
    %c0_45 = arith.constant 0 : index
    %c2_46 = arith.constant 2 : index
    %c0_47 = arith.constant 0 : index
    %43 = vector.load %arg1[%c2_44, %c0_45, %c2_46, %c0_47] : memref<4x8x16x4xf32, #tpu.memory_space<vmem>>, vector<1x1x14x4xf32>
    %44 = vector.shape_cast %43 : vector<1x1x14x4xf32> to vector<14x4xf32>
    %45 = arith.truncf %44 : vector<14x4xf32> to vector<14x4xbf16>
    %cst_48 = arith.constant dense<0.000000e+00> : vector<14x8xf32>
    %46 = tpu.matmul %45, %11, %cst_48 {dimension_numbers = #tpu.dot_dimension_numbers<[1], [0], [0], [1], [0, 0, 1, 1], [], []>} : vector<14x4xbf16>, vector<4x8xbf16>, vector<14x8xf32> -> vector<14x8xf32>
    %47 = arith.addf %42, %46 : vector<14x8xf32>
    %c0_49 = arith.constant 0 : index
    %c1_50 = arith.constant 1 : index
    %c0_51 = arith.constant 0 : index
    %c0_52 = arith.constant 0 : index
    %48 = vector.load %arg1[%c0_49, %c1_50, %c0_51, %c0_52] : memref<4x8x16x4xf32, #tpu.memory_space<vmem>>, vector<1x1x14x4xf32>
    %49 = vector.shape_cast %48 : vector<1x1x14x4xf32> to vector<14x4xf32>
    %50 = arith.truncf %49 : vector<14x4xf32> to vector<14x4xbf16>
    %cst_53 = arith.constant dense<0.000000e+00> : vector<14x8xf32>
    %51 = tpu.matmul %50, %13, %cst_53 {dimension_numbers = #tpu.dot_dimension_numbers<[1], [0], [0], [1], [0, 0, 1, 1], [], []>} : vector<14x4xbf16>, vector<4x8xbf16>, vector<14x8xf32> -> vector<14x8xf32>
    %52 = arith.addf %47, %51 : vector<14x8xf32>
    %c1_54 = arith.constant 1 : index
    %c1_55 = arith.constant 1 : index
    %c0_56 = arith.constant 0 : index
    %c0_57 = arith.constant 0 : index
    %53 = vector.load %arg1[%c1_54, %c1_55, %c0_56, %c0_57] : memref<4x8x16x4xf32, #tpu.memory_space<vmem>>, vector<1x1x14x4xf32>
    %54 = vector.shape_cast %53 : vector<1x1x14x4xf32> to vector<14x4xf32>
    %55 = arith.truncf %54 : vector<14x4xf32> to vector<14x4xbf16>
    %cst_58 = arith.constant dense<0.000000e+00> : vector<14x8xf32>
    %56 = tpu.matmul %55, %15, %cst_58 {dimension_numbers = #tpu.dot_dimension_numbers<[1], [0], [0], [1], [0, 0, 1, 1], [], []>} : vector<14x4xbf16>, vector<4x8xbf16>, vector<14x8xf32> -> vector<14x8xf32>
    %57 = arith.addf %52, %56 : vector<14x8xf32>
    %c0_59 = arith.constant 0 : index
    %c1_60 = arith.constant 1 : index
    %c2_61 = arith.constant 2 : index
    %c0_62 = arith.constant 0 : index
    %58 = vector.load %arg1[%c0_59, %c1_60, %c2_61, %c0_62] : memref<4x8x16x4xf32, #tpu.memory_space<vmem>>, vector<1x1x14x4xf32>
    %59 = vector.shape_cast %58 : vector<1x1x14x4xf32> to vector<14x4xf32>
    %60 = arith.truncf %59 : vector<14x4xf32> to vector<14x4xbf16>
    %cst_63 = arith.constant dense<0.000000e+00> : vector<14x8xf32>
    %61 = tpu.matmul %60, %17, %cst_63 {dimension_numbers = #tpu.dot_dimension_numbers<[1], [0], [0], [1], [0, 0, 1, 1], [], []>} : vector<14x4xbf16>, vector<4x8xbf16>, vector<14x8xf32> -> vector<14x8xf32>
    %62 = arith.addf %57, %61 : vector<14x8xf32>
    %63 = vector.broadcast %18 : vector<1x8xf32> to vector<14x8xf32>
    %64 = arith.addf %62, %63 : vector<14x8xf32>
    %cst_64 = arith.constant 0.000000e+00 : f32
    %65 = vector.broadcast %cst_64 : f32 to vector<14x8xf32>
    %66 = arith.maximumf %64, %65 : vector<14x8xf32>
    %c0_65 = arith.constant 0 : index
    %c0_66 = arith.constant 0 : index
    %c0_67 = arith.constant 0 : index
    %67 = vector.load %arg23[%c0_65, %c0_66, %c0_67] : memref<7x14x8xf32, #tpu.memory_space<vmem>>, vector<1x14x8xf32>
    %68 = vector.shape_cast %67 : vector<1x14x8xf32> to vector<14x8xf32>
    %69 = vector.shape_cast %66 : vector<14x8xf32> to vector<1x14x8xf32>
    tpu.vector_store %arg23[%c0_65, %c0_66, %c0_67], %69 {strides = array<i32>} : memref<7x14x8xf32, #tpu.memory_space<vmem>>, vector<1x14x8xf32>,
    %c0_68 = arith.constant 0 : index
    %c1_69 = arith.constant 1 : index
    %c0_70 = arith.constant 0 : index
    %c0_71 = arith.constant 0 : index
    %70 = vector.load %arg1[%c0_68, %c1_69, %c0_70, %c0_71] : memref<4x8x16x4xf32, #tpu.memory_space<vmem>>, vector<1x1x14x4xf32>
    %71 = vector.shape_cast %70 : vector<1x1x14x4xf32> to vector<14x4xf32>
    %72 = arith.truncf %71 : vector<14x4xf32> to vector<14x4xbf16>
    %cst_72 = arith.constant dense<0.000000e+00> : vector<14x8xf32>
    %73 = tpu.matmul %72, %1, %cst_72 {dimension_numbers = #tpu.dot_dimension_numbers<[1], [0], [0], [1], [0, 0, 1, 1], [], []>} : vector<14x4xbf16>, vector<4x8xbf16>, vector<14x8xf32> -> vector<14x8xf32>
    %c1_73 = arith.constant 1 : index
    %c1_74 = arith.constant 1 : index
    %c0_75 = arith.constant 0 : index
    %c0_76 = arith.constant 0 : index
    %74 = vector.load %arg1[%c1_73, %c1_74, %c0_75, %c0_76] : memref<4x8x16x4xf32, #tpu.memory_space<vmem>>, vector<1x1x14x4xf32>
    %75 = vector.shape_cast %74 : vector<1x1x14x4xf32> to vector<14x4xf32>
    %76 = arith.truncf %75 : vector<14x4xf32> to vector<14x4xbf16>
    %cst_77 = arith.constant dense<0.000000e+00> : vector<14x8xf32>
    %77 = tpu.matmul %76, %3, %cst_77 {dimension_numbers = #tpu.dot_dimension_numbers<[1], [0], [0], [1], [0, 0, 1, 1], [], []>} : vector<14x4xbf16>, vector<4x8xbf16>, vector<14x8xf32> -> vector<14x8xf32>
    %78 = arith.addf %73, %77 : vector<14x8xf32>
    %c0_78 = arith.constant 0 : index
    %c1_79 = arith.constant 1 : index
    %c2_80 = arith.constant 2 : index
    %c0_81 = arith.constant 0 : index
    %79 = vector.load %arg1[%c0_78, %c1_79, %c2_80, %c0_81] : memref<4x8x16x4xf32, #tpu.memory_space<vmem>>, vector<1x1x14x4xf32>
    %80 = vector.shape_cast %79 : vector<1x1x14x4xf32> to vector<14x4xf32>
    %81 = arith.truncf %80 : vector<14x4xf32> to vector<14x4xbf16>
    %cst_82 = arith.constant dense<0.000000e+00> : vector<14x8xf32>
    %82 = tpu.matmul %81, %5, %cst_82 {dimension_numbers = #tpu.dot_dimension_numbers<[1], [0], [0], [1], [0, 0, 1, 1], [], []>} : vector<14x4xbf16>, vector<4x8xbf16>, vector<14x8xf32> -> vector<14x8xf32>
    %83 = arith.addf %78, %82 : vector<14x8xf32>
    %c2_83 = arith.constant 2 : index
    %c1_84 = arith.constant 1 : index
    %c0_85 = arith.constant 0 : index
    %c0_86 = arith.constant 0 : index
    %84 = vector.load %arg1[%c2_83, %c1_84, %c0_85, %c0_86] : memref<4x8x16x4xf32, #tpu.memory_space<vmem>>, vector<1x1x14x4xf32>
    %85 = vector.shape_cast %84 : vector<1x1x14x4xf32> to vector<14x4xf32>
    %86 = arith.truncf %85 : vector<14x4xf32> to vector<14x4xbf16>
    %cst_87 = arith.constant dense<0.000000e+00> : vector<14x8xf32>
    %87 = tpu.matmul %86, %7, %cst_87 {dimension_numbers = #tpu.dot_dimension_numbers<[1], [0], [0], [1], [0, 0, 1, 1], [], []>} : vector<14x4xbf16>, vector<4x8xbf16>, vector<14x8xf32> -> vector<14x8xf32>
    %88 = arith.addf %83, %87 : vector<14x8xf32>
    %c3_88 = arith.constant 3 : index
    %c1_89 = arith.constant 1 : index
    %c0_90 = arith.constant 0 : index
    %c0_91 = arith.constant 0 : index
    %89 = vector.load %arg1[%c3_88, %c1_89, %c0_90, %c0_91] : memref<4x8x16x4xf32, #tpu.memory_space<vmem>>, vector<1x1x14x4xf32>
    %90 = vector.shape_cast %89 : vector<1x1x14x4xf32> to vector<14x4xf32>
    %91 = arith.truncf %90 : vector<14x4xf32> to vector<14x4xbf16>
    %cst_92 = arith.constant dense<0.000000e+00> : vector<14x8xf32>
    %92 = tpu.matmul %91, %9, %cst_92 {dimension_numbers = #tpu.dot_dimension_numbers<[1], [0], [0], [1], [0, 0, 1, 1], [], []>} : vector<14x4xbf16>, vector<4x8xbf16>, vector<14x8xf32> -> vector<14x8xf32>
    %93 = arith.addf %88, %92 : vector<14x8xf32>
    %c2_93 = arith.constant 2 : index
    %c1_94 = arith.constant 1 : index
    %c2_95 = arith.constant 2 : index
    %c0_96 = arith.constant 0 : index
    %94 = vector.load %arg1[%c2_93, %c1_94, %c2_95, %c0_96] : memref<4x8x16x4xf32, #tpu.memory_space<vmem>>, vector<1x1x14x4xf32>
    %95 = vector.shape_cast %94 : vector<1x1x14x4xf32> to vector<14x4xf32>
    %96 = arith.truncf %95 : vector<14x4xf32> to vector<14x4xbf16>
    %cst_97 = arith.constant dense<0.000000e+00> : vector<14x8xf32>
    %97 = tpu.matmul %96, %11, %cst_97 {dimension_numbers = #tpu.dot_dimension_numbers<[1], [0], [0], [1], [0, 0, 1, 1], [], []>} : vector<14x4xbf16>, vector<4x8xbf16>, vector<14x8xf32> -> vector<14x8xf32>
    %98 = arith.addf %93, %97 : vector<14x8xf32>
    %c0_98 = arith.constant 0 : index
    %c2_99 = arith.constant 2 : index
    %c0_100 = arith.constant 0 : index
    %c0_101 = arith.constant 0 : index
    %99 = vector.load %arg1[%c0_98, %c2_99, %c0_100, %c0_101] : memref<4x8x16x4xf32, #tpu.memory_space<vmem>>, vector<1x1x14x4xf32>
    %100 = vector.shape_cast %99 : vector<1x1x14x4xf32> to vector<14x4xf32>
    %101 = arith.truncf %100 : vector<14x4xf32> to vector<14x4xbf16>
    %cst_102 = arith.constant dense<0.000000e+00> : vector<14x8xf32>
    %102 = tpu.matmul %101, %13, %cst_102 {dimension_numbers = #tpu.dot_dimension_numbers<[1], [0], [0], [1], [0, 0, 1, 1], [], []>} : vector<14x4xbf16>, vector<4x8xbf16>, vector<14x8xf32> -> vector<14x8xf32>
    %103 = arith.addf %98, %102 : vector<14x8xf32>
    %c1_103 = arith.constant 1 : index
    %c2_104 = arith.constant 2 : index
    %c0_105 = arith.constant 0 : index
    %c0_106 = arith.constant 0 : index
    %104 = vector.load %arg1[%c1_103, %c2_104, %c0_105, %c0_106] : memref<4x8x16x4xf32, #tpu.memory_space<vmem>>, vector<1x1x14x4xf32>
    %105 = vector.shape_cast %104 : vector<1x1x14x4xf32> to vector<14x4xf32>
    %106 = arith.truncf %105 : vector<14x4xf32> to vector<14x4xbf16>
    %cst_107 = arith.constant dense<0.000000e+00> : vector<14x8xf32>
    %107 = tpu.matmul %106, %15, %cst_107 {dimension_numbers = #tpu.dot_dimension_numbers<[1], [0], [0], [1], [0, 0, 1, 1], [], []>} : vector<14x4xbf16>, vector<4x8xbf16>, vector<14x8xf32> -> vector<14x8xf32>
    %108 = arith.addf %103, %107 : vector<14x8xf32>
    %c0_108 = arith.constant 0 : index
    %c2_109 = arith.constant 2 : index
    %c2_110 = arith.constant 2 : index
    %c0_111 = arith.constant 0 : index
    %109 = vector.load %arg1[%c0_108, %c2_109, %c2_110, %c0_111] : memref<4x8x16x4xf32, #tpu.memory_space<vmem>>, vector<1x1x14x4xf32>
    %110 = vector.shape_cast %109 : vector<1x1x14x4xf32> to vector<14x4xf32>
    %111 = arith.truncf %110 : vector<14x4xf32> to vector<14x4xbf16>
    %cst_112 = arith.constant dense<0.000000e+00> : vector<14x8xf32>
    %112 = tpu.matmul %111, %17, %cst_112 {dimension_numbers = #tpu.dot_dimension_numbers<[1], [0], [0], [1], [0, 0, 1, 1], [], []>} : vector<14x4xbf16>, vector<4x8xbf16>, vector<14x8xf32> -> vector<14x8xf32>
    %113 = arith.addf %108, %112 : vector<14x8xf32>
    %114 = vector.broadcast %18 : vector<1x8xf32> to vector<14x8xf32>
    %115 = arith.addf %113, %114 : vector<14x8xf32>
    %cst_113 = arith.constant 0.000000e+00 : f32
    %116 = vector.broadcast %cst_113 : f32 to vector<14x8xf32>
    %117 = arith.maximumf %115, %116 : vector<14x8xf32>
    %c1_114 = arith.constant 1 : index
    %c0_115 = arith.constant 0 : index
    %c0_116 = arith.constant 0 : index
    %118 = vector.load %arg23[%c1_114, %c0_115, %c0_116] : memref<7x14x8xf32, #tpu.memory_space<vmem>>, vector<1x14x8xf32>
    %119 = vector.shape_cast %118 : vector<1x14x8xf32> to vector<14x8xf32>
    %120 = vector.shape_cast %117 : vector<14x8xf32> to vector<1x14x8xf32>
    tpu.vector_store %arg23[%c1_114, %c0_115, %c0_116], %120 {strides = array<i32>} : memref<7x14x8xf32, #tpu.memory_space<vmem>>, vector<1x14x8xf32>,
    %c0_117 = arith.constant 0 : index
    %c2_118 = arith.constant 2 : index
    %c0_119 = arith.constant 0 : index
    %c0_120 = arith.constant 0 : index
    %121 = vector.load %arg1[%c0_117, %c2_118, %c0_119, %c0_120] : memref<4x8x16x4xf32, #tpu.memory_space<vmem>>, vector<1x1x14x4xf32>
    %122 = vector.shape_cast %121 : vector<1x1x14x4xf32> to vector<14x4xf32>
    %123 = arith.truncf %122 : vector<14x4xf32> to vector<14x4xbf16>
    %cst_121 = arith.constant dense<0.000000e+00> : vector<14x8xf32>
    %124 = tpu.matmul %123, %1, %cst_121 {dimension_numbers = #tpu.dot_dimension_numbers<[1], [0], [0], [1], [0, 0, 1, 1], [], []>} : vector<14x4xbf16>, vector<4x8xbf16>, vector<14x8xf32> -> vector<14x8xf32>
    %c1_122 = arith.constant 1 : index
    %c2_123 = arith.constant 2 : index
    %c0_124 = arith.constant 0 : index
    %c0_125 = arith.constant 0 : index
    %125 = vector.load %arg1[%c1_122, %c2_123, %c0_124, %c0_125] : memref<4x8x16x4xf32, #tpu.memory_space<vmem>>, vector<1x1x14x4xf32>
    %126 = vector.shape_cast %125 : vector<1x1x14x4xf32> to vector<14x4xf32>
    %127 = arith.truncf %126 : vector<14x4xf32> to vector<14x4xbf16>
    %cst_126 = arith.constant dense<0.000000e+00> : vector<14x8xf32>
    %128 = tpu.matmul %127, %3, %cst_126 {dimension_numbers = #tpu.dot_dimension_numbers<[1], [0], [0], [1], [0, 0, 1, 1], [], []>} : vector<14x4xbf16>, vector<4x8xbf16>, vector<14x8xf32> -> vector<14x8xf32>
    %129 = arith.addf %124, %128 : vector<14x8xf32>
    %c0_127 = arith.constant 0 : index
    %c2_128 = arith.constant 2 : index
    %c2_129 = arith.constant 2 : index
    %c0_130 = arith.constant 0 : index
    %130 = vector.load %arg1[%c0_127, %c2_128, %c2_129, %c0_130] : memref<4x8x16x4xf32, #tpu.memory_space<vmem>>, vector<1x1x14x4xf32>
    %131 = vector.shape_cast %130 : vector<1x1x14x4xf32> to vector<14x4xf32>
    %132 = arith.truncf %131 : vector<14x4xf32> to vector<14x4xbf16>
    %cst_131 = arith.constant dense<0.000000e+00> : vector<14x8xf32>
    %133 = tpu.matmul %132, %5, %cst_131 {dimension_numbers = #tpu.dot_dimension_numbers<[1], [0], [0], [1], [0, 0, 1, 1], [], []>} : vector<14x4xbf16>, vector<4x8xbf16>, vector<14x8xf32> -> vector<14x8xf32>
    %134 = arith.addf %129, %133 : vector<14x8xf32>
    %c2_132 = arith.constant 2 : index
    %c2_133 = arith.constant 2 : index
    %c0_134 = arith.constant 0 : index
    %c0_135 = arith.constant 0 : index
    %135 = vector.load %arg1[%c2_132, %c2_133, %c0_134, %c0_135] : memref<4x8x16x4xf32, #tpu.memory_space<vmem>>, vector<1x1x14x4xf32>
    %136 = vector.shape_cast %135 : vector<1x1x14x4xf32> to vector<14x4xf32>
    %137 = arith.truncf %136 : vector<14x4xf32> to vector<14x4xbf16>
    %cst_136 = arith.constant dense<0.000000e+00> : vector<14x8xf32>
    %138 = tpu.matmul %137, %7, %cst_136 {dimension_numbers = #tpu.dot_dimension_numbers<[1], [0], [0], [1], [0, 0, 1, 1], [], []>} : vector<14x4xbf16>, vector<4x8xbf16>, vector<14x8xf32> -> vector<14x8xf32>
    %139 = arith.addf %134, %138 : vector<14x8xf32>
    %c3_137 = arith.constant 3 : index
    %c2_138 = arith.constant 2 : index
    %c0_139 = arith.constant 0 : index
    %c0_140 = arith.constant 0 : index
    %140 = vector.load %arg1[%c3_137, %c2_138, %c0_139, %c0_140] : memref<4x8x16x4xf32, #tpu.memory_space<vmem>>, vector<1x1x14x4xf32>
    %141 = vector.shape_cast %140 : vector<1x1x14x4xf32> to vector<14x4xf32>
    %142 = arith.truncf %141 : vector<14x4xf32> to vector<14x4xbf16>
    %cst_141 = arith.constant dense<0.000000e+00> : vector<14x8xf32>
    %143 = tpu.matmul %142, %9, %cst_141 {dimension_numbers = #tpu.dot_dimension_numbers<[1], [0], [0], [1], [0, 0, 1, 1], [], []>} : vector<14x4xbf16>, vector<4x8xbf16>, vector<14x8xf32> -> vector<14x8xf32>
    %144 = arith.addf %139, %143 : vector<14x8xf32>
    %c2_142 = arith.constant 2 : index
    %c2_143 = arith.constant 2 : index
    %c2_144 = arith.constant 2 : index
    %c0_145 = arith.constant 0 : index
    %145 = vector.load %arg1[%c2_142, %c2_143, %c2_144, %c0_145] : memref<4x8x16x4xf32, #tpu.memory_space<vmem>>, vector<1x1x14x4xf32>
    %146 = vector.shape_cast %145 : vector<1x1x14x4xf32> to vector<14x4xf32>
    %147 = arith.truncf %146 : vector<14x4xf32> to vector<14x4xbf16>
    %cst_146 = arith.constant dense<0.000000e+00> : vector<14x8xf32>
    %148 = tpu.matmul %147, %11, %cst_146 {dimension_numbers = #tpu.dot_dimension_numbers<[1], [0], [0], [1], [0, 0, 1, 1], [], []>} : vector<14x4xbf16>, vector<4x8xbf16>, vector<14x8xf32> -> vector<14x8xf32>
    %149 = arith.addf %144, %148 : vector<14x8xf32>
    %c0_147 = arith.constant 0 : index
    %c3_148 = arith.constant 3 : index
    %c0_149 = arith.constant 0 : index
    %c0_150 = arith.constant 0 : index
    %150 = vector.load %arg1[%c0_147, %c3_148, %c0_149, %c0_150] : memref<4x8x16x4xf32, #tpu.memory_space<vmem>>, vector<1x1x14x4xf32>
    %151 = vector.shape_cast %150 : vector<1x1x14x4xf32> to vector<14x4xf32>
    %152 = arith.truncf %151 : vector<14x4xf32> to vector<14x4xbf16>
    %cst_151 = arith.constant dense<0.000000e+00> : vector<14x8xf32>
    %153 = tpu.matmul %152, %13, %cst_151 {dimension_numbers = #tpu.dot_dimension_numbers<[1], [0], [0], [1], [0, 0, 1, 1], [], []>} : vector<14x4xbf16>, vector<4x8xbf16>, vector<14x8xf32> -> vector<14x8xf32>
    %154 = arith.addf %149, %153 : vector<14x8xf32>
    %c1_152 = arith.constant 1 : index
    %c3_153 = arith.constant 3 : index
    %c0_154 = arith.constant 0 : index
    %c0_155 = arith.constant 0 : index
    %155 = vector.load %arg1[%c1_152, %c3_153, %c0_154, %c0_155] : memref<4x8x16x4xf32, #tpu.memory_space<vmem>>, vector<1x1x14x4xf32>
    %156 = vector.shape_cast %155 : vector<1x1x14x4xf32> to vector<14x4xf32>
    %157 = arith.truncf %156 : vector<14x4xf32> to vector<14x4xbf16>
    %cst_156 = arith.constant dense<0.000000e+00> : vector<14x8xf32>
    %158 = tpu.matmul %157, %15, %cst_156 {dimension_numbers = #tpu.dot_dimension_numbers<[1], [0], [0], [1], [0, 0, 1, 1], [], []>} : vector<14x4xbf16>, vector<4x8xbf16>, vector<14x8xf32> -> vector<14x8xf32>
    %159 = arith.addf %154, %158 : vector<14x8xf32>
    %c0_157 = arith.constant 0 : index
    %c3_158 = arith.constant 3 : index
    %c2_159 = arith.constant 2 : index
    %c0_160 = arith.constant 0 : index
    %160 = vector.load %arg1[%c0_157, %c3_158, %c2_159, %c0_160] : memref<4x8x16x4xf32, #tpu.memory_space<vmem>>, vector<1x1x14x4xf32>
    %161 = vector.shape_cast %160 : vector<1x1x14x4xf32> to vector<14x4xf32>
    %162 = arith.truncf %161 : vector<14x4xf32> to vector<14x4xbf16>
    %cst_161 = arith.constant dense<0.000000e+00> : vector<14x8xf32>
    %163 = tpu.matmul %162, %17, %cst_161 {dimension_numbers = #tpu.dot_dimension_numbers<[1], [0], [0], [1], [0, 0, 1, 1], [], []>} : vector<14x4xbf16>, vector<4x8xbf16>, vector<14x8xf32> -> vector<14x8xf32>
    %164 = arith.addf %159, %163 : vector<14x8xf32>
    %165 = vector.broadcast %18 : vector<1x8xf32> to vector<14x8xf32>
    %166 = arith.addf %164, %165 : vector<14x8xf32>
    %cst_162 = arith.constant 0.000000e+00 : f32
    %167 = vector.broadcast %cst_162 : f32 to vector<14x8xf32>
    %168 = arith.maximumf %166, %167 : vector<14x8xf32>
    %c2_163 = arith.constant 2 : index
    %c0_164 = arith.constant 0 : index
    %c0_165 = arith.constant 0 : index
    %169 = vector.load %arg23[%c2_163, %c0_164, %c0_165] : memref<7x14x8xf32, #tpu.memory_space<vmem>>, vector<1x14x8xf32>
    %170 = vector.shape_cast %169 : vector<1x14x8xf32> to vector<14x8xf32>
    %171 = vector.shape_cast %168 : vector<14x8xf32> to vector<1x14x8xf32>
    tpu.vector_store %arg23[%c2_163, %c0_164, %c0_165], %171 {strides = array<i32>} : memref<7x14x8xf32, #tpu.memory_space<vmem>>, vector<1x14x8xf32>,
    %c0_166 = arith.constant 0 : index
    %c3_167 = arith.constant 3 : index
    %c0_168 = arith.constant 0 : index
    %c0_169 = arith.constant 0 : index
    %172 = vector.load %arg1[%c0_166, %c3_167, %c0_168, %c0_169] : memref<4x8x16x4xf32, #tpu.memory_space<vmem>>, vector<1x1x14x4xf32>
    %173 = vector.shape_cast %172 : vector<1x1x14x4xf32> to vector<14x4xf32>
    %174 = arith.truncf %173 : vector<14x4xf32> to vector<14x4xbf16>
    %cst_170 = arith.constant dense<0.000000e+00> : vector<14x8xf32>
    %175 = tpu.matmul %174, %1, %cst_170 {dimension_numbers = #tpu.dot_dimension_numbers<[1], [0], [0], [1], [0, 0, 1, 1], [], []>} : vector<14x4xbf16>, vector<4x8xbf16>, vector<14x8xf32> -> vector<14x8xf32>
    %c1_171 = arith.constant 1 : index
    %c3_172 = arith.constant 3 : index
    %c0_173 = arith.constant 0 : index
    %c0_174 = arith.constant 0 : index
    %176 = vector.load %arg1[%c1_171, %c3_172, %c0_173, %c0_174] : memref<4x8x16x4xf32, #tpu.memory_space<vmem>>, vector<1x1x14x4xf32>
    %177 = vector.shape_cast %176 : vector<1x1x14x4xf32> to vector<14x4xf32>
    %178 = arith.truncf %177 : vector<14x4xf32> to vector<14x4xbf16>
    %cst_175 = arith.constant dense<0.000000e+00> : vector<14x8xf32>
    %179 = tpu.matmul %178, %3, %cst_175 {dimension_numbers = #tpu.dot_dimension_numbers<[1], [0], [0], [1], [0, 0, 1, 1], [], []>} : vector<14x4xbf16>, vector<4x8xbf16>, vector<14x8xf32> -> vector<14x8xf32>
    %180 = arith.addf %175, %179 : vector<14x8xf32>
    %c0_176 = arith.constant 0 : index
    %c3_177 = arith.constant 3 : index
    %c2_178 = arith.constant 2 : index
    %c0_179 = arith.constant 0 : index
    %181 = vector.load %arg1[%c0_176, %c3_177, %c2_178, %c0_179] : memref<4x8x16x4xf32, #tpu.memory_space<vmem>>, vector<1x1x14x4xf32>
    %182 = vector.shape_cast %181 : vector<1x1x14x4xf32> to vector<14x4xf32>
    %183 = arith.truncf %182 : vector<14x4xf32> to vector<14x4xbf16>
    %cst_180 = arith.constant dense<0.000000e+00> : vector<14x8xf32>
    %184 = tpu.matmul %183, %5, %cst_180 {dimension_numbers = #tpu.dot_dimension_numbers<[1], [0], [0], [1], [0, 0, 1, 1], [], []>} : vector<14x4xbf16>, vector<4x8xbf16>, vector<14x8xf32> -> vector<14x8xf32>
    %185 = arith.addf %180, %184 : vector<14x8xf32>
    %c2_181 = arith.constant 2 : index
    %c3_182 = arith.constant 3 : index
    %c0_183 = arith.constant 0 : index
    %c0_184 = arith.constant 0 : index
    %186 = vector.load %arg1[%c2_181, %c3_182, %c0_183, %c0_184] : memref<4x8x16x4xf32, #tpu.memory_space<vmem>>, vector<1x1x14x4xf32>
    %187 = vector.shape_cast %186 : vector<1x1x14x4xf32> to vector<14x4xf32>
    %188 = arith.truncf %187 : vector<14x4xf32> to vector<14x4xbf16>
    %cst_185 = arith.constant dense<0.000000e+00> : vector<14x8xf32>
    %189 = tpu.matmul %188, %7, %cst_185 {dimension_numbers = #tpu.dot_dimension_numbers<[1], [0], [0], [1], [0, 0, 1, 1], [], []>} : vector<14x4xbf16>, vector<4x8xbf16>, vector<14x8xf32> -> vector<14x8xf32>
    %190 = arith.addf %185, %189 : vector<14x8xf32>
    %c3_186 = arith.constant 3 : index
    %c3_187 = arith.constant 3 : index
    %c0_188 = arith.constant 0 : index
    %c0_189 = arith.constant 0 : index
    %191 = vector.load %arg1[%c3_186, %c3_187, %c0_188, %c0_189] : memref<4x8x16x4xf32, #tpu.memory_space<vmem>>, vector<1x1x14x4xf32>
    %192 = vector.shape_cast %191 : vector<1x1x14x4xf32> to vector<14x4xf32>
    %193 = arith.truncf %192 : vector<14x4xf32> to vector<14x4xbf16>
    %cst_190 = arith.constant dense<0.000000e+00> : vector<14x8xf32>
    %194 = tpu.matmul %193, %9, %cst_190 {dimension_numbers = #tpu.dot_dimension_numbers<[1], [0], [0], [1], [0, 0, 1, 1], [], []>} : vector<14x4xbf16>, vector<4x8xbf16>, vector<14x8xf32> -> vector<14x8xf32>
    %195 = arith.addf %190, %194 : vector<14x8xf32>
    %c2_191 = arith.constant 2 : index
    %c3_192 = arith.constant 3 : index
    %c2_193 = arith.constant 2 : index
    %c0_194 = arith.constant 0 : index
    %196 = vector.load %arg1[%c2_191, %c3_192, %c2_193, %c0_194] : memref<4x8x16x4xf32, #tpu.memory_space<vmem>>, vector<1x1x14x4xf32>
    %197 = vector.shape_cast %196 : vector<1x1x14x4xf32> to vector<14x4xf32>
    %198 = arith.truncf %197 : vector<14x4xf32> to vector<14x4xbf16>
    %cst_195 = arith.constant dense<0.000000e+00> : vector<14x8xf32>
    %199 = tpu.matmul %198, %11, %cst_195 {dimension_numbers = #tpu.dot_dimension_numbers<[1], [0], [0], [1], [0, 0, 1, 1], [], []>} : vector<14x4xbf16>, vector<4x8xbf16>, vector<14x8xf32> -> vector<14x8xf32>
    %200 = arith.addf %195, %199 : vector<14x8xf32>
    %c0_196 = arith.constant 0 : index
    %c4_197 = arith.constant 4 : index
    %c0_198 = arith.constant 0 : index
    %c0_199 = arith.constant 0 : index
    %201 = vector.load %arg1[%c0_196, %c4_197, %c0_198, %c0_199] : memref<4x8x16x4xf32, #tpu.memory_space<vmem>>, vector<1x1x14x4xf32>
    %202 = vector.shape_cast %201 : vector<1x1x14x4xf32> to vector<14x4xf32>
    %203 = arith.truncf %202 : vector<14x4xf32> to vector<14x4xbf16>
    %cst_200 = arith.constant dense<0.000000e+00> : vector<14x8xf32>
    %204 = tpu.matmul %203, %13, %cst_200 {dimension_numbers = #tpu.dot_dimension_numbers<[1], [0], [0], [1], [0, 0, 1, 1], [], []>} : vector<14x4xbf16>, vector<4x8xbf16>, vector<14x8xf32> -> vector<14x8xf32>
    %205 = arith.addf %200, %204 : vector<14x8xf32>
    %c1_201 = arith.constant 1 : index
    %c4_202 = arith.constant 4 : index
    %c0_203 = arith.constant 0 : index
    %c0_204 = arith.constant 0 : index
    %206 = vector.load %arg1[%c1_201, %c4_202, %c0_203, %c0_204] : memref<4x8x16x4xf32, #tpu.memory_space<vmem>>, vector<1x1x14x4xf32>
    %207 = vector.shape_cast %206 : vector<1x1x14x4xf32> to vector<14x4xf32>
    %208 = arith.truncf %207 : vector<14x4xf32> to vector<14x4xbf16>
    %cst_205 = arith.constant dense<0.000000e+00> : vector<14x8xf32>
    %209 = tpu.matmul %208, %15, %cst_205 {dimension_numbers = #tpu.dot_dimension_numbers<[1], [0], [0], [1], [0, 0, 1, 1], [], []>} : vector<14x4xbf16>, vector<4x8xbf16>, vector<14x8xf32> -> vector<14x8xf32>
    %210 = arith.addf %205, %209 : vector<14x8xf32>
    %c0_206 = arith.constant 0 : index
    %c4_207 = arith.constant 4 : index
    %c2_208 = arith.constant 2 : index
    %c0_209 = arith.constant 0 : index
    %211 = vector.load %arg1[%c0_206, %c4_207, %c2_208, %c0_209] : memref<4x8x16x4xf32, #tpu.memory_space<vmem>>, vector<1x1x14x4xf32>
    %212 = vector.shape_cast %211 : vector<1x1x14x4xf32> to vector<14x4xf32>
    %213 = arith.truncf %212 : vector<14x4xf32> to vector<14x4xbf16>
    %cst_210 = arith.constant dense<0.000000e+00> : vector<14x8xf32>
    %214 = tpu.matmul %213, %17, %cst_210 {dimension_numbers = #tpu.dot_dimension_numbers<[1], [0], [0], [1], [0, 0, 1, 1], [], []>} : vector<14x4xbf16>, vector<4x8xbf16>, vector<14x8xf32> -> vector<14x8xf32>
    %215 = arith.addf %210, %214 : vector<14x8xf32>
    %216 = vector.broadcast %18 : vector<1x8xf32> to vector<14x8xf32>
    %217 = arith.addf %215, %216 : vector<14x8xf32>
    %cst_211 = arith.constant 0.000000e+00 : f32
    %218 = vector.broadcast %cst_211 : f32 to vector<14x8xf32>
    %219 = arith.maximumf %217, %218 : vector<14x8xf32>
    %c3_212 = arith.constant 3 : index
    %c0_213 = arith.constant 0 : index
    %c0_214 = arith.constant 0 : index
    %220 = vector.load %arg23[%c3_212, %c0_213, %c0_214] : memref<7x14x8xf32, #tpu.memory_space<vmem>>, vector<1x14x8xf32>
    %221 = vector.shape_cast %220 : vector<1x14x8xf32> to vector<14x8xf32>
    %222 = vector.shape_cast %219 : vector<14x8xf32> to vector<1x14x8xf32>
    tpu.vector_store %arg23[%c3_212, %c0_213, %c0_214], %222 {strides = array<i32>} : memref<7x14x8xf32, #tpu.memory_space<vmem>>, vector<1x14x8xf32>,
    %c0_215 = arith.constant 0 : index
    %c4_216 = arith.constant 4 : index
    %c0_217 = arith.constant 0 : index
    %c0_218 = arith.constant 0 : index
    %223 = vector.load %arg1[%c0_215, %c4_216, %c0_217, %c0_218] : memref<4x8x16x4xf32, #tpu.memory_space<vmem>>, vector<1x1x14x4xf32>
    %224 = vector.shape_cast %223 : vector<1x1x14x4xf32> to vector<14x4xf32>
    %225 = arith.truncf %224 : vector<14x4xf32> to vector<14x4xbf16>
    %cst_219 = arith.constant dense<0.000000e+00> : vector<14x8xf32>
    %226 = tpu.matmul %225, %1, %cst_219 {dimension_numbers = #tpu.dot_dimension_numbers<[1], [0], [0], [1], [0, 0, 1, 1], [], []>} : vector<14x4xbf16>, vector<4x8xbf16>, vector<14x8xf32> -> vector<14x8xf32>
    %c1_220 = arith.constant 1 : index
    %c4_221 = arith.constant 4 : index
    %c0_222 = arith.constant 0 : index
    %c0_223 = arith.constant 0 : index
    %227 = vector.load %arg1[%c1_220, %c4_221, %c0_222, %c0_223] : memref<4x8x16x4xf32, #tpu.memory_space<vmem>>, vector<1x1x14x4xf32>
    %228 = vector.shape_cast %227 : vector<1x1x14x4xf32> to vector<14x4xf32>
    %229 = arith.truncf %228 : vector<14x4xf32> to vector<14x4xbf16>
    %cst_224 = arith.constant dense<0.000000e+00> : vector<14x8xf32>
    %230 = tpu.matmul %229, %3, %cst_224 {dimension_numbers = #tpu.dot_dimension_numbers<[1], [0], [0], [1], [0, 0, 1, 1], [], []>} : vector<14x4xbf16>, vector<4x8xbf16>, vector<14x8xf32> -> vector<14x8xf32>
    %231 = arith.addf %226, %230 : vector<14x8xf32>
    %c0_225 = arith.constant 0 : index
    %c4_226 = arith.constant 4 : index
    %c2_227 = arith.constant 2 : index
    %c0_228 = arith.constant 0 : index
    %232 = vector.load %arg1[%c0_225, %c4_226, %c2_227, %c0_228] : memref<4x8x16x4xf32, #tpu.memory_space<vmem>>, vector<1x1x14x4xf32>
    %233 = vector.shape_cast %232 : vector<1x1x14x4xf32> to vector<14x4xf32>
    %234 = arith.truncf %233 : vector<14x4xf32> to vector<14x4xbf16>
    %cst_229 = arith.constant dense<0.000000e+00> : vector<14x8xf32>
    %235 = tpu.matmul %234, %5, %cst_229 {dimension_numbers = #tpu.dot_dimension_numbers<[1], [0], [0], [1], [0, 0, 1, 1], [], []>} : vector<14x4xbf16>, vector<4x8xbf16>, vector<14x8xf32> -> vector<14x8xf32>
    %236 = arith.addf %231, %235 : vector<14x8xf32>
    %c2_230 = arith.constant 2 : index
    %c4_231 = arith.constant 4 : index
    %c0_232 = arith.constant 0 : index
    %c0_233 = arith.constant 0 : index
    %237 = vector.load %arg1[%c2_230, %c4_231, %c0_232, %c0_233] : memref<4x8x16x4xf32, #tpu.memory_space<vmem>>, vector<1x1x14x4xf32>
    %238 = vector.shape_cast %237 : vector<1x1x14x4xf32> to vector<14x4xf32>
    %239 = arith.truncf %238 : vector<14x4xf32> to vector<14x4xbf16>
    %cst_234 = arith.constant dense<0.000000e+00> : vector<14x8xf32>
    %240 = tpu.matmul %239, %7, %cst_234 {dimension_numbers = #tpu.dot_dimension_numbers<[1], [0], [0], [1], [0, 0, 1, 1], [], []>} : vector<14x4xbf16>, vector<4x8xbf16>, vector<14x8xf32> -> vector<14x8xf32>
    %241 = arith.addf %236, %240 : vector<14x8xf32>
    %c3_235 = arith.constant 3 : index
    %c4_236 = arith.constant 4 : index
    %c0_237 = arith.constant 0 : index
    %c0_238 = arith.constant 0 : index
    %242 = vector.load %arg1[%c3_235, %c4_236, %c0_237, %c0_238] : memref<4x8x16x4xf32, #tpu.memory_space<vmem>>, vector<1x1x14x4xf32>
    %243 = vector.shape_cast %242 : vector<1x1x14x4xf32> to vector<14x4xf32>
    %244 = arith.truncf %243 : vector<14x4xf32> to vector<14x4xbf16>
    %cst_239 = arith.constant dense<0.000000e+00> : vector<14x8xf32>
    %245 = tpu.matmul %244, %9, %cst_239 {dimension_numbers = #tpu.dot_dimension_numbers<[1], [0], [0], [1], [0, 0, 1, 1], [], []>} : vector<14x4xbf16>, vector<4x8xbf16>, vector<14x8xf32> -> vector<14x8xf32>
    %246 = arith.addf %241, %245 : vector<14x8xf32>
    %c2_240 = arith.constant 2 : index
    %c4_241 = arith.constant 4 : index
    %c2_242 = arith.constant 2 : index
    %c0_243 = arith.constant 0 : index
    %247 = vector.load %arg1[%c2_240, %c4_241, %c2_242, %c0_243] : memref<4x8x16x4xf32, #tpu.memory_space<vmem>>, vector<1x1x14x4xf32>
    %248 = vector.shape_cast %247 : vector<1x1x14x4xf32> to vector<14x4xf32>
    %249 = arith.truncf %248 : vector<14x4xf32> to vector<14x4xbf16>
    %cst_244 = arith.constant dense<0.000000e+00> : vector<14x8xf32>
    %250 = tpu.matmul %249, %11, %cst_244 {dimension_numbers = #tpu.dot_dimension_numbers<[1], [0], [0], [1], [0, 0, 1, 1], [], []>} : vector<14x4xbf16>, vector<4x8xbf16>, vector<14x8xf32> -> vector<14x8xf32>
    %251 = arith.addf %246, %250 : vector<14x8xf32>
    %c0_245 = arith.constant 0 : index
    %c5_246 = arith.constant 5 : index
    %c0_247 = arith.constant 0 : index
    %c0_248 = arith.constant 0 : index
    %252 = vector.load %arg1[%c0_245, %c5_246, %c0_247, %c0_248] : memref<4x8x16x4xf32, #tpu.memory_space<vmem>>, vector<1x1x14x4xf32>
    %253 = vector.shape_cast %252 : vector<1x1x14x4xf32> to vector<14x4xf32>
    %254 = arith.truncf %253 : vector<14x4xf32> to vector<14x4xbf16>
    %cst_249 = arith.constant dense<0.000000e+00> : vector<14x8xf32>
    %255 = tpu.matmul %254, %13, %cst_249 {dimension_numbers = #tpu.dot_dimension_numbers<[1], [0], [0], [1], [0, 0, 1, 1], [], []>} : vector<14x4xbf16>, vector<4x8xbf16>, vector<14x8xf32> -> vector<14x8xf32>
    %256 = arith.addf %251, %255 : vector<14x8xf32>
    %c1_250 = arith.constant 1 : index
    %c5_251 = arith.constant 5 : index
    %c0_252 = arith.constant 0 : index
    %c0_253 = arith.constant 0 : index
    %257 = vector.load %arg1[%c1_250, %c5_251, %c0_252, %c0_253] : memref<4x8x16x4xf32, #tpu.memory_space<vmem>>, vector<1x1x14x4xf32>
    %258 = vector.shape_cast %257 : vector<1x1x14x4xf32> to vector<14x4xf32>
    %259 = arith.truncf %258 : vector<14x4xf32> to vector<14x4xbf16>
    %cst_254 = arith.constant dense<0.000000e+00> : vector<14x8xf32>
    %260 = tpu.matmul %259, %15, %cst_254 {dimension_numbers = #tpu.dot_dimension_numbers<[1], [0], [0], [1], [0, 0, 1, 1], [], []>} : vector<14x4xbf16>, vector<4x8xbf16>, vector<14x8xf32> -> vector<14x8xf32>
    %261 = arith.addf %256, %260 : vector<14x8xf32>
    %c0_255 = arith.constant 0 : index
    %c5_256 = arith.constant 5 : index
    %c2_257 = arith.constant 2 : index
    %c0_258 = arith.constant 0 : index
    %262 = vector.load %arg1[%c0_255, %c5_256, %c2_257, %c0_258] : memref<4x8x16x4xf32, #tpu.memory_space<vmem>>, vector<1x1x14x4xf32>
    %263 = vector.shape_cast %262 : vector<1x1x14x4xf32> to vector<14x4xf32>
    %264 = arith.truncf %263 : vector<14x4xf32> to vector<14x4xbf16>
    %cst_259 = arith.constant dense<0.000000e+00> : vector<14x8xf32>
    %265 = tpu.matmul %264, %17, %cst_259 {dimension_numbers = #tpu.dot_dimension_numbers<[1], [0], [0], [1], [0, 0, 1, 1], [], []>} : vector<14x4xbf16>, vector<4x8xbf16>, vector<14x8xf32> -> vector<14x8xf32>
    %266 = arith.addf %261, %265 : vector<14x8xf32>
    %267 = vector.broadcast %18 : vector<1x8xf32> to vector<14x8xf32>
    %268 = arith.addf %266, %267 : vector<14x8xf32>
    %cst_260 = arith.constant 0.000000e+00 : f32
    %269 = vector.broadcast %cst_260 : f32 to vector<14x8xf32>
    %270 = arith.maximumf %268, %269 : vector<14x8xf32>
    %c4_261 = arith.constant 4 : index
    %c0_262 = arith.constant 0 : index
    %c0_263 = arith.constant 0 : index
    %271 = vector.load %arg23[%c4_261, %c0_262, %c0_263] : memref<7x14x8xf32, #tpu.memory_space<vmem>>, vector<1x14x8xf32>
    %272 = vector.shape_cast %271 : vector<1x14x8xf32> to vector<14x8xf32>
    %273 = vector.shape_cast %270 : vector<14x8xf32> to vector<1x14x8xf32>
    tpu.vector_store %arg23[%c4_261, %c0_262, %c0_263], %273 {strides = array<i32>} : memref<7x14x8xf32, #tpu.memory_space<vmem>>, vector<1x14x8xf32>,
    %c0_264 = arith.constant 0 : index
    %c5_265 = arith.constant 5 : index
    %c0_266 = arith.constant 0 : index
    %c0_267 = arith.constant 0 : index
    %274 = vector.load %arg1[%c0_264, %c5_265, %c0_266, %c0_267] : memref<4x8x16x4xf32, #tpu.memory_space<vmem>>, vector<1x1x14x4xf32>
    %275 = vector.shape_cast %274 : vector<1x1x14x4xf32> to vector<14x4xf32>
    %276 = arith.truncf %275 : vector<14x4xf32> to vector<14x4xbf16>
    %cst_268 = arith.constant dense<0.000000e+00> : vector<14x8xf32>
    %277 = tpu.matmul %276, %1, %cst_268 {dimension_numbers = #tpu.dot_dimension_numbers<[1], [0], [0], [1], [0, 0, 1, 1], [], []>} : vector<14x4xbf16>, vector<4x8xbf16>, vector<14x8xf32> -> vector<14x8xf32>
    %c1_269 = arith.constant 1 : index
    %c5_270 = arith.constant 5 : index
    %c0_271 = arith.constant 0 : index
    %c0_272 = arith.constant 0 : index
    %278 = vector.load %arg1[%c1_269, %c5_270, %c0_271, %c0_272] : memref<4x8x16x4xf32, #tpu.memory_space<vmem>>, vector<1x1x14x4xf32>
    %279 = vector.shape_cast %278 : vector<1x1x14x4xf32> to vector<14x4xf32>
    %280 = arith.truncf %279 : vector<14x4xf32> to vector<14x4xbf16>
    %cst_273 = arith.constant dense<0.000000e+00> : vector<14x8xf32>
    %281 = tpu.matmul %280, %3, %cst_273 {dimension_numbers = #tpu.dot_dimension_numbers<[1], [0], [0], [1], [0, 0, 1, 1], [], []>} : vector<14x4xbf16>, vector<4x8xbf16>, vector<14x8xf32> -> vector<14x8xf32>
    %282 = arith.addf %277, %281 : vector<14x8xf32>
    %c0_274 = arith.constant 0 : index
    %c5_275 = arith.constant 5 : index
    %c2_276 = arith.constant 2 : index
    %c0_277 = arith.constant 0 : index
    %283 = vector.load %arg1[%c0_274, %c5_275, %c2_276, %c0_277] : memref<4x8x16x4xf32, #tpu.memory_space<vmem>>, vector<1x1x14x4xf32>
    %284 = vector.shape_cast %283 : vector<1x1x14x4xf32> to vector<14x4xf32>
    %285 = arith.truncf %284 : vector<14x4xf32> to vector<14x4xbf16>
    %cst_278 = arith.constant dense<0.000000e+00> : vector<14x8xf32>
    %286 = tpu.matmul %285, %5, %cst_278 {dimension_numbers = #tpu.dot_dimension_numbers<[1], [0], [0], [1], [0, 0, 1, 1], [], []>} : vector<14x4xbf16>, vector<4x8xbf16>, vector<14x8xf32> -> vector<14x8xf32>
    %287 = arith.addf %282, %286 : vector<14x8xf32>
    %c2_279 = arith.constant 2 : index
    %c5_280 = arith.constant 5 : index
    %c0_281 = arith.constant 0 : index
    %c0_282 = arith.constant 0 : index
    %288 = vector.load %arg1[%c2_279, %c5_280, %c0_281, %c0_282] : memref<4x8x16x4xf32, #tpu.memory_space<vmem>>, vector<1x1x14x4xf32>
    %289 = vector.shape_cast %288 : vector<1x1x14x4xf32> to vector<14x4xf32>
    %290 = arith.truncf %289 : vector<14x4xf32> to vector<14x4xbf16>
    %cst_283 = arith.constant dense<0.000000e+00> : vector<14x8xf32>
    %291 = tpu.matmul %290, %7, %cst_283 {dimension_numbers = #tpu.dot_dimension_numbers<[1], [0], [0], [1], [0, 0, 1, 1], [], []>} : vector<14x4xbf16>, vector<4x8xbf16>, vector<14x8xf32> -> vector<14x8xf32>
    %292 = arith.addf %287, %291 : vector<14x8xf32>
    %c3_284 = arith.constant 3 : index
    %c5_285 = arith.constant 5 : index
    %c0_286 = arith.constant 0 : index
    %c0_287 = arith.constant 0 : index
    %293 = vector.load %arg1[%c3_284, %c5_285, %c0_286, %c0_287] : memref<4x8x16x4xf32, #tpu.memory_space<vmem>>, vector<1x1x14x4xf32>
    %294 = vector.shape_cast %293 : vector<1x1x14x4xf32> to vector<14x4xf32>
    %295 = arith.truncf %294 : vector<14x4xf32> to vector<14x4xbf16>
    %cst_288 = arith.constant dense<0.000000e+00> : vector<14x8xf32>
    %296 = tpu.matmul %295, %9, %cst_288 {dimension_numbers = #tpu.dot_dimension_numbers<[1], [0], [0], [1], [0, 0, 1, 1], [], []>} : vector<14x4xbf16>, vector<4x8xbf16>, vector<14x8xf32> -> vector<14x8xf32>
    %297 = arith.addf %292, %296 : vector<14x8xf32>
    %c2_289 = arith.constant 2 : index
    %c5_290 = arith.constant 5 : index
    %c2_291 = arith.constant 2 : index
    %c0_292 = arith.constant 0 : index
    %298 = vector.load %arg1[%c2_289, %c5_290, %c2_291, %c0_292] : memref<4x8x16x4xf32, #tpu.memory_space<vmem>>, vector<1x1x14x4xf32>
    %299 = vector.shape_cast %298 : vector<1x1x14x4xf32> to vector<14x4xf32>
    %300 = arith.truncf %299 : vector<14x4xf32> to vector<14x4xbf16>
    %cst_293 = arith.constant dense<0.000000e+00> : vector<14x8xf32>
    %301 = tpu.matmul %300, %11, %cst_293 {dimension_numbers = #tpu.dot_dimension_numbers<[1], [0], [0], [1], [0, 0, 1, 1], [], []>} : vector<14x4xbf16>, vector<4x8xbf16>, vector<14x8xf32> -> vector<14x8xf32>
    %302 = arith.addf %297, %301 : vector<14x8xf32>
    %c0_294 = arith.constant 0 : index
    %c6_295 = arith.constant 6 : index
    %c0_296 = arith.constant 0 : index
    %c0_297 = arith.constant 0 : index
    %303 = vector.load %arg1[%c0_294, %c6_295, %c0_296, %c0_297] : memref<4x8x16x4xf32, #tpu.memory_space<vmem>>, vector<1x1x14x4xf32>
    %304 = vector.shape_cast %303 : vector<1x1x14x4xf32> to vector<14x4xf32>
    %305 = arith.truncf %304 : vector<14x4xf32> to vector<14x4xbf16>
    %cst_298 = arith.constant dense<0.000000e+00> : vector<14x8xf32>
    %306 = tpu.matmul %305, %13, %cst_298 {dimension_numbers = #tpu.dot_dimension_numbers<[1], [0], [0], [1], [0, 0, 1, 1], [], []>} : vector<14x4xbf16>, vector<4x8xbf16>, vector<14x8xf32> -> vector<14x8xf32>
    %307 = arith.addf %302, %306 : vector<14x8xf32>
    %c1_299 = arith.constant 1 : index
    %c6_300 = arith.constant 6 : index
    %c0_301 = arith.constant 0 : index
    %c0_302 = arith.constant 0 : index
    %308 = vector.load %arg1[%c1_299, %c6_300, %c0_301, %c0_302] : memref<4x8x16x4xf32, #tpu.memory_space<vmem>>, vector<1x1x14x4xf32>
    %309 = vector.shape_cast %308 : vector<1x1x14x4xf32> to vector<14x4xf32>
    %310 = arith.truncf %309 : vector<14x4xf32> to vector<14x4xbf16>
    %cst_303 = arith.constant dense<0.000000e+00> : vector<14x8xf32>
    %311 = tpu.matmul %310, %15, %cst_303 {dimension_numbers = #tpu.dot_dimension_numbers<[1], [0], [0], [1], [0, 0, 1, 1], [], []>} : vector<14x4xbf16>, vector<4x8xbf16>, vector<14x8xf32> -> vector<14x8xf32>
    %312 = arith.addf %307, %311 : vector<14x8xf32>
    %c0_304 = arith.constant 0 : index
    %c6_305 = arith.constant 6 : index
    %c2_306 = arith.constant 2 : index
    %c0_307 = arith.constant 0 : index
    %313 = vector.load %arg1[%c0_304, %c6_305, %c2_306, %c0_307] : memref<4x8x16x4xf32, #tpu.memory_space<vmem>>, vector<1x1x14x4xf32>
    %314 = vector.shape_cast %313 : vector<1x1x14x4xf32> to vector<14x4xf32>
    %315 = arith.truncf %314 : vector<14x4xf32> to vector<14x4xbf16>
    %cst_308 = arith.constant dense<0.000000e+00> : vector<14x8xf32>
    %316 = tpu.matmul %315, %17, %cst_308 {dimension_numbers = #tpu.dot_dimension_numbers<[1], [0], [0], [1], [0, 0, 1, 1], [], []>} : vector<14x4xbf16>, vector<4x8xbf16>, vector<14x8xf32> -> vector<14x8xf32>
    %317 = arith.addf %312, %316 : vector<14x8xf32>
    %318 = vector.broadcast %18 : vector<1x8xf32> to vector<14x8xf32>
    %319 = arith.addf %317, %318 : vector<14x8xf32>
    %cst_309 = arith.constant 0.000000e+00 : f32
    %320 = vector.broadcast %cst_309 : f32 to vector<14x8xf32>
    %321 = arith.maximumf %319, %320 : vector<14x8xf32>
    %c5_310 = arith.constant 5 : index
    %c0_311 = arith.constant 0 : index
    %c0_312 = arith.constant 0 : index
    %322 = vector.load %arg23[%c5_310, %c0_311, %c0_312] : memref<7x14x8xf32, #tpu.memory_space<vmem>>, vector<1x14x8xf32>
    %323 = vector.shape_cast %322 : vector<1x14x8xf32> to vector<14x8xf32>
    %324 = vector.shape_cast %321 : vector<14x8xf32> to vector<1x14x8xf32>
    tpu.vector_store %arg23[%c5_310, %c0_311, %c0_312], %324 {strides = array<i32>} : memref<7x14x8xf32, #tpu.memory_space<vmem>>, vector<1x14x8xf32>,
    %c0_313 = arith.constant 0 : index
    %c6_314 = arith.constant 6 : index
    %c0_315 = arith.constant 0 : index
    %c0_316 = arith.constant 0 : index
    %325 = vector.load %arg1[%c0_313, %c6_314, %c0_315, %c0_316] : memref<4x8x16x4xf32, #tpu.memory_space<vmem>>, vector<1x1x14x4xf32>
    %326 = vector.shape_cast %325 : vector<1x1x14x4xf32> to vector<14x4xf32>
    %327 = arith.truncf %326 : vector<14x4xf32> to vector<14x4xbf16>
    %cst_317 = arith.constant dense<0.000000e+00> : vector<14x8xf32>
    %328 = tpu.matmul %327, %1, %cst_317 {dimension_numbers = #tpu.dot_dimension_numbers<[1], [0], [0], [1], [0, 0, 1, 1], [], []>} : vector<14x4xbf16>, vector<4x8xbf16>, vector<14x8xf32> -> vector<14x8xf32>
    %c1_318 = arith.constant 1 : index
    %c6_319 = arith.constant 6 : index
    %c0_320 = arith.constant 0 : index
    %c0_321 = arith.constant 0 : index
    %329 = vector.load %arg1[%c1_318, %c6_319, %c0_320, %c0_321] : memref<4x8x16x4xf32, #tpu.memory_space<vmem>>, vector<1x1x14x4xf32>
    %330 = vector.shape_cast %329 : vector<1x1x14x4xf32> to vector<14x4xf32>
    %331 = arith.truncf %330 : vector<14x4xf32> to vector<14x4xbf16>
    %cst_322 = arith.constant dense<0.000000e+00> : vector<14x8xf32>
    %332 = tpu.matmul %331, %3, %cst_322 {dimension_numbers = #tpu.dot_dimension_numbers<[1], [0], [0], [1], [0, 0, 1, 1], [], []>} : vector<14x4xbf16>, vector<4x8xbf16>, vector<14x8xf32> -> vector<14x8xf32>
    %333 = arith.addf %328, %332 : vector<14x8xf32>
    %c0_323 = arith.constant 0 : index
    %c6_324 = arith.constant 6 : index
    %c2_325 = arith.constant 2 : index
    %c0_326 = arith.constant 0 : index
    %334 = vector.load %arg1[%c0_323, %c6_324, %c2_325, %c0_326] : memref<4x8x16x4xf32, #tpu.memory_space<vmem>>, vector<1x1x14x4xf32>
    %335 = vector.shape_cast %334 : vector<1x1x14x4xf32> to vector<14x4xf32>
    %336 = arith.truncf %335 : vector<14x4xf32> to vector<14x4xbf16>
    %cst_327 = arith.constant dense<0.000000e+00> : vector<14x8xf32>
    %337 = tpu.matmul %336, %5, %cst_327 {dimension_numbers = #tpu.dot_dimension_numbers<[1], [0], [0], [1], [0, 0, 1, 1], [], []>} : vector<14x4xbf16>, vector<4x8xbf16>, vector<14x8xf32> -> vector<14x8xf32>
    %338 = arith.addf %333, %337 : vector<14x8xf32>
    %c2_328 = arith.constant 2 : index
    %c6_329 = arith.constant 6 : index
    %c0_330 = arith.constant 0 : index
    %c0_331 = arith.constant 0 : index
    %339 = vector.load %arg1[%c2_328, %c6_329, %c0_330, %c0_331] : memref<4x8x16x4xf32, #tpu.memory_space<vmem>>, vector<1x1x14x4xf32>
    %340 = vector.shape_cast %339 : vector<1x1x14x4xf32> to vector<14x4xf32>
    %341 = arith.truncf %340 : vector<14x4xf32> to vector<14x4xbf16>
    %cst_332 = arith.constant dense<0.000000e+00> : vector<14x8xf32>
    %342 = tpu.matmul %341, %7, %cst_332 {dimension_numbers = #tpu.dot_dimension_numbers<[1], [0], [0], [1], [0, 0, 1, 1], [], []>} : vector<14x4xbf16>, vector<4x8xbf16>, vector<14x8xf32> -> vector<14x8xf32>
    %343 = arith.addf %338, %342 : vector<14x8xf32>
    %c3_333 = arith.constant 3 : index
    %c6_334 = arith.constant 6 : index
    %c0_335 = arith.constant 0 : index
    %c0_336 = arith.constant 0 : index
    %344 = vector.load %arg1[%c3_333, %c6_334, %c0_335, %c0_336] : memref<4x8x16x4xf32, #tpu.memory_space<vmem>>, vector<1x1x14x4xf32>
    %345 = vector.shape_cast %344 : vector<1x1x14x4xf32> to vector<14x4xf32>
    %346 = arith.truncf %345 : vector<14x4xf32> to vector<14x4xbf16>
    %cst_337 = arith.constant dense<0.000000e+00> : vector<14x8xf32>
    %347 = tpu.matmul %346, %9, %cst_337 {dimension_numbers = #tpu.dot_dimension_numbers<[1], [0], [0], [1], [0, 0, 1, 1], [], []>} : vector<14x4xbf16>, vector<4x8xbf16>, vector<14x8xf32> -> vector<14x8xf32>
    %348 = arith.addf %343, %347 : vector<14x8xf32>
    %c2_338 = arith.constant 2 : index
    %c6_339 = arith.constant 6 : index
    %c2_340 = arith.constant 2 : index
    %c0_341 = arith.constant 0 : index
    %349 = vector.load %arg1[%c2_338, %c6_339, %c2_340, %c0_341] : memref<4x8x16x4xf32, #tpu.memory_space<vmem>>, vector<1x1x14x4xf32>
    %350 = vector.shape_cast %349 : vector<1x1x14x4xf32> to vector<14x4xf32>
    %351 = arith.truncf %350 : vector<14x4xf32> to vector<14x4xbf16>
    %cst_342 = arith.constant dense<0.000000e+00> : vector<14x8xf32>
    %352 = tpu.matmul %351, %11, %cst_342 {dimension_numbers = #tpu.dot_dimension_numbers<[1], [0], [0], [1], [0, 0, 1, 1], [], []>} : vector<14x4xbf16>, vector<4x8xbf16>, vector<14x8xf32> -> vector<14x8xf32>
    %353 = arith.addf %348, %352 : vector<14x8xf32>
    %c0_343 = arith.constant 0 : index
    %c7_344 = arith.constant 7 : index
    %c0_345 = arith.constant 0 : index
    %c0_346 = arith.constant 0 : index
    %354 = vector.load %arg1[%c0_343, %c7_344, %c0_345, %c0_346] : memref<4x8x16x4xf32, #tpu.memory_space<vmem>>, vector<1x1x14x4xf32>
    %355 = vector.shape_cast %354 : vector<1x1x14x4xf32> to vector<14x4xf32>
    %356 = arith.truncf %355 : vector<14x4xf32> to vector<14x4xbf16>
    %cst_347 = arith.constant dense<0.000000e+00> : vector<14x8xf32>
    %357 = tpu.matmul %356, %13, %cst_347 {dimension_numbers = #tpu.dot_dimension_numbers<[1], [0], [0], [1], [0, 0, 1, 1], [], []>} : vector<14x4xbf16>, vector<4x8xbf16>, vector<14x8xf32> -> vector<14x8xf32>
    %358 = arith.addf %353, %357 : vector<14x8xf32>
    %c1_348 = arith.constant 1 : index
    %c7_349 = arith.constant 7 : index
    %c0_350 = arith.constant 0 : index
    %c0_351 = arith.constant 0 : index
    %359 = vector.load %arg1[%c1_348, %c7_349, %c0_350, %c0_351] : memref<4x8x16x4xf32, #tpu.memory_space<vmem>>, vector<1x1x14x4xf32>
    %360 = vector.shape_cast %359 : vector<1x1x14x4xf32> to vector<14x4xf32>
    %361 = arith.truncf %360 : vector<14x4xf32> to vector<14x4xbf16>
    %cst_352 = arith.constant dense<0.000000e+00> : vector<14x8xf32>
    %362 = tpu.matmul %361, %15, %cst_352 {dimension_numbers = #tpu.dot_dimension_numbers<[1], [0], [0], [1], [0, 0, 1, 1], [], []>} : vector<14x4xbf16>, vector<4x8xbf16>, vector<14x8xf32> -> vector<14x8xf32>
    %363 = arith.addf %358, %362 : vector<14x8xf32>
    %c0_353 = arith.constant 0 : index
    %c7_354 = arith.constant 7 : index
    %c2_355 = arith.constant 2 : index
    %c0_356 = arith.constant 0 : index
    %364 = vector.load %arg1[%c0_353, %c7_354, %c2_355, %c0_356] : memref<4x8x16x4xf32, #tpu.memory_space<vmem>>, vector<1x1x14x4xf32>
    %365 = vector.shape_cast %364 : vector<1x1x14x4xf32> to vector<14x4xf32>
    %366 = arith.truncf %365 : vector<14x4xf32> to vector<14x4xbf16>
    %cst_357 = arith.constant dense<0.000000e+00> : vector<14x8xf32>
    %367 = tpu.matmul %366, %17, %cst_357 {dimension_numbers = #tpu.dot_dimension_numbers<[1], [0], [0], [1], [0, 0, 1, 1], [], []>} : vector<14x4xbf16>, vector<4x8xbf16>, vector<14x8xf32> -> vector<14x8xf32>
    %368 = arith.addf %363, %367 : vector<14x8xf32>
    %369 = vector.broadcast %18 : vector<1x8xf32> to vector<14x8xf32>
    %370 = arith.addf %368, %369 : vector<14x8xf32>
    %cst_358 = arith.constant 0.000000e+00 : f32
    %371 = vector.broadcast %cst_358 : f32 to vector<14x8xf32>
    %372 = arith.maximumf %370, %371 : vector<14x8xf32>
    %c6_359 = arith.constant 6 : index
    %c0_360 = arith.constant 0 : index
    %c0_361 = arith.constant 0 : index
    %373 = vector.load %arg23[%c6_359, %c0_360, %c0_361] : memref<7x14x8xf32, #tpu.memory_space<vmem>>, vector<1x14x8xf32>
    %374 = vector.shape_cast %373 : vector<1x14x8xf32> to vector<14x8xf32>
    %375 = vector.shape_cast %372 : vector<14x8xf32> to vector<1x14x8xf32>
    tpu.vector_store %arg23[%c6_359, %c0_360, %c0_361], %375 {strides = array<i32>} : memref<7x14x8xf32, #tpu.memory_space<vmem>>, vector<1x14x8xf32>,
    %c0_362 = arith.constant 0 : index
    %c0_363 = arith.constant 0 : index
    %c0_364 = arith.constant 0 : index
    %376 = vector.load %arg4[%c0_362, %c0_363, %c0_364] : memref<9x8x8xbf16, #tpu.memory_space<vmem>>, vector<1x8x8xbf16>
    %377 = vector.shape_cast %376 : vector<1x8x8xbf16> to vector<8x8xbf16>
    %c1_365 = arith.constant 1 : index
    %c0_366 = arith.constant 0 : index
    %c0_367 = arith.constant 0 : index
    %378 = vector.load %arg4[%c1_365, %c0_366, %c0_367] : memref<9x8x8xbf16, #tpu.memory_space<vmem>>, vector<1x8x8xbf16>
    %379 = vector.shape_cast %378 : vector<1x8x8xbf16> to vector<8x8xbf16>
    %c2_368 = arith.constant 2 : index
    %c0_369 = arith.constant 0 : index
    %c0_370 = arith.constant 0 : index
    %380 = vector.load %arg4[%c2_368, %c0_369, %c0_370] : memref<9x8x8xbf16, #tpu.memory_space<vmem>>, vector<1x8x8xbf16>
    %381 = vector.shape_cast %380 : vector<1x8x8xbf16> to vector<8x8xbf16>
    %c3_371 = arith.constant 3 : index
    %c0_372 = arith.constant 0 : index
    %c0_373 = arith.constant 0 : index
    %382 = vector.load %arg4[%c3_371, %c0_372, %c0_373] : memref<9x8x8xbf16, #tpu.memory_space<vmem>>, vector<1x8x8xbf16>
    %383 = vector.shape_cast %382 : vector<1x8x8xbf16> to vector<8x8xbf16>
    %c4_374 = arith.constant 4 : index
    %c0_375 = arith.constant 0 : index
    %c0_376 = arith.constant 0 : index
    %384 = vector.load %arg4[%c4_374, %c0_375, %c0_376] : memref<9x8x8xbf16, #tpu.memory_space<vmem>>, vector<1x8x8xbf16>
    %385 = vector.shape_cast %384 : vector<1x8x8xbf16> to vector<8x8xbf16>
    %c5_377 = arith.constant 5 : index
    %c0_378 = arith.constant 0 : index
    %c0_379 = arith.constant 0 : index
    %386 = vector.load %arg4[%c5_377, %c0_378, %c0_379] : memref<9x8x8xbf16, #tpu.memory_space<vmem>>, vector<1x8x8xbf16>
    %387 = vector.shape_cast %386 : vector<1x8x8xbf16> to vector<8x8xbf16>
    %c6_380 = arith.constant 6 : index
    %c0_381 = arith.constant 0 : index
    %c0_382 = arith.constant 0 : index
    %388 = vector.load %arg4[%c6_380, %c0_381, %c0_382] : memref<9x8x8xbf16, #tpu.memory_space<vmem>>, vector<1x8x8xbf16>
    %389 = vector.shape_cast %388 : vector<1x8x8xbf16> to vector<8x8xbf16>
    %c7_383 = arith.constant 7 : index
    %c0_384 = arith.constant 0 : index
    %c0_385 = arith.constant 0 : index
    %390 = vector.load %arg4[%c7_383, %c0_384, %c0_385] : memref<9x8x8xbf16, #tpu.memory_space<vmem>>, vector<1x8x8xbf16>
    %391 = vector.shape_cast %390 : vector<1x8x8xbf16> to vector<8x8xbf16>
    %c8_386 = arith.constant 8 : index
    %c0_387 = arith.constant 0 : index
    %c0_388 = arith.constant 0 : index
    %392 = vector.load %arg4[%c8_386, %c0_387, %c0_388] : memref<9x8x8xbf16, #tpu.memory_space<vmem>>, vector<1x8x8xbf16>
    %393 = vector.shape_cast %392 : vector<1x8x8xbf16> to vector<8x8xbf16>
    %c0_389 = arith.constant 0 : index
    %c0_390 = arith.constant 0 : index
    %394 = vector.load %arg5[%c0_389, %c0_390] : memref<1x8xf32, #tpu.memory_space<vmem>>, vector<1x8xf32>
    %c0_391 = arith.constant 0 : index
    %c0_392 = arith.constant 0 : index
    %c0_393 = arith.constant 0 : index
    %395 = vector.load %arg23[%c0_391, %c0_392, %c0_393] : memref<7x14x8xf32, #tpu.memory_space<vmem>>, vector<1x10x8xf32>
    %396 = vector.shape_cast %395 : vector<1x10x8xf32> to vector<10x8xf32>
    %397 = arith.truncf %396 : vector<10x8xf32> to vector<10x8xbf16>
    %cst_394 = arith.constant dense<0.000000e+00> : vector<10x8xf32>
    %398 = tpu.matmul %397, %377, %cst_394 {dimension_numbers = #tpu.dot_dimension_numbers<[1], [0], [0], [1], [0, 0, 1, 1], [], []>} : vector<10x8xbf16>, vector<8x8xbf16>, vector<10x8xf32> -> vector<10x8xf32>
    %c0_395 = arith.constant 0 : index
    %c2_396 = arith.constant 2 : index
    %c0_397 = arith.constant 0 : index
    %399 = vector.load %arg23[%c0_395, %c2_396, %c0_397] : memref<7x14x8xf32, #tpu.memory_space<vmem>>, vector<1x10x8xf32>
    %400 = vector.shape_cast %399 : vector<1x10x8xf32> to vector<10x8xf32>
    %401 = arith.truncf %400 : vector<10x8xf32> to vector<10x8xbf16>
    %cst_398 = arith.constant dense<0.000000e+00> : vector<10x8xf32>
    %402 = tpu.matmul %401, %379, %cst_398 {dimension_numbers = #tpu.dot_dimension_numbers<[1], [0], [0], [1], [0, 0, 1, 1], [], []>} : vector<10x8xbf16>, vector<8x8xbf16>, vector<10x8xf32> -> vector<10x8xf32>
    %403 = arith.addf %398, %402 : vector<10x8xf32>
    %c0_399 = arith.constant 0 : index
    %c4_400 = arith.constant 4 : index
    %c0_401 = arith.constant 0 : index
    %404 = vector.load %arg23[%c0_399, %c4_400, %c0_401] : memref<7x14x8xf32, #tpu.memory_space<vmem>>, vector<1x10x8xf32>
    %405 = vector.shape_cast %404 : vector<1x10x8xf32> to vector<10x8xf32>
    %406 = arith.truncf %405 : vector<10x8xf32> to vector<10x8xbf16>
    %cst_402 = arith.constant dense<0.000000e+00> : vector<10x8xf32>
    %407 = tpu.matmul %406, %381, %cst_402 {dimension_numbers = #tpu.dot_dimension_numbers<[1], [0], [0], [1], [0, 0, 1, 1], [], []>} : vector<10x8xbf16>, vector<8x8xbf16>, vector<10x8xf32> -> vector<10x8xf32>
    %408 = arith.addf %403, %407 : vector<10x8xf32>
    %c1_403 = arith.constant 1 : index
    %c0_404 = arith.constant 0 : index
    %c0_405 = arith.constant 0 : index
    %409 = vector.load %arg23[%c1_403, %c0_404, %c0_405] : memref<7x14x8xf32, #tpu.memory_space<vmem>>, vector<1x10x8xf32>
    %410 = vector.shape_cast %409 : vector<1x10x8xf32> to vector<10x8xf32>
    %411 = arith.truncf %410 : vector<10x8xf32> to vector<10x8xbf16>
    %cst_406 = arith.constant dense<0.000000e+00> : vector<10x8xf32>
    %412 = tpu.matmul %411, %383, %cst_406 {dimension_numbers = #tpu.dot_dimension_numbers<[1], [0], [0], [1], [0, 0, 1, 1], [], []>} : vector<10x8xbf16>, vector<8x8xbf16>, vector<10x8xf32> -> vector<10x8xf32>
    %413 = arith.addf %408, %412 : vector<10x8xf32>
    %c1_407 = arith.constant 1 : index
    %c2_408 = arith.constant 2 : index
    %c0_409 = arith.constant 0 : index
    %414 = vector.load %arg23[%c1_407, %c2_408, %c0_409] : memref<7x14x8xf32, #tpu.memory_space<vmem>>, vector<1x10x8xf32>
    %415 = vector.shape_cast %414 : vector<1x10x8xf32> to vector<10x8xf32>
    %416 = arith.truncf %415 : vector<10x8xf32> to vector<10x8xbf16>
    %cst_410 = arith.constant dense<0.000000e+00> : vector<10x8xf32>
    %417 = tpu.matmul %416, %385, %cst_410 {dimension_numbers = #tpu.dot_dimension_numbers<[1], [0], [0], [1], [0, 0, 1, 1], [], []>} : vector<10x8xbf16>, vector<8x8xbf16>, vector<10x8xf32> -> vector<10x8xf32>
    %418 = arith.addf %413, %417 : vector<10x8xf32>
    %c1_411 = arith.constant 1 : index
    %c4_412 = arith.constant 4 : index
    %c0_413 = arith.constant 0 : index
    %419 = vector.load %arg23[%c1_411, %c4_412, %c0_413] : memref<7x14x8xf32, #tpu.memory_space<vmem>>, vector<1x10x8xf32>
    %420 = vector.shape_cast %419 : vector<1x10x8xf32> to vector<10x8xf32>
    %421 = arith.truncf %420 : vector<10x8xf32> to vector<10x8xbf16>
    %cst_414 = arith.constant dense<0.000000e+00> : vector<10x8xf32>
    %422 = tpu.matmul %421, %387, %cst_414 {dimension_numbers = #tpu.dot_dimension_numbers<[1], [0], [0], [1], [0, 0, 1, 1], [], []>} : vector<10x8xbf16>, vector<8x8xbf16>, vector<10x8xf32> -> vector<10x8xf32>
    %423 = arith.addf %418, %422 : vector<10x8xf32>
    %c2_415 = arith.constant 2 : index
    %c0_416 = arith.constant 0 : index
    %c0_417 = arith.constant 0 : index
    %424 = vector.load %arg23[%c2_415, %c0_416, %c0_417] : memref<7x14x8xf32, #tpu.memory_space<vmem>>, vector<1x10x8xf32>
    %425 = vector.shape_cast %424 : vector<1x10x8xf32> to vector<10x8xf32>
    %426 = arith.truncf %425 : vector<10x8xf32> to vector<10x8xbf16>
    %cst_418 = arith.constant dense<0.000000e+00> : vector<10x8xf32>
    %427 = tpu.matmul %426, %389, %cst_418 {dimension_numbers = #tpu.dot_dimension_numbers<[1], [0], [0], [1], [0, 0, 1, 1], [], []>} : vector<10x8xbf16>, vector<8x8xbf16>, vector<10x8xf32> -> vector<10x8xf32>
    %428 = arith.addf %423, %427 : vector<10x8xf32>
    %c2_419 = arith.constant 2 : index
    %c2_420 = arith.constant 2 : index
    %c0_421 = arith.constant 0 : index
    %429 = vector.load %arg23[%c2_419, %c2_420, %c0_421] : memref<7x14x8xf32, #tpu.memory_space<vmem>>, vector<1x10x8xf32>
    %430 = vector.shape_cast %429 : vector<1x10x8xf32> to vector<10x8xf32>
    %431 = arith.truncf %430 : vector<10x8xf32> to vector<10x8xbf16>
    %cst_422 = arith.constant dense<0.000000e+00> : vector<10x8xf32>
    %432 = tpu.matmul %431, %391, %cst_422 {dimension_numbers = #tpu.dot_dimension_numbers<[1], [0], [0], [1], [0, 0, 1, 1], [], []>} : vector<10x8xbf16>, vector<8x8xbf16>, vector<10x8xf32> -> vector<10x8xf32>
    %433 = arith.addf %428, %432 : vector<10x8xf32>
    %c2_423 = arith.constant 2 : index
    %c4_424 = arith.constant 4 : index
    %c0_425 = arith.constant 0 : index
    %434 = vector.load %arg23[%c2_423, %c4_424, %c0_425] : memref<7x14x8xf32, #tpu.memory_space<vmem>>, vector<1x10x8xf32>
    %435 = vector.shape_cast %434 : vector<1x10x8xf32> to vector<10x8xf32>
    %436 = arith.truncf %435 : vector<10x8xf32> to vector<10x8xbf16>
    %cst_426 = arith.constant dense<0.000000e+00> : vector<10x8xf32>
    %437 = tpu.matmul %436, %393, %cst_426 {dimension_numbers = #tpu.dot_dimension_numbers<[1], [0], [0], [1], [0, 0, 1, 1], [], []>} : vector<10x8xbf16>, vector<8x8xbf16>, vector<10x8xf32> -> vector<10x8xf32>
    %438 = arith.addf %433, %437 : vector<10x8xf32>
    %439 = vector.broadcast %394 : vector<1x8xf32> to vector<10x8xf32>
    %440 = arith.addf %438, %439 : vector<10x8xf32>
    %cst_427 = arith.constant 0.000000e+00 : f32
    %441 = vector.broadcast %cst_427 : f32 to vector<10x8xf32>
    %442 = arith.maximumf %440, %441 : vector<10x8xf32>
    %c0_428 = arith.constant 0 : index
    %c0_429 = arith.constant 0 : index
    %c0_430 = arith.constant 0 : index
    %443 = vector.load %arg24[%c0_428, %c0_429, %c0_430] : memref<5x10x8xf32, #tpu.memory_space<vmem>>, vector<1x10x8xf32>
    %444 = vector.shape_cast %443 : vector<1x10x8xf32> to vector<10x8xf32>
    %445 = vector.shape_cast %442 : vector<10x8xf32> to vector<1x10x8xf32>
    tpu.vector_store %arg24[%c0_428, %c0_429, %c0_430], %445 {strides = array<i32>} : memref<5x10x8xf32, #tpu.memory_space<vmem>>, vector<1x10x8xf32>,
    %c1_431 = arith.constant 1 : index
    %c0_432 = arith.constant 0 : index
    %c0_433 = arith.constant 0 : index
    %446 = vector.load %arg23[%c1_431, %c0_432, %c0_433] : memref<7x14x8xf32, #tpu.memory_space<vmem>>, vector<1x10x8xf32>
    %447 = vector.shape_cast %446 : vector<1x10x8xf32> to vector<10x8xf32>
    %448 = arith.truncf %447 : vector<10x8xf32> to vector<10x8xbf16>
    %cst_434 = arith.constant dense<0.000000e+00> : vector<10x8xf32>
    %449 = tpu.matmul %448, %377, %cst_434 {dimension_numbers = #tpu.dot_dimension_numbers<[1], [0], [0], [1], [0, 0, 1, 1], [], []>} : vector<10x8xbf16>, vector<8x8xbf16>, vector<10x8xf32> -> vector<10x8xf32>
    %c1_435 = arith.constant 1 : index
    %c2_436 = arith.constant 2 : index
    %c0_437 = arith.constant 0 : index
    %450 = vector.load %arg23[%c1_435, %c2_436, %c0_437] : memref<7x14x8xf32, #tpu.memory_space<vmem>>, vector<1x10x8xf32>
    %451 = vector.shape_cast %450 : vector<1x10x8xf32> to vector<10x8xf32>
    %452 = arith.truncf %451 : vector<10x8xf32> to vector<10x8xbf16>
    %cst_438 = arith.constant dense<0.000000e+00> : vector<10x8xf32>
    %453 = tpu.matmul %452, %379, %cst_438 {dimension_numbers = #tpu.dot_dimension_numbers<[1], [0], [0], [1], [0, 0, 1, 1], [], []>} : vector<10x8xbf16>, vector<8x8xbf16>, vector<10x8xf32> -> vector<10x8xf32>
    %454 = arith.addf %449, %453 : vector<10x8xf32>
    %c1_439 = arith.constant 1 : index
    %c4_440 = arith.constant 4 : index
    %c0_441 = arith.constant 0 : index
    %455 = vector.load %arg23[%c1_439, %c4_440, %c0_441] : memref<7x14x8xf32, #tpu.memory_space<vmem>>, vector<1x10x8xf32>
    %456 = vector.shape_cast %455 : vector<1x10x8xf32> to vector<10x8xf32>
    %457 = arith.truncf %456 : vector<10x8xf32> to vector<10x8xbf16>
    %cst_442 = arith.constant dense<0.000000e+00> : vector<10x8xf32>
    %458 = tpu.matmul %457, %381, %cst_442 {dimension_numbers = #tpu.dot_dimension_numbers<[1], [0], [0], [1], [0, 0, 1, 1], [], []>} : vector<10x8xbf16>, vector<8x8xbf16>, vector<10x8xf32> -> vector<10x8xf32>
    %459 = arith.addf %454, %458 : vector<10x8xf32>
    %c2_443 = arith.constant 2 : index
    %c0_444 = arith.constant 0 : index
    %c0_445 = arith.constant 0 : index
    %460 = vector.load %arg23[%c2_443, %c0_444, %c0_445] : memref<7x14x8xf32, #tpu.memory_space<vmem>>, vector<1x10x8xf32>
    %461 = vector.shape_cast %460 : vector<1x10x8xf32> to vector<10x8xf32>
    %462 = arith.truncf %461 : vector<10x8xf32> to vector<10x8xbf16>
    %cst_446 = arith.constant dense<0.000000e+00> : vector<10x8xf32>
    %463 = tpu.matmul %462, %383, %cst_446 {dimension_numbers = #tpu.dot_dimension_numbers<[1], [0], [0], [1], [0, 0, 1, 1], [], []>} : vector<10x8xbf16>, vector<8x8xbf16>, vector<10x8xf32> -> vector<10x8xf32>
    %464 = arith.addf %459, %463 : vector<10x8xf32>
    %c2_447 = arith.constant 2 : index
    %c2_448 = arith.constant 2 : index
    %c0_449 = arith.constant 0 : index
    %465 = vector.load %arg23[%c2_447, %c2_448, %c0_449] : memref<7x14x8xf32, #tpu.memory_space<vmem>>, vector<1x10x8xf32>
    %466 = vector.shape_cast %465 : vector<1x10x8xf32> to vector<10x8xf32>
    %467 = arith.truncf %466 : vector<10x8xf32> to vector<10x8xbf16>
    %cst_450 = arith.constant dense<0.000000e+00> : vector<10x8xf32>
    %468 = tpu.matmul %467, %385, %cst_450 {dimension_numbers = #tpu.dot_dimension_numbers<[1], [0], [0], [1], [0, 0, 1, 1], [], []>} : vector<10x8xbf16>, vector<8x8xbf16>, vector<10x8xf32> -> vector<10x8xf32>
    %469 = arith.addf %464, %468 : vector<10x8xf32>
    %c2_451 = arith.constant 2 : index
    %c4_452 = arith.constant 4 : index
    %c0_453 = arith.constant 0 : index
    %470 = vector.load %arg23[%c2_451, %c4_452, %c0_453] : memref<7x14x8xf32, #tpu.memory_space<vmem>>, vector<1x10x8xf32>
    %471 = vector.shape_cast %470 : vector<1x10x8xf32> to vector<10x8xf32>
    %472 = arith.truncf %471 : vector<10x8xf32> to vector<10x8xbf16>
    %cst_454 = arith.constant dense<0.000000e+00> : vector<10x8xf32>
    %473 = tpu.matmul %472, %387, %cst_454 {dimension_numbers = #tpu.dot_dimension_numbers<[1], [0], [0], [1], [0, 0, 1, 1], [], []>} : vector<10x8xbf16>, vector<8x8xbf16>, vector<10x8xf32> -> vector<10x8xf32>
    %474 = arith.addf %469, %473 : vector<10x8xf32>
    %c3_455 = arith.constant 3 : index
    %c0_456 = arith.constant 0 : index
    %c0_457 = arith.constant 0 : index
    %475 = vector.load %arg23[%c3_455, %c0_456, %c0_457] : memref<7x14x8xf32, #tpu.memory_space<vmem>>, vector<1x10x8xf32>
    %476 = vector.shape_cast %475 : vector<1x10x8xf32> to vector<10x8xf32>
    %477 = arith.truncf %476 : vector<10x8xf32> to vector<10x8xbf16>
    %cst_458 = arith.constant dense<0.000000e+00> : vector<10x8xf32>
    %478 = tpu.matmul %477, %389, %cst_458 {dimension_numbers = #tpu.dot_dimension_numbers<[1], [0], [0], [1], [0, 0, 1, 1], [], []>} : vector<10x8xbf16>, vector<8x8xbf16>, vector<10x8xf32> -> vector<10x8xf32>
    %479 = arith.addf %474, %478 : vector<10x8xf32>
    %c3_459 = arith.constant 3 : index
    %c2_460 = arith.constant 2 : index
    %c0_461 = arith.constant 0 : index
    %480 = vector.load %arg23[%c3_459, %c2_460, %c0_461] : memref<7x14x8xf32, #tpu.memory_space<vmem>>, vector<1x10x8xf32>
    %481 = vector.shape_cast %480 : vector<1x10x8xf32> to vector<10x8xf32>
    %482 = arith.truncf %481 : vector<10x8xf32> to vector<10x8xbf16>
    %cst_462 = arith.constant dense<0.000000e+00> : vector<10x8xf32>
    %483 = tpu.matmul %482, %391, %cst_462 {dimension_numbers = #tpu.dot_dimension_numbers<[1], [0], [0], [1], [0, 0, 1, 1], [], []>} : vector<10x8xbf16>, vector<8x8xbf16>, vector<10x8xf32> -> vector<10x8xf32>
    %484 = arith.addf %479, %483 : vector<10x8xf32>
    %c3_463 = arith.constant 3 : index
    %c4_464 = arith.constant 4 : index
    %c0_465 = arith.constant 0 : index
    %485 = vector.load %arg23[%c3_463, %c4_464, %c0_465] : memref<7x14x8xf32, #tpu.memory_space<vmem>>, vector<1x10x8xf32>
    %486 = vector.shape_cast %485 : vector<1x10x8xf32> to vector<10x8xf32>
    %487 = arith.truncf %486 : vector<10x8xf32> to vector<10x8xbf16>
    %cst_466 = arith.constant dense<0.000000e+00> : vector<10x8xf32>
    %488 = tpu.matmul %487, %393, %cst_466 {dimension_numbers = #tpu.dot_dimension_numbers<[1], [0], [0], [1], [0, 0, 1, 1], [], []>} : vector<10x8xbf16>, vector<8x8xbf16>, vector<10x8xf32> -> vector<10x8xf32>
    %489 = arith.addf %484, %488 : vector<10x8xf32>
    %490 = vector.broadcast %394 : vector<1x8xf32> to vector<10x8xf32>
    %491 = arith.addf %489, %490 : vector<10x8xf32>
    %cst_467 = arith.constant 0.000000e+00 : f32
    %492 = vector.broadcast %cst_467 : f32 to vector<10x8xf32>
    %493 = arith.maximumf %491, %492 : vector<10x8xf32>
    %c1_468 = arith.constant 1 : index
    %c0_469 = arith.constant 0 : index
    %c0_470 = arith.constant 0 : index
    %494 = vector.load %arg24[%c1_468, %c0_469, %c0_470] : memref<5x10x8xf32, #tpu.memory_space<vmem>>, vector<1x10x8xf32>
    %495 = vector.shape_cast %494 : vector<1x10x8xf32> to vector<10x8xf32>
    %496 = vector.shape_cast %493 : vector<10x8xf32> to vector<1x10x8xf32>
    tpu.vector_store %arg24[%c1_468, %c0_469, %c0_470], %496 {strides = array<i32>} : memref<5x10x8xf32, #tpu.memory_space<vmem>>, vector<1x10x8xf32>,
    %c2_471 = arith.constant 2 : index
    %c0_472 = arith.constant 0 : index
    %c0_473 = arith.constant 0 : index
    %497 = vector.load %arg23[%c2_471, %c0_472, %c0_473] : memref<7x14x8xf32, #tpu.memory_space<vmem>>, vector<1x10x8xf32>
    %498 = vector.shape_cast %497 : vector<1x10x8xf32> to vector<10x8xf32>
    %499 = arith.truncf %498 : vector<10x8xf32> to vector<10x8xbf16>
    %cst_474 = arith.constant dense<0.000000e+00> : vector<10x8xf32>
    %500 = tpu.matmul %499, %377, %cst_474 {dimension_numbers = #tpu.dot_dimension_numbers<[1], [0], [0], [1], [0, 0, 1, 1], [], []>} : vector<10x8xbf16>, vector<8x8xbf16>, vector<10x8xf32> -> vector<10x8xf32>
    %c2_475 = arith.constant 2 : index
    %c2_476 = arith.constant 2 : index
    %c0_477 = arith.constant 0 : index
    %501 = vector.load %arg23[%c2_475, %c2_476, %c0_477] : memref<7x14x8xf32, #tpu.memory_space<vmem>>, vector<1x10x8xf32>
    %502 = vector.shape_cast %501 : vector<1x10x8xf32> to vector<10x8xf32>
    %503 = arith.truncf %502 : vector<10x8xf32> to vector<10x8xbf16>
    %cst_478 = arith.constant dense<0.000000e+00> : vector<10x8xf32>
    %504 = tpu.matmul %503, %379, %cst_478 {dimension_numbers = #tpu.dot_dimension_numbers<[1], [0], [0], [1], [0, 0, 1, 1], [], []>} : vector<10x8xbf16>, vector<8x8xbf16>, vector<10x8xf32> -> vector<10x8xf32>
    %505 = arith.addf %500, %504 : vector<10x8xf32>
    %c2_479 = arith.constant 2 : index
    %c4_480 = arith.constant 4 : index
    %c0_481 = arith.constant 0 : index
    %506 = vector.load %arg23[%c2_479, %c4_480, %c0_481] : memref<7x14x8xf32, #tpu.memory_space<vmem>>, vector<1x10x8xf32>
    %507 = vector.shape_cast %506 : vector<1x10x8xf32> to vector<10x8xf32>
    %508 = arith.truncf %507 : vector<10x8xf32> to vector<10x8xbf16>
    %cst_482 = arith.constant dense<0.000000e+00> : vector<10x8xf32>
    %509 = tpu.matmul %508, %381, %cst_482 {dimension_numbers = #tpu.dot_dimension_numbers<[1], [0], [0], [1], [0, 0, 1, 1], [], []>} : vector<10x8xbf16>, vector<8x8xbf16>, vector<10x8xf32> -> vector<10x8xf32>
    %510 = arith.addf %505, %509 : vector<10x8xf32>
    %c3_483 = arith.constant 3 : index
    %c0_484 = arith.constant 0 : index
    %c0_485 = arith.constant 0 : index
    %511 = vector.load %arg23[%c3_483, %c0_484, %c0_485] : memref<7x14x8xf32, #tpu.memory_space<vmem>>, vector<1x10x8xf32>
    %512 = vector.shape_cast %511 : vector<1x10x8xf32> to vector<10x8xf32>
    %513 = arith.truncf %512 : vector<10x8xf32> to vector<10x8xbf16>
    %cst_486 = arith.constant dense<0.000000e+00> : vector<10x8xf32>
    %514 = tpu.matmul %513, %383, %cst_486 {dimension_numbers = #tpu.dot_dimension_numbers<[1], [0], [0], [1], [0, 0, 1, 1], [], []>} : vector<10x8xbf16>, vector<8x8xbf16>, vector<10x8xf32> -> vector<10x8xf32>
    %515 = arith.addf %510, %514 : vector<10x8xf32>
    %c3_487 = arith.constant 3 : index
    %c2_488 = arith.constant 2 : index
    %c0_489 = arith.constant 0 : index
    %516 = vector.load %arg23[%c3_487, %c2_488, %c0_489] : memref<7x14x8xf32, #tpu.memory_space<vmem>>, vector<1x10x8xf32>
    %517 = vector.shape_cast %516 : vector<1x10x8xf32> to vector<10x8xf32>
    %518 = arith.truncf %517 : vector<10x8xf32> to vector<10x8xbf16>
    %cst_490 = arith.constant dense<0.000000e+00> : vector<10x8xf32>
    %519 = tpu.matmul %518, %385, %cst_490 {dimension_numbers = #tpu.dot_dimension_numbers<[1], [0], [0], [1], [0, 0, 1, 1], [], []>} : vector<10x8xbf16>, vector<8x8xbf16>, vector<10x8xf32> -> vector<10x8xf32>
    %520 = arith.addf %515, %519 : vector<10x8xf32>
    %c3_491 = arith.constant 3 : index
    %c4_492 = arith.constant 4 : index
    %c0_493 = arith.constant 0 : index
    %521 = vector.load %arg23[%c3_491, %c4_492, %c0_493] : memref<7x14x8xf32, #tpu.memory_space<vmem>>, vector<1x10x8xf32>
    %522 = vector.shape_cast %521 : vector<1x10x8xf32> to vector<10x8xf32>
    %523 = arith.truncf %522 : vector<10x8xf32> to vector<10x8xbf16>
    %cst_494 = arith.constant dense<0.000000e+00> : vector<10x8xf32>
    %524 = tpu.matmul %523, %387, %cst_494 {dimension_numbers = #tpu.dot_dimension_numbers<[1], [0], [0], [1], [0, 0, 1, 1], [], []>} : vector<10x8xbf16>, vector<8x8xbf16>, vector<10x8xf32> -> vector<10x8xf32>
    %525 = arith.addf %520, %524 : vector<10x8xf32>
    %c4_495 = arith.constant 4 : index
    %c0_496 = arith.constant 0 : index
    %c0_497 = arith.constant 0 : index
    %526 = vector.load %arg23[%c4_495, %c0_496, %c0_497] : memref<7x14x8xf32, #tpu.memory_space<vmem>>, vector<1x10x8xf32>
    %527 = vector.shape_cast %526 : vector<1x10x8xf32> to vector<10x8xf32>
    %528 = arith.truncf %527 : vector<10x8xf32> to vector<10x8xbf16>
    %cst_498 = arith.constant dense<0.000000e+00> : vector<10x8xf32>
    %529 = tpu.matmul %528, %389, %cst_498 {dimension_numbers = #tpu.dot_dimension_numbers<[1], [0], [0], [1], [0, 0, 1, 1], [], []>} : vector<10x8xbf16>, vector<8x8xbf16>, vector<10x8xf32> -> vector<10x8xf32>
    %530 = arith.addf %525, %529 : vector<10x8xf32>
    %c4_499 = arith.constant 4 : index
    %c2_500 = arith.constant 2 : index
    %c0_501 = arith.constant 0 : index
    %531 = vector.load %arg23[%c4_499, %c2_500, %c0_501] : memref<7x14x8xf32, #tpu.memory_space<vmem>>, vector<1x10x8xf32>
    %532 = vector.shape_cast %531 : vector<1x10x8xf32> to vector<10x8xf32>
    %533 = arith.truncf %532 : vector<10x8xf32> to vector<10x8xbf16>
    %cst_502 = arith.constant dense<0.000000e+00> : vector<10x8xf32>
    %534 = tpu.matmul %533, %391, %cst_502 {dimension_numbers = #tpu.dot_dimension_numbers<[1], [0], [0], [1], [0, 0, 1, 1], [], []>} : vector<10x8xbf16>, vector<8x8xbf16>, vector<10x8xf32> -> vector<10x8xf32>
    %535 = arith.addf %530, %534 : vector<10x8xf32>
    %c4_503 = arith.constant 4 : index
    %c4_504 = arith.constant 4 : index
    %c0_505 = arith.constant 0 : index
    %536 = vector.load %arg23[%c4_503, %c4_504, %c0_505] : memref<7x14x8xf32, #tpu.memory_space<vmem>>, vector<1x10x8xf32>
    %537 = vector.shape_cast %536 : vector<1x10x8xf32> to vector<10x8xf32>
    %538 = arith.truncf %537 : vector<10x8xf32> to vector<10x8xbf16>
    %cst_506 = arith.constant dense<0.000000e+00> : vector<10x8xf32>
    %539 = tpu.matmul %538, %393, %cst_506 {dimension_numbers = #tpu.dot_dimension_numbers<[1], [0], [0], [1], [0, 0, 1, 1], [], []>} : vector<10x8xbf16>, vector<8x8xbf16>, vector<10x8xf32> -> vector<10x8xf32>
    %540 = arith.addf %535, %539 : vector<10x8xf32>
    %541 = vector.broadcast %394 : vector<1x8xf32> to vector<10x8xf32>
    %542 = arith.addf %540, %541 : vector<10x8xf32>
    %cst_507 = arith.constant 0.000000e+00 : f32
    %543 = vector.broadcast %cst_507 : f32 to vector<10x8xf32>
    %544 = arith.maximumf %542, %543 : vector<10x8xf32>
    %c2_508 = arith.constant 2 : index
    %c0_509 = arith.constant 0 : index
    %c0_510 = arith.constant 0 : index
    %545 = vector.load %arg24[%c2_508, %c0_509, %c0_510] : memref<5x10x8xf32, #tpu.memory_space<vmem>>, vector<1x10x8xf32>
    %546 = vector.shape_cast %545 : vector<1x10x8xf32> to vector<10x8xf32>
    %547 = vector.shape_cast %544 : vector<10x8xf32> to vector<1x10x8xf32>
    tpu.vector_store %arg24[%c2_508, %c0_509, %c0_510], %547 {strides = array<i32>} : memref<5x10x8xf32, #tpu.memory_space<vmem>>, vector<1x10x8xf32>,
    %c3_511 = arith.constant 3 : index
    %c0_512 = arith.constant 0 : index
    %c0_513 = arith.constant 0 : index
    %548 = vector.load %arg23[%c3_511, %c0_512, %c0_513] : memref<7x14x8xf32, #tpu.memory_space<vmem>>, vector<1x10x8xf32>
    %549 = vector.shape_cast %548 : vector<1x10x8xf32> to vector<10x8xf32>
    %550 = arith.truncf %549 : vector<10x8xf32> to vector<10x8xbf16>
    %cst_514 = arith.constant dense<0.000000e+00> : vector<10x8xf32>
    %551 = tpu.matmul %550, %377, %cst_514 {dimension_numbers = #tpu.dot_dimension_numbers<[1], [0], [0], [1], [0, 0, 1, 1], [], []>} : vector<10x8xbf16>, vector<8x8xbf16>, vector<10x8xf32> -> vector<10x8xf32>
    %c3_515 = arith.constant 3 : index
    %c2_516 = arith.constant 2 : index
    %c0_517 = arith.constant 0 : index
    %552 = vector.load %arg23[%c3_515, %c2_516, %c0_517] : memref<7x14x8xf32, #tpu.memory_space<vmem>>, vector<1x10x8xf32>
    %553 = vector.shape_cast %552 : vector<1x10x8xf32> to vector<10x8xf32>
    %554 = arith.truncf %553 : vector<10x8xf32> to vector<10x8xbf16>
    %cst_518 = arith.constant dense<0.000000e+00> : vector<10x8xf32>
    %555 = tpu.matmul %554, %379, %cst_518 {dimension_numbers = #tpu.dot_dimension_numbers<[1], [0], [0], [1], [0, 0, 1, 1], [], []>} : vector<10x8xbf16>, vector<8x8xbf16>, vector<10x8xf32> -> vector<10x8xf32>
    %556 = arith.addf %551, %555 : vector<10x8xf32>
    %c3_519 = arith.constant 3 : index
    %c4_520 = arith.constant 4 : index
    %c0_521 = arith.constant 0 : index
    %557 = vector.load %arg23[%c3_519, %c4_520, %c0_521] : memref<7x14x8xf32, #tpu.memory_space<vmem>>, vector<1x10x8xf32>
    %558 = vector.shape_cast %557 : vector<1x10x8xf32> to vector<10x8xf32>
    %559 = arith.truncf %558 : vector<10x8xf32> to vector<10x8xbf16>
    %cst_522 = arith.constant dense<0.000000e+00> : vector<10x8xf32>
    %560 = tpu.matmul %559, %381, %cst_522 {dimension_numbers = #tpu.dot_dimension_numbers<[1], [0], [0], [1], [0, 0, 1, 1], [], []>} : vector<10x8xbf16>, vector<8x8xbf16>, vector<10x8xf32> -> vector<10x8xf32>
    %561 = arith.addf %556, %560 : vector<10x8xf32>
    %c4_523 = arith.constant 4 : index
    %c0_524 = arith.constant 0 : index
    %c0_525 = arith.constant 0 : index
    %562 = vector.load %arg23[%c4_523, %c0_524, %c0_525] : memref<7x14x8xf32, #tpu.memory_space<vmem>>, vector<1x10x8xf32>
    %563 = vector.shape_cast %562 : vector<1x10x8xf32> to vector<10x8xf32>
    %564 = arith.truncf %563 : vector<10x8xf32> to vector<10x8xbf16>
    %cst_526 = arith.constant dense<0.000000e+00> : vector<10x8xf32>
    %565 = tpu.matmul %564, %383, %cst_526 {dimension_numbers = #tpu.dot_dimension_numbers<[1], [0], [0], [1], [0, 0, 1, 1], [], []>} : vector<10x8xbf16>, vector<8x8xbf16>, vector<10x8xf32> -> vector<10x8xf32>
    %566 = arith.addf %561, %565 : vector<10x8xf32>
    %c4_527 = arith.constant 4 : index
    %c2_528 = arith.constant 2 : index
    %c0_529 = arith.constant 0 : index
    %567 = vector.load %arg23[%c4_527, %c2_528, %c0_529] : memref<7x14x8xf32, #tpu.memory_space<vmem>>, vector<1x10x8xf32>
    %568 = vector.shape_cast %567 : vector<1x10x8xf32> to vector<10x8xf32>
    %569 = arith.truncf %568 : vector<10x8xf32> to vector<10x8xbf16>
    %cst_530 = arith.constant dense<0.000000e+00> : vector<10x8xf32>
    %570 = tpu.matmul %569, %385, %cst_530 {dimension_numbers = #tpu.dot_dimension_numbers<[1], [0], [0], [1], [0, 0, 1, 1], [], []>} : vector<10x8xbf16>, vector<8x8xbf16>, vector<10x8xf32> -> vector<10x8xf32>
    %571 = arith.addf %566, %570 : vector<10x8xf32>
    %c4_531 = arith.constant 4 : index
    %c4_532 = arith.constant 4 : index
    %c0_533 = arith.constant 0 : index
    %572 = vector.load %arg23[%c4_531, %c4_532, %c0_533] : memref<7x14x8xf32, #tpu.memory_space<vmem>>, vector<1x10x8xf32>
    %573 = vector.shape_cast %572 : vector<1x10x8xf32> to vector<10x8xf32>
    %574 = arith.truncf %573 : vector<10x8xf32> to vector<10x8xbf16>
    %cst_534 = arith.constant dense<0.000000e+00> : vector<10x8xf32>
    %575 = tpu.matmul %574, %387, %cst_534 {dimension_numbers = #tpu.dot_dimension_numbers<[1], [0], [0], [1], [0, 0, 1, 1], [], []>} : vector<10x8xbf16>, vector<8x8xbf16>, vector<10x8xf32> -> vector<10x8xf32>
    %576 = arith.addf %571, %575 : vector<10x8xf32>
    %c5_535 = arith.constant 5 : index
    %c0_536 = arith.constant 0 : index
    %c0_537 = arith.constant 0 : index
    %577 = vector.load %arg23[%c5_535, %c0_536, %c0_537] : memref<7x14x8xf32, #tpu.memory_space<vmem>>, vector<1x10x8xf32>
    %578 = vector.shape_cast %577 : vector<1x10x8xf32> to vector<10x8xf32>
    %579 = arith.truncf %578 : vector<10x8xf32> to vector<10x8xbf16>
    %cst_538 = arith.constant dense<0.000000e+00> : vector<10x8xf32>
    %580 = tpu.matmul %579, %389, %cst_538 {dimension_numbers = #tpu.dot_dimension_numbers<[1], [0], [0], [1], [0, 0, 1, 1], [], []>} : vector<10x8xbf16>, vector<8x8xbf16>, vector<10x8xf32> -> vector<10x8xf32>
    %581 = arith.addf %576, %580 : vector<10x8xf32>
    %c5_539 = arith.constant 5 : index
    %c2_540 = arith.constant 2 : index
    %c0_541 = arith.constant 0 : index
    %582 = vector.load %arg23[%c5_539, %c2_540, %c0_541] : memref<7x14x8xf32, #tpu.memory_space<vmem>>, vector<1x10x8xf32>
    %583 = vector.shape_cast %582 : vector<1x10x8xf32> to vector<10x8xf32>
    %584 = arith.truncf %583 : vector<10x8xf32> to vector<10x8xbf16>
    %cst_542 = arith.constant dense<0.000000e+00> : vector<10x8xf32>
    %585 = tpu.matmul %584, %391, %cst_542 {dimension_numbers = #tpu.dot_dimension_numbers<[1], [0], [0], [1], [0, 0, 1, 1], [], []>} : vector<10x8xbf16>, vector<8x8xbf16>, vector<10x8xf32> -> vector<10x8xf32>
    %586 = arith.addf %581, %585 : vector<10x8xf32>
    %c5_543 = arith.constant 5 : index
    %c4_544 = arith.constant 4 : index
    %c0_545 = arith.constant 0 : index
    %587 = vector.load %arg23[%c5_543, %c4_544, %c0_545] : memref<7x14x8xf32, #tpu.memory_space<vmem>>, vector<1x10x8xf32>
    %588 = vector.shape_cast %587 : vector<1x10x8xf32> to vector<10x8xf32>
    %589 = arith.truncf %588 : vector<10x8xf32> to vector<10x8xbf16>
    %cst_546 = arith.constant dense<0.000000e+00> : vector<10x8xf32>
    %590 = tpu.matmul %589, %393, %cst_546 {dimension_numbers = #tpu.dot_dimension_numbers<[1], [0], [0], [1], [0, 0, 1, 1], [], []>} : vector<10x8xbf16>, vector<8x8xbf16>, vector<10x8xf32> -> vector<10x8xf32>
    %591 = arith.addf %586, %590 : vector<10x8xf32>
    %592 = vector.broadcast %394 : vector<1x8xf32> to vector<10x8xf32>
    %593 = arith.addf %591, %592 : vector<10x8xf32>
    %cst_547 = arith.constant 0.000000e+00 : f32
    %594 = vector.broadcast %cst_547 : f32 to vector<10x8xf32>
    %595 = arith.maximumf %593, %594 : vector<10x8xf32>
    %c3_548 = arith.constant 3 : index
    %c0_549 = arith.constant 0 : index
    %c0_550 = arith.constant 0 : index
    %596 = vector.load %arg24[%c3_548, %c0_549, %c0_550] : memref<5x10x8xf32, #tpu.memory_space<vmem>>, vector<1x10x8xf32>
    %597 = vector.shape_cast %596 : vector<1x10x8xf32> to vector<10x8xf32>
    %598 = vector.shape_cast %595 : vector<10x8xf32> to vector<1x10x8xf32>
    tpu.vector_store %arg24[%c3_548, %c0_549, %c0_550], %598 {strides = array<i32>} : memref<5x10x8xf32, #tpu.memory_space<vmem>>, vector<1x10x8xf32>,
    %c4_551 = arith.constant 4 : index
    %c0_552 = arith.constant 0 : index
    %c0_553 = arith.constant 0 : index
    %599 = vector.load %arg23[%c4_551, %c0_552, %c0_553] : memref<7x14x8xf32, #tpu.memory_space<vmem>>, vector<1x10x8xf32>
    %600 = vector.shape_cast %599 : vector<1x10x8xf32> to vector<10x8xf32>
    %601 = arith.truncf %600 : vector<10x8xf32> to vector<10x8xbf16>
    %cst_554 = arith.constant dense<0.000000e+00> : vector<10x8xf32>
    %602 = tpu.matmul %601, %377, %cst_554 {dimension_numbers = #tpu.dot_dimension_numbers<[1], [0], [0], [1], [0, 0, 1, 1], [], []>} : vector<10x8xbf16>, vector<8x8xbf16>, vector<10x8xf32> -> vector<10x8xf32>
    %c4_555 = arith.constant 4 : index
    %c2_556 = arith.constant 2 : index
    %c0_557 = arith.constant 0 : index
    %603 = vector.load %arg23[%c4_555, %c2_556, %c0_557] : memref<7x14x8xf32, #tpu.memory_space<vmem>>, vector<1x10x8xf32>
    %604 = vector.shape_cast %603 : vector<1x10x8xf32> to vector<10x8xf32>
    %605 = arith.truncf %604 : vector<10x8xf32> to vector<10x8xbf16>
    %cst_558 = arith.constant dense<0.000000e+00> : vector<10x8xf32>
    %606 = tpu.matmul %605, %379, %cst_558 {dimension_numbers = #tpu.dot_dimension_numbers<[1], [0], [0], [1], [0, 0, 1, 1], [], []>} : vector<10x8xbf16>, vector<8x8xbf16>, vector<10x8xf32> -> vector<10x8xf32>
    %607 = arith.addf %602, %606 : vector<10x8xf32>
    %c4_559 = arith.constant 4 : index
    %c4_560 = arith.constant 4 : index
    %c0_561 = arith.constant 0 : index
    %608 = vector.load %arg23[%c4_559, %c4_560, %c0_561] : memref<7x14x8xf32, #tpu.memory_space<vmem>>, vector<1x10x8xf32>
    %609 = vector.shape_cast %608 : vector<1x10x8xf32> to vector<10x8xf32>
    %610 = arith.truncf %609 : vector<10x8xf32> to vector<10x8xbf16>
    %cst_562 = arith.constant dense<0.000000e+00> : vector<10x8xf32>
    %611 = tpu.matmul %610, %381, %cst_562 {dimension_numbers = #tpu.dot_dimension_numbers<[1], [0], [0], [1], [0, 0, 1, 1], [], []>} : vector<10x8xbf16>, vector<8x8xbf16>, vector<10x8xf32> -> vector<10x8xf32>
    %612 = arith.addf %607, %611 : vector<10x8xf32>
    %c5_563 = arith.constant 5 : index
    %c0_564 = arith.constant 0 : index
    %c0_565 = arith.constant 0 : index
    %613 = vector.load %arg23[%c5_563, %c0_564, %c0_565] : memref<7x14x8xf32, #tpu.memory_space<vmem>>, vector<1x10x8xf32>
    %614 = vector.shape_cast %613 : vector<1x10x8xf32> to vector<10x8xf32>
    %615 = arith.truncf %614 : vector<10x8xf32> to vector<10x8xbf16>
    %cst_566 = arith.constant dense<0.000000e+00> : vector<10x8xf32>
    %616 = tpu.matmul %615, %383, %cst_566 {dimension_numbers = #tpu.dot_dimension_numbers<[1], [0], [0], [1], [0, 0, 1, 1], [], []>} : vector<10x8xbf16>, vector<8x8xbf16>, vector<10x8xf32> -> vector<10x8xf32>
    %617 = arith.addf %612, %616 : vector<10x8xf32>
    %c5_567 = arith.constant 5 : index
    %c2_568 = arith.constant 2 : index
    %c0_569 = arith.constant 0 : index
    %618 = vector.load %arg23[%c5_567, %c2_568, %c0_569] : memref<7x14x8xf32, #tpu.memory_space<vmem>>, vector<1x10x8xf32>
    %619 = vector.shape_cast %618 : vector<1x10x8xf32> to vector<10x8xf32>
    %620 = arith.truncf %619 : vector<10x8xf32> to vector<10x8xbf16>
    %cst_570 = arith.constant dense<0.000000e+00> : vector<10x8xf32>
    %621 = tpu.matmul %620, %385, %cst_570 {dimension_numbers = #tpu.dot_dimension_numbers<[1], [0], [0], [1], [0, 0, 1, 1], [], []>} : vector<10x8xbf16>, vector<8x8xbf16>, vector<10x8xf32> -> vector<10x8xf32>
    %622 = arith.addf %617, %621 : vector<10x8xf32>
    %c5_571 = arith.constant 5 : index
    %c4_572 = arith.constant 4 : index
    %c0_573 = arith.constant 0 : index
    %623 = vector.load %arg23[%c5_571, %c4_572, %c0_573] : memref<7x14x8xf32, #tpu.memory_space<vmem>>, vector<1x10x8xf32>
    %624 = vector.shape_cast %623 : vector<1x10x8xf32> to vector<10x8xf32>
    %625 = arith.truncf %624 : vector<10x8xf32> to vector<10x8xbf16>
    %cst_574 = arith.constant dense<0.000000e+00> : vector<10x8xf32>
    %626 = tpu.matmul %625, %387, %cst_574 {dimension_numbers = #tpu.dot_dimension_numbers<[1], [0], [0], [1], [0, 0, 1, 1], [], []>} : vector<10x8xbf16>, vector<8x8xbf16>, vector<10x8xf32> -> vector<10x8xf32>
    %627 = arith.addf %622, %626 : vector<10x8xf32>
    %c6_575 = arith.constant 6 : index
    %c0_576 = arith.constant 0 : index
    %c0_577 = arith.constant 0 : index
    %628 = vector.load %arg23[%c6_575, %c0_576, %c0_577] : memref<7x14x8xf32, #tpu.memory_space<vmem>>, vector<1x10x8xf32>
    %629 = vector.shape_cast %628 : vector<1x10x8xf32> to vector<10x8xf32>
    %630 = arith.truncf %629 : vector<10x8xf32> to vector<10x8xbf16>
    %cst_578 = arith.constant dense<0.000000e+00> : vector<10x8xf32>
    %631 = tpu.matmul %630, %389, %cst_578 {dimension_numbers = #tpu.dot_dimension_numbers<[1], [0], [0], [1], [0, 0, 1, 1], [], []>} : vector<10x8xbf16>, vector<8x8xbf16>, vector<10x8xf32> -> vector<10x8xf32>
    %632 = arith.addf %627, %631 : vector<10x8xf32>
    %c6_579 = arith.constant 6 : index
    %c2_580 = arith.constant 2 : index
    %c0_581 = arith.constant 0 : index
    %633 = vector.load %arg23[%c6_579, %c2_580, %c0_581] : memref<7x14x8xf32, #tpu.memory_space<vmem>>, vector<1x10x8xf32>
    %634 = vector.shape_cast %633 : vector<1x10x8xf32> to vector<10x8xf32>
    %635 = arith.truncf %634 : vector<10x8xf32> to vector<10x8xbf16>
    %cst_582 = arith.constant dense<0.000000e+00> : vector<10x8xf32>
    %636 = tpu.matmul %635, %391, %cst_582 {dimension_numbers = #tpu.dot_dimension_numbers<[1], [0], [0], [1], [0, 0, 1, 1], [], []>} : vector<10x8xbf16>, vector<8x8xbf16>, vector<10x8xf32> -> vector<10x8xf32>
    %637 = arith.addf %632, %636 : vector<10x8xf32>
    %c6_583 = arith.constant 6 : index
    %c4_584 = arith.constant 4 : index
    %c0_585 = arith.constant 0 : index
    %638 = vector.load %arg23[%c6_583, %c4_584, %c0_585] : memref<7x14x8xf32, #tpu.memory_space<vmem>>, vector<1x10x8xf32>
    %639 = vector.shape_cast %638 : vector<1x10x8xf32> to vector<10x8xf32>
    %640 = arith.truncf %639 : vector<10x8xf32> to vector<10x8xbf16>
    %cst_586 = arith.constant dense<0.000000e+00> : vector<10x8xf32>
    %641 = tpu.matmul %640, %393, %cst_586 {dimension_numbers = #tpu.dot_dimension_numbers<[1], [0], [0], [1], [0, 0, 1, 1], [], []>} : vector<10x8xbf16>, vector<8x8xbf16>, vector<10x8xf32> -> vector<10x8xf32>
    %642 = arith.addf %637, %641 : vector<10x8xf32>
    %643 = vector.broadcast %394 : vector<1x8xf32> to vector<10x8xf32>
    %644 = arith.addf %642, %643 : vector<10x8xf32>
    %cst_587 = arith.constant 0.000000e+00 : f32
    %645 = vector.broadcast %cst_587 : f32 to vector<10x8xf32>
    %646 = arith.maximumf %644, %645 : vector<10x8xf32>
    %c4_588 = arith.constant 4 : index
    %c0_589 = arith.constant 0 : index
    %c0_590 = arith.constant 0 : index
    %647 = vector.load %arg24[%c4_588, %c0_589, %c0_590] : memref<5x10x8xf32, #tpu.memory_space<vmem>>, vector<1x10x8xf32>
    %648 = vector.shape_cast %647 : vector<1x10x8xf32> to vector<10x8xf32>
    %649 = vector.shape_cast %646 : vector<10x8xf32> to vector<1x10x8xf32>
    tpu.vector_store %arg24[%c4_588, %c0_589, %c0_590], %649 {strides = array<i32>} : memref<5x10x8xf32, #tpu.memory_space<vmem>>, vector<1x10x8xf32>,
    %c0_591 = arith.constant 0 : index
    %c0_592 = arith.constant 0 : index
    %c0_593 = arith.constant 0 : index
    %650 = vector.load %arg24[%c0_591, %c0_592, %c0_593] : memref<5x10x8xf32, #tpu.memory_space<vmem>>, vector<1x2x8xf32>
    %651 = vector.shape_cast %650 : vector<1x2x8xf32> to vector<2x8xf32>
    %c0_594 = arith.constant 0 : index
    %c0_595 = arith.constant 0 : index
    %c0_596 = arith.constant 0 : index
    %652 = vector.load %arg6[%c0_594, %c0_595, %c0_596] : memref<25x8x32xbf16, #tpu.memory_space<vmem>>, vector<1x8x32xbf16>
    %653 = vector.shape_cast %652 : vector<1x8x32xbf16> to vector<8x32xbf16>
    %654 = arith.truncf %651 : vector<2x8xf32> to vector<2x8xbf16>
    %cst_597 = arith.constant dense<0.000000e+00> : vector<2x32xf32>
    %655 = tpu.matmul %654, %653, %cst_597 {dimension_numbers = #tpu.dot_dimension_numbers<[1], [0], [0], [1], [0, 0, 1, 1], [], []>} : vector<2x8xbf16>, vector<8x32xbf16>, vector<2x32xf32> -> vector<2x32xf32>
    %c0_598 = arith.constant 0 : index
    %c2_599 = arith.constant 2 : index
    %c0_600 = arith.constant 0 : index
    %656 = vector.load %arg24[%c0_598, %c2_599, %c0_600] : memref<5x10x8xf32, #tpu.memory_space<vmem>>, vector<1x2x8xf32>
    %657 = vector.shape_cast %656 : vector<1x2x8xf32> to vector<2x8xf32>
    %c1_601 = arith.constant 1 : index
    %c0_602 = arith.constant 0 : index
    %c0_603 = arith.constant 0 : index
    %658 = vector.load %arg6[%c1_601, %c0_602, %c0_603] : memref<25x8x32xbf16, #tpu.memory_space<vmem>>, vector<1x8x32xbf16>
    %659 = vector.shape_cast %658 : vector<1x8x32xbf16> to vector<8x32xbf16>
    %660 = arith.truncf %657 : vector<2x8xf32> to vector<2x8xbf16>
    %cst_604 = arith.constant dense<0.000000e+00> : vector<2x32xf32>
    %661 = tpu.matmul %660, %659, %cst_604 {dimension_numbers = #tpu.dot_dimension_numbers<[1], [0], [0], [1], [0, 0, 1, 1], [], []>} : vector<2x8xbf16>, vector<8x32xbf16>, vector<2x32xf32> -> vector<2x32xf32>
    %662 = arith.addf %655, %661 : vector<2x32xf32>
    %c0_605 = arith.constant 0 : index
    %c4_606 = arith.constant 4 : index
    %c0_607 = arith.constant 0 : index
    %663 = vector.load %arg24[%c0_605, %c4_606, %c0_607] : memref<5x10x8xf32, #tpu.memory_space<vmem>>, vector<1x2x8xf32>
    %664 = vector.shape_cast %663 : vector<1x2x8xf32> to vector<2x8xf32>
    %c2_608 = arith.constant 2 : index
    %c0_609 = arith.constant 0 : index
    %c0_610 = arith.constant 0 : index
    %665 = vector.load %arg6[%c2_608, %c0_609, %c0_610] : memref<25x8x32xbf16, #tpu.memory_space<vmem>>, vector<1x8x32xbf16>
    %666 = vector.shape_cast %665 : vector<1x8x32xbf16> to vector<8x32xbf16>
    %667 = arith.truncf %664 : vector<2x8xf32> to vector<2x8xbf16>
    %cst_611 = arith.constant dense<0.000000e+00> : vector<2x32xf32>
    %668 = tpu.matmul %667, %666, %cst_611 {dimension_numbers = #tpu.dot_dimension_numbers<[1], [0], [0], [1], [0, 0, 1, 1], [], []>} : vector<2x8xbf16>, vector<8x32xbf16>, vector<2x32xf32> -> vector<2x32xf32>
    %669 = arith.addf %662, %668 : vector<2x32xf32>
    %c0_612 = arith.constant 0 : index
    %c6_613 = arith.constant 6 : index
    %c0_614 = arith.constant 0 : index
    %670 = vector.load %arg24[%c0_612, %c6_613, %c0_614] : memref<5x10x8xf32, #tpu.memory_space<vmem>>, vector<1x2x8xf32>
    %671 = vector.shape_cast %670 : vector<1x2x8xf32> to vector<2x8xf32>
    %c3_615 = arith.constant 3 : index
    %c0_616 = arith.constant 0 : index
    %c0_617 = arith.constant 0 : index
    %672 = vector.load %arg6[%c3_615, %c0_616, %c0_617] : memref<25x8x32xbf16, #tpu.memory_space<vmem>>, vector<1x8x32xbf16>
    %673 = vector.shape_cast %672 : vector<1x8x32xbf16> to vector<8x32xbf16>
    %674 = arith.truncf %671 : vector<2x8xf32> to vector<2x8xbf16>
    %cst_618 = arith.constant dense<0.000000e+00> : vector<2x32xf32>
    %675 = tpu.matmul %674, %673, %cst_618 {dimension_numbers = #tpu.dot_dimension_numbers<[1], [0], [0], [1], [0, 0, 1, 1], [], []>} : vector<2x8xbf16>, vector<8x32xbf16>, vector<2x32xf32> -> vector<2x32xf32>
    %676 = arith.addf %669, %675 : vector<2x32xf32>
    %c0_619 = arith.constant 0 : index
    %c8_620 = arith.constant 8 : index
    %c0_621 = arith.constant 0 : index
    %677 = vector.load %arg24[%c0_619, %c8_620, %c0_621] : memref<5x10x8xf32, #tpu.memory_space<vmem>>, vector<1x2x8xf32>
    %678 = vector.shape_cast %677 : vector<1x2x8xf32> to vector<2x8xf32>
    %c4_622 = arith.constant 4 : index
    %c0_623 = arith.constant 0 : index
    %c0_624 = arith.constant 0 : index
    %679 = vector.load %arg6[%c4_622, %c0_623, %c0_624] : memref<25x8x32xbf16, #tpu.memory_space<vmem>>, vector<1x8x32xbf16>
    %680 = vector.shape_cast %679 : vector<1x8x32xbf16> to vector<8x32xbf16>
    %681 = arith.truncf %678 : vector<2x8xf32> to vector<2x8xbf16>
    %cst_625 = arith.constant dense<0.000000e+00> : vector<2x32xf32>
    %682 = tpu.matmul %681, %680, %cst_625 {dimension_numbers = #tpu.dot_dimension_numbers<[1], [0], [0], [1], [0, 0, 1, 1], [], []>} : vector<2x8xbf16>, vector<8x32xbf16>, vector<2x32xf32> -> vector<2x32xf32>
    %683 = arith.addf %676, %682 : vector<2x32xf32>
    %c1_626 = arith.constant 1 : index
    %c0_627 = arith.constant 0 : index
    %c0_628 = arith.constant 0 : index
    %684 = vector.load %arg24[%c1_626, %c0_627, %c0_628] : memref<5x10x8xf32, #tpu.memory_space<vmem>>, vector<1x2x8xf32>
    %685 = vector.shape_cast %684 : vector<1x2x8xf32> to vector<2x8xf32>
    %c5_629 = arith.constant 5 : index
    %c0_630 = arith.constant 0 : index
    %c0_631 = arith.constant 0 : index
    %686 = vector.load %arg6[%c5_629, %c0_630, %c0_631] : memref<25x8x32xbf16, #tpu.memory_space<vmem>>, vector<1x8x32xbf16>
    %687 = vector.shape_cast %686 : vector<1x8x32xbf16> to vector<8x32xbf16>
    %688 = arith.truncf %685 : vector<2x8xf32> to vector<2x8xbf16>
    %cst_632 = arith.constant dense<0.000000e+00> : vector<2x32xf32>
    %689 = tpu.matmul %688, %687, %cst_632 {dimension_numbers = #tpu.dot_dimension_numbers<[1], [0], [0], [1], [0, 0, 1, 1], [], []>} : vector<2x8xbf16>, vector<8x32xbf16>, vector<2x32xf32> -> vector<2x32xf32>
    %690 = arith.addf %683, %689 : vector<2x32xf32>
    %c1_633 = arith.constant 1 : index
    %c2_634 = arith.constant 2 : index
    %c0_635 = arith.constant 0 : index
    %691 = vector.load %arg24[%c1_633, %c2_634, %c0_635] : memref<5x10x8xf32, #tpu.memory_space<vmem>>, vector<1x2x8xf32>
    %692 = vector.shape_cast %691 : vector<1x2x8xf32> to vector<2x8xf32>
    %c6_636 = arith.constant 6 : index
    %c0_637 = arith.constant 0 : index
    %c0_638 = arith.constant 0 : index
    %693 = vector.load %arg6[%c6_636, %c0_637, %c0_638] : memref<25x8x32xbf16, #tpu.memory_space<vmem>>, vector<1x8x32xbf16>
    %694 = vector.shape_cast %693 : vector<1x8x32xbf16> to vector<8x32xbf16>
    %695 = arith.truncf %692 : vector<2x8xf32> to vector<2x8xbf16>
    %cst_639 = arith.constant dense<0.000000e+00> : vector<2x32xf32>
    %696 = tpu.matmul %695, %694, %cst_639 {dimension_numbers = #tpu.dot_dimension_numbers<[1], [0], [0], [1], [0, 0, 1, 1], [], []>} : vector<2x8xbf16>, vector<8x32xbf16>, vector<2x32xf32> -> vector<2x32xf32>
    %697 = arith.addf %690, %696 : vector<2x32xf32>
    %c1_640 = arith.constant 1 : index
    %c4_641 = arith.constant 4 : index
    %c0_642 = arith.constant 0 : index
    %698 = vector.load %arg24[%c1_640, %c4_641, %c0_642] : memref<5x10x8xf32, #tpu.memory_space<vmem>>, vector<1x2x8xf32>
    %699 = vector.shape_cast %698 : vector<1x2x8xf32> to vector<2x8xf32>
    %c7_643 = arith.constant 7 : index
    %c0_644 = arith.constant 0 : index
    %c0_645 = arith.constant 0 : index
    %700 = vector.load %arg6[%c7_643, %c0_644, %c0_645] : memref<25x8x32xbf16, #tpu.memory_space<vmem>>, vector<1x8x32xbf16>
    %701 = vector.shape_cast %700 : vector<1x8x32xbf16> to vector<8x32xbf16>
    %702 = arith.truncf %699 : vector<2x8xf32> to vector<2x8xbf16>
    %cst_646 = arith.constant dense<0.000000e+00> : vector<2x32xf32>
    %703 = tpu.matmul %702, %701, %cst_646 {dimension_numbers = #tpu.dot_dimension_numbers<[1], [0], [0], [1], [0, 0, 1, 1], [], []>} : vector<2x8xbf16>, vector<8x32xbf16>, vector<2x32xf32> -> vector<2x32xf32>
    %704 = arith.addf %697, %703 : vector<2x32xf32>
    %c1_647 = arith.constant 1 : index
    %c6_648 = arith.constant 6 : index
    %c0_649 = arith.constant 0 : index
    %705 = vector.load %arg24[%c1_647, %c6_648, %c0_649] : memref<5x10x8xf32, #tpu.memory_space<vmem>>, vector<1x2x8xf32>
    %706 = vector.shape_cast %705 : vector<1x2x8xf32> to vector<2x8xf32>
    %c8_650 = arith.constant 8 : index
    %c0_651 = arith.constant 0 : index
    %c0_652 = arith.constant 0 : index
    %707 = vector.load %arg6[%c8_650, %c0_651, %c0_652] : memref<25x8x32xbf16, #tpu.memory_space<vmem>>, vector<1x8x32xbf16>
    %708 = vector.shape_cast %707 : vector<1x8x32xbf16> to vector<8x32xbf16>
    %709 = arith.truncf %706 : vector<2x8xf32> to vector<2x8xbf16>
    %cst_653 = arith.constant dense<0.000000e+00> : vector<2x32xf32>
    %710 = tpu.matmul %709, %708, %cst_653 {dimension_numbers = #tpu.dot_dimension_numbers<[1], [0], [0], [1], [0, 0, 1, 1], [], []>} : vector<2x8xbf16>, vector<8x32xbf16>, vector<2x32xf32> -> vector<2x32xf32>
    %711 = arith.addf %704, %710 : vector<2x32xf32>
    %c1_654 = arith.constant 1 : index
    %c8_655 = arith.constant 8 : index
    %c0_656 = arith.constant 0 : index
    %712 = vector.load %arg24[%c1_654, %c8_655, %c0_656] : memref<5x10x8xf32, #tpu.memory_space<vmem>>, vector<1x2x8xf32>
    %713 = vector.shape_cast %712 : vector<1x2x8xf32> to vector<2x8xf32>
    %c9 = arith.constant 9 : index
    %c0_657 = arith.constant 0 : index
    %c0_658 = arith.constant 0 : index
    %714 = vector.load %arg6[%c9, %c0_657, %c0_658] : memref<25x8x32xbf16, #tpu.memory_space<vmem>>, vector<1x8x32xbf16>
    %715 = vector.shape_cast %714 : vector<1x8x32xbf16> to vector<8x32xbf16>
    %716 = arith.truncf %713 : vector<2x8xf32> to vector<2x8xbf16>
    %cst_659 = arith.constant dense<0.000000e+00> : vector<2x32xf32>
    %717 = tpu.matmul %716, %715, %cst_659 {dimension_numbers = #tpu.dot_dimension_numbers<[1], [0], [0], [1], [0, 0, 1, 1], [], []>} : vector<2x8xbf16>, vector<8x32xbf16>, vector<2x32xf32> -> vector<2x32xf32>
    %718 = arith.addf %711, %717 : vector<2x32xf32>
    %c2_660 = arith.constant 2 : index
    %c0_661 = arith.constant 0 : index
    %c0_662 = arith.constant 0 : index
    %719 = vector.load %arg24[%c2_660, %c0_661, %c0_662] : memref<5x10x8xf32, #tpu.memory_space<vmem>>, vector<1x2x8xf32>
    %720 = vector.shape_cast %719 : vector<1x2x8xf32> to vector<2x8xf32>
    %c10 = arith.constant 10 : index
    %c0_663 = arith.constant 0 : index
    %c0_664 = arith.constant 0 : index
    %721 = vector.load %arg6[%c10, %c0_663, %c0_664] : memref<25x8x32xbf16, #tpu.memory_space<vmem>>, vector<1x8x32xbf16>
    %722 = vector.shape_cast %721 : vector<1x8x32xbf16> to vector<8x32xbf16>
    %723 = arith.truncf %720 : vector<2x8xf32> to vector<2x8xbf16>
    %cst_665 = arith.constant dense<0.000000e+00> : vector<2x32xf32>
    %724 = tpu.matmul %723, %722, %cst_665 {dimension_numbers = #tpu.dot_dimension_numbers<[1], [0], [0], [1], [0, 0, 1, 1], [], []>} : vector<2x8xbf16>, vector<8x32xbf16>, vector<2x32xf32> -> vector<2x32xf32>
    %725 = arith.addf %718, %724 : vector<2x32xf32>
    %c2_666 = arith.constant 2 : index
    %c2_667 = arith.constant 2 : index
    %c0_668 = arith.constant 0 : index
    %726 = vector.load %arg24[%c2_666, %c2_667, %c0_668] : memref<5x10x8xf32, #tpu.memory_space<vmem>>, vector<1x2x8xf32>
    %727 = vector.shape_cast %726 : vector<1x2x8xf32> to vector<2x8xf32>
    %c11 = arith.constant 11 : index
    %c0_669 = arith.constant 0 : index
    %c0_670 = arith.constant 0 : index
    %728 = vector.load %arg6[%c11, %c0_669, %c0_670] : memref<25x8x32xbf16, #tpu.memory_space<vmem>>, vector<1x8x32xbf16>
    %729 = vector.shape_cast %728 : vector<1x8x32xbf16> to vector<8x32xbf16>
    %730 = arith.truncf %727 : vector<2x8xf32> to vector<2x8xbf16>
    %cst_671 = arith.constant dense<0.000000e+00> : vector<2x32xf32>
    %731 = tpu.matmul %730, %729, %cst_671 {dimension_numbers = #tpu.dot_dimension_numbers<[1], [0], [0], [1], [0, 0, 1, 1], [], []>} : vector<2x8xbf16>, vector<8x32xbf16>, vector<2x32xf32> -> vector<2x32xf32>
    %732 = arith.addf %725, %731 : vector<2x32xf32>
    %c2_672 = arith.constant 2 : index
    %c4_673 = arith.constant 4 : index
    %c0_674 = arith.constant 0 : index
    %733 = vector.load %arg24[%c2_672, %c4_673, %c0_674] : memref<5x10x8xf32, #tpu.memory_space<vmem>>, vector<1x2x8xf32>
    %734 = vector.shape_cast %733 : vector<1x2x8xf32> to vector<2x8xf32>
    %c12 = arith.constant 12 : index
    %c0_675 = arith.constant 0 : index
    %c0_676 = arith.constant 0 : index
    %735 = vector.load %arg6[%c12, %c0_675, %c0_676] : memref<25x8x32xbf16, #tpu.memory_space<vmem>>, vector<1x8x32xbf16>
    %736 = vector.shape_cast %735 : vector<1x8x32xbf16> to vector<8x32xbf16>
    %737 = arith.truncf %734 : vector<2x8xf32> to vector<2x8xbf16>
    %cst_677 = arith.constant dense<0.000000e+00> : vector<2x32xf32>
    %738 = tpu.matmul %737, %736, %cst_677 {dimension_numbers = #tpu.dot_dimension_numbers<[1], [0], [0], [1], [0, 0, 1, 1], [], []>} : vector<2x8xbf16>, vector<8x32xbf16>, vector<2x32xf32> -> vector<2x32xf32>
    %739 = arith.addf %732, %738 : vector<2x32xf32>
    %c2_678 = arith.constant 2 : index
    %c6_679 = arith.constant 6 : index
    %c0_680 = arith.constant 0 : index
    %740 = vector.load %arg24[%c2_678, %c6_679, %c0_680] : memref<5x10x8xf32, #tpu.memory_space<vmem>>, vector<1x2x8xf32>
    %741 = vector.shape_cast %740 : vector<1x2x8xf32> to vector<2x8xf32>
    %c13 = arith.constant 13 : index
    %c0_681 = arith.constant 0 : index
    %c0_682 = arith.constant 0 : index
    %742 = vector.load %arg6[%c13, %c0_681, %c0_682] : memref<25x8x32xbf16, #tpu.memory_space<vmem>>, vector<1x8x32xbf16>
    %743 = vector.shape_cast %742 : vector<1x8x32xbf16> to vector<8x32xbf16>
    %744 = arith.truncf %741 : vector<2x8xf32> to vector<2x8xbf16>
    %cst_683 = arith.constant dense<0.000000e+00> : vector<2x32xf32>
    %745 = tpu.matmul %744, %743, %cst_683 {dimension_numbers = #tpu.dot_dimension_numbers<[1], [0], [0], [1], [0, 0, 1, 1], [], []>} : vector<2x8xbf16>, vector<8x32xbf16>, vector<2x32xf32> -> vector<2x32xf32>
    %746 = arith.addf %739, %745 : vector<2x32xf32>
    %c2_684 = arith.constant 2 : index
    %c8_685 = arith.constant 8 : index
    %c0_686 = arith.constant 0 : index
    %747 = vector.load %arg24[%c2_684, %c8_685, %c0_686] : memref<5x10x8xf32, #tpu.memory_space<vmem>>, vector<1x2x8xf32>
    %748 = vector.shape_cast %747 : vector<1x2x8xf32> to vector<2x8xf32>
    %c14 = arith.constant 14 : index
    %c0_687 = arith.constant 0 : index
    %c0_688 = arith.constant 0 : index
    %749 = vector.load %arg6[%c14, %c0_687, %c0_688] : memref<25x8x32xbf16, #tpu.memory_space<vmem>>, vector<1x8x32xbf16>
    %750 = vector.shape_cast %749 : vector<1x8x32xbf16> to vector<8x32xbf16>
    %751 = arith.truncf %748 : vector<2x8xf32> to vector<2x8xbf16>
    %cst_689 = arith.constant dense<0.000000e+00> : vector<2x32xf32>
    %752 = tpu.matmul %751, %750, %cst_689 {dimension_numbers = #tpu.dot_dimension_numbers<[1], [0], [0], [1], [0, 0, 1, 1], [], []>} : vector<2x8xbf16>, vector<8x32xbf16>, vector<2x32xf32> -> vector<2x32xf32>
    %753 = arith.addf %746, %752 : vector<2x32xf32>
    %c3_690 = arith.constant 3 : index
    %c0_691 = arith.constant 0 : index
    %c0_692 = arith.constant 0 : index
    %754 = vector.load %arg24[%c3_690, %c0_691, %c0_692] : memref<5x10x8xf32, #tpu.memory_space<vmem>>, vector<1x2x8xf32>
    %755 = vector.shape_cast %754 : vector<1x2x8xf32> to vector<2x8xf32>
    %c15 = arith.constant 15 : index
    %c0_693 = arith.constant 0 : index
    %c0_694 = arith.constant 0 : index
    %756 = vector.load %arg6[%c15, %c0_693, %c0_694] : memref<25x8x32xbf16, #tpu.memory_space<vmem>>, vector<1x8x32xbf16>
    %757 = vector.shape_cast %756 : vector<1x8x32xbf16> to vector<8x32xbf16>
    %758 = arith.truncf %755 : vector<2x8xf32> to vector<2x8xbf16>
    %cst_695 = arith.constant dense<0.000000e+00> : vector<2x32xf32>
    %759 = tpu.matmul %758, %757, %cst_695 {dimension_numbers = #tpu.dot_dimension_numbers<[1], [0], [0], [1], [0, 0, 1, 1], [], []>} : vector<2x8xbf16>, vector<8x32xbf16>, vector<2x32xf32> -> vector<2x32xf32>
    %760 = arith.addf %753, %759 : vector<2x32xf32>
    %c3_696 = arith.constant 3 : index
    %c2_697 = arith.constant 2 : index
    %c0_698 = arith.constant 0 : index
    %761 = vector.load %arg24[%c3_696, %c2_697, %c0_698] : memref<5x10x8xf32, #tpu.memory_space<vmem>>, vector<1x2x8xf32>
    %762 = vector.shape_cast %761 : vector<1x2x8xf32> to vector<2x8xf32>
    %c16 = arith.constant 16 : index
    %c0_699 = arith.constant 0 : index
    %c0_700 = arith.constant 0 : index
    %763 = vector.load %arg6[%c16, %c0_699, %c0_700] : memref<25x8x32xbf16, #tpu.memory_space<vmem>>, vector<1x8x32xbf16>
    %764 = vector.shape_cast %763 : vector<1x8x32xbf16> to vector<8x32xbf16>
    %765 = arith.truncf %762 : vector<2x8xf32> to vector<2x8xbf16>
    %cst_701 = arith.constant dense<0.000000e+00> : vector<2x32xf32>
    %766 = tpu.matmul %765, %764, %cst_701 {dimension_numbers = #tpu.dot_dimension_numbers<[1], [0], [0], [1], [0, 0, 1, 1], [], []>} : vector<2x8xbf16>, vector<8x32xbf16>, vector<2x32xf32> -> vector<2x32xf32>
    %767 = arith.addf %760, %766 : vector<2x32xf32>
    %c3_702 = arith.constant 3 : index
    %c4_703 = arith.constant 4 : index
    %c0_704 = arith.constant 0 : index
    %768 = vector.load %arg24[%c3_702, %c4_703, %c0_704] : memref<5x10x8xf32, #tpu.memory_space<vmem>>, vector<1x2x8xf32>
    %769 = vector.shape_cast %768 : vector<1x2x8xf32> to vector<2x8xf32>
    %c17 = arith.constant 17 : index
    %c0_705 = arith.constant 0 : index
    %c0_706 = arith.constant 0 : index
    %770 = vector.load %arg6[%c17, %c0_705, %c0_706] : memref<25x8x32xbf16, #tpu.memory_space<vmem>>, vector<1x8x32xbf16>
    %771 = vector.shape_cast %770 : vector<1x8x32xbf16> to vector<8x32xbf16>
    %772 = arith.truncf %769 : vector<2x8xf32> to vector<2x8xbf16>
    %cst_707 = arith.constant dense<0.000000e+00> : vector<2x32xf32>
    %773 = tpu.matmul %772, %771, %cst_707 {dimension_numbers = #tpu.dot_dimension_numbers<[1], [0], [0], [1], [0, 0, 1, 1], [], []>} : vector<2x8xbf16>, vector<8x32xbf16>, vector<2x32xf32> -> vector<2x32xf32>
    %774 = arith.addf %767, %773 : vector<2x32xf32>
    %c3_708 = arith.constant 3 : index
    %c6_709 = arith.constant 6 : index
    %c0_710 = arith.constant 0 : index
    %775 = vector.load %arg24[%c3_708, %c6_709, %c0_710] : memref<5x10x8xf32, #tpu.memory_space<vmem>>, vector<1x2x8xf32>
    %776 = vector.shape_cast %775 : vector<1x2x8xf32> to vector<2x8xf32>
    %c18 = arith.constant 18 : index
    %c0_711 = arith.constant 0 : index
    %c0_712 = arith.constant 0 : index
    %777 = vector.load %arg6[%c18, %c0_711, %c0_712] : memref<25x8x32xbf16, #tpu.memory_space<vmem>>, vector<1x8x32xbf16>
    %778 = vector.shape_cast %777 : vector<1x8x32xbf16> to vector<8x32xbf16>
    %779 = arith.truncf %776 : vector<2x8xf32> to vector<2x8xbf16>
    %cst_713 = arith.constant dense<0.000000e+00> : vector<2x32xf32>
    %780 = tpu.matmul %779, %778, %cst_713 {dimension_numbers = #tpu.dot_dimension_numbers<[1], [0], [0], [1], [0, 0, 1, 1], [], []>} : vector<2x8xbf16>, vector<8x32xbf16>, vector<2x32xf32> -> vector<2x32xf32>
    %781 = arith.addf %774, %780 : vector<2x32xf32>
    %c3_714 = arith.constant 3 : index
    %c8_715 = arith.constant 8 : index
    %c0_716 = arith.constant 0 : index
    %782 = vector.load %arg24[%c3_714, %c8_715, %c0_716] : memref<5x10x8xf32, #tpu.memory_space<vmem>>, vector<1x2x8xf32>
    %783 = vector.shape_cast %782 : vector<1x2x8xf32> to vector<2x8xf32>
    %c19 = arith.constant 19 : index
    %c0_717 = arith.constant 0 : index
    %c0_718 = arith.constant 0 : index
    %784 = vector.load %arg6[%c19, %c0_717, %c0_718] : memref<25x8x32xbf16, #tpu.memory_space<vmem>>, vector<1x8x32xbf16>
    %785 = vector.shape_cast %784 : vector<1x8x32xbf16> to vector<8x32xbf16>
    %786 = arith.truncf %783 : vector<2x8xf32> to vector<2x8xbf16>
    %cst_719 = arith.constant dense<0.000000e+00> : vector<2x32xf32>
    %787 = tpu.matmul %786, %785, %cst_719 {dimension_numbers = #tpu.dot_dimension_numbers<[1], [0], [0], [1], [0, 0, 1, 1], [], []>} : vector<2x8xbf16>, vector<8x32xbf16>, vector<2x32xf32> -> vector<2x32xf32>
    %788 = arith.addf %781, %787 : vector<2x32xf32>
    %c4_720 = arith.constant 4 : index
    %c0_721 = arith.constant 0 : index
    %c0_722 = arith.constant 0 : index
    %789 = vector.load %arg24[%c4_720, %c0_721, %c0_722] : memref<5x10x8xf32, #tpu.memory_space<vmem>>, vector<1x2x8xf32>
    %790 = vector.shape_cast %789 : vector<1x2x8xf32> to vector<2x8xf32>
    %c20 = arith.constant 20 : index
    %c0_723 = arith.constant 0 : index
    %c0_724 = arith.constant 0 : index
    %791 = vector.load %arg6[%c20, %c0_723, %c0_724] : memref<25x8x32xbf16, #tpu.memory_space<vmem>>, vector<1x8x32xbf16>
    %792 = vector.shape_cast %791 : vector<1x8x32xbf16> to vector<8x32xbf16>
    %793 = arith.truncf %790 : vector<2x8xf32> to vector<2x8xbf16>
    %cst_725 = arith.constant dense<0.000000e+00> : vector<2x32xf32>
    %794 = tpu.matmul %793, %792, %cst_725 {dimension_numbers = #tpu.dot_dimension_numbers<[1], [0], [0], [1], [0, 0, 1, 1], [], []>} : vector<2x8xbf16>, vector<8x32xbf16>, vector<2x32xf32> -> vector<2x32xf32>
    %795 = arith.addf %788, %794 : vector<2x32xf32>
    %c4_726 = arith.constant 4 : index
    %c2_727 = arith.constant 2 : index
    %c0_728 = arith.constant 0 : index
    %796 = vector.load %arg24[%c4_726, %c2_727, %c0_728] : memref<5x10x8xf32, #tpu.memory_space<vmem>>, vector<1x2x8xf32>
    %797 = vector.shape_cast %796 : vector<1x2x8xf32> to vector<2x8xf32>
    %c21 = arith.constant 21 : index
    %c0_729 = arith.constant 0 : index
    %c0_730 = arith.constant 0 : index
    %798 = vector.load %arg6[%c21, %c0_729, %c0_730] : memref<25x8x32xbf16, #tpu.memory_space<vmem>>, vector<1x8x32xbf16>
    %799 = vector.shape_cast %798 : vector<1x8x32xbf16> to vector<8x32xbf16>
    %800 = arith.truncf %797 : vector<2x8xf32> to vector<2x8xbf16>
    %cst_731 = arith.constant dense<0.000000e+00> : vector<2x32xf32>
    %801 = tpu.matmul %800, %799, %cst_731 {dimension_numbers = #tpu.dot_dimension_numbers<[1], [0], [0], [1], [0, 0, 1, 1], [], []>} : vector<2x8xbf16>, vector<8x32xbf16>, vector<2x32xf32> -> vector<2x32xf32>
    %802 = arith.addf %795, %801 : vector<2x32xf32>
    %c4_732 = arith.constant 4 : index
    %c4_733 = arith.constant 4 : index
    %c0_734 = arith.constant 0 : index
    %803 = vector.load %arg24[%c4_732, %c4_733, %c0_734] : memref<5x10x8xf32, #tpu.memory_space<vmem>>, vector<1x2x8xf32>
    %804 = vector.shape_cast %803 : vector<1x2x8xf32> to vector<2x8xf32>
    %c22 = arith.constant 22 : index
    %c0_735 = arith.constant 0 : index
    %c0_736 = arith.constant 0 : index
    %805 = vector.load %arg6[%c22, %c0_735, %c0_736] : memref<25x8x32xbf16, #tpu.memory_space<vmem>>, vector<1x8x32xbf16>
    %806 = vector.shape_cast %805 : vector<1x8x32xbf16> to vector<8x32xbf16>
    %807 = arith.truncf %804 : vector<2x8xf32> to vector<2x8xbf16>
    %cst_737 = arith.constant dense<0.000000e+00> : vector<2x32xf32>
    %808 = tpu.matmul %807, %806, %cst_737 {dimension_numbers = #tpu.dot_dimension_numbers<[1], [0], [0], [1], [0, 0, 1, 1], [], []>} : vector<2x8xbf16>, vector<8x32xbf16>, vector<2x32xf32> -> vector<2x32xf32>
    %809 = arith.addf %802, %808 : vector<2x32xf32>
    %c4_738 = arith.constant 4 : index
    %c6_739 = arith.constant 6 : index
    %c0_740 = arith.constant 0 : index
    %810 = vector.load %arg24[%c4_738, %c6_739, %c0_740] : memref<5x10x8xf32, #tpu.memory_space<vmem>>, vector<1x2x8xf32>
    %811 = vector.shape_cast %810 : vector<1x2x8xf32> to vector<2x8xf32>
    %c23 = arith.constant 23 : index
    %c0_741 = arith.constant 0 : index
    %c0_742 = arith.constant 0 : index
    %812 = vector.load %arg6[%c23, %c0_741, %c0_742] : memref<25x8x32xbf16, #tpu.memory_space<vmem>>, vector<1x8x32xbf16>
    %813 = vector.shape_cast %812 : vector<1x8x32xbf16> to vector<8x32xbf16>
    %814 = arith.truncf %811 : vector<2x8xf32> to vector<2x8xbf16>
    %cst_743 = arith.constant dense<0.000000e+00> : vector<2x32xf32>
    %815 = tpu.matmul %814, %813, %cst_743 {dimension_numbers = #tpu.dot_dimension_numbers<[1], [0], [0], [1], [0, 0, 1, 1], [], []>} : vector<2x8xbf16>, vector<8x32xbf16>, vector<2x32xf32> -> vector<2x32xf32>
    %816 = arith.addf %809, %815 : vector<2x32xf32>
    %c4_744 = arith.constant 4 : index
    %c8_745 = arith.constant 8 : index
    %c0_746 = arith.constant 0 : index
    %817 = vector.load %arg24[%c4_744, %c8_745, %c0_746] : memref<5x10x8xf32, #tpu.memory_space<vmem>>, vector<1x2x8xf32>
    %818 = vector.shape_cast %817 : vector<1x2x8xf32> to vector<2x8xf32>
    %c24 = arith.constant 24 : index
    %c0_747 = arith.constant 0 : index
    %c0_748 = arith.constant 0 : index
    %819 = vector.load %arg6[%c24, %c0_747, %c0_748] : memref<25x8x32xbf16, #tpu.memory_space<vmem>>, vector<1x8x32xbf16>
    %820 = vector.shape_cast %819 : vector<1x8x32xbf16> to vector<8x32xbf16>
    %821 = arith.truncf %818 : vector<2x8xf32> to vector<2x8xbf16>
    %cst_749 = arith.constant dense<0.000000e+00> : vector<2x32xf32>
    %822 = tpu.matmul %821, %820, %cst_749 {dimension_numbers = #tpu.dot_dimension_numbers<[1], [0], [0], [1], [0, 0, 1, 1], [], []>} : vector<2x8xbf16>, vector<8x32xbf16>, vector<2x32xf32> -> vector<2x32xf32>
    %823 = arith.addf %816, %822 : vector<2x32xf32>
    %c0_750 = arith.constant 0 : index
    %c0_751 = arith.constant 0 : index
    %824 = vector.load %arg7[%c0_750, %c0_751] : memref<1x32xf32, #tpu.memory_space<vmem>>, vector<1x32xf32>
    %825 = vector.broadcast %824 : vector<1x32xf32> to vector<2x32xf32>
    %826 = arith.addf %823, %825 : vector<2x32xf32>
    %cst_752 = arith.constant dense<0.000000e+00> : vector<2xf32>
    %827 = vector.multi_reduction <add>, %826, %cst_752 [1] : vector<2x32xf32> to vector<2xf32>
    %828 = vector.shape_cast %827 : vector<2xf32> to vector<2x1xf32>
    %cst_753 = arith.constant 3.200000e+01 : f32
    %829 = vector.broadcast %cst_753 : f32 to vector<2x1xf32>
    %830 = arith.divf %828, %829 : vector<2x1xf32>
    %831 = vector.broadcast %830 : vector<2x1xf32> to vector<2x32xf32>
    %832 = arith.subf %826, %831 : vector<2x32xf32>
    %833 = arith.mulf %832, %832 : vector<2x32xf32>
    %cst_754 = arith.constant dense<0.000000e+00> : vector<2xf32>
    %834 = vector.multi_reduction <add>, %833, %cst_754 [1] : vector<2x32xf32> to vector<2xf32>
    %835 = vector.shape_cast %834 : vector<2xf32> to vector<2x1xf32>
    %cst_755 = arith.constant 3.200000e+01 : f32
    %836 = vector.broadcast %cst_755 : f32 to vector<2x1xf32>
    %837 = arith.divf %835, %836 : vector<2x1xf32>
    %cst_756 = arith.constant 9.99999974E-6 : f32
    %838 = vector.broadcast %cst_756 : f32 to vector<2x1xf32>
    %839 = arith.addf %837, %838 : vector<2x1xf32>
    %840 = math.rsqrt %839 : vector<2x1xf32>
    %841 = vector.broadcast %840 : vector<2x1xf32> to vector<2x32xf32>
    %842 = arith.mulf %832, %841 : vector<2x32xf32>
    %c0_757 = arith.constant 0 : index
    %c0_758 = arith.constant 0 : index
    %843 = vector.load %arg8[%c0_757, %c0_758] : memref<1x32xf32, #tpu.memory_space<vmem>>, vector<1x32xf32>
    %844 = vector.broadcast %843 : vector<1x32xf32> to vector<2x32xf32>
    %845 = arith.mulf %842, %844 : vector<2x32xf32>
    %c0_759 = arith.constant 0 : index
    %c0_760 = arith.constant 0 : index
    %846 = vector.load %arg9[%c0_759, %c0_760] : memref<1x32xf32, #tpu.memory_space<vmem>>, vector<1x32xf32>
    %847 = vector.broadcast %846 : vector<1x32xf32> to vector<2x32xf32>
    %848 = arith.addf %845, %847 : vector<2x32xf32>
    %c0_761 = arith.constant 0 : index
    %c0_762 = arith.constant 0 : index
    %849 = vector.load %arg10[%c0_761, %c0_762] : memref<32x32xbf16, #tpu.memory_space<vmem>>, vector<32x32xbf16>
    %850 = arith.truncf %848 : vector<2x32xf32> to vector<2x32xbf16>
    %cst_763 = arith.constant dense<0.000000e+00> : vector<2x32xf32>
    %851 = tpu.matmul %850, %849, %cst_763 {dimension_numbers = #tpu.dot_dimension_numbers<[1], [0], [0], [1], [0, 0, 1, 1], [], []>} : vector<2x32xbf16>, vector<32x32xbf16>, vector<2x32xf32> -> vector<2x32xf32>
    %c0_764 = arith.constant 0 : index
    %c0_765 = arith.constant 0 : index
    %852 = vector.load %arg11[%c0_764, %c0_765] : memref<1x32xf32, #tpu.memory_space<vmem>>, vector<1x32xf32>
    %853 = vector.broadcast %852 : vector<1x32xf32> to vector<2x32xf32>
    %854 = arith.addf %851, %853 : vector<2x32xf32>
    %cst_766 = arith.constant 0.000000e+00 : f32
    %855 = vector.broadcast %cst_766 : f32 to vector<2x32xf32>
    %856 = arith.maximumf %854, %855 : vector<2x32xf32>
    %c0_767 = arith.constant 0 : index
    %c0_768 = arith.constant 0 : index
    %857 = vector.load %arg12[%c0_767, %c0_768] : memref<32x32xbf16, #tpu.memory_space<vmem>>, vector<32x32xbf16>
    %858 = arith.truncf %856 : vector<2x32xf32> to vector<2x32xbf16>
    %cst_769 = arith.constant dense<0.000000e+00> : vector<2x32xf32>
    %859 = tpu.matmul %858, %857, %cst_769 {dimension_numbers = #tpu.dot_dimension_numbers<[1], [0], [0], [1], [0, 0, 1, 1], [], []>} : vector<2x32xbf16>, vector<32x32xbf16>, vector<2x32xf32> -> vector<2x32xf32>
    %c0_770 = arith.constant 0 : index
    %c0_771 = arith.constant 0 : index
    %860 = vector.load %arg13[%c0_770, %c0_771] : memref<1x32xf32, #tpu.memory_space<vmem>>, vector<1x32xf32>
    %861 = vector.broadcast %860 : vector<1x32xf32> to vector<2x32xf32>
    %862 = arith.addf %859, %861 : vector<2x32xf32>
    %cst_772 = arith.constant 0.000000e+00 : f32
    %863 = vector.broadcast %cst_772 : f32 to vector<2x32xf32>
    %864 = arith.maximumf %862, %863 : vector<2x32xf32>
    %c0_773 = arith.constant 0 : index
    %c0_774 = arith.constant 0 : index
    %865 = vector.load %arg14[%c0_773, %c0_774] : memref<32x4xbf16, #tpu.memory_space<vmem>>, vector<32x4xbf16>
    %866 = arith.truncf %864 : vector<2x32xf32> to vector<2x32xbf16>
    %cst_775 = arith.constant dense<0.000000e+00> : vector<2x4xf32>
    %867 = tpu.matmul %866, %865, %cst_775 {dimension_numbers = #tpu.dot_dimension_numbers<[1], [0], [0], [1], [0, 0, 1, 1], [], []>} : vector<2x32xbf16>, vector<32x4xbf16>, vector<2x4xf32> -> vector<2x4xf32>
    %c0_776 = arith.constant 0 : index
    %c0_777 = arith.constant 0 : index
    %868 = vector.load %arg15[%c0_776, %c0_777] : memref<1x4xf32, #tpu.memory_space<vmem>>, vector<1x4xf32>
    %869 = vector.broadcast %868 : vector<1x4xf32> to vector<2x4xf32>
    %870 = arith.addf %867, %869 : vector<2x4xf32>
    %c0_778 = arith.constant 0 : index
    %c0_779 = arith.constant 0 : index
    %871 = vector.load %arg16[%c0_778, %c0_779] : memref<32x4xbf16, #tpu.memory_space<vmem>>, vector<32x4xbf16>
    %872 = arith.truncf %864 : vector<2x32xf32> to vector<2x32xbf16>
    %cst_780 = arith.constant dense<0.000000e+00> : vector<2x4xf32>
    %873 = tpu.matmul %872, %871, %cst_780 {dimension_numbers = #tpu.dot_dimension_numbers<[1], [0], [0], [1], [0, 0, 1, 1], [], []>} : vector<2x32xbf16>, vector<32x4xbf16>, vector<2x4xf32> -> vector<2x4xf32>
    %c0_781 = arith.constant 0 : index
    %c0_782 = arith.constant 0 : index
    %874 = vector.load %arg17[%c0_781, %c0_782] : memref<1x4xf32, #tpu.memory_space<vmem>>, vector<1x4xf32>
    %875 = vector.broadcast %874 : vector<1x4xf32> to vector<2x4xf32>
    %876 = arith.addf %873, %875 : vector<2x4xf32>
    %877 = math.tanh %876 : vector<2x4xf32>
    %cst_783 = arith.constant 1.000000e+00 : f32
    %878 = vector.broadcast %cst_783 : f32 to vector<2x4xf32>
    %879 = arith.addf %877, %878 : vector<2x4xf32>
    %cst_784 = arith.constant 6.000000e+00 : f32
    %880 = vector.broadcast %cst_784 : f32 to vector<2x4xf32>
    %881 = arith.mulf %880, %879 : vector<2x4xf32>
    %cst_785 = arith.constant -1.000000e+01 : f32
    %882 = vector.broadcast %cst_785 : f32 to vector<2x4xf32>
    %883 = arith.addf %882, %881 : vector<2x4xf32>
    %884 = math.exp %883 : vector<2x4xf32>
    %c0_786 = arith.constant 0 : index
    %c0_787 = arith.constant 0 : index
    %885 = vector.load %arg18[%c0_786, %c0_787] : memref<2x4xf32, #tpu.memory_space<vmem>>, vector<2x4xf32>
    %886 = arith.mulf %885, %884 : vector<2x4xf32>
    %887 = arith.addf %870, %886 : vector<2x4xf32>
    %cst_788 = arith.constant -5.000000e-01 : f32
    %888 = vector.broadcast %cst_788 : f32 to vector<2x4xf32>
    %889 = arith.mulf %888, %885 : vector<2x4xf32>
    %890 = arith.mulf %889, %885 : vector<2x4xf32>
    %891 = arith.subf %890, %883 : vector<2x4xf32>
    %cst_789 = arith.constant dense<0.000000e+00> : vector<2xf32>
    %892 = vector.multi_reduction <add>, %891, %cst_789 [1] : vector<2x4xf32> to vector<2xf32>
    %893 = vector.shape_cast %892 : vector<2xf32> to vector<2x1xf32>
    %cst_790 = arith.constant 3.67575407 : f32
    %894 = vector.broadcast %cst_790 : f32 to vector<2x1xf32>
    %895 = arith.subf %893, %894 : vector<2x1xf32>
    %896 = math.tanh %870 : vector<2x4xf32>
    %897 = math.tanh %887 : vector<2x4xf32>
    %898 = arith.mulf %897, %897 : vector<2x4xf32>
    %cst_791 = arith.constant 1.000000e+00 : f32
    %899 = vector.broadcast %cst_791 : f32 to vector<2x4xf32>
    %900 = arith.subf %899, %898 : vector<2x4xf32>
    %cst_792 = arith.constant 0.000000e+00 : f32
    %901 = vector.broadcast %cst_792 : f32 to vector<2x4xf32>
    %902 = arith.maximumf %900, %901 : vector<2x4xf32>
    %cst_793 = arith.constant 9.99999997E-7 : f32
    %903 = vector.broadcast %cst_793 : f32 to vector<2x4xf32>
    %904 = arith.addf %902, %903 : vector<2x4xf32>
    %905 = math.log %904 : vector<2x4xf32>
    %cst_794 = arith.constant dense<0.000000e+00> : vector<2xf32>
    %906 = vector.multi_reduction <add>, %905, %cst_794 [1] : vector<2x4xf32> to vector<2xf32>
    %907 = vector.shape_cast %906 : vector<2xf32> to vector<2x1xf32>
    %908 = arith.subf %895, %907 : vector<2x1xf32>
    %c0_795 = arith.constant 0 : index
    %c0_796 = arith.constant 0 : index
    %909 = vector.load %arg19[%c0_795, %c0_796] : memref<2x4xf32, #tpu.memory_space<vmem>>, vector<2x4xf32>
    tpu.vector_store %arg19[%c0_795, %c0_796], %896 {strides = array<i32>} : memref<2x4xf32, #tpu.memory_space<vmem>>, vector<2x4xf32>,
    %c0_797 = arith.constant 0 : index
    %c0_798 = arith.constant 0 : index
    %910 = vector.load %arg20[%c0_797, %c0_798] : memref<2x4xf32, #tpu.memory_space<vmem>>, vector<2x4xf32>
    tpu.vector_store %arg20[%c0_797, %c0_798], %897 {strides = array<i32>} : memref<2x4xf32, #tpu.memory_space<vmem>>, vector<2x4xf32>,
    %c0_799 = arith.constant 0 : index
    %c0_800 = arith.constant 0 : index
    %911 = vector.load %arg21[%c0_799, %c0_800] : memref<2x1xf32, #tpu.memory_space<vmem>>, vector<2x1xf32>
    tpu.vector_store %arg21[%c0_799, %c0_800], %908 {strides = array<i32>} : memref<2x1xf32, #tpu.memory_space<vmem>>, vector<2x1xf32>,
    %c0_801 = arith.constant 0 : index
    %c0_802 = arith.constant 0 : index
    %912 = vector.load %arg22[%c0_801, %c0_802] : memref<2x4xf32, #tpu.memory_space<vmem>>, vector<2x4xf32>
    tpu.vector_store %arg22[%c0_801, %c0_802], %883 {strides = array<i32>} : memref<2x4xf32, #tpu.memory_space<vmem>>, vector<2x4xf32>,
    return
  }
  func.func @transform_0(%arg0: i32) -> (i32, i32, i32, i32) {
    %c0_i32 = arith.constant 0 : i32
    %c0_i32_0 = arith.constant 0 : i32
    %c0_i32_1 = arith.constant 0 : i32
    %c0_i32_2 = arith.constant 0 : i32
    %c0_i32_3 = arith.constant 0 : i32
    return %c0_i32, %c0_i32_0, %c0_i32_1, %c0_i32_2 : i32, i32, i32, i32
  }
  func.func @transform_1(%arg0: i32) -> (i32, i32, i32) {
    %c0_i32 = arith.constant 0 : i32
    %c0_i32_0 = arith.constant 0 : i32
    %c0_i32_1 = arith.constant 0 : i32
    %c0_i32_2 = arith.constant 0 : i32
    return %c0_i32, %c0_i32_0, %c0_i32_1 : i32, i32, i32
  }
  func.func @transform_2(%arg0: i32) -> (i32, i32) {
    %c0_i32 = arith.constant 0 : i32
    %c0_i32_0 = arith.constant 0 : i32
    %c0_i32_1 = arith.constant 0 : i32
    return %c0_i32, %c0_i32_0 : i32, i32
  }
  func.func @transform_3(%arg0: i32) -> (i32, i32, i32) {
    %c0_i32 = arith.constant 0 : i32
    %c0_i32_0 = arith.constant 0 : i32
    %c0_i32_1 = arith.constant 0 : i32
    %c0_i32_2 = arith.constant 0 : i32
    return %c0_i32, %c0_i32_0, %c0_i32_1 : i32, i32, i32
  }
  func.func @transform_4(%arg0: i32) -> (i32, i32) {
    %c0_i32 = arith.constant 0 : i32
    %c0_i32_0 = arith.constant 0 : i32
    %c0_i32_1 = arith.constant 0 : i32
    return %c0_i32, %c0_i32_0 : i32, i32
  }
  func.func @transform_5(%arg0: i32) -> (i32, i32, i32) {
    %c0_i32 = arith.constant 0 : i32
    %c0_i32_0 = arith.constant 0 : i32
    %c0_i32_1 = arith.constant 0 : i32
    %c0_i32_2 = arith.constant 0 : i32
    return %c0_i32, %c0_i32_0, %c0_i32_1 : i32, i32, i32
  }
  func.func @transform_6(%arg0: i32) -> (i32, i32) {
    %c0_i32 = arith.constant 0 : i32
    %c0_i32_0 = arith.constant 0 : i32
    %c0_i32_1 = arith.constant 0 : i32
    return %c0_i32, %c0_i32_0 : i32, i32
  }
  func.func @transform_7(%arg0: i32) -> (i32, i32) {
    %c0_i32 = arith.constant 0 : i32
    %c0_i32_0 = arith.constant 0 : i32
    %c0_i32_1 = arith.constant 0 : i32
    return %c0_i32, %c0_i32_0 : i32, i32
  }
  func.func @transform_8(%arg0: i32) -> (i32, i32) {
    %c0_i32 = arith.constant 0 : i32
    %c0_i32_0 = arith.constant 0 : i32
    %c0_i32_1 = arith.constant 0 : i32
    return %c0_i32, %c0_i32_0 : i32, i32
  }
  func.func @transform_9(%arg0: i32) -> (i32, i32) {
    %c0_i32 = arith.constant 0 : i32
    %c0_i32_0 = arith.constant 0 : i32
    %c0_i32_1 = arith.constant 0 : i32
    return %c0_i32, %c0_i32_0 : i32, i32
  }
  func.func @transform_10(%arg0: i32) -> (i32, i32) {
    %c0_i32 = arith.constant 0 : i32
    %c0_i32_0 = arith.constant 0 : i32
    %c0_i32_1 = arith.constant 0 : i32
    return %c0_i32, %c0_i32_0 : i32, i32
  }
  func.func @transform_11(%arg0: i32) -> (i32, i32) {
    %c0_i32 = arith.constant 0 : i32
    %c0_i32_0 = arith.constant 0 : i32
    %c0_i32_1 = arith.constant 0 : i32
    return %c0_i32, %c0_i32_0 : i32, i32
  }
  func.func @transform_12(%arg0: i32) -> (i32, i32) {
    %c0_i32 = arith.constant 0 : i32
    %c0_i32_0 = arith.constant 0 : i32
    %c0_i32_1 = arith.constant 0 : i32
    return %c0_i32, %c0_i32_0 : i32, i32
  }
  func.func @transform_13(%arg0: i32) -> (i32, i32) {
    %c0_i32 = arith.constant 0 : i32
    %c0_i32_0 = arith.constant 0 : i32
    %c0_i32_1 = arith.constant 0 : i32
    return %c0_i32, %c0_i32_0 : i32, i32
  }
  func.func @transform_14(%arg0: i32) -> (i32, i32) {
    %c0_i32 = arith.constant 0 : i32
    %c0_i32_0 = arith.constant 0 : i32
    %c0_i32_1 = arith.constant 0 : i32
    return %c0_i32, %c0_i32_0 : i32, i32
  }
  func.func @transform_15(%arg0: i32) -> (i32, i32) {
    %c0_i32 = arith.constant 0 : i32
    %c0_i32_0 = arith.constant 0 : i32
    %c0_i32_1 = arith.constant 0 : i32
    return %c0_i32, %c0_i32_0 : i32, i32
  }
  func.func @transform_16(%arg0: i32) -> (i32, i32) {
    %c0_i32 = arith.constant 0 : i32
    %c0_i32_0 = arith.constant 0 : i32
    %c0_i32_1 = arith.constant 0 : i32
    return %c0_i32, %c0_i32_0 : i32, i32
  }
  func.func @transform_17(%arg0: i32) -> (i32, i32) {
    %c0_i32 = arith.constant 0 : i32
    %c0_i32_0 = arith.constant 0 : i32
    %c0_i32_1 = arith.constant 0 : i32
    return %c0_i32, %c0_i32_0 : i32, i32
  }
  func.func @transform_18(%arg0: i32) -> (i32, i32) {
    %c0_i32 = arith.constant 0 : i32
    %c0_i32_0 = arith.constant 0 : i32
    %c0_i32_1 = arith.constant 0 : i32
    return %c0_i32, %c0_i32_0 : i32, i32
  }
  func.func @transform_19(%arg0: i32) -> (i32, i32) {
    %c0_i32 = arith.constant 0 : i32
    %c0_i32_0 = arith.constant 0 : i32
    %c0_i32_1 = arith.constant 0 : i32
    return %c0_i32, %c0_i32_0 : i32, i32
  }
  func.func @transform_20(%arg0: i32) -> (i32, i32) {
    %c0_i32 = arith.constant 0 : i32
    %c0_i32_0 = arith.constant 0 : i32
    %c0_i32_1 = arith.constant 0 : i32
    return %c0_i32, %c0_i32_0 : i32, i32
  }
  func.func @transform_21(%arg0: i32) -> (i32, i32) {
    %c0_i32 = arith.constant 0 : i32
    %c0_i32_0 = arith.constant 0 : i32
    %c0_i32_1 = arith.constant 0 : i32
    return %c0_i32, %c0_i32_0 : i32, i32
  }
}

</mosaic_0001>

<llo_original>
// kernel: actor_forward.1
$region0: #{actor_forward.1}
  #allocation0 [shape = 'u32[]', space=smem, size = 0x4, offset = 0x4, fixed_abs, tag = 'smem constant byte address 0x4 - core index']
  #allocation1 [shape = 'u32[144,128]{1,0:T(1,128)}', space=vmem, size = 0x12000, scoped, tag = 'internal scratch']
  #allocation2 [shape = 'f32[7,14,8]{2,1,0:T(8,128)}', space=vmem, size = 0xe000, scoped, tag = 'scratch operand']
  #allocation3 [shape = 'f32[5,10,8]{2,1,0:T(8,128)}', space=vmem, size = 0xa000, scoped, tag = 'scratch operand']
  %s0 = inlined_call_operand.vmem [shape: f32[4,8,16,4], index: 0, kind: input, shape index: {}]
  %s1 = inlined_call_operand.vmem [shape: bf16[9,4,8], index: 1, kind: input, shape index: {}]
  %s2 = inlined_call_operand.vmem [shape: f32[1,8], index: 2, kind: input, shape index: {}]
  %s3 = inlined_call_operand.vmem [shape: bf16[9,8,8], index: 3, kind: input, shape index: {}]
  %s4 = inlined_call_operand.vmem [shape: f32[1,8], index: 4, kind: input, shape index: {}]
  %s5 = inlined_call_operand.vmem [shape: bf16[25,8,32], index: 5, kind: input, shape index: {}]
  %s6 = inlined_call_operand.vmem [shape: f32[1,32], index: 6, kind: input, shape index: {}]
  %s7 = inlined_call_operand.vmem [shape: f32[1,32], index: 7, kind: input, shape index: {}]
  %s8 = inlined_call_operand.vmem [shape: f32[1,32], index: 8, kind: input, shape index: {}]
  %s9 = inlined_call_operand.vmem [shape: bf16[32,32], index: 9, kind: input, shape index: {}]
  %s10 = inlined_call_operand.vmem [shape: f32[1,32], index: 10, kind: input, shape index: {}]
  %s11 = inlined_call_operand.vmem [shape: bf16[32,32], index: 11, kind: input, shape index: {}]
  %s12 = inlined_call_operand.vmem [shape: f32[1,32], index: 12, kind: input, shape index: {}]
  %s13 = inlined_call_operand.vmem [shape: bf16[32,4], index: 13, kind: input, shape index: {}]
  %s14 = inlined_call_operand.vmem [shape: f32[1,4], index: 14, kind: input, shape index: {}]
  %s15 = inlined_call_operand.vmem [shape: bf16[32,4], index: 15, kind: input, shape index: {}]
  %s16 = inlined_call_operand.vmem [shape: f32[1,4], index: 16, kind: input, shape index: {}]
  %s17 = inlined_call_operand.vmem [shape: f32[2,4], index: 17, kind: input, shape index: {}]
  %s18 = inlined_call_operand.hbm [shape: f32[2,4], index: 18, kind: output, shape index: {0}]
  %s19 = inlined_call_operand.hbm [shape: f32[2,4], index: 19, kind: output, shape index: {1}]
  %s20 = inlined_call_operand.vmem [shape: f32[2,1], index: 20, kind: output, shape index: {2}]
  %s21 = inlined_call_operand.hbm [shape: f32[2,4], index: 21, kind: output, shape index: {3}]
  %22 = xla_tuple %s18, %s19, %s20, %s21
  %s23 = sld [smem:[#allocation0]]
  $region106: #{actor_forward.1} parent=0
    _
  %s25 = ssub.s32 1, %s23
  %s26 = scalar_select 0, %s25, %s23
  $region1: #{actor_forward.1} parent=0
    #allocation4 [shape = 'u8[1024]{0}', space=vmem, size = 0x400, scoped, tag = 'output window, operand 0, single buffered']
    #allocation5 [shape = 's32[1]{0}', space=sflag, size = 0x4, scoped, tag = 'scoped memory for actor_forward.1']
    #allocation6 [shape = 'u8[1024]{0}', space=vmem, size = 0x400, scoped, tag = 'output window, operand 1, single buffered']
    #allocation7 [shape = 's32[1]{0}', space=sflag, size = 0x4, scoped, tag = 'scoped memory for actor_forward.1']
    #allocation8 [shape = 'u8[1024]{0}', space=vmem, size = 0x400, scoped, tag = 'output window, operand 3, single buffered']
    %27 = vsyncpa [#allocation5], 0
    %28 = vsyncpa [#allocation7], 0
    // Predicated region
    $region2: #{actor_forward.1} parent=1 // pred_check
      _
    $region3: #{actor_forward.1} parent=1 // pred_check_branch
      %30 = sbr.rel (0) target = $region5
    $region4: #{actor_forward.1} parent=1 // pred_region
      _
    $region5: #{actor_forward.1} parent=1 // pred_fallthru
      _
    // Predicated region
    $region6: #{actor_forward.1} parent=1 // pred_check
      _
    $region7: #{actor_forward.1} parent=1 // pred_check_branch
      %32 = sbr.rel (0) target = $region9
    $region8: #{actor_forward.1} parent=1 // pred_region
      _
    $region9: #{actor_forward.1} parent=1 // pred_fallthru
      _
    // Predicated region
    $region10: #{actor_forward.1} parent=1 // pred_check
      _
    $region11: #{actor_forward.1} parent=1 // pred_check_branch
      %34 = sbr.rel (0) target = $region13
    $region12: #{actor_forward.1} parent=1 // pred_region
      _
    $region13: #{actor_forward.1} parent=1 // pred_fallthru
      _
    // Predicated region
    $region14: #{actor_forward.1} parent=1 // pred_check
      _
    $region15: #{actor_forward.1} parent=1 // pred_check_branch
      %36 = sbr.rel (0) target = $region17
    $region16: #{actor_forward.1} parent=1 // pred_region
      _
    $region17: #{actor_forward.1} parent=1 // pred_fallthru
      _
    // Predicated region
    $region18: #{actor_forward.1} parent=1 // pred_check
      _
    $region19: #{actor_forward.1} parent=1 // pred_check_branch
      %38 = sbr.rel (0) target = $region21
    $region20: #{actor_forward.1} parent=1 // pred_region
      _
    $region21: #{actor_forward.1} parent=1 // pred_fallthru
      _
    // Predicated region
    $region22: #{actor_forward.1} parent=1 // pred_check
      _
    $region23: #{actor_forward.1} parent=1 // pred_check_branch
      %40 = sbr.rel (0) target = $region25
    $region24: #{actor_forward.1} parent=1 // pred_region
      _
    $region25: #{actor_forward.1} parent=1 // pred_fallthru
      _
    // Predicated region
    $region26: #{actor_forward.1} parent=1 // pred_check
      _
    $region27: #{actor_forward.1} parent=1 // pred_check_branch
      %42 = sbr.rel (0) target = $region29
    $region28: #{actor_forward.1} parent=1 // pred_region
      _
    $region29: #{actor_forward.1} parent=1 // pred_fallthru
      _
    // Predicated region
    $region30: #{actor_forward.1} parent=1 // pred_check
      _
    $region31: #{actor_forward.1} parent=1 // pred_check_branch
      %44 = sbr.rel (0) target = $region33
    $region32: #{actor_forward.1} parent=1 // pred_region
      _
    $region33: #{actor_forward.1} parent=1 // pred_fallthru
      _
    // Predicated region
    $region34: #{actor_forward.1} parent=1 // pred_check
      _
    $region35: #{actor_forward.1} parent=1 // pred_check_branch
      %46 = sbr.rel (0) target = $region37
    $region36: #{actor_forward.1} parent=1 // pred_region
      _
    $region37: #{actor_forward.1} parent=1 // pred_fallthru
      _
    // Predicated region
    $region38: #{actor_forward.1} parent=1 // pred_check
      _
    $region39: #{actor_forward.1} parent=1 // pred_check_branch
      %48 = sbr.rel (0) target = $region41
    $region40: #{actor_forward.1} parent=1 // pred_region
      _
    $region41: #{actor_forward.1} parent=1 // pred_fallthru
      _
    // Predicated region
    $region42: #{actor_forward.1} parent=1 // pred_check
      _
    $region43: #{actor_forward.1} parent=1 // pred_check_branch
      %50 = sbr.rel (0) target = $region45
    $region44: #{actor_forward.1} parent=1 // pred_region
      _
    $region45: #{actor_forward.1} parent=1 // pred_fallthru
      _
    // Predicated region
    $region46: #{actor_forward.1} parent=1 // pred_check
      _
    $region47: #{actor_forward.1} parent=1 // pred_check_branch
      %52 = sbr.rel (0) target = $region49
    $region48: #{actor_forward.1} parent=1 // pred_region
      _
    $region49: #{actor_forward.1} parent=1 // pred_fallthru
      _
    // Predicated region
    $region50: #{actor_forward.1} parent=1 // pred_check
      _
    $region51: #{actor_forward.1} parent=1 // pred_check_branch
      %54 = sbr.rel (0) target = $region53
    $region52: #{actor_forward.1} parent=1 // pred_region
      _
    $region53: #{actor_forward.1} parent=1 // pred_fallthru
      _
    // Predicated region
    $region54: #{actor_forward.1} parent=1 // pred_check
      _
    $region55: #{actor_forward.1} parent=1 // pred_check_branch
      %56 = sbr.rel (0) target = $region57
    $region56: #{actor_forward.1} parent=1 // pred_region
      _
    $region57: #{actor_forward.1} parent=1 // pred_fallthru
      _
    // Predicated region
    $region58: #{actor_forward.1} parent=1 // pred_check
      _
    $region59: #{actor_forward.1} parent=1 // pred_check_branch
      %58 = sbr.rel (0) target = $region61
    $region60: #{actor_forward.1} parent=1 // pred_region
      _
    $region61: #{actor_forward.1} parent=1 // pred_fallthru
      _
    // Predicated region
    $region62: #{actor_forward.1} parent=1 // pred_check
      _
    $region63: #{actor_forward.1} parent=1 // pred_check_branch
      %60 = sbr.rel (0) target = $region65
    $region64: #{actor_forward.1} parent=1 // pred_region
      _
    $region65: #{actor_forward.1} parent=1 // pred_fallthru
      _
    // Predicated region
    $region66: #{actor_forward.1} parent=1 // pred_check
      _
    $region67: #{actor_forward.1} parent=1 // pred_check_branch
      %62 = sbr.rel (0) target = $region69
    $region68: #{actor_forward.1} parent=1 // pred_region
      _
    $region69: #{actor_forward.1} parent=1 // pred_fallthru
      _
    // Predicated region
    $region70: #{actor_forward.1} parent=1 // pred_check
      _
    $region71: #{actor_forward.1} parent=1 // pred_check_branch
      %64 = sbr.rel (0) target = $region73
    $region72: #{actor_forward.1} parent=1 // pred_region
      _
    $region73: #{actor_forward.1} parent=1 // pred_fallthru
      _
    %v66 = vld [vmem:[%s1] sm:$0x3]
    %s67 = scalar_lea.vmem %s1, 2
    %v68 = vld [vmem:[%s67] sm:$0x3]
    %s69 = scalar_lea.vmem %s1, 4
    %v70 = vld [vmem:[%s69] sm:$0x3]
    %s71 = scalar_lea.vmem %s1, 6
    %v72 = vld [vmem:[%s71] sm:$0x3]
    %s73 = scalar_lea.vmem %s1, 8
    %v74 = vld [vmem:[%s73] sm:$0x3]
    %s75 = scalar_lea.vmem %s1, 10
    %v76 = vld [vmem:[%s75] sm:$0x3]
    %s77 = scalar_lea.vmem %s1, 12
    %v78 = vld [vmem:[%s77] sm:$0x3]
    %s79 = scalar_lea.vmem %s1, 14
    %v80 = vld [vmem:[%s79] sm:$0x3]
    %s81 = scalar_lea.vmem %s1, 16
    %v82 = vld [vmem:[%s81] sm:$0x3]
    %v83 = vld [vmem:[%s2] sm:$0x1]
    %v84 = vld [vmem:[%s0] sm:$0xff]
    %v85 = vld [vmem:[%s0 + $0x8] sm:$0x3f]
    %v86 = vpack.c.bf16 %v85, %v84
    %s87 = scalar_lea.vmem %s0, 128
    %v88 = vld [vmem:[%s87] sm:$0xff]
    %v89 = vld [vmem:[%s87 + $0x8] sm:$0x3f]
    %v90 = vpack.c.bf16 %v89, %v88
    %vm91 = vcmask 31744
    %v93 = vsel %vm91, %v90, 0
    %vm95 = vcmask 1041408
    %v97 = vsel %vm95, %v68, 0
    %99 = vmatprep.subr.bf16.mxu0 0
    %100 = vmatpush1.bf16.msra.mxu0 %v97
    %101 = vmatprep.subr.bf16.mxu0 0
    %102 = vmatpush1.bf16.msra.mxu0 0
    %103 = vmatprep.subr.bf16.mxu0 0
    %104 = vmatpush1.bf16.msra.mxu0 0
    %105 = vmatprep.subr.bf16.mxu0 0
    %106 = vmatpush1.bf16.msra.mxu0 0
    %107 = vmatprep.subr.bf16.mxu0 0
    %108 = vmatpush1.bf16.msra.mxu0 0
    %109 = vmatprep.subr.bf16.mxu0 0
    %110 = vmatpush1.bf16.msra.mxu0 0
    %111 = vmatprep.subr.bf16.mxu0 0
    %112 = vmatpush1.bf16.msra.mxu0 0
    %113 = vmatprep.subr.bf16.mxu0 0
    %114 = vmatpush1.bf16.msra.mxu0 0
    %115 = vmatprep.subr.bf16.mxu0 0
    %116 = vmatpush1.bf16.msra.mxu0 0
    %117 = vmatprep.subr.bf16.mxu0 0
    %118 = vmatpush1.bf16.msra.mxu0 0
    %119 = vmatprep.subr.bf16.mxu0 0
    %120 = vmatpush1.bf16.msra.mxu0 0
    %121 = vmatprep.subr.bf16.mxu0 0
    %122 = vmatpush1.bf16.msra.mxu0 0
    %123 = vmatprep.subr.bf16.mxu0 0
    %124 = vmatpush1.bf16.msra.mxu0 0
    %125 = vmatprep.subr.bf16.mxu0 0
    %126 = vmatpush1.bf16.msra.mxu0 0
    %127 = vmatprep.subr.bf16.mxu0 0
    %128 = vmatpush1.bf16.msra.mxu0 0
    %129 = vmatprep.subr.bf16.mxu0 0
    %130 = vmatpush1.bf16.msra.mxu0 0
    %131 = vmatprep.mubr.bf16.mxu0 0
    %132 = vmatmul.mubr.bf16.gmra.mrb[0].mxu0 %v93
    %v133 = vpop.f32.mrb[0].mxu0
    %v134 = vadd.f32 0.0, %v133
    %v135 = vpop.f32.mrb[0].mxu0
    %v136 = vpop.f32.mrb[0].mxu0
    %v137 = vadd.f32 0.0, %v136
    %v138 = vpop.f32.mrb[0].mxu0
    %139 = vdwg.mxu0
    %v141 = vsel %vm91, %v86, 0
    %v144 = vsel %vm95, %v66, 0
    %146 = vmatprep.subr.bf16.mxu0 0
    %147 = vmatpush1.bf16.msra.mxu0 %v144
    %148 = vmatprep.subr.bf16.mxu0 0
    %149 = vmatpush1.bf16.msra.mxu0 0
    %150 = vmatprep.subr.bf16.mxu0 0
    %151 = vmatpush1.bf16.msra.mxu0 0
    %152 = vmatprep.subr.bf16.mxu0 0
    %153 = vmatpush1.bf16.msra.mxu0 0
    %154 = vmatprep.subr.bf16.mxu0 0
    %155 = vmatpush1.bf16.msra.mxu0 0
    %156 = vmatprep.subr.bf16.mxu0 0
    %157 = vmatpush1.bf16.msra.mxu0 0
    %158 = vmatprep.subr.bf16.mxu0 0
    %159 = vmatpush1.bf16.msra.mxu0 0
    %160 = vmatprep.subr.bf16.mxu0 0
    %161 = vmatpush1.bf16.msra.mxu0 0
    %162 = vmatprep.subr.bf16.mxu0 0
    %163 = vmatpush1.bf16.msra.mxu0 0
    %164 = vmatprep.subr.bf16.mxu0 0
    %165 = vmatpush1.bf16.msra.mxu0 0
    %166 = vmatprep.subr.bf16.mxu0 0
    %167 = vmatpush1.bf16.msra.mxu0 0
    %168 = vmatprep.subr.bf16.mxu0 0
    %169 = vmatpush1.bf16.msra.mxu0 0
    %170 = vmatprep.subr.bf16.mxu0 0
    %171 = vmatpush1.bf16.msra.mxu0 0
    %172 = vmatprep.subr.bf16.mxu0 0
    %173 = vmatpush1.bf16.msra.mxu0 0
    %174 = vmatprep.subr.bf16.mxu0 0
    %175 = vmatpush1.bf16.msra.mxu0 0
    %176 = vmatprep.subr.bf16.mxu0 0
    %177 = vmatpush1.bf16.msra.mxu0 0
    %178 = vmatprep.mubr.bf16.mxu0 0
    %179 = vmatmul.mubr.bf16.gmra.mrb[0].mxu0 %v141
    %v180 = vpop.f32.mrb[0].mxu0
    %v181 = vadd.f32 %v134, %v180
    %v182 = vpop.f32.mrb[0].mxu0
    %v183 = vpop.f32.mrb[0].mxu0
    %v184 = vadd.f32 %v137, %v183
    %v185 = vpop.f32.mrb[0].mxu0
    %186 = vdwg.mxu0
    %v187 = vld [vmem:[%s0 + $0x2] sm:$0xff]
    %v188 = vld [vmem:[%s0 + $0xa] sm:$0x3f]
    %v189 = vpack.c.bf16 %v188, %v187
    %v191 = vsel %vm91, %v189, 0
    %v194 = vsel %vm95, %v70, 0
    %196 = vmatprep.subr.bf16.mxu0 0
    %197 = vmatpush1.bf16.msra.mxu0 %v194
    %198 = vmatprep.subr.bf16.mxu0 0
    %199 = vmatpush1.bf16.msra.mxu0 0
    %200 = vmatprep.subr.bf16.mxu0 0
    %201 = vmatpush1.bf16.msra.mxu0 0
    %202 = vmatprep.subr.bf16.mxu0 0
    %203 = vmatpush1.bf16.msra.mxu0 0
    %204 = vmatprep.subr.bf16.mxu0 0
    %205 = vmatpush1.bf16.msra.mxu0 0
    %206 = vmatprep.subr.bf16.mxu0 0
    %207 = vmatpush1.bf16.msra.mxu0 0
    %208 = vmatprep.subr.bf16.mxu0 0
    %209 = vmatpush1.bf16.msra.mxu0 0
    %210 = vmatprep.subr.bf16.mxu0 0
    %211 = vmatpush1.bf16.msra.mxu0 0
    %212 = vmatprep.subr.bf16.mxu0 0
    %213 = vmatpush1.bf16.msra.mxu0 0
    %214 = vmatprep.subr.bf16.mxu0 0
    %215 = vmatpush1.bf16.msra.mxu0 0
    %216 = vmatprep.subr.bf16.mxu0 0
    %217 = vmatpush1.bf16.msra.mxu0 0
    %218 = vmatprep.subr.bf16.mxu0 0
    %219 = vmatpush1.bf16.msra.mxu0 0
    %220 = vmatprep.subr.bf16.mxu0 0
    %221 = vmatpush1.bf16.msra.mxu0 0
    %222 = vmatprep.subr.bf16.mxu0 0
    %223 = vmatpush1.bf16.msra.mxu0 0
    %224 = vmatprep.subr.bf16.mxu0 0
    %225 = vmatpush1.bf16.msra.mxu0 0
    %226 = vmatprep.subr.bf16.mxu0 0
    %227 = vmatpush1.bf16.msra.mxu0 0
    %228 = vmatprep.mubr.bf16.mxu0 0
    %229 = vmatmul.mubr.bf16.gmra.mrb[0].mxu0 %v191
    %v230 = vpop.f32.mrb[0].mxu0
    %v231 = vadd.f32 0.0, %v230
    %v232 = vpop.f32.mrb[0].mxu0
    %v233 = vpop.f32.mrb[0].mxu0
    %v234 = vadd.f32 0.0, %v233
    %v235 = vpop.f32.mrb[0].mxu0
    %236 = vdwg.mxu0
    %v237 = vadd.f32 %v181, %v231
    %v238 = vadd.f32 %v184, %v234
    %s239 = scalar_lea.vmem %s0, 256
    %v240 = vld [vmem:[%s239] sm:$0xff]
    %v241 = vld [vmem:[%s239 + $0x8] sm:$0x3f]
    %v242 = vpack.c.bf16 %v241, %v240
    %v244 = vsel %vm91, %v242, 0
    %v247 = vsel %vm95, %v72, 0
    %249 = vmatprep.subr.bf16.mxu0 0
    %250 = vmatpush1.bf16.msra.mxu0 %v247
    %251 = vmatprep.subr.bf16.mxu0 0
    %252 = vmatpush1.bf16.msra.mxu0 0
    %253 = vmatprep.subr.bf16.mxu0 0
    %254 = vmatpush1.bf16.msra.mxu0 0
    %255 = vmatprep.subr.bf16.mxu0 0
    %256 = vmatpush1.bf16.msra.mxu0 0
    %257 = vmatprep.subr.bf16.mxu0 0
    %258 = vmatpush1.bf16.msra.mxu0 0
    %259 = vmatprep.subr.bf16.mxu0 0
    %260 = vmatpush1.bf16.msra.mxu0 0
    %261 = vmatprep.subr.bf16.mxu0 0
    %262 = vmatpush1.bf16.msra.mxu0 0
    %263 = vmatprep.subr.bf16.mxu0 0
    %264 = vmatpush1.bf16.msra.mxu0 0
    %265 = vmatprep.subr.bf16.mxu0 0
    %266 = vmatpush1.bf16.msra.mxu0 0
    %267 = vmatprep.subr.bf16.mxu0 0
    %268 = vmatpush1.bf16.msra.mxu0 0
    %269 = vmatprep.subr.bf16.mxu0 0
    %270 = vmatpush1.bf16.msra.mxu0 0
    %271 = vmatprep.subr.bf16.mxu0 0
    %272 = vmatpush1.bf16.msra.mxu0 0
    %273 = vmatprep.subr.bf16.mxu0 0
    %274 = vmatpush1.bf16.msra.mxu0 0
    %275 = vmatprep.subr.bf16.mxu0 0
    %276 = vmatpush1.bf16.msra.mxu0 0
    %277 = vmatprep.subr.bf16.mxu0 0
    %278 = vmatpush1.bf16.msra.mxu0 0
    %279 = vmatprep.subr.bf16.mxu0 0
    %280 = vmatpush1.bf16.msra.mxu0 0
    %281 = vmatprep.mubr.bf16.mxu0 0
    %282 = vmatmul.mubr.bf16.gmra.mrb[0].mxu0 %v244
    %v283 = vpop.f32.mrb[0].mxu0
    %v284 = vadd.f32 0.0, %v283
    %v285 = vpop.f32.mrb[0].mxu0
    %v286 = vpop.f32.mrb[0].mxu0
    %v287 = vadd.f32 0.0, %v286
    %v288 = vpop.f32.mrb[0].mxu0
    %289 = vdwg.mxu0
    %v290 = vadd.f32 %v237, %v284
    %v291 = vadd.f32 %v238, %v287
    %s292 = scalar_lea.vmem %s0, 384
    %v293 = vld [vmem:[%s292] sm:$0xff]
    %v294 = vld [vmem:[%s292 + $0x8] sm:$0x3f]
    %v295 = vpack.c.bf16 %v294, %v293
    %v297 = vsel %vm91, %v295, 0
    %v300 = vsel %vm95, %v74, 0
    %302 = vmatprep.subr.bf16.mxu0 0
    %303 = vmatpush1.bf16.msra.mxu0 %v300
    %304 = vmatprep.subr.bf16.mxu0 0
    %305 = vmatpush1.bf16.msra.mxu0 0
    %306 = vmatprep.subr.bf16.mxu0 0
    %307 = vmatpush1.bf16.msra.mxu0 0
    %308 = vmatprep.subr.bf16.mxu0 0
    %309 = vmatpush1.bf16.msra.mxu0 0
    %310 = vmatprep.subr.bf16.mxu0 0
    %311 = vmatpush1.bf16.msra.mxu0 0
    %312 = vmatprep.subr.bf16.mxu0 0
    %313 = vmatpush1.bf16.msra.mxu0 0
    %314 = vmatprep.subr.bf16.mxu0 0
    %315 = vmatpush1.bf16.msra.mxu0 0
    %316 = vmatprep.subr.bf16.mxu0 0
    %317 = vmatpush1.bf16.msra.mxu0 0
    %318 = vmatprep.subr.bf16.mxu0 0
    %319 = vmatpush1.bf16.msra.mxu0 0
    %320 = vmatprep.subr.bf16.mxu0 0
    %321 = vmatpush1.bf16.msra.mxu0 0
    %322 = vmatprep.subr.bf16.mxu0 0
    %323 = vmatpush1.bf16.msra.mxu0 0
    %324 = vmatprep.subr.bf16.mxu0 0
    %325 = vmatpush1.bf16.msra.mxu0 0
    %326 = vmatprep.subr.bf16.mxu0 0
    %327 = vmatpush1.bf16.msra.mxu0 0
    %328 = vmatprep.subr.bf16.mxu0 0
    %329 = vmatpush1.bf16.msra.mxu0 0
    %330 = vmatprep.subr.bf16.mxu0 0
    %331 = vmatpush1.bf16.msra.mxu0 0
    %332 = vmatprep.subr.bf16.mxu0 0
    %333 = vmatpush1.bf16.msra.mxu0 0
    %334 = vmatprep.mubr.bf16.mxu0 0
    %335 = vmatmul.mubr.bf16.gmra.mrb[0].mxu0 %v297
    %v336 = vpop.f32.mrb[0].mxu0
    %v337 = vadd.f32 0.0, %v336
    %v338 = vpop.f32.mrb[0].mxu0
    %v339 = vpop.f32.mrb[0].mxu0
    %v340 = vadd.f32 0.0, %v339
    %v341 = vpop.f32.mrb[0].mxu0
    %342 = vdwg.mxu0
    %v343 = vadd.f32 %v290, %v337
    %v344 = vadd.f32 %v291, %v340
    %v345 = vld [vmem:[%s239 + $0x2] sm:$0xff]
    %v346 = vld [vmem:[%s239 + $0xa] sm:$0x3f]
    %v347 = vpack.c.bf16 %v346, %v345
    %v349 = vsel %vm91, %v347, 0
    %v352 = vsel %vm95, %v76, 0
    %354 = vmatprep.subr.bf16.mxu0 0
    %355 = vmatpush1.bf16.msra.mxu0 %v352
    %356 = vmatprep.subr.bf16.mxu0 0
    %357 = vmatpush1.bf16.msra.mxu0 0
    %358 = vmatprep.subr.bf16.mxu0 0
    %359 = vmatpush1.bf16.msra.mxu0 0
    %360 = vmatprep.subr.bf16.mxu0 0
    %361 = vmatpush1.bf16.msra.mxu0 0
    %362 = vmatprep.subr.bf16.mxu0 0
    %363 = vmatpush1.bf16.msra.mxu0 0
    %364 = vmatprep.subr.bf16.mxu0 0
    %365 = vmatpush1.bf16.msra.mxu0 0
    %366 = vmatprep.subr.bf16.mxu0 0
    %367 = vmatpush1.bf16.msra.mxu0 0
    %368 = vmatprep.subr.bf16.mxu0 0
    %369 = vmatpush1.bf16.msra.mxu0 0
    %370 = vmatprep.subr.bf16.mxu0 0
    %371 = vmatpush1.bf16.msra.mxu0 0
    %372 = vmatprep.subr.bf16.mxu0 0
    %373 = vmatpush1.bf16.msra.mxu0 0
    %374 = vmatprep.subr.bf16.mxu0 0
    %375 = vmatpush1.bf16.msra.mxu0 0
    %376 = vmatprep.subr.bf16.mxu0 0
    %377 = vmatpush1.bf16.msra.mxu0 0
    %378 = vmatprep.subr.bf16.mxu0 0
    %379 = vmatpush1.bf16.msra.mxu0 0
    %380 = vmatprep.subr.bf16.mxu0 0
    %381 = vmatpush1.bf16.msra.mxu0 0
    %382 = vmatprep.subr.bf16.mxu0 0
    %383 = vmatpush1.bf16.msra.mxu0 0
    %384 = vmatprep.subr.bf16.mxu0 0
    %385 = vmatpush1.bf16.msra.mxu0 0
    %386 = vmatprep.mubr.bf16.mxu0 0
    %387 = vmatmul.mubr.bf16.gmra.mrb[0].mxu0 %v349
    %v388 = vpop.f32.mrb[0].mxu0
    %v389 = vadd.f32 0.0, %v388
    %v390 = vpop.f32.mrb[0].mxu0
    %v391 = vpop.f32.mrb[0].mxu0
    %v392 = vadd.f32 0.0, %v391
    %v393 = vpop.f32.mrb[0].mxu0
    %394 = vdwg.mxu0
    %v395 = vadd.f32 %v343, %v389
    %v396 = vadd.f32 %v344, %v392
    %s397 = scalar_lea.vmem %s0, 16
    %v398 = vld [vmem:[%s397] sm:$0xff]
    %v399 = vld [vmem:[%s397 + $0x8] sm:$0x3f]
    %v400 = vpack.c.bf16 %v399, %v398
    %v402 = vsel %vm91, %v400, 0
    %v405 = vsel %vm95, %v78, 0
    %407 = vmatprep.subr.bf16.mxu0 0
    %408 = vmatpush1.bf16.msra.mxu0 %v405
    %409 = vmatprep.subr.bf16.mxu0 0
    %410 = vmatpush1.bf16.msra.mxu0 0
    %411 = vmatprep.subr.bf16.mxu0 0
    %412 = vmatpush1.bf16.msra.mxu0 0
    %413 = vmatprep.subr.bf16.mxu0 0
    %414 = vmatpush1.bf16.msra.mxu0 0
    %415 = vmatprep.subr.bf16.mxu0 0
    %416 = vmatpush1.bf16.msra.mxu0 0
    %417 = vmatprep.subr.bf16.mxu0 0
    %418 = vmatpush1.bf16.msra.mxu0 0
    %419 = vmatprep.subr.bf16.mxu0 0
    %420 = vmatpush1.bf16.msra.mxu0 0
    %421 = vmatprep.subr.bf16.mxu0 0
    %422 = vmatpush1.bf16.msra.mxu0 0
    %423 = vmatprep.subr.bf16.mxu0 0
    %424 = vmatpush1.bf16.msra.mxu0 0
    %425 = vmatprep.subr.bf16.mxu0 0
    %426 = vmatpush1.bf16.msra.mxu0 0
    %427 = vmatprep.subr.bf16.mxu0 0
    %428 = vmatpush1.bf16.msra.mxu0 0
    %429 = vmatprep.subr.bf16.mxu0 0
    %430 = vmatpush1.bf16.msra.mxu0 0
    %431 = vmatprep.subr.bf16.mxu0 0
    %432 = vmatpush1.bf16.msra.mxu0 0
    %433 = vmatprep.subr.bf16.mxu0 0
    %434 = vmatpush1.bf16.msra.mxu0 0
    %435 = vmatprep.subr.bf16.mxu0 0
    %436 = vmatpush1.bf16.msra.mxu0 0
    %437 = vmatprep.subr.bf16.mxu0 0
    %438 = vmatpush1.bf16.msra.mxu0 0
    %439 = vmatprep.mubr.bf16.mxu0 0
    %440 = vmatmul.mubr.bf16.gmra.mrb[0].mxu0 %v402
    %v441 = vpop.f32.mrb[0].mxu0
    %v442 = vadd.f32 0.0, %v441
    %v443 = vpop.f32.mrb[0].mxu0
    %v444 = vpop.f32.mrb[0].mxu0
    %v445 = vadd.f32 0.0, %v444
    %v446 = vpop.f32.mrb[0].mxu0
    %447 = vdwg.mxu0
    %v448 = vadd.f32 %v395, %v442
    %v449 = vadd.f32 %v396, %v445
    %s450 = scalar_lea.vmem %s0, 144
    %v451 = vld [vmem:[%s450] sm:$0xff]
    %v452 = vld [vmem:[%s450 + $0x8] sm:$0x3f]
    %v453 = vpack.c.bf16 %v452, %v451
    %v455 = vsel %vm91, %v453, 0
    %v458 = vsel %vm95, %v80, 0
    %460 = vmatprep.subr.bf16.mxu0 0
    %461 = vmatpush1.bf16.msra.mxu0 %v458
    %462 = vmatprep.subr.bf16.mxu0 0
    %463 = vmatpush1.bf16.msra.mxu0 0
    %464 = vmatprep.subr.bf16.mxu0 0
    %465 = vmatpush1.bf16.msra.mxu0 0
    %466 = vmatprep.subr.bf16.mxu0 0
    %467 = vmatpush1.bf16.msra.mxu0 0
    %468 = vmatprep.subr.bf16.mxu0 0
    %469 = vmatpush1.bf16.msra.mxu0 0
    %470 = vmatprep.subr.bf16.mxu0 0
    %471 = vmatpush1.bf16.msra.mxu0 0
    %472 = vmatprep.subr.bf16.mxu0 0
    %473 = vmatpush1.bf16.msra.mxu0 0
    %474 = vmatprep.subr.bf16.mxu0 0
    %475 = vmatpush1.bf16.msra.mxu0 0
    %476 = vmatprep.subr.bf16.mxu0 0
    %477 = vmatpush1.bf16.msra.mxu0 0
    %478 = vmatprep.subr.bf16.mxu0 0
    %479 = vmatpush1.bf16.msra.mxu0 0
    %480 = vmatprep.subr.bf16.mxu0 0
    %481 = vmatpush1.bf16.msra.mxu0 0
    %482 = vmatprep.subr.bf16.mxu0 0
    %483 = vmatpush1.bf16.msra.mxu0 0
    %484 = vmatprep.subr.bf16.mxu0 0
    %485 = vmatpush1.bf16.msra.mxu0 0
    %486 = vmatprep.subr.bf16.mxu0 0
    %487 = vmatpush1.bf16.msra.mxu0 0
    %488 = vmatprep.subr.bf16.mxu0 0
    %489 = vmatpush1.bf16.msra.mxu0 0
    %490 = vmatprep.subr.bf16.mxu0 0
    %491 = vmatpush1.bf16.msra.mxu0 0
    %492 = vmatprep.mubr.bf16.mxu0 0
    %493 = vmatmul.mubr.bf16.gmra.mrb[0].mxu0 %v455
    %v494 = vpop.f32.mrb[0].mxu0
    %v495 = vadd.f32 0.0, %v494
    %v496 = vpop.f32.mrb[0].mxu0
    %v497 = vpop.f32.mrb[0].mxu0
    %v498 = vadd.f32 0.0, %v497
    %v499 = vpop.f32.mrb[0].mxu0
    %500 = vdwg.mxu0
    %v501 = vadd.f32 %v448, %v495
    %v502 = vadd.f32 %v449, %v498
    %v503 = vld [vmem:[%s397 + $0x2] sm:$0xff]
    %v504 = vld [vmem:[%s397 + $0xa] sm:$0x3f]
    %v505 = vpack.c.bf16 %v504, %v503
    %v507 = vsel %vm91, %v505, 0
    %v510 = vsel %vm95, %v82, 0
    %512 = vmatprep.subr.bf16.mxu0 0
    %513 = vmatpush1.bf16.msra.mxu0 %v510
    %514 = vmatprep.subr.bf16.mxu0 0
    %515 = vmatpush1.bf16.msra.mxu0 0
    %516 = vmatprep.subr.bf16.mxu0 0
    %517 = vmatpush1.bf16.msra.mxu0 0
    %518 = vmatprep.subr.bf16.mxu0 0
    %519 = vmatpush1.bf16.msra.mxu0 0
    %520 = vmatprep.subr.bf16.mxu0 0
    %521 = vmatpush1.bf16.msra.mxu0 0
    %522 = vmatprep.subr.bf16.mxu0 0
    %523 = vmatpush1.bf16.msra.mxu0 0
    %524 = vmatprep.subr.bf16.mxu0 0
    %525 = vmatpush1.bf16.msra.mxu0 0
    %526 = vmatprep.subr.bf16.mxu0 0
    %527 = vmatpush1.bf16.msra.mxu0 0
    %528 = vmatprep.subr.bf16.mxu0 0
    %529 = vmatpush1.bf16.msra.mxu0 0
    %530 = vmatprep.subr.bf16.mxu0 0
    %531 = vmatpush1.bf16.msra.mxu0 0
    %532 = vmatprep.subr.bf16.mxu0 0
    %533 = vmatpush1.bf16.msra.mxu0 0
    %534 = vmatprep.subr.bf16.mxu0 0
    %535 = vmatpush1.bf16.msra.mxu0 0
    %536 = vmatprep.subr.bf16.mxu0 0
    %537 = vmatpush1.bf16.msra.mxu0 0
    %538 = vmatprep.subr.bf16.mxu0 0
    %539 = vmatpush1.bf16.msra.mxu0 0
    %540 = vmatprep.subr.bf16.mxu0 0
    %541 = vmatpush1.bf16.msra.mxu0 0
    %542 = vmatprep.subr.bf16.mxu0 0
    %543 = vmatpush1.bf16.msra.mxu0 0
    %544 = vmatprep.mubr.bf16.mxu0 0
    %545 = vmatmul.mubr.bf16.gmra.mrb[0].mxu0 %v507
    %v546 = vpop.f32.mrb[0].mxu0
    %v547 = vadd.f32 0.0, %v546
    %v548 = vpop.f32.mrb[0].mxu0
    %v549 = vpop.f32.mrb[0].mxu0
    %v550 = vadd.f32 0.0, %v549
    %v551 = vpop.f32.mrb[0].mxu0
    %552 = vdwg.mxu0
    %v553 = vadd.f32 %v501, %v547
    %v554 = vadd.f32 %v502, %v550
    %v556 = vlaneseq
    %v557 = vshrl.u32 %v556, 7
    %v558 = vsub.s32 0, %v557
    %v559 = vrot.slane %v83, %v558
    %v561 = vadd.f32 %v553, %v559
    %v562 = vadd.f32 %v554, %v559
    %v563 = vmax.f32 %v561, 0.0
    %v564 = vmax.f32 %v562, 0.0
    %vm565 = vcmask 64512
    %566 = vst.msk [vmem:[#allocation2] sm:$0xff] %vm565, %v563
    %vm567 = vcmask 62464
    %568 = vst.msk [vmem:[#allocation2 + $0x8] sm:$0x3f] %vm567, %v564
    %v569 = vld [vmem:[%s397] sm:$0xff]
    %v570 = vld [vmem:[%s397 + $0x8] sm:$0x3f]
    %v571 = vpack.c.bf16 %v570, %v569
    %v572 = vld [vmem:[%s450] sm:$0xff]
    %v573 = vld [vmem:[%s450 + $0x8] sm:$0x3f]
    %v574 = vpack.c.bf16 %v573, %v572
    %v576 = vsel %vm91, %v574, 0
    %578 = vmatprep.subr.bf16.mxu0 0
    %579 = vmatpush1.bf16.msra.mxu0 %v97
    %580 = vmatprep.subr.bf16.mxu0 0
    %581 = vmatpush1.bf16.msra.mxu0 0
    %582 = vmatprep.subr.bf16.mxu0 0
    %583 = vmatpush1.bf16.msra.mxu0 0
    %584 = vmatprep.subr.bf16.mxu0 0
    %585 = vmatpush1.bf16.msra.mxu0 0
    %586 = vmatprep.subr.bf16.mxu0 0
    %587 = vmatpush1.bf16.msra.mxu0 0
    %588 = vmatprep.subr.bf16.mxu0 0
    %589 = vmatpush1.bf16.msra.mxu0 0
    %590 = vmatprep.subr.bf16.mxu0 0
    %591 = vmatpush1.bf16.msra.mxu0 0
    %592 = vmatprep.subr.bf16.mxu0 0
    %593 = vmatpush1.bf16.msra.mxu0 0
    %594 = vmatprep.subr.bf16.mxu0 0
    %595 = vmatpush1.bf16.msra.mxu0 0
    %596 = vmatprep.subr.bf16.mxu0 0
    %597 = vmatpush1.bf16.msra.mxu0 0
    %598 = vmatprep.subr.bf16.mxu0 0
    %599 = vmatpush1.bf16.msra.mxu0 0
    %600 = vmatprep.subr.bf16.mxu0 0
    %601 = vmatpush1.bf16.msra.mxu0 0
    %602 = vmatprep.subr.bf16.mxu0 0
    %603 = vmatpush1.bf16.msra.mxu0 0
    %604 = vmatprep.subr.bf16.mxu0 0
    %605 = vmatpush1.bf16.msra.mxu0 0
    %606 = vmatprep.subr.bf16.mxu0 0
    %607 = vmatpush1.bf16.msra.mxu0 0
    %608 = vmatprep.subr.bf16.mxu0 0
    %609 = vmatpush1.bf16.msra.mxu0 0
    %610 = vmatprep.mubr.bf16.mxu0 0
    %611 = vmatmul.mubr.bf16.gmra.mrb[0].mxu0 %v576
    %v612 = vpop.f32.mrb[0].mxu0
    %v613 = vadd.f32 0.0, %v612
    %v614 = vpop.f32.mrb[0].mxu0
    %v615 = vpop.f32.mrb[0].mxu0
    %v616 = vadd.f32 0.0, %v615
    %v617 = vpop.f32.mrb[0].mxu0
    %618 = vdwg.mxu0
    %v620 = vsel %vm91, %v571, 0
    %622 = vmatprep.subr.bf16.mxu0 0
    %623 = vmatpush1.bf16.msra.mxu0 %v144
    %624 = vmatprep.subr.bf16.mxu0 0
    %625 = vmatpush1.bf16.msra.mxu0 0
    %626 = vmatprep.subr.bf16.mxu0 0
    %627 = vmatpush1.bf16.msra.mxu0 0
    %628 = vmatprep.subr.bf16.mxu0 0
    %629 = vmatpush1.bf16.msra.mxu0 0
    %630 = vmatprep.subr.bf16.mxu0 0
    %631 = vmatpush1.bf16.msra.mxu0 0
    %632 = vmatprep.subr.bf16.mxu0 0
    %633 = vmatpush1.bf16.msra.mxu0 0
    %634 = vmatprep.subr.bf16.mxu0 0
    %635 = vmatpush1.bf16.msra.mxu0 0
    %636 = vmatprep.subr.bf16.mxu0 0
    %637 = vmatpush1.bf16.msra.mxu0 0
    %638 = vmatprep.subr.bf16.mxu0 0
    %639 = vmatpush1.bf16.msra.mxu0 0
    %640 = vmatprep.subr.bf16.mxu0 0
    %641 = vmatpush1.bf16.msra.mxu0 0
    %642 = vmatprep.subr.bf16.mxu0 0
    %643 = vmatpush1.bf16.msra.mxu0 0
    %644 = vmatprep.subr.bf16.mxu0 0
    %645 = vmatpush1.bf16.msra.mxu0 0
    %646 = vmatprep.subr.bf16.mxu0 0
    %647 = vmatpush1.bf16.msra.mxu0 0
    %648 = vmatprep.subr.bf16.mxu0 0
    %649 = vmatpush1.bf16.msra.mxu0 0
    %650 = vmatprep.subr.bf16.mxu0 0
    %651 = vmatpush1.bf16.msra.mxu0 0
    %652 = vmatprep.subr.bf16.mxu0 0
    %653 = vmatpush1.bf16.msra.mxu0 0
    %654 = vmatprep.mubr.bf16.mxu0 0
    %655 = vmatmul.mubr.bf16.gmra.mrb[0].mxu0 %v620
    %v656 = vpop.f32.mrb[0].mxu0
    %v657 = vadd.f32 %v613, %v656
    %v658 = vpop.f32.mrb[0].mxu0
    %v659 = vpop.f32.mrb[0].mxu0
    %v660 = vadd.f32 %v616, %v659
    %v661 = vpop.f32.mrb[0].mxu0
    %662 = vdwg.mxu0
    %v663 = vld [vmem:[%s397 + $0x2] sm:$0xff]
    %v664 = vld [vmem:[%s397 + $0xa] sm:$0x3f]
    %v665 = vpack.c.bf16 %v664, %v663
    %v667 = vsel %vm91, %v665, 0
    %669 = vmatprep.subr.bf16.mxu0 0
    %670 = vmatpush1.bf16.msra.mxu0 %v194
    %671 = vmatprep.subr.bf16.mxu0 0
    %672 = vmatpush1.bf16.msra.mxu0 0
    %673 = vmatprep.subr.bf16.mxu0 0
    %674 = vmatpush1.bf16.msra.mxu0 0
    %675 = vmatprep.subr.bf16.mxu0 0
    %676 = vmatpush1.bf16.msra.mxu0 0
    %677 = vmatprep.subr.bf16.mxu0 0
    %678 = vmatpush1.bf16.msra.mxu0 0
    %679 = vmatprep.subr.bf16.mxu0 0
    %680 = vmatpush1.bf16.msra.mxu0 0
    %681 = vmatprep.subr.bf16.mxu0 0
    %682 = vmatpush1.bf16.msra.mxu0 0
    %683 = vmatprep.subr.bf16.mxu0 0
    %684 = vmatpush1.bf16.msra.mxu0 0
    %685 = vmatprep.subr.bf16.mxu0 0
    %686 = vmatpush1.bf16.msra.mxu0 0
    %687 = vmatprep.subr.bf16.mxu0 0
    %688 = vmatpush1.bf16.msra.mxu0 0
    %689 = vmatprep.subr.bf16.mxu0 0
    %690 = vmatpush1.bf16.msra.mxu0 0
    %691 = vmatprep.subr.bf16.mxu0 0
    %692 = vmatpush1.bf16.msra.mxu0 0
    %693 = vmatprep.subr.bf16.mxu0 0
    %694 = vmatpush1.bf16.msra.mxu0 0
    %695 = vmatprep.subr.bf16.mxu0 0
    %696 = vmatpush1.bf16.msra.mxu0 0
    %697 = vmatprep.subr.bf16.mxu0 0
    %698 = vmatpush1.bf16.msra.mxu0 0
    %699 = vmatprep.subr.bf16.mxu0 0
    %700 = vmatpush1.bf16.msra.mxu0 0
    %701 = vmatprep.mubr.bf16.mxu0 0
    %702 = vmatmul.mubr.bf16.gmra.mrb[0].mxu0 %v667
    %v703 = vpop.f32.mrb[0].mxu0
    %v704 = vadd.f32 0.0, %v703
    %v705 = vpop.f32.mrb[0].mxu0
    %v706 = vpop.f32.mrb[0].mxu0
    %v707 = vadd.f32 0.0, %v706
    %v708 = vpop.f32.mrb[0].mxu0
    %709 = vdwg.mxu0
    %v710 = vadd.f32 %v657, %v704
    %v711 = vadd.f32 %v660, %v707
    %s712 = scalar_lea.vmem %s0, 272
    %v713 = vld [vmem:[%s712] sm:$0xff]
    %v714 = vld [vmem:[%s712 + $0x8] sm:$0x3f]
    %v715 = vpack.c.bf16 %v714, %v713
    %v717 = vsel %vm91, %v715, 0
    %719 = vmatprep.subr.bf16.mxu0 0
    %720 = vmatpush1.bf16.msra.mxu0 %v247
    %721 = vmatprep.subr.bf16.mxu0 0
    %722 = vmatpush1.bf16.msra.mxu0 0
    %723 = vmatprep.subr.bf16.mxu0 0
    %724 = vmatpush1.bf16.msra.mxu0 0
    %725 = vmatprep.subr.bf16.mxu0 0
    %726 = vmatpush1.bf16.msra.mxu0 0
    %727 = vmatprep.subr.bf16.mxu0 0
    %728 = vmatpush1.bf16.msra.mxu0 0
    %729 = vmatprep.subr.bf16.mxu0 0
    %730 = vmatpush1.bf16.msra.mxu0 0
    %731 = vmatprep.subr.bf16.mxu0 0
    %732 = vmatpush1.bf16.msra.mxu0 0
    %733 = vmatprep.subr.bf16.mxu0 0
    %734 = vmatpush1.bf16.msra.mxu0 0
    %735 = vmatprep.subr.bf16.mxu0 0
    %736 = vmatpush1.bf16.msra.mxu0 0
    %737 = vmatprep.subr.bf16.mxu0 0
    %738 = vmatpush1.bf16.msra.mxu0 0
    %739 = vmatprep.subr.bf16.mxu0 0
    %740 = vmatpush1.bf16.msra.mxu0 0
    %741 = vmatprep.subr.bf16.mxu0 0
    %742 = vmatpush1.bf16.msra.mxu0 0
    %743 = vmatprep.subr.bf16.mxu0 0
    %744 = vmatpush1.bf16.msra.mxu0 0
    %745 = vmatprep.subr.bf16.mxu0 0
    %746 = vmatpush1.bf16.msra.mxu0 0
    %747 = vmatprep.subr.bf16.mxu0 0
    %748 = vmatpush1.bf16.msra.mxu0 0
    %749 = vmatprep.subr.bf16.mxu0 0
    %750 = vmatpush1.bf16.msra.mxu0 0
    %751 = vmatprep.mubr.bf16.mxu0 0
    %752 = vmatmul.mubr.bf16.gmra.mrb[0].mxu0 %v717
    %v753 = vpop.f32.mrb[0].mxu0
    %v754 = vadd.f32 0.0, %v753
    %v755 = vpop.f32.mrb[0].mxu0
    %v756 = vpop.f32.mrb[0].mxu0
    %v757 = vadd.f32 0.0, %v756
    %v758 = vpop.f32.mrb[0].mxu0
    %759 = vdwg.mxu0
    %v760 = vadd.f32 %v710, %v754
    %v761 = vadd.f32 %v711, %v757
    %s762 = scalar_lea.vmem %s0, 400
    %v763 = vld [vmem:[%s762] sm:$0xff]
    %v764 = vld [vmem:[%s762 + $0x8] sm:$0x3f]
    %v765 = vpack.c.bf16 %v764, %v763
    %v767 = vsel %vm91, %v765, 0
    %769 = vmatprep.subr.bf16.mxu0 0
    %770 = vmatpush1.bf16.msra.mxu0 %v300
    %771 = vmatprep.subr.bf16.mxu0 0
    %772 = vmatpush1.bf16.msra.mxu0 0
    %773 = vmatprep.subr.bf16.mxu0 0
    %774 = vmatpush1.bf16.msra.mxu0 0
    %775 = vmatprep.subr.bf16.mxu0 0
    %776 = vmatpush1.bf16.msra.mxu0 0
    %777 = vmatprep.subr.bf16.mxu0 0
    %778 = vmatpush1.bf16.msra.mxu0 0
    %779 = vmatprep.subr.bf16.mxu0 0
    %780 = vmatpush1.bf16.msra.mxu0 0
    %781 = vmatprep.subr.bf16.mxu0 0
    %782 = vmatpush1.bf16.msra.mxu0 0
    %783 = vmatprep.subr.bf16.mxu0 0
    %784 = vmatpush1.bf16.msra.mxu0 0
    %785 = vmatprep.subr.bf16.mxu0 0
    %786 = vmatpush1.bf16.msra.mxu0 0
    %787 = vmatprep.subr.bf16.mxu0 0
    %788 = vmatpush1.bf16.msra.mxu0 0
    %789 = vmatprep.subr.bf16.mxu0 0
    %790 = vmatpush1.bf16.msra.mxu0 0
    %791 = vmatprep.subr.bf16.mxu0 0
    %792 = vmatpush1.bf16.msra.mxu0 0
    %793 = vmatprep.subr.bf16.mxu0 0
    %794 = vmatpush1.bf16.msra.mxu0 0
    %795 = vmatprep.subr.bf16.mxu0 0
    %796 = vmatpush1.bf16.msra.mxu0 0
    %797 = vmatprep.subr.bf16.mxu0 0
    %798 = vmatpush1.bf16.msra.mxu0 0
    %799 = vmatprep.subr.bf16.mxu0 0
    %800 = vmatpush1.bf16.msra.mxu0 0
    %801 = vmatprep.mubr.bf16.mxu0 0
    %802 = vmatmul.mubr.bf16.gmra.mrb[0].mxu0 %v767
    %v803 = vpop.f32.mrb[0].mxu0
    %v804 = vadd.f32 0.0, %v803
    %v805 = vpop.f32.mrb[0].mxu0
    %v806 = vpop.f32.mrb[0].mxu0
    %v807 = vadd.f32 0.0, %v806
    %v808 = vpop.f32.mrb[0].mxu0
    %809 = vdwg.mxu0
    %v810 = vadd.f32 %v760, %v804
    %v811 = vadd.f32 %v761, %v807
    %v812 = vld [vmem:[%s712 + $0x2] sm:$0xff]
    %v813 = vld [vmem:[%s712 + $0xa] sm:$0x3f]
    %v814 = vpack.c.bf16 %v813, %v812
    %v816 = vsel %vm91, %v814, 0
    %818 = vmatprep.subr.bf16.mxu0 0
    %819 = vmatpush1.bf16.msra.mxu0 %v352
    %820 = vmatprep.subr.bf16.mxu0 0
    %821 = vmatpush1.bf16.msra.mxu0 0
    %822 = vmatprep.subr.bf16.mxu0 0
    %823 = vmatpush1.bf16.msra.mxu0 0
    %824 = vmatprep.subr.bf16.mxu0 0
    %825 = vmatpush1.bf16.msra.mxu0 0
    %826 = vmatprep.subr.bf16.mxu0 0
    %827 = vmatpush1.bf16.msra.mxu0 0
    %828 = vmatprep.subr.bf16.mxu0 0
    %829 = vmatpush1.bf16.msra.mxu0 0
    %830 = vmatprep.subr.bf16.mxu0 0
    %831 = vmatpush1.bf16.msra.mxu0 0
    %832 = vmatprep.subr.bf16.mxu0 0
    %833 = vmatpush1.bf16.msra.mxu0 0
    %834 = vmatprep.subr.bf16.mxu0 0
    %835 = vmatpush1.bf16.msra.mxu0 0
    %836 = vmatprep.subr.bf16.mxu0 0
    %837 = vmatpush1.bf16.msra.mxu0 0
    %838 = vmatprep.subr.bf16.mxu0 0
    %839 = vmatpush1.bf16.msra.mxu0 0
    %840 = vmatprep.subr.bf16.mxu0 0
    %841 = vmatpush1.bf16.msra.mxu0 0
    %842 = vmatprep.subr.bf16.mxu0 0
    %843 = vmatpush1.bf16.msra.mxu0 0
    %844 = vmatprep.subr.bf16.mxu0 0
    %845 = vmatpush1.bf16.msra.mxu0 0
    %846 = vmatprep.subr.bf16.mxu0 0
    %847 = vmatpush1.bf16.msra.mxu0 0
    %848 = vmatprep.subr.bf16.mxu0 0
    %849 = vmatpush1.bf16.msra.mxu0 0
    %850 = vmatprep.mubr.bf16.mxu0 0
    %851 = vmatmul.mubr.bf16.gmra.mrb[0].mxu0 %v816
    %v852 = vpop.f32.mrb[0].mxu0
    %v853 = vadd.f32 0.0, %v852
    %v854 = vpop.f32.mrb[0].mxu0
    %v855 = vpop.f32.mrb[0].mxu0
    %v856 = vadd.f32 0.0, %v855
    %v857 = vpop.f32.mrb[0].mxu0
    %858 = vdwg.mxu0
    %v859 = vadd.f32 %v810, %v853
    %v860 = vadd.f32 %v811, %v856
    %s861 = scalar_lea.vmem %s0, 32
    %v862 = vld [vmem:[%s861] sm:$0xff]
    %v863 = vld [vmem:[%s861 + $0x8] sm:$0x3f]
    %v864 = vpack.c.bf16 %v863, %v862
    %v866 = vsel %vm91, %v864, 0
    %868 = vmatprep.subr.bf16.mxu0 0
    %869 = vmatpush1.bf16.msra.mxu0 %v405
    %870 = vmatprep.subr.bf16.mxu0 0
    %871 = vmatpush1.bf16.msra.mxu0 0
    %872 = vmatprep.subr.bf16.mxu0 0
    %873 = vmatpush1.bf16.msra.mxu0 0
    %874 = vmatprep.subr.bf16.mxu0 0
    %875 = vmatpush1.bf16.msra.mxu0 0
    %876 = vmatprep.subr.bf16.mxu0 0
    %877 = vmatpush1.bf16.msra.mxu0 0
    %878 = vmatprep.subr.bf16.mxu0 0
    %879 = vmatpush1.bf16.msra.mxu0 0
    %880 = vmatprep.subr.bf16.mxu0 0
    %881 = vmatpush1.bf16.msra.mxu0 0
    %882 = vmatprep.subr.bf16.mxu0 0
    %883 = vmatpush1.bf16.msra.mxu0 0
    %884 = vmatprep.subr.bf16.mxu0 0
    %885 = vmatpush1.bf16.msra.mxu0 0
    %886 = vmatprep.subr.bf16.mxu0 0
    %887 = vmatpush1.bf16.msra.mxu0 0
    %888 = vmatprep.subr.bf16.mxu0 0
    %889 = vmatpush1.bf16.msra.mxu0 0
    %890 = vmatprep.subr.bf16.mxu0 0
    %891 = vmatpush1.bf16.msra.mxu0 0
    %892 = vmatprep.subr.bf16.mxu0 0
    %893 = vmatpush1.bf16.msra.mxu0 0
    %894 = vmatprep.subr.bf16.mxu0 0
    %895 = vmatpush1.bf16.msra.mxu0 0
    %896 = vmatprep.subr.bf16.mxu0 0
    %897 = vmatpush1.bf16.msra.mxu0 0
    %898 = vmatprep.subr.bf16.mxu0 0
    %899 = vmatpush1.bf16.msra.mxu0 0
    %900 = vmatprep.mubr.bf16.mxu0 0
    %901 = vmatmul.mubr.bf16.gmra.mrb[0].mxu0 %v866
    %v902 = vpop.f32.mrb[0].mxu0
    %v903 = vadd.f32 0.0, %v902
    %v904 = vpop.f32.mrb[0].mxu0
    %v905 = vpop.f32.mrb[0].mxu0
    %v906 = vadd.f32 0.0, %v905
    %v907 = vpop.f32.mrb[0].mxu0
    %908 = vdwg.mxu0
    %v909 = vadd.f32 %v859, %v903
    %v910 = vadd.f32 %v860, %v906
    %s911 = scalar_lea.vmem %s0, 160
    %v912 = vld [vmem:[%s911] sm:$0xff]
    %v913 = vld [vmem:[%s911 + $0x8] sm:$0x3f]
    %v914 = vpack.c.bf16 %v913, %v912
    %v916 = vsel %vm91, %v914, 0
    %918 = vmatprep.subr.bf16.mxu0 0
    %919 = vmatpush1.bf16.msra.mxu0 %v458
    %920 = vmatprep.subr.bf16.mxu0 0
    %921 = vmatpush1.bf16.msra.mxu0 0
    %922 = vmatprep.subr.bf16.mxu0 0
    %923 = vmatpush1.bf16.msra.mxu0 0
    %924 = vmatprep.subr.bf16.mxu0 0
    %925 = vmatpush1.bf16.msra.mxu0 0
    %926 = vmatprep.subr.bf16.mxu0 0
    %927 = vmatpush1.bf16.msra.mxu0 0
    %928 = vmatprep.subr.bf16.mxu0 0
    %929 = vmatpush1.bf16.msra.mxu0 0
    %930 = vmatprep.subr.bf16.mxu0 0
    %931 = vmatpush1.bf16.msra.mxu0 0
    %932 = vmatprep.subr.bf16.mxu0 0
    %933 = vmatpush1.bf16.msra.mxu0 0
    %934 = vmatprep.subr.bf16.mxu0 0
    %935 = vmatpush1.bf16.msra.mxu0 0
    %936 = vmatprep.subr.bf16.mxu0 0
    %937 = vmatpush1.bf16.msra.mxu0 0
    %938 = vmatprep.subr.bf16.mxu0 0
    %939 = vmatpush1.bf16.msra.mxu0 0
    %940 = vmatprep.subr.bf16.mxu0 0
    %941 = vmatpush1.bf16.msra.mxu0 0
    %942 = vmatprep.subr.bf16.mxu0 0
    %943 = vmatpush1.bf16.msra.mxu0 0
    %944 = vmatprep.subr.bf16.mxu0 0
    %945 = vmatpush1.bf16.msra.mxu0 0
    %946 = vmatprep.subr.bf16.mxu0 0
    %947 = vmatpush1.bf16.msra.mxu0 0
    %948 = vmatprep.subr.bf16.mxu0 0
    %949 = vmatpush1.bf16.msra.mxu0 0
    %950 = vmatprep.mubr.bf16.mxu0 0
    %951 = vmatmul.mubr.bf16.gmra.mrb[0].mxu0 %v916
    %v952 = vpop.f32.mrb[0].mxu0
    %v953 = vadd.f32 0.0, %v952
    %v954 = vpop.f32.mrb[0].mxu0
    %v955 = vpop.f32.mrb[0].mxu0
    %v956 = vadd.f32 0.0, %v955
    %v957 = vpop.f32.mrb[0].mxu0
    %958 = vdwg.mxu0
    %v959 = vadd.f32 %v909, %v953
    %v960 = vadd.f32 %v910, %v956
    %v961 = vld [vmem:[%s861 + $0x2] sm:$0xff]
    %v962 = vld [vmem:[%s861 + $0xa] sm:$0x3f]
    %v963 = vpack.c.bf16 %v962, %v961
    %v965 = vsel %vm91, %v963, 0
    %967 = vmatprep.subr.bf16.mxu0 0
    %968 = vmatpush1.bf16.msra.mxu0 %v510
    %969 = vmatprep.subr.bf16.mxu0 0
    %970 = vmatpush1.bf16.msra.mxu0 0
    %971 = vmatprep.subr.bf16.mxu0 0
    %972 = vmatpush1.bf16.msra.mxu0 0
    %973 = vmatprep.subr.bf16.mxu0 0
    %974 = vmatpush1.bf16.msra.mxu0 0
    %975 = vmatprep.subr.bf16.mxu0 0
    %976 = vmatpush1.bf16.msra.mxu0 0
    %977 = vmatprep.subr.bf16.mxu0 0
    %978 = vmatpush1.bf16.msra.mxu0 0
    %979 = vmatprep.subr.bf16.mxu0 0
    %980 = vmatpush1.bf16.msra.mxu0 0
    %981 = vmatprep.subr.bf16.mxu0 0
    %982 = vmatpush1.bf16.msra.mxu0 0
    %983 = vmatprep.subr.bf16.mxu0 0
    %984 = vmatpush1.bf16.msra.mxu0 0
    %985 = vmatprep.subr.bf16.mxu0 0
    %986 = vmatpush1.bf16.msra.mxu0 0
    %987 = vmatprep.subr.bf16.mxu0 0
    %988 = vmatpush1.bf16.msra.mxu0 0
    %989 = vmatprep.subr.bf16.mxu0 0
    %990 = vmatpush1.bf16.msra.mxu0 0
    %991 = vmatprep.subr.bf16.mxu0 0
    %992 = vmatpush1.bf16.msra.mxu0 0
    %993 = vmatprep.subr.bf16.mxu0 0
    %994 = vmatpush1.bf16.msra.mxu0 0
    %995 = vmatprep.subr.bf16.mxu0 0
    %996 = vmatpush1.bf16.msra.mxu0 0
    %997 = vmatprep.subr.bf16.mxu0 0
    %998 = vmatpush1.bf16.msra.mxu0 0
    %999 = vmatprep.mubr.bf16.mxu0 0
    %1000 = vmatmul.mubr.bf16.gmra.mrb[0].mxu0 %v965
    %v1001 = vpop.f32.mrb[0].mxu0
    %v1002 = vadd.f32 0.0, %v1001
    %v1003 = vpop.f32.mrb[0].mxu0
    %v1004 = vpop.f32.mrb[0].mxu0
    %v1005 = vadd.f32 0.0, %v1004
    %v1006 = vpop.f32.mrb[0].mxu0
    %1007 = vdwg.mxu0
    %v1008 = vadd.f32 %v959, %v1002
    %v1009 = vadd.f32 %v960, %v1005
    %v1010 = vadd.f32 %v1008, %v559
    %v1011 = vadd.f32 %v1009, %v559
    %v1012 = vmax.f32 %v1010, 0.0
    %v1013 = vmax.f32 %v1011, 0.0
    %s1014 = scalar_lea.vmem [#allocation2], 16
    %1015 = vst.msk [vmem:[%s1014] sm:$0xff] %vm565, %v1012
    %1016 = vst.msk [vmem:[%s1014 + $0x8] sm:$0x3f] %vm567, %v1013
    %v1017 = vld [vmem:[%s861] sm:$0xff]
    %v1018 = vld [vmem:[%s861 + $0x8] sm:$0x3f]
    %v1019 = vpack.c.bf16 %v1018, %v1017
    %v1020 = vld [vmem:[%s911] sm:$0xff]
    %v1021 = vld [vmem:[%s911 + $0x8] sm:$0x3f]
    %v1022 = vpack.c.bf16 %v1021, %v1020
    %v1024 = vsel %vm91, %v1022, 0
    %1026 = vmatprep.subr.bf16.mxu0 0
    %1027 = vmatpush1.bf16.msra.mxu0 %v97
    %1028 = vmatprep.subr.bf16.mxu0 0
    %1029 = vmatpush1.bf16.msra.mxu0 0
    %1030 = vmatprep.subr.bf16.mxu0 0
    %1031 = vmatpush1.bf16.msra.mxu0 0
    %1032 = vmatprep.subr.bf16.mxu0 0
    %1033 = vmatpush1.bf16.msra.mxu0 0
    %1034 = vmatprep.subr.bf16.mxu0 0
    %1035 = vmatpush1.bf16.msra.mxu0 0
    %1036 = vmatprep.subr.bf16.mxu0 0
    %1037 = vmatpush1.bf16.msra.mxu0 0
    %1038 = vmatprep.subr.bf16.mxu0 0
    %1039 = vmatpush1.bf16.msra.mxu0 0
    %1040 = vmatprep.subr.bf16.mxu0 0
    %1041 = vmatpush1.bf16.msra.mxu0 0
    %1042 = vmatprep.subr.bf16.mxu0 0
    %1043 = vmatpush1.bf16.msra.mxu0 0
    %1044 = vmatprep.subr.bf16.mxu0 0
    %1045 = vmatpush1.bf16.msra.mxu0 0
    %1046 = vmatprep.subr.bf16.mxu0 0
    %1047 = vmatpush1.bf16.msra.mxu0 0
    %1048 = vmatprep.subr.bf16.mxu0 0
    %1049 = vmatpush1.bf16.msra.mxu0 0
    %1050 = vmatprep.subr.bf16.mxu0 0
    %1051 = vmatpush1.bf16.msra.mxu0 0
    %1052 = vmatprep.subr.bf16.mxu0 0
    %1053 = vmatpush1.bf16.msra.mxu0 0
    %1054 = vmatprep.subr.bf16.mxu0 0
    %1055 = vmatpush1.bf16.msra.mxu0 0
    %1056 = vmatprep.subr.bf16.mxu0 0
    %1057 = vmatpush1.bf16.msra.mxu0 0
    %1058 = vmatprep.mubr.bf16.mxu0 0
    %1059 = vmatmul.mubr.bf16.gmra.mrb[0].mxu0 %v1024
    %v1060 = vpop.f32.mrb[0].mxu0
    %v1061 = vadd.f32 0.0, %v1060
    %v1062 = vpop.f32.mrb[0].mxu0
    %v1063 = vpop.f32.mrb[0].mxu0
    %v1064 = vadd.f32 0.0, %v1063
    %v1065 = vpop.f32.mrb[0].mxu0
    %1066 = vdwg.mxu0
    %v1068 = vsel %vm91, %v1019, 0
    %1070 = vmatprep.subr.bf16.mxu0 0
    %1071 = vmatpush1.bf16.msra.mxu0 %v144
    %1072 = vmatprep.subr.bf16.mxu0 0
    %1073 = vmatpush1.bf16.msra.mxu0 0
    %1074 = vmatprep.subr.bf16.mxu0 0
    %1075 = vmatpush1.bf16.msra.mxu0 0
    %1076 = vmatprep.subr.bf16.mxu0 0
    %1077 = vmatpush1.bf16.msra.mxu0 0
    %1078 = vmatprep.subr.bf16.mxu0 0
    %1079 = vmatpush1.bf16.msra.mxu0 0
    %1080 = vmatprep.subr.bf16.mxu0 0
    %1081 = vmatpush1.bf16.msra.mxu0 0
    %1082 = vmatprep.subr.bf16.mxu0 0
    %1083 = vmatpush1.bf16.msra.mxu0 0
    %1084 = vmatprep.subr.bf16.mxu0 0
    %1085 = vmatpush1.bf16.msra.mxu0 0
    %1086 = vmatprep.subr.bf16.mxu0 0
    %1087 = vmatpush1.bf16.msra.mxu0 0
    %1088 = vmatprep.subr.bf16.mxu0 0
    %1089 = vmatpush1.bf16.msra.mxu0 0
    %1090 = vmatprep.subr.bf16.mxu0 0
    %1091 = vmatpush1.bf16.msra.mxu0 0
    %1092 = vmatprep.subr.bf16.mxu0 0
    %1093 = vmatpush1.bf16.msra.mxu0 0
    %1094 = vmatprep.subr.bf16.mxu0 0
    %1095 = vmatpush1.bf16.msra.mxu0 0
    %1096 = vmatprep.subr.bf16.mxu0 0
    %1097 = vmatpush1.bf16.msra.mxu0 0
    %1098 = vmatprep.subr.bf16.mxu0 0
    %1099 = vmatpush1.bf16.msra.mxu0 0
    %1100 = vmatprep.subr.bf16.mxu0 0
    %1101 = vmatpush1.bf16.msra.mxu0 0
    %1102 = vmatprep.mubr.bf16.mxu0 0
    %1103 = vmatmul.mubr.bf16.gmra.mrb[0].mxu0 %v1068
    %v1104 = vpop.f32.mrb[0].mxu0
    %v1105 = vadd.f32 %v1061, %v1104
    %v1106 = vpop.f32.mrb[0].mxu0
    %v1107 = vpop.f32.mrb[0].mxu0
    %v1108 = vadd.f32 %v1064, %v1107
    %v1109 = vpop.f32.mrb[0].mxu0
    %1110 = vdwg.mxu0
    %v1111 = vld [vmem:[%s861 + $0x2] sm:$0xff]
    %v1112 = vld [vmem:[%s861 + $0xa] sm:$0x3f]
    %v1113 = vpack.c.bf16 %v1112, %v1111
    %v1115 = vsel %vm91, %v1113, 0
    %1117 = vmatprep.subr.bf16.mxu0 0
    %1118 = vmatpush1.bf16.msra.mxu0 %v194
    %1119 = vmatprep.subr.bf16.mxu0 0
    %1120 = vmatpush1.bf16.msra.mxu0 0
    %1121 = vmatprep.subr.bf16.mxu0 0
    %1122 = vmatpush1.bf16.msra.mxu0 0
    %1123 = vmatprep.subr.bf16.mxu0 0
    %1124 = vmatpush1.bf16.msra.mxu0 0
    %1125 = vmatprep.subr.bf16.mxu0 0
    %1126 = vmatpush1.bf16.msra.mxu0 0
    %1127 = vmatprep.subr.bf16.mxu0 0
    %1128 = vmatpush1.bf16.msra.mxu0 0
    %1129 = vmatprep.subr.bf16.mxu0 0
    %1130 = vmatpush1.bf16.msra.mxu0 0
    %1131 = vmatprep.subr.bf16.mxu0 0
    %1132 = vmatpush1.bf16.msra.mxu0 0
    %1133 = vmatprep.subr.bf16.mxu0 0
    %1134 = vmatpush1.bf16.msra.mxu0 0
    %1135 = vmatprep.subr.bf16.mxu0 0
    %1136 = vmatpush1.bf16.msra.mxu0 0
    %1137 = vmatprep.subr.bf16.mxu0 0
    %1138 = vmatpush1.bf16.msra.mxu0 0
    %1139 = vmatprep.subr.bf16.mxu0 0
    %1140 = vmatpush1.bf16.msra.mxu0 0
    %1141 = vmatprep.subr.bf16.mxu0 0
    %1142 = vmatpush1.bf16.msra.mxu0 0
    %1143 = vmatprep.subr.bf16.mxu0 0
    %1144 = vmatpush1.bf16.msra.mxu0 0
    %1145 = vmatprep.subr.bf16.mxu0 0
    %1146 = vmatpush1.bf16.msra.mxu0 0
    %1147 = vmatprep.subr.bf16.mxu0 0
    %1148 = vmatpush1.bf16.msra.mxu0 0
    %1149 = vmatprep.mubr.bf16.mxu0 0
    %1150 = vmatmul.mubr.bf16.gmra.mrb[0].mxu0 %v1115
    %v1151 = vpop.f32.mrb[0].mxu0
    %v1152 = vadd.f32 0.0, %v1151
    %v1153 = vpop.f32.mrb[0].mxu0
    %v1154 = vpop.f32.mrb[0].mxu0
    %v1155 = vadd.f32 0.0, %v1154
    %v1156 = vpop.f32.mrb[0].mxu0
    %1157 = vdwg.mxu0
    %v1158 = vadd.f32 %v1105, %v1152
    %v1159 = vadd.f32 %v1108, %v1155
    %s1160 = scalar_lea.vmem %s0, 288
    %v1161 = vld [vmem:[%s1160] sm:$0xff]
    %v1162 = vld [vmem:[%s1160 + $0x8] sm:$0x3f]
    %v1163 = vpack.c.bf16 %v1162, %v1161
    %v1165 = vsel %vm91, %v1163, 0
    %1167 = vmatprep.subr.bf16.mxu0 0
    %1168 = vmatpush1.bf16.msra.mxu0 %v247
    %1169 = vmatprep.subr.bf16.mxu0 0
    %1170 = vmatpush1.bf16.msra.mxu0 0
    %1171 = vmatprep.subr.bf16.mxu0 0
    %1172 = vmatpush1.bf16.msra.mxu0 0
    %1173 = vmatprep.subr.bf16.mxu0 0
    %1174 = vmatpush1.bf16.msra.mxu0 0
    %1175 = vmatprep.subr.bf16.mxu0 0
    %1176 = vmatpush1.bf16.msra.mxu0 0
    %1177 = vmatprep.subr.bf16.mxu0 0
    %1178 = vmatpush1.bf16.msra.mxu0 0
    %1179 = vmatprep.subr.bf16.mxu0 0
    %1180 = vmatpush1.bf16.msra.mxu0 0
    %1181 = vmatprep.subr.bf16.mxu0 0
    %1182 = vmatpush1.bf16.msra.mxu0 0
    %1183 = vmatprep.subr.bf16.mxu0 0
    %1184 = vmatpush1.bf16.msra.mxu0 0
    %1185 = vmatprep.subr.bf16.mxu0 0
    %1186 = vmatpush1.bf16.msra.mxu0 0
    %1187 = vmatprep.subr.bf16.mxu0 0
    %1188 = vmatpush1.bf16.msra.mxu0 0
    %1189 = vmatprep.subr.bf16.mxu0 0
    %1190 = vmatpush1.bf16.msra.mxu0 0
    %1191 = vmatprep.subr.bf16.mxu0 0
    %1192 = vmatpush1.bf16.msra.mxu0 0
    %1193 = vmatprep.subr.bf16.mxu0 0
    %1194 = vmatpush1.bf16.msra.mxu0 0
    %1195 = vmatprep.subr.bf16.mxu0 0
    %1196 = vmatpush1.bf16.msra.mxu0 0
    %1197 = vmatprep.subr.bf16.mxu0 0
    %1198 = vmatpush1.bf16.msra.mxu0 0
    %1199 = vmatprep.mubr.bf16.mxu0 0
    %1200 = vmatmul.mubr.bf16.gmra.mrb[0].mxu0 %v1165
    %v1201 = vpop.f32.mrb[0].mxu0
    %v1202 = vadd.f32 0.0, %v1201
    %v1203 = vpop.f32.mrb[0].mxu0
    %v1204 = vpop.f32.mrb[0].mxu0
    %v1205 = vadd.f32 0.0, %v1204
    %v1206 = vpop.f32.mrb[0].mxu0
    %1207 = vdwg.mxu0
    %v1208 = vadd.f32 %v1158, %v1202
    %v1209 = vadd.f32 %v1159, %v1205
    %s1210 = scalar_lea.vmem %s0, 416
    %v1211 = vld [vmem:[%s1210] sm:$0xff]
    %v1212 = vld [vmem:[%s1210 + $0x8] sm:$0x3f]
    %v1213 = vpack.c.bf16 %v1212, %v1211
    %v1215 = vsel %vm91, %v1213, 0
    %1217 = vmatprep.subr.bf16.mxu0 0
    %1218 = vmatpush1.bf16.msra.mxu0 %v300
    %1219 = vmatprep.subr.bf16.mxu0 0
    %1220 = vmatpush1.bf16.msra.mxu0 0
    %1221 = vmatprep.subr.bf16.mxu0 0
    %1222 = vmatpush1.bf16.msra.mxu0 0
    %1223 = vmatprep.subr.bf16.mxu0 0
    %1224 = vmatpush1.bf16.msra.mxu0 0
    %1225 = vmatprep.subr.bf16.mxu0 0
    %1226 = vmatpush1.bf16.msra.mxu0 0
    %1227 = vmatprep.subr.bf16.mxu0 0
    %1228 = vmatpush1.bf16.msra.mxu0 0
    %1229 = vmatprep.subr.bf16.mxu0 0
    %1230 = vmatpush1.bf16.msra.mxu0 0
    %1231 = vmatprep.subr.bf16.mxu0 0
    %1232 = vmatpush1.bf16.msra.mxu0 0
    %1233 = vmatprep.subr.bf16.mxu0 0
    %1234 = vmatpush1.bf16.msra.mxu0 0
    %1235 = vmatprep.subr.bf16.mxu0 0
    %1236 = vmatpush1.bf16.msra.mxu0 0
    %1237 = vmatprep.subr.bf16.mxu0 0
    %1238 = vmatpush1.bf16.msra.mxu0 0
    %1239 = vmatprep.subr.bf16.mxu0 0
    %1240 = vmatpush1.bf16.msra.mxu0 0
    %1241 = vmatprep.subr.bf16.mxu0 0
    %1242 = vmatpush1.bf16.msra.mxu0 0
    %1243 = vmatprep.subr.bf16.mxu0 0
    %1244 = vmatpush1.bf16.msra.mxu0 0
    %1245 = vmatprep.subr.bf16.mxu0 0
    %1246 = vmatpush1.bf16.msra.mxu0 0
    %1247 = vmatprep.subr.bf16.mxu0 0
    %1248 = vmatpush1.bf16.msra.mxu0 0
    %1249 = vmatprep.mubr.bf16.mxu0 0
    %1250 = vmatmul.mubr.bf16.gmra.mrb[0].mxu0 %v1215
    %v1251 = vpop.f32.mrb[0].mxu0
    %v1252 = vadd.f32 0.0, %v1251
    %v1253 = vpop.f32.mrb[0].mxu0
    %v1254 = vpop.f32.mrb[0].mxu0
    %v1255 = vadd.f32 0.0, %v1254
    %v1256 = vpop.f32.mrb[0].mxu0
    %1257 = vdwg.mxu0
    %v1258 = vadd.f32 %v1208, %v1252
    %v1259 = vadd.f32 %v1209, %v1255
    %v1260 = vld [vmem:[%s1160 + $0x2] sm:$0xff]
    %v1261 = vld [vmem:[%s1160 + $0xa] sm:$0x3f]
    %v1262 = vpack.c.bf16 %v1261, %v1260
    %v1264 = vsel %vm91, %v1262, 0
    %1266 = vmatprep.subr.bf16.mxu0 0
    %1267 = vmatpush1.bf16.msra.mxu0 %v352
    %1268 = vmatprep.subr.bf16.mxu0 0
    %1269 = vmatpush1.bf16.msra.mxu0 0
    %1270 = vmatprep.subr.bf16.mxu0 0
    %1271 = vmatpush1.bf16.msra.mxu0 0
    %1272 = vmatprep.subr.bf16.mxu0 0
    %1273 = vmatpush1.bf16.msra.mxu0 0
    %1274 = vmatprep.subr.bf16.mxu0 0
    %1275 = vmatpush1.bf16.msra.mxu0 0
    %1276 = vmatprep.subr.bf16.mxu0 0
    %1277 = vmatpush1.bf16.msra.mxu0 0
    %1278 = vmatprep.subr.bf16.mxu0 0
    %1279 = vmatpush1.bf16.msra.mxu0 0
    %1280 = vmatprep.subr.bf16.mxu0 0
    %1281 = vmatpush1.bf16.msra.mxu0 0
    %1282 = vmatprep.subr.bf16.mxu0 0
    %1283 = vmatpush1.bf16.msra.mxu0 0
    %1284 = vmatprep.subr.bf16.mxu0 0
    %1285 = vmatpush1.bf16.msra.mxu0 0
    %1286 = vmatprep.subr.bf16.mxu0 0
    %1287 = vmatpush1.bf16.msra.mxu0 0
    %1288 = vmatprep.subr.bf16.mxu0 0
    %1289 = vmatpush1.bf16.msra.mxu0 0
    %1290 = vmatprep.subr.bf16.mxu0 0
    %1291 = vmatpush1.bf16.msra.mxu0 0
    %1292 = vmatprep.subr.bf16.mxu0 0
    %1293 = vmatpush1.bf16.msra.mxu0 0
    %1294 = vmatprep.subr.bf16.mxu0 0
    %1295 = vmatpush1.bf16.msra.mxu0 0
    %1296 = vmatprep.subr.bf16.mxu0 0
    %1297 = vmatpush1.bf16.msra.mxu0 0
    %1298 = vmatprep.mubr.bf16.mxu0 0
    %1299 = vmatmul.mubr.bf16.gmra.mrb[0].mxu0 %v1264
    %v1300 = vpop.f32.mrb[0].mxu0
    %v1301 = vadd.f32 0.0, %v1300
    %v1302 = vpop.f32.mrb[0].mxu0
    %v1303 = vpop.f32.mrb[0].mxu0
    %v1304 = vadd.f32 0.0, %v1303
    %v1305 = vpop.f32.mrb[0].mxu0
    %1306 = vdwg.mxu0
    %v1307 = vadd.f32 %v1258, %v1301
    %v1308 = vadd.f32 %v1259, %v1304
    %s1309 = scalar_lea.vmem %s0, 48
    %v1310 = vld [vmem:[%s1309] sm:$0xff]
    %v1311 = vld [vmem:[%s1309 + $0x8] sm:$0x3f]
    %v1312 = vpack.c.bf16 %v1311, %v1310
    %v1314 = vsel %vm91, %v1312, 0
    %1316 = vmatprep.subr.bf16.mxu0 0
    %1317 = vmatpush1.bf16.msra.mxu0 %v405
    %1318 = vmatprep.subr.bf16.mxu0 0
    %1319 = vmatpush1.bf16.msra.mxu0 0
    %1320 = vmatprep.subr.bf16.mxu0 0
    %1321 = vmatpush1.bf16.msra.mxu0 0
    %1322 = vmatprep.subr.bf16.mxu0 0
    %1323 = vmatpush1.bf16.msra.mxu0 0
    %1324 = vmatprep.subr.bf16.mxu0 0
    %1325 = vmatpush1.bf16.msra.mxu0 0
    %1326 = vmatprep.subr.bf16.mxu0 0
    %1327 = vmatpush1.bf16.msra.mxu0 0
    %1328 = vmatprep.subr.bf16.mxu0 0
    %1329 = vmatpush1.bf16.msra.mxu0 0
    %1330 = vmatprep.subr.bf16.mxu0 0
    %1331 = vmatpush1.bf16.msra.mxu0 0
    %1332 = vmatprep.subr.bf16.mxu0 0
    %1333 = vmatpush1.bf16.msra.mxu0 0
    %1334 = vmatprep.subr.bf16.mxu0 0
    %1335 = vmatpush1.bf16.msra.mxu0 0
    %1336 = vmatprep.subr.bf16.mxu0 0
    %1337 = vmatpush1.bf16.msra.mxu0 0
    %1338 = vmatprep.subr.bf16.mxu0 0
    %1339 = vmatpush1.bf16.msra.mxu0 0
    %1340 = vmatprep.subr.bf16.mxu0 0
    %1341 = vmatpush1.bf16.msra.mxu0 0
    %1342 = vmatprep.subr.bf16.mxu0 0
    %1343 = vmatpush1.bf16.msra.mxu0 0
    %1344 = vmatprep.subr.bf16.mxu0 0
    %1345 = vmatpush1.bf16.msra.mxu0 0
    %1346 = vmatprep.subr.bf16.mxu0 0
    %1347 = vmatpush1.bf16.msra.mxu0 0
    %1348 = vmatprep.mubr.bf16.mxu0 0
    %1349 = vmatmul.mubr.bf16.gmra.mrb[0].mxu0 %v1314
    %v1350 = vpop.f32.mrb[0].mxu0
    %v1351 = vadd.f32 0.0, %v1350
    %v1352 = vpop.f32.mrb[0].mxu0
    %v1353 = vpop.f32.mrb[0].mxu0
    %v1354 = vadd.f32 0.0, %v1353
    %v1355 = vpop.f32.mrb[0].mxu0
    %1356 = vdwg.mxu0
    %v1357 = vadd.f32 %v1307, %v1351
    %v1358 = vadd.f32 %v1308, %v1354
    %s1359 = scalar_lea.vmem %s0, 176
    %v1360 = vld [vmem:[%s1359] sm:$0xff]
    %v1361 = vld [vmem:[%s1359 + $0x8] sm:$0x3f]
    %v1362 = vpack.c.bf16 %v1361, %v1360
    %v1364 = vsel %vm91, %v1362, 0
    %1366 = vmatprep.subr.bf16.mxu0 0
    %1367 = vmatpush1.bf16.msra.mxu0 %v458
    %1368 = vmatprep.subr.bf16.mxu0 0
    %1369 = vmatpush1.bf16.msra.mxu0 0
    %1370 = vmatprep.subr.bf16.mxu0 0
    %1371 = vmatpush1.bf16.msra.mxu0 0
    %1372 = vmatprep.subr.bf16.mxu0 0
    %1373 = vmatpush1.bf16.msra.mxu0 0
    %1374 = vmatprep.subr.bf16.mxu0 0
    %1375 = vmatpush1.bf16.msra.mxu0 0
    %1376 = vmatprep.subr.bf16.mxu0 0
    %1377 = vmatpush1.bf16.msra.mxu0 0
    %1378 = vmatprep.subr.bf16.mxu0 0
    %1379 = vmatpush1.bf16.msra.mxu0 0
    %1380 = vmatprep.subr.bf16.mxu0 0
    %1381 = vmatpush1.bf16.msra.mxu0 0
    %1382 = vmatprep.subr.bf16.mxu0 0
    %1383 = vmatpush1.bf16.msra.mxu0 0
    %1384 = vmatprep.subr.bf16.mxu0 0
    %1385 = vmatpush1.bf16.msra.mxu0 0
    %1386 = vmatprep.subr.bf16.mxu0 0
    %1387 = vmatpush1.bf16.msra.mxu0 0
    %1388 = vmatprep.subr.bf16.mxu0 0
    %1389 = vmatpush1.bf16.msra.mxu0 0
    %1390 = vmatprep.subr.bf16.mxu0 0
    %1391 = vmatpush1.bf16.msra.mxu0 0
    %1392 = vmatprep.subr.bf16.mxu0 0
    %1393 = vmatpush1.bf16.msra.mxu0 0
    %1394 = vmatprep.subr.bf16.mxu0 0
    %1395 = vmatpush1.bf16.msra.mxu0 0
    %1396 = vmatprep.subr.bf16.mxu0 0
    %1397 = vmatpush1.bf16.msra.mxu0 0
    %1398 = vmatprep.mubr.bf16.mxu0 0
    %1399 = vmatmul.mubr.bf16.gmra.mrb[0].mxu0 %v1364
    %v1400 = vpop.f32.mrb[0].mxu0
    %v1401 = vadd.f32 0.0, %v1400
    %v1402 = vpop.f32.mrb[0].mxu0
    %v1403 = vpop.f32.mrb[0].mxu0
    %v1404 = vadd.f32 0.0, %v1403
    %v1405 = vpop.f32.mrb[0].mxu0
    %1406 = vdwg.mxu0
    %v1407 = vadd.f32 %v1357, %v1401
    %v1408 = vadd.f32 %v1358, %v1404
    %v1409 = vld [vmem:[%s1309 + $0x2] sm:$0xff]
    %v1410 = vld [vmem:[%s1309 + $0xa] sm:$0x3f]
    %v1411 = vpack.c.bf16 %v1410, %v1409
    %v1413 = vsel %vm91, %v1411, 0
    %1415 = vmatprep.subr.bf16.mxu0 0
    %1416 = vmatpush1.bf16.msra.mxu0 %v510
    %1417 = vmatprep.subr.bf16.mxu0 0
    %1418 = vmatpush1.bf16.msra.mxu0 0
    %1419 = vmatprep.subr.bf16.mxu0 0
    %1420 = vmatpush1.bf16.msra.mxu0 0
    %1421 = vmatprep.subr.bf16.mxu0 0
    %1422 = vmatpush1.bf16.msra.mxu0 0
    %1423 = vmatprep.subr.bf16.mxu0 0
    %1424 = vmatpush1.bf16.msra.mxu0 0
    %1425 = vmatprep.subr.bf16.mxu0 0
    %1426 = vmatpush1.bf16.msra.mxu0 0
    %1427 = vmatprep.subr.bf16.mxu0 0
    %1428 = vmatpush1.bf16.msra.mxu0 0
    %1429 = vmatprep.subr.bf16.mxu0 0
    %1430 = vmatpush1.bf16.msra.mxu0 0
    %1431 = vmatprep.subr.bf16.mxu0 0
    %1432 = vmatpush1.bf16.msra.mxu0 0
    %1433 = vmatprep.subr.bf16.mxu0 0
    %1434 = vmatpush1.bf16.msra.mxu0 0
    %1435 = vmatprep.subr.bf16.mxu0 0
    %1436 = vmatpush1.bf16.msra.mxu0 0
    %1437 = vmatprep.subr.bf16.mxu0 0
    %1438 = vmatpush1.bf16.msra.mxu0 0
    %1439 = vmatprep.subr.bf16.mxu0 0
    %1440 = vmatpush1.bf16.msra.mxu0 0
    %1441 = vmatprep.subr.bf16.mxu0 0
    %1442 = vmatpush1.bf16.msra.mxu0 0
    %1443 = vmatprep.subr.bf16.mxu0 0
    %1444 = vmatpush1.bf16.msra.mxu0 0
    %1445 = vmatprep.subr.bf16.mxu0 0
    %1446 = vmatpush1.bf16.msra.mxu0 0
    %1447 = vmatprep.mubr.bf16.mxu0 0
    %1448 = vmatmul.mubr.bf16.gmra.mrb[0].mxu0 %v1413
    %v1449 = vpop.f32.mrb[0].mxu0
    %v1450 = vadd.f32 0.0, %v1449
    %v1451 = vpop.f32.mrb[0].mxu0
    %v1452 = vpop.f32.mrb[0].mxu0
    %v1453 = vadd.f32 0.0, %v1452
    %v1454 = vpop.f32.mrb[0].mxu0
    %1455 = vdwg.mxu0
    %v1456 = vadd.f32 %v1407, %v1450
    %v1457 = vadd.f32 %v1408, %v1453
    %v1458 = vadd.f32 %v1456, %v559
    %v1459 = vadd.f32 %v1457, %v559
    %v1460 = vmax.f32 %v1458, 0.0
    %v1461 = vmax.f32 %v1459, 0.0
    %s1462 = scalar_lea.vmem [#allocation2], 32
    %1463 = vst.msk [vmem:[%s1462] sm:$0xff] %vm565, %v1460
    %1464 = vst.msk [vmem:[%s1462 + $0x8] sm:$0x3f] %vm567, %v1461
    %v1465 = vld [vmem:[%s1309] sm:$0xff]
    %v1466 = vld [vmem:[%s1309 + $0x8] sm:$0x3f]
    %v1467 = vpack.c.bf16 %v1466, %v1465
    %v1468 = vld [vmem:[%s1359] sm:$0xff]
    %v1469 = vld [vmem:[%s1359 + $0x8] sm:$0x3f]
    %v1470 = vpack.c.bf16 %v1469, %v1468
    %v1472 = vsel %vm91, %v1470, 0
    %1474 = vmatprep.subr.bf16.mxu0 0
    %1475 = vmatpush1.bf16.msra.mxu0 %v97
    %1476 = vmatprep.subr.bf16.mxu0 0
    %1477 = vmatpush1.bf16.msra.mxu0 0
    %1478 = vmatprep.subr.bf16.mxu0 0
    %1479 = vmatpush1.bf16.msra.mxu0 0
    %1480 = vmatprep.subr.bf16.mxu0 0
    %1481 = vmatpush1.bf16.msra.mxu0 0
    %1482 = vmatprep.subr.bf16.mxu0 0
    %1483 = vmatpush1.bf16.msra.mxu0 0
    %1484 = vmatprep.subr.bf16.mxu0 0
    %1485 = vmatpush1.bf16.msra.mxu0 0
    %1486 = vmatprep.subr.bf16.mxu0 0
    %1487 = vmatpush1.bf16.msra.mxu0 0
    %1488 = vmatprep.subr.bf16.mxu0 0
    %1489 = vmatpush1.bf16.msra.mxu0 0
    %1490 = vmatprep.subr.bf16.mxu0 0
    %1491 = vmatpush1.bf16.msra.mxu0 0
    %1492 = vmatprep.subr.bf16.mxu0 0
    %1493 = vmatpush1.bf16.msra.mxu0 0
    %1494 = vmatprep.subr.bf16.mxu0 0
    %1495 = vmatpush1.bf16.msra.mxu0 0
    %1496 = vmatprep.subr.bf16.mxu0 0
    %1497 = vmatpush1.bf16.msra.mxu0 0
    %1498 = vmatprep.subr.bf16.mxu0 0
    %1499 = vmatpush1.bf16.msra.mxu0 0
    %1500 = vmatprep.subr.bf16.mxu0 0
    %1501 = vmatpush1.bf16.msra.mxu0 0
    %1502 = vmatprep.subr.bf16.mxu0 0
    %1503 = vmatpush1.bf16.msra.mxu0 0
    %1504 = vmatprep.subr.bf16.mxu0 0
    %1505 = vmatpush1.bf16.msra.mxu0 0
    %1506 = vmatprep.mubr.bf16.mxu0 0
    %1507 = vmatmul.mubr.bf16.gmra.mrb[0].mxu0 %v1472
    %v1508 = vpop.f32.mrb[0].mxu0
    %v1509 = vadd.f32 0.0, %v1508
    %v1510 = vpop.f32.mrb[0].mxu0
    %v1511 = vpop.f32.mrb[0].mxu0
    %v1512 = vadd.f32 0.0, %v1511
    %v1513 = vpop.f32.mrb[0].mxu0
    %1514 = vdwg.mxu0
    %v1516 = vsel %vm91, %v1467, 0
    %1518 = vmatprep.subr.bf16.mxu0 0
    %1519 = vmatpush1.bf16.msra.mxu0 %v144
    %1520 = vmatprep.subr.bf16.mxu0 0
    %1521 = vmatpush1.bf16.msra.mxu0 0
    %1522 = vmatprep.subr.bf16.mxu0 0
    %1523 = vmatpush1.bf16.msra.mxu0 0
    %1524 = vmatprep.subr.bf16.mxu0 0
    %1525 = vmatpush1.bf16.msra.mxu0 0
    %1526 = vmatprep.subr.bf16.mxu0 0
    %1527 = vmatpush1.bf16.msra.mxu0 0
    %1528 = vmatprep.subr.bf16.mxu0 0
    %1529 = vmatpush1.bf16.msra.mxu0 0
    %1530 = vmatprep.subr.bf16.mxu0 0
    %1531 = vmatpush1.bf16.msra.mxu0 0
    %1532 = vmatprep.subr.bf16.mxu0 0
    %1533 = vmatpush1.bf16.msra.mxu0 0
    %1534 = vmatprep.subr.bf16.mxu0 0
    %1535 = vmatpush1.bf16.msra.mxu0 0
    %1536 = vmatprep.subr.bf16.mxu0 0
    %1537 = vmatpush1.bf16.msra.mxu0 0
    %1538 = vmatprep.subr.bf16.mxu0 0
    %1539 = vmatpush1.bf16.msra.mxu0 0
    %1540 = vmatprep.subr.bf16.mxu0 0
    %1541 = vmatpush1.bf16.msra.mxu0 0
    %1542 = vmatprep.subr.bf16.mxu0 0
    %1543 = vmatpush1.bf16.msra.mxu0 0
    %1544 = vmatprep.subr.bf16.mxu0 0
    %1545 = vmatpush1.bf16.msra.mxu0 0
    %1546 = vmatprep.subr.bf16.mxu0 0
    %1547 = vmatpush1.bf16.msra.mxu0 0
    %1548 = vmatprep.subr.bf16.mxu0 0
    %1549 = vmatpush1.bf16.msra.mxu0 0
    %1550 = vmatprep.mubr.bf16.mxu0 0
    %1551 = vmatmul.mubr.bf16.gmra.mrb[0].mxu0 %v1516
    %v1552 = vpop.f32.mrb[0].mxu0
    %v1553 = vadd.f32 %v1509, %v1552
    %v1554 = vpop.f32.mrb[0].mxu0
    %v1555 = vpop.f32.mrb[0].mxu0
    %v1556 = vadd.f32 %v1512, %v1555
    %v1557 = vpop.f32.mrb[0].mxu0
    %1558 = vdwg.mxu0
    %v1559 = vld [vmem:[%s1309 + $0x2] sm:$0xff]
    %v1560 = vld [vmem:[%s1309 + $0xa] sm:$0x3f]
    %v1561 = vpack.c.bf16 %v1560, %v1559
    %v1563 = vsel %vm91, %v1561, 0
    %1565 = vmatprep.subr.bf16.mxu0 0
    %1566 = vmatpush1.bf16.msra.mxu0 %v194
    %1567 = vmatprep.subr.bf16.mxu0 0
    %1568 = vmatpush1.bf16.msra.mxu0 0
    %1569 = vmatprep.subr.bf16.mxu0 0
    %1570 = vmatpush1.bf16.msra.mxu0 0
    %1571 = vmatprep.subr.bf16.mxu0 0
    %1572 = vmatpush1.bf16.msra.mxu0 0
    %1573 = vmatprep.subr.bf16.mxu0 0
    %1574 = vmatpush1.bf16.msra.mxu0 0
    %1575 = vmatprep.subr.bf16.mxu0 0
    %1576 = vmatpush1.bf16.msra.mxu0 0
    %1577 = vmatprep.subr.bf16.mxu0 0
    %1578 = vmatpush1.bf16.msra.mxu0 0
    %1579 = vmatprep.subr.bf16.mxu0 0
    %1580 = vmatpush1.bf16.msra.mxu0 0
    %1581 = vmatprep.subr.bf16.mxu0 0
    %1582 = vmatpush1.bf16.msra.mxu0 0
    %1583 = vmatprep.subr.bf16.mxu0 0
    %1584 = vmatpush1.bf16.msra.mxu0 0
    %1585 = vmatprep.subr.bf16.mxu0 0
    %1586 = vmatpush1.bf16.msra.mxu0 0
    %1587 = vmatprep.subr.bf16.mxu0 0
    %1588 = vmatpush1.bf16.msra.mxu0 0
    %1589 = vmatprep.subr.bf16.mxu0 0
    %1590 = vmatpush1.bf16.msra.mxu0 0
    %1591 = vmatprep.subr.bf16.mxu0 0
    %1592 = vmatpush1.bf16.msra.mxu0 0
    %1593 = vmatprep.subr.bf16.mxu0 0
    %1594 = vmatpush1.bf16.msra.mxu0 0
    %1595 = vmatprep.subr.bf16.mxu0 0
    %1596 = vmatpush1.bf16.msra.mxu0 0
    %1597 = vmatprep.mubr.bf16.mxu0 0
    %1598 = vmatmul.mubr.bf16.gmra.mrb[0].mxu0 %v1563
    %v1599 = vpop.f32.mrb[0].mxu0
    %v1600 = vadd.f32 0.0, %v1599
    %v1601 = vpop.f32.mrb[0].mxu0
    %v1602 = vpop.f32.mrb[0].mxu0
    %v1603 = vadd.f32 0.0, %v1602
    %v1604 = vpop.f32.mrb[0].mxu0
    %1605 = vdwg.mxu0
    %v1606 = vadd.f32 %v1553, %v1600
    %v1607 = vadd.f32 %v1556, %v1603
    %s1608 = scalar_lea.vmem %s0, 304
    %v1609 = vld [vmem:[%s1608] sm:$0xff]
    %v1610 = vld [vmem:[%s1608 + $0x8] sm:$0x3f]
    %v1611 = vpack.c.bf16 %v1610, %v1609
    %v1613 = vsel %vm91, %v1611, 0
    %1615 = vmatprep.subr.bf16.mxu0 0
    %1616 = vmatpush1.bf16.msra.mxu0 %v247
    %1617 = vmatprep.subr.bf16.mxu0 0
    %1618 = vmatpush1.bf16.msra.mxu0 0
    %1619 = vmatprep.subr.bf16.mxu0 0
    %1620 = vmatpush1.bf16.msra.mxu0 0
    %1621 = vmatprep.subr.bf16.mxu0 0
    %1622 = vmatpush1.bf16.msra.mxu0 0
    %1623 = vmatprep.subr.bf16.mxu0 0
    %1624 = vmatpush1.bf16.msra.mxu0 0
    %1625 = vmatprep.subr.bf16.mxu0 0
    %1626 = vmatpush1.bf16.msra.mxu0 0
    %1627 = vmatprep.subr.bf16.mxu0 0
    %1628 = vmatpush1.bf16.msra.mxu0 0
    %1629 = vmatprep.subr.bf16.mxu0 0
    %1630 = vmatpush1.bf16.msra.mxu0 0
    %1631 = vmatprep.subr.bf16.mxu0 0
    %1632 = vmatpush1.bf16.msra.mxu0 0
    %1633 = vmatprep.subr.bf16.mxu0 0
    %1634 = vmatpush1.bf16.msra.mxu0 0
    %1635 = vmatprep.subr.bf16.mxu0 0
    %1636 = vmatpush1.bf16.msra.mxu0 0
    %1637 = vmatprep.subr.bf16.mxu0 0
    %1638 = vmatpush1.bf16.msra.mxu0 0
    %1639 = vmatprep.subr.bf16.mxu0 0
    %1640 = vmatpush1.bf16.msra.mxu0 0
    %1641 = vmatprep.subr.bf16.mxu0 0
    %1642 = vmatpush1.bf16.msra.mxu0 0
    %1643 = vmatprep.subr.bf16.mxu0 0
    %1644 = vmatpush1.bf16.msra.mxu0 0
    %1645 = vmatprep.subr.bf16.mxu0 0
    %1646 = vmatpush1.bf16.msra.mxu0 0
    %1647 = vmatprep.mubr.bf16.mxu0 0
    %1648 = vmatmul.mubr.bf16.gmra.mrb[0].mxu0 %v1613
    %v1649 = vpop.f32.mrb[0].mxu0
    %v1650 = vadd.f32 0.0, %v1649
    %v1651 = vpop.f32.mrb[0].mxu0
    %v1652 = vpop.f32.mrb[0].mxu0
    %v1653 = vadd.f32 0.0, %v1652
    %v1654 = vpop.f32.mrb[0].mxu0
    %1655 = vdwg.mxu0
    %v1656 = vadd.f32 %v1606, %v1650
    %v1657 = vadd.f32 %v1607, %v1653
    %s1658 = scalar_lea.vmem %s0, 432
    %v1659 = vld [vmem:[%s1658] sm:$0xff]
    %v1660 = vld [vmem:[%s1658 + $0x8] sm:$0x3f]
    %v1661 = vpack.c.bf16 %v1660, %v1659
    %v1663 = vsel %vm91, %v1661, 0
    %1665 = vmatprep.subr.bf16.mxu0 0
    %1666 = vmatpush1.bf16.msra.mxu0 %v300
    %1667 = vmatprep.subr.bf16.mxu0 0
    %1668 = vmatpush1.bf16.msra.mxu0 0
    %1669 = vmatprep.subr.bf16.mxu0 0
    %1670 = vmatpush1.bf16.msra.mxu0 0
    %1671 = vmatprep.subr.bf16.mxu0 0
    %1672 = vmatpush1.bf16.msra.mxu0 0
    %1673 = vmatprep.subr.bf16.mxu0 0
    %1674 = vmatpush1.bf16.msra.mxu0 0
    %1675 = vmatprep.subr.bf16.mxu0 0
    %1676 = vmatpush1.bf16.msra.mxu0 0
    %1677 = vmatprep.subr.bf16.mxu0 0
    %1678 = vmatpush1.bf16.msra.mxu0 0
    %1679 = vmatprep.subr.bf16.mxu0 0
    %1680 = vmatpush1.bf16.msra.mxu0 0
    %1681 = vmatprep.subr.bf16.mxu0 0
    %1682 = vmatpush1.bf16.msra.mxu0 0
    %1683 = vmatprep.subr.bf16.mxu0 0
    %1684 = vmatpush1.bf16.msra.mxu0 0
    %1685 = vmatprep.subr.bf16.mxu0 0
    %1686 = vmatpush1.bf16.msra.mxu0 0
    %1687 = vmatprep.subr.bf16.mxu0 0
    %1688 = vmatpush1.bf16.msra.mxu0 0
    %1689 = vmatprep.subr.bf16.mxu0 0
    %1690 = vmatpush1.bf16.msra.mxu0 0
    %1691 = vmatprep.subr.bf16.mxu0 0
    %1692 = vmatpush1.bf16.msra.mxu0 0
    %1693 = vmatprep.subr.bf16.mxu0 0
    %1694 = vmatpush1.bf16.msra.mxu0 0
    %1695 = vmatprep.subr.bf16.mxu0 0
    %1696 = vmatpush1.bf16.msra.mxu0 0
    %1697 = vmatprep.mubr.bf16.mxu0 0
    %1698 = vmatmul.mubr.bf16.gmra.mrb[0].mxu0 %v1663
    %v1699 = vpop.f32.mrb[0].mxu0
    %v1700 = vadd.f32 0.0, %v1699
    %v1701 = vpop.f32.mrb[0].mxu0
    %v1702 = vpop.f32.mrb[0].mxu0
    %v1703 = vadd.f32 0.0, %v1702
    %v1704 = vpop.f32.mrb[0].mxu0
    %1705 = vdwg.mxu0
    %v1706 = vadd.f32 %v1656, %v1700
    %v1707 = vadd.f32 %v1657, %v1703
    %v1708 = vld [vmem:[%s1608 + $0x2] sm:$0xff]
    %v1709 = vld [vmem:[%s1608 + $0xa] sm:$0x3f]
    %v1710 = vpack.c.bf16 %v1709, %v1708
    %v1712 = vsel %vm91, %v1710, 0
    %1714 = vmatprep.subr.bf16.mxu0 0
    %1715 = vmatpush1.bf16.msra.mxu0 %v352
    %1716 = vmatprep.subr.bf16.mxu0 0
    %1717 = vmatpush1.bf16.msra.mxu0 0
    %1718 = vmatprep.subr.bf16.mxu0 0
    %1719 = vmatpush1.bf16.msra.mxu0 0
    %1720 = vmatprep.subr.bf16.mxu0 0
    %1721 = vmatpush1.bf16.msra.mxu0 0
    %1722 = vmatprep.subr.bf16.mxu0 0
    %1723 = vmatpush1.bf16.msra.mxu0 0
    %1724 = vmatprep.subr.bf16.mxu0 0
    %1725 = vmatpush1.bf16.msra.mxu0 0
    %1726 = vmatprep.subr.bf16.mxu0 0
    %1727 = vmatpush1.bf16.msra.mxu0 0
    %1728 = vmatprep.subr.bf16.mxu0 0
    %1729 = vmatpush1.bf16.msra.mxu0 0
    %1730 = vmatprep.subr.bf16.mxu0 0
    %1731 = vmatpush1.bf16.msra.mxu0 0
    %1732 = vmatprep.subr.bf16.mxu0 0
    %1733 = vmatpush1.bf16.msra.mxu0 0
    %1734 = vmatprep.subr.bf16.mxu0 0
    %1735 = vmatpush1.bf16.msra.mxu0 0
    %1736 = vmatprep.subr.bf16.mxu0 0
    %1737 = vmatpush1.bf16.msra.mxu0 0
    %1738 = vmatprep.subr.bf16.mxu0 0
    %1739 = vmatpush1.bf16.msra.mxu0 0
    %1740 = vmatprep.subr.bf16.mxu0 0
    %1741 = vmatpush1.bf16.msra.mxu0 0
    %1742 = vmatprep.subr.bf16.mxu0 0
    %1743 = vmatpush1.bf16.msra.mxu0 0
    %1744 = vmatprep.subr.bf16.mxu0 0
    %1745 = vmatpush1.bf16.msra.mxu0 0
    %1746 = vmatprep.mubr.bf16.mxu0 0
    %1747 = vmatmul.mubr.bf16.gmra.mrb[0].mxu0 %v1712
    %v1748 = vpop.f32.mrb[0].mxu0
    %v1749 = vadd.f32 0.0, %v1748
    %v1750 = vpop.f32.mrb[0].mxu0
    %v1751 = vpop.f32.mrb[0].mxu0
    %v1752 = vadd.f32 0.0, %v1751
    %v1753 = vpop.f32.mrb[0].mxu0
    %1754 = vdwg.mxu0
    %v1755 = vadd.f32 %v1706, %v1749
    %v1756 = vadd.f32 %v1707, %v1752
    %s1757 = scalar_lea.vmem %s0, 64
    %v1758 = vld [vmem:[%s1757] sm:$0xff]
    %v1759 = vld [vmem:[%s1757 + $0x8] sm:$0x3f]
    %v1760 = vpack.c.bf16 %v1759, %v1758
    %v1762 = vsel %vm91, %v1760, 0
    %1764 = vmatprep.subr.bf16.mxu0 0
    %1765 = vmatpush1.bf16.msra.mxu0 %v405
    %1766 = vmatprep.subr.bf16.mxu0 0
    %1767 = vmatpush1.bf16.msra.mxu0 0
    %1768 = vmatprep.subr.bf16.mxu0 0
    %1769 = vmatpush1.bf16.msra.mxu0 0
    %1770 = vmatprep.subr.bf16.mxu0 0
    %1771 = vmatpush1.bf16.msra.mxu0 0
    %1772 = vmatprep.subr.bf16.mxu0 0
    %1773 = vmatpush1.bf16.msra.mxu0 0
    %1774 = vmatprep.subr.bf16.mxu0 0
    %1775 = vmatpush1.bf16.msra.mxu0 0
    %1776 = vmatprep.subr.bf16.mxu0 0
    %1777 = vmatpush1.bf16.msra.mxu0 0
    %1778 = vmatprep.subr.bf16.mxu0 0
    %1779 = vmatpush1.bf16.msra.mxu0 0
    %1780 = vmatprep.subr.bf16.mxu0 0
    %1781 = vmatpush1.bf16.msra.mxu0 0
    %1782 = vmatprep.subr.bf16.mxu0 0
    %1783 = vmatpush1.bf16.msra.mxu0 0
    %1784 = vmatprep.subr.bf16.mxu0 0
    %1785 = vmatpush1.bf16.msra.mxu0 0
    %1786 = vmatprep.subr.bf16.mxu0 0
    %1787 = vmatpush1.bf16.msra.mxu0 0
    %1788 = vmatprep.subr.bf16.mxu0 0
    %1789 = vmatpush1.bf16.msra.mxu0 0
    %1790 = vmatprep.subr.bf16.mxu0 0
    %1791 = vmatpush1.bf16.msra.mxu0 0
    %1792 = vmatprep.subr.bf16.mxu0 0
    %1793 = vmatpush1.bf16.msra.mxu0 0
    %1794 = vmatprep.subr.bf16.mxu0 0
    %1795 = vmatpush1.bf16.msra.mxu0 0
    %1796 = vmatprep.mubr.bf16.mxu0 0
    %1797 = vmatmul.mubr.bf16.gmra.mrb[0].mxu0 %v1762
    %v1798 = vpop.f32.mrb[0].mxu0
    %v1799 = vadd.f32 0.0, %v1798
    %v1800 = vpop.f32.mrb[0].mxu0
    %v1801 = vpop.f32.mrb[0].mxu0
    %v1802 = vadd.f32 0.0, %v1801
    %v1803 = vpop.f32.mrb[0].mxu0
    %1804 = vdwg.mxu0
    %v1805 = vadd.f32 %v1755, %v1799
    %v1806 = vadd.f32 %v1756, %v1802
    %s1807 = scalar_lea.vmem %s0, 192
    %v1808 = vld [vmem:[%s1807] sm:$0xff]
    %v1809 = vld [vmem:[%s1807 + $0x8] sm:$0x3f]
    %v1810 = vpack.c.bf16 %v1809, %v1808
    %v1812 = vsel %vm91, %v1810, 0
    %1814 = vmatprep.subr.bf16.mxu0 0
    %1815 = vmatpush1.bf16.msra.mxu0 %v458
    %1816 = vmatprep.subr.bf16.mxu0 0
    %1817 = vmatpush1.bf16.msra.mxu0 0
    %1818 = vmatprep.subr.bf16.mxu0 0
    %1819 = vmatpush1.bf16.msra.mxu0 0
    %1820 = vmatprep.subr.bf16.mxu0 0
    %1821 = vmatpush1.bf16.msra.mxu0 0
    %1822 = vmatprep.subr.bf16.mxu0 0
    %1823 = vmatpush1.bf16.msra.mxu0 0
    %1824 = vmatprep.subr.bf16.mxu0 0
    %1825 = vmatpush1.bf16.msra.mxu0 0
    %1826 = vmatprep.subr.bf16.mxu0 0
    %1827 = vmatpush1.bf16.msra.mxu0 0
    %1828 = vmatprep.subr.bf16.mxu0 0
    %1829 = vmatpush1.bf16.msra.mxu0 0
    %1830 = vmatprep.subr.bf16.mxu0 0
    %1831 = vmatpush1.bf16.msra.mxu0 0
    %1832 = vmatprep.subr.bf16.mxu0 0
    %1833 = vmatpush1.bf16.msra.mxu0 0
    %1834 = vmatprep.subr.bf16.mxu0 0
    %1835 = vmatpush1.bf16.msra.mxu0 0
    %1836 = vmatprep.subr.bf16.mxu0 0
    %1837 = vmatpush1.bf16.msra.mxu0 0
    %1838 = vmatprep.subr.bf16.mxu0 0
    %1839 = vmatpush1.bf16.msra.mxu0 0
    %1840 = vmatprep.subr.bf16.mxu0 0
    %1841 = vmatpush1.bf16.msra.mxu0 0
    %1842 = vmatprep.subr.bf16.mxu0 0
    %1843 = vmatpush1.bf16.msra.mxu0 0
    %1844 = vmatprep.subr.bf16.mxu0 0
    %1845 = vmatpush1.bf16.msra.mxu0 0
    %1846 = vmatprep.mubr.bf16.mxu0 0
    %1847 = vmatmul.mubr.bf16.gmra.mrb[0].mxu0 %v1812
    %v1848 = vpop.f32.mrb[0].mxu0
    %v1849 = vadd.f32 0.0, %v1848
    %v1850 = vpop.f32.mrb[0].mxu0
    %v1851 = vpop.f32.mrb[0].mxu0
    %v1852 = vadd.f32 0.0, %v1851
    %v1853 = vpop.f32.mrb[0].mxu0
    %1854 = vdwg.mxu0
    %v1855 = vadd.f32 %v1805, %v1849
    %v1856 = vadd.f32 %v1806, %v1852
    %v1857 = vld [vmem:[%s1757 + $0x2] sm:$0xff]
    %v1858 = vld [vmem:[%s1757 + $0xa] sm:$0x3f]
    %v1859 = vpack.c.bf16 %v1858, %v1857
    %v1861 = vsel %vm91, %v1859, 0
    %1863 = vmatprep.subr.bf16.mxu0 0
    %1864 = vmatpush1.bf16.msra.mxu0 %v510
    %1865 = vmatprep.subr.bf16.mxu0 0
    %1866 = vmatpush1.bf16.msra.mxu0 0
    %1867 = vmatprep.subr.bf16.mxu0 0
    %1868 = vmatpush1.bf16.msra.mxu0 0
    %1869 = vmatprep.subr.bf16.mxu0 0
    %1870 = vmatpush1.bf16.msra.mxu0 0
    %1871 = vmatprep.subr.bf16.mxu0 0
    %1872 = vmatpush1.bf16.msra.mxu0 0
    %1873 = vmatprep.subr.bf16.mxu0 0
    %1874 = vmatpush1.bf16.msra.mxu0 0
    %1875 = vmatprep.subr.bf16.mxu0 0
    %1876 = vmatpush1.bf16.msra.mxu0 0
    %1877 = vmatprep.subr.bf16.mxu0 0
    %1878 = vmatpush1.bf16.msra.mxu0 0
    %1879 = vmatprep.subr.bf16.mxu0 0
    %1880 = vmatpush1.bf16.msra.mxu0 0
    %1881 = vmatprep.subr.bf16.mxu0 0
    %1882 = vmatpush1.bf16.msra.mxu0 0
    %1883 = vmatprep.subr.bf16.mxu0 0
    %1884 = vmatpush1.bf16.msra.mxu0 0
    %1885 = vmatprep.subr.bf16.mxu0 0
    %1886 = vmatpush1.bf16.msra.mxu0 0
    %1887 = vmatprep.subr.bf16.mxu0 0
    %1888 = vmatpush1.bf16.msra.mxu0 0
    %1889 = vmatprep.subr.bf16.mxu0 0
    %1890 = vmatpush1.bf16.msra.mxu0 0
    %1891 = vmatprep.subr.bf16.mxu0 0
    %1892 = vmatpush1.bf16.msra.mxu0 0
    %1893 = vmatprep.subr.bf16.mxu0 0
    %1894 = vmatpush1.bf16.msra.mxu0 0
    %1895 = vmatprep.mubr.bf16.mxu0 0
    %1896 = vmatmul.mubr.bf16.gmra.mrb[0].mxu0 %v1861
    %v1897 = vpop.f32.mrb[0].mxu0
    %v1898 = vadd.f32 0.0, %v1897
    %v1899 = vpop.f32.mrb[0].mxu0
    %v1900 = vpop.f32.mrb[0].mxu0
    %v1901 = vadd.f32 0.0, %v1900
    %v1902 = vpop.f32.mrb[0].mxu0
    %1903 = vdwg.mxu0
    %v1904 = vadd.f32 %v1855, %v1898
    %v1905 = vadd.f32 %v1856, %v1901
    %v1906 = vadd.f32 %v1904, %v559
    %v1907 = vadd.f32 %v1905, %v559
    %v1908 = vmax.f32 %v1906, 0.0
    %v1909 = vmax.f32 %v1907, 0.0
    %s1910 = scalar_lea.vmem [#allocation2], 48
    %1911 = vst.msk [vmem:[%s1910] sm:$0xff] %vm565, %v1908
    %1912 = vst.msk [vmem:[%s1910 + $0x8] sm:$0x3f] %vm567, %v1909
    %v1913 = vld [vmem:[%s1757] sm:$0xff]
    %v1914 = vld [vmem:[%s1757 + $0x8] sm:$0x3f]
    %v1915 = vpack.c.bf16 %v1914, %v1913
    %v1916 = vld [vmem:[%s1807] sm:$0xff]
    %v1917 = vld [vmem:[%s1807 + $0x8] sm:$0x3f]
    %v1918 = vpack.c.bf16 %v1917, %v1916
    %v1920 = vsel %vm91, %v1918, 0
    %1922 = vmatprep.subr.bf16.mxu0 0
    %1923 = vmatpush1.bf16.msra.mxu0 %v97
    %1924 = vmatprep.subr.bf16.mxu0 0
    %1925 = vmatpush1.bf16.msra.mxu0 0
    %1926 = vmatprep.subr.bf16.mxu0 0
    %1927 = vmatpush1.bf16.msra.mxu0 0
    %1928 = vmatprep.subr.bf16.mxu0 0
    %1929 = vmatpush1.bf16.msra.mxu0 0
    %1930 = vmatprep.subr.bf16.mxu0 0
    %1931 = vmatpush1.bf16.msra.mxu0 0
    %1932 = vmatprep.subr.bf16.mxu0 0
    %1933 = vmatpush1.bf16.msra.mxu0 0
    %1934 = vmatprep.subr.bf16.mxu0 0
    %1935 = vmatpush1.bf16.msra.mxu0 0
    %1936 = vmatprep.subr.bf16.mxu0 0
    %1937 = vmatpush1.bf16.msra.mxu0 0
    %1938 = vmatprep.subr.bf16.mxu0 0
    %1939 = vmatpush1.bf16.msra.mxu0 0
    %1940 = vmatprep.subr.bf16.mxu0 0
    %1941 = vmatpush1.bf16.msra.mxu0 0
    %1942 = vmatprep.subr.bf16.mxu0 0
    %1943 = vmatpush1.bf16.msra.mxu0 0
    %1944 = vmatprep.subr.bf16.mxu0 0
    %1945 = vmatpush1.bf16.msra.mxu0 0
    %1946 = vmatprep.subr.bf16.mxu0 0
    %1947 = vmatpush1.bf16.msra.mxu0 0
    %1948 = vmatprep.subr.bf16.mxu0 0
    %1949 = vmatpush1.bf16.msra.mxu0 0
    %1950 = vmatprep.subr.bf16.mxu0 0
    %1951 = vmatpush1.bf16.msra.mxu0 0
    %1952 = vmatprep.subr.bf16.mxu0 0
    %1953 = vmatpush1.bf16.msra.mxu0 0
    %1954 = vmatprep.mubr.bf16.mxu0 0
    %1955 = vmatmul.mubr.bf16.gmra.mrb[0].mxu0 %v1920
    %v1956 = vpop.f32.mrb[0].mxu0
    %v1957 = vadd.f32 0.0, %v1956
    %v1958 = vpop.f32.mrb[0].mxu0
    %v1959 = vpop.f32.mrb[0].mxu0
    %v1960 = vadd.f32 0.0, %v1959
    %v1961 = vpop.f32.mrb[0].mxu0
    %1962 = vdwg.mxu0
    %v1964 = vsel %vm91, %v1915, 0
    %1966 = vmatprep.subr.bf16.mxu0 0
    %1967 = vmatpush1.bf16.msra.mxu0 %v144
    %1968 = vmatprep.subr.bf16.mxu0 0
    %1969 = vmatpush1.bf16.msra.mxu0 0
    %1970 = vmatprep.subr.bf16.mxu0 0
    %1971 = vmatpush1.bf16.msra.mxu0 0
    %1972 = vmatprep.subr.bf16.mxu0 0
    %1973 = vmatpush1.bf16.msra.mxu0 0
    %1974 = vmatprep.subr.bf16.mxu0 0
    %1975 = vmatpush1.bf16.msra.mxu0 0
    %1976 = vmatprep.subr.bf16.mxu0 0
    %1977 = vmatpush1.bf16.msra.mxu0 0
    %1978 = vmatprep.subr.bf16.mxu0 0
    %1979 = vmatpush1.bf16.msra.mxu0 0
    %1980 = vmatprep.subr.bf16.mxu0 0
    %1981 = vmatpush1.bf16.msra.mxu0 0
    %1982 = vmatprep.subr.bf16.mxu0 0
    %1983 = vmatpush1.bf16.msra.mxu0 0
    %1984 = vmatprep.subr.bf16.mxu0 0
    %1985 = vmatpush1.bf16.msra.mxu0 0
    %1986 = vmatprep.subr.bf16.mxu0 0
    %1987 = vmatpush1.bf16.msra.mxu0 0
    %1988 = vmatprep.subr.bf16.mxu0 0
    %1989 = vmatpush1.bf16.msra.mxu0 0
    %1990 = vmatprep.subr.bf16.mxu0 0
    %1991 = vmatpush1.bf16.msra.mxu0 0
    %1992 = vmatprep.subr.bf16.mxu0 0
    %1993 = vmatpush1.bf16.msra.mxu0 0
    %1994 = vmatprep.subr.bf16.mxu0 0
    %1995 = vmatpush1.bf16.msra.mxu0 0
    %1996 = vmatprep.subr.bf16.mxu0 0
    %1997 = vmatpush1.bf16.msra.mxu0 0
    %1998 = vmatprep.mubr.bf16.mxu0 0
    %1999 = vmatmul.mubr.bf16.gmra.mrb[0].mxu0 %v1964
    %v2000 = vpop.f32.mrb[0].mxu0
    %v2001 = vadd.f32 %v1957, %v2000
    %v2002 = vpop.f32.mrb[0].mxu0
    %v2003 = vpop.f32.mrb[0].mxu0
    %v2004 = vadd.f32 %v1960, %v2003
    %v2005 = vpop.f32.mrb[0].mxu0
    %2006 = vdwg.mxu0
    %v2007 = vld [vmem:[%s1757 + $0x2] sm:$0xff]
    %v2008 = vld [vmem:[%s1757 + $0xa] sm:$0x3f]
    %v2009 = vpack.c.bf16 %v2008, %v2007
    %v2011 = vsel %vm91, %v2009, 0
    %2013 = vmatprep.subr.bf16.mxu0 0
    %2014 = vmatpush1.bf16.msra.mxu0 %v194
    %2015 = vmatprep.subr.bf16.mxu0 0
    %2016 = vmatpush1.bf16.msra.mxu0 0
    %2017 = vmatprep.subr.bf16.mxu0 0
    %2018 = vmatpush1.bf16.msra.mxu0 0
    %2019 = vmatprep.subr.bf16.mxu0 0
    %2020 = vmatpush1.bf16.msra.mxu0 0
    %2021 = vmatprep.subr.bf16.mxu0 0
    %2022 = vmatpush1.bf16.msra.mxu0 0
    %2023 = vmatprep.subr.bf16.mxu0 0
    %2024 = vmatpush1.bf16.msra.mxu0 0
    %2025 = vmatprep.subr.bf16.mxu0 0
    %2026 = vmatpush1.bf16.msra.mxu0 0
    %2027 = vmatprep.subr.bf16.mxu0 0
    %2028 = vmatpush1.bf16.msra.mxu0 0
    %2029 = vmatprep.subr.bf16.mxu0 0
    %2030 = vmatpush1.bf16.msra.mxu0 0
    %2031 = vmatprep.subr.bf16.mxu0 0
    %2032 = vmatpush1.bf16.msra.mxu0 0
    %2033 = vmatprep.subr.bf16.mxu0 0
    %2034 = vmatpush1.bf16.msra.mxu0 0
    %2035 = vmatprep.subr.bf16.mxu0 0
    %2036 = vmatpush1.bf16.msra.mxu0 0
    %2037 = vmatprep.subr.bf16.mxu0 0
    %2038 = vmatpush1.bf16.msra.mxu0 0
    %2039 = vmatprep.subr.bf16.mxu0 0
    %2040 = vmatpush1.bf16.msra.mxu0 0
    %2041 = vmatprep.subr.bf16.mxu0 0
    %2042 = vmatpush1.bf16.msra.mxu0 0
    %2043 = vmatprep.subr.bf16.mxu0 0
    %2044 = vmatpush1.bf16.msra.mxu0 0
    %2045 = vmatprep.mubr.bf16.mxu0 0
    %2046 = vmatmul.mubr.bf16.gmra.mrb[0].mxu0 %v2011
    %v2047 = vpop.f32.mrb[0].mxu0
    %v2048 = vadd.f32 0.0, %v2047
    %v2049 = vpop.f32.mrb[0].mxu0
    %v2050 = vpop.f32.mrb[0].mxu0
    %v2051 = vadd.f32 0.0, %v2050
    %v2052 = vpop.f32.mrb[0].mxu0
    %2053 = vdwg.mxu0
    %v2054 = vadd.f32 %v2001, %v2048
    %v2055 = vadd.f32 %v2004, %v2051
    %s2056 = scalar_lea.vmem %s0, 320
    %v2057 = vld [vmem:[%s2056] sm:$0xff]
    %v2058 = vld [vmem:[%s2056 + $0x8] sm:$0x3f]
    %v2059 = vpack.c.bf16 %v2058, %v2057
    %v2061 = vsel %vm91, %v2059, 0
    %2063 = vmatprep.subr.bf16.mxu0 0
    %2064 = vmatpush1.bf16.msra.mxu0 %v247
    %2065 = vmatprep.subr.bf16.mxu0 0
    %2066 = vmatpush1.bf16.msra.mxu0 0
    %2067 = vmatprep.subr.bf16.mxu0 0
    %2068 = vmatpush1.bf16.msra.mxu0 0
    %2069 = vmatprep.subr.bf16.mxu0 0
    %2070 = vmatpush1.bf16.msra.mxu0 0
    %2071 = vmatprep.subr.bf16.mxu0 0
    %2072 = vmatpush1.bf16.msra.mxu0 0
    %2073 = vmatprep.subr.bf16.mxu0 0
    %2074 = vmatpush1.bf16.msra.mxu0 0
    %2075 = vmatprep.subr.bf16.mxu0 0
    %2076 = vmatpush1.bf16.msra.mxu0 0
    %2077 = vmatprep.subr.bf16.mxu0 0
    %2078 = vmatpush1.bf16.msra.mxu0 0
    %2079 = vmatprep.subr.bf16.mxu0 0
    %2080 = vmatpush1.bf16.msra.mxu0 0
    %2081 = vmatprep.subr.bf16.mxu0 0
    %2082 = vmatpush1.bf16.msra.mxu0 0
    %2083 = vmatprep.subr.bf16.mxu0 0
    %2084 = vmatpush1.bf16.msra.mxu0 0
    %2085 = vmatprep.subr.bf16.mxu0 0
    %2086 = vmatpush1.bf16.msra.mxu0 0
    %2087 = vmatprep.subr.bf16.mxu0 0
    %2088 = vmatpush1.bf16.msra.mxu0 0
    %2089 = vmatprep.subr.bf16.mxu0 0
    %2090 = vmatpush1.bf16.msra.mxu0 0
    %2091 = vmatprep.subr.bf16.mxu0 0
    %2092 = vmatpush1.bf16.msra.mxu0 0
    %2093 = vmatprep.subr.bf16.mxu0 0
    %2094 = vmatpush1.bf16.msra.mxu0 0
    %2095 = vmatprep.mubr.bf16.mxu0 0
    %2096 = vmatmul.mubr.bf16.gmra.mrb[0].mxu0 %v2061
    %v2097 = vpop.f32.mrb[0].mxu0
    %v2098 = vadd.f32 0.0, %v2097
    %v2099 = vpop.f32.mrb[0].mxu0
    %v2100 = vpop.f32.mrb[0].mxu0
    %v2101 = vadd.f32 0.0, %v2100
    %v2102 = vpop.f32.mrb[0].mxu0
    %2103 = vdwg.mxu0
    %v2104 = vadd.f32 %v2054, %v2098
    %v2105 = vadd.f32 %v2055, %v2101
    %s2106 = scalar_lea.vmem %s0, 448
    %v2107 = vld [vmem:[%s2106] sm:$0xff]
    %v2108 = vld [vmem:[%s2106 + $0x8] sm:$0x3f]
    %v2109 = vpack.c.bf16 %v2108, %v2107
    %v2111 = vsel %vm91, %v2109, 0
    %2113 = vmatprep.subr.bf16.mxu0 0
    %2114 = vmatpush1.bf16.msra.mxu0 %v300
    %2115 = vmatprep.subr.bf16.mxu0 0
    %2116 = vmatpush1.bf16.msra.mxu0 0
    %2117 = vmatprep.subr.bf16.mxu0 0
    %2118 = vmatpush1.bf16.msra.mxu0 0
    %2119 = vmatprep.subr.bf16.mxu0 0
    %2120 = vmatpush1.bf16.msra.mxu0 0
    %2121 = vmatprep.subr.bf16.mxu0 0
    %2122 = vmatpush1.bf16.msra.mxu0 0
    %2123 = vmatprep.subr.bf16.mxu0 0
    %2124 = vmatpush1.bf16.msra.mxu0 0
    %2125 = vmatprep.subr.bf16.mxu0 0
    %2126 = vmatpush1.bf16.msra.mxu0 0
    %2127 = vmatprep.subr.bf16.mxu0 0
    %2128 = vmatpush1.bf16.msra.mxu0 0
    %2129 = vmatprep.subr.bf16.mxu0 0
    %2130 = vmatpush1.bf16.msra.mxu0 0
    %2131 = vmatprep.subr.bf16.mxu0 0
    %2132 = vmatpush1.bf16.msra.mxu0 0
    %2133 = vmatprep.subr.bf16.mxu0 0
    %2134 = vmatpush1.bf16.msra.mxu0 0
    %2135 = vmatprep.subr.bf16.mxu0 0
    %2136 = vmatpush1.bf16.msra.mxu0 0
    %2137 = vmatprep.subr.bf16.mxu0 0
    %2138 = vmatpush1.bf16.msra.mxu0 0
    %2139 = vmatprep.subr.bf16.mxu0 0
    %2140 = vmatpush1.bf16.msra.mxu0 0
    %2141 = vmatprep.subr.bf16.mxu0 0
    %2142 = vmatpush1.bf16.msra.mxu0 0
    %2143 = vmatprep.subr.bf16.mxu0 0
    %2144 = vmatpush1.bf16.msra.mxu0 0
    %2145 = vmatprep.mubr.bf16.mxu0 0
    %2146 = vmatmul.mubr.bf16.gmra.mrb[0].mxu0 %v2111
    %v2147 = vpop.f32.mrb[0].mxu0
    %v2148 = vadd.f32 0.0, %v2147
    %v2149 = vpop.f32.mrb[0].mxu0
    %v2150 = vpop.f32.mrb[0].mxu0
    %v2151 = vadd.f32 0.0, %v2150
    %v2152 = vpop.f32.mrb[0].mxu0
    %2153 = vdwg.mxu0
    %v2154 = vadd.f32 %v2104, %v2148
    %v2155 = vadd.f32 %v2105, %v2151
    %v2156 = vld [vmem:[%s2056 + $0x2] sm:$0xff]
    %v2157 = vld [vmem:[%s2056 + $0xa] sm:$0x3f]
    %v2158 = vpack.c.bf16 %v2157, %v2156
    %v2160 = vsel %vm91, %v2158, 0
    %2162 = vmatprep.subr.bf16.mxu0 0
    %2163 = vmatpush1.bf16.msra.mxu0 %v352
    %2164 = vmatprep.subr.bf16.mxu0 0
    %2165 = vmatpush1.bf16.msra.mxu0 0
    %2166 = vmatprep.subr.bf16.mxu0 0
    %2167 = vmatpush1.bf16.msra.mxu0 0
    %2168 = vmatprep.subr.bf16.mxu0 0
    %2169 = vmatpush1.bf16.msra.mxu0 0
    %2170 = vmatprep.subr.bf16.mxu0 0
    %2171 = vmatpush1.bf16.msra.mxu0 0
    %2172 = vmatprep.subr.bf16.mxu0 0
    %2173 = vmatpush1.bf16.msra.mxu0 0
    %2174 = vmatprep.subr.bf16.mxu0 0
    %2175 = vmatpush1.bf16.msra.mxu0 0
    %2176 = vmatprep.subr.bf16.mxu0 0
    %2177 = vmatpush1.bf16.msra.mxu0 0
    %2178 = vmatprep.subr.bf16.mxu0 0
    %2179 = vmatpush1.bf16.msra.mxu0 0
    %2180 = vmatprep.subr.bf16.mxu0 0
    %2181 = vmatpush1.bf16.msra.mxu0 0
    %2182 = vmatprep.subr.bf16.mxu0 0
    %2183 = vmatpush1.bf16.msra.mxu0 0
    %2184 = vmatprep.subr.bf16.mxu0 0
    %2185 = vmatpush1.bf16.msra.mxu0 0
    %2186 = vmatprep.subr.bf16.mxu0 0
    %2187 = vmatpush1.bf16.msra.mxu0 0
    %2188 = vmatprep.subr.bf16.mxu0 0
    %2189 = vmatpush1.bf16.msra.mxu0 0
    %2190 = vmatprep.subr.bf16.mxu0 0
    %2191 = vmatpush1.bf16.msra.mxu0 0
    %2192 = vmatprep.subr.bf16.mxu0 0
    %2193 = vmatpush1.bf16.msra.mxu0 0
    %2194 = vmatprep.mubr.bf16.mxu0 0
    %2195 = vmatmul.mubr.bf16.gmra.mrb[0].mxu0 %v2160
    %v2196 = vpop.f32.mrb[0].mxu0
    %v2197 = vadd.f32 0.0, %v2196
    %v2198 = vpop.f32.mrb[0].mxu0
    %v2199 = vpop.f32.mrb[0].mxu0
    %v2200 = vadd.f32 0.0, %v2199
    %v2201 = vpop.f32.mrb[0].mxu0
    %2202 = vdwg.mxu0
    %v2203 = vadd.f32 %v2154, %v2197
    %v2204 = vadd.f32 %v2155, %v2200
    %s2205 = scalar_lea.vmem %s0, 80
    %v2206 = vld [vmem:[%s2205] sm:$0xff]
    %v2207 = vld [vmem:[%s2205 + $0x8] sm:$0x3f]
    %v2208 = vpack.c.bf16 %v2207, %v2206
    %v2210 = vsel %vm91, %v2208, 0
    %2212 = vmatprep.subr.bf16.mxu0 0
    %2213 = vmatpush1.bf16.msra.mxu0 %v405
    %2214 = vmatprep.subr.bf16.mxu0 0
    %2215 = vmatpush1.bf16.msra.mxu0 0
    %2216 = vmatprep.subr.bf16.mxu0 0
    %2217 = vmatpush1.bf16.msra.mxu0 0
    %2218 = vmatprep.subr.bf16.mxu0 0
    %2219 = vmatpush1.bf16.msra.mxu0 0
    %2220 = vmatprep.subr.bf16.mxu0 0
    %2221 = vmatpush1.bf16.msra.mxu0 0
    %2222 = vmatprep.subr.bf16.mxu0 0
    %2223 = vmatpush1.bf16.msra.mxu0 0
    %2224 = vmatprep.subr.bf16.mxu0 0
    %2225 = vmatpush1.bf16.msra.mxu0 0
    %2226 = vmatprep.subr.bf16.mxu0 0
    %2227 = vmatpush1.bf16.msra.mxu0 0
    %2228 = vmatprep.subr.bf16.mxu0 0
    %2229 = vmatpush1.bf16.msra.mxu0 0
    %2230 = vmatprep.subr.bf16.mxu0 0
    %2231 = vmatpush1.bf16.msra.mxu0 0
    %2232 = vmatprep.subr.bf16.mxu0 0
    %2233 = vmatpush1.bf16.msra.mxu0 0
    %2234 = vmatprep.subr.bf16.mxu0 0
    %2235 = vmatpush1.bf16.msra.mxu0 0
    %2236 = vmatprep.subr.bf16.mxu0 0
    %2237 = vmatpush1.bf16.msra.mxu0 0
    %2238 = vmatprep.subr.bf16.mxu0 0
    %2239 = vmatpush1.bf16.msra.mxu0 0
    %2240 = vmatprep.subr.bf16.mxu0 0
    %2241 = vmatpush1.bf16.msra.mxu0 0
    %2242 = vmatprep.subr.bf16.mxu0 0
    %2243 = vmatpush1.bf16.msra.mxu0 0
    %2244 = vmatprep.mubr.bf16.mxu0 0
    %2245 = vmatmul.mubr.bf16.gmra.mrb[0].mxu0 %v2210
    %v2246 = vpop.f32.mrb[0].mxu0
    %v2247 = vadd.f32 0.0, %v2246
    %v2248 = vpop.f32.mrb[0].mxu0
    %v2249 = vpop.f32.mrb[0].mxu0
    %v2250 = vadd.f32 0.0, %v2249
    %v2251 = vpop.f32.mrb[0].mxu0
    %2252 = vdwg.mxu0
    %v2253 = vadd.f32 %v2203, %v2247
    %v2254 = vadd.f32 %v2204, %v2250
    %s2255 = scalar_lea.vmem %s0, 208
    %v2256 = vld [vmem:[%s2255] sm:$0xff]
    %v2257 = vld [vmem:[%s2255 + $0x8] sm:$0x3f]
    %v2258 = vpack.c.bf16 %v2257, %v2256
    %v2260 = vsel %vm91, %v2258, 0
    %2262 = vmatprep.subr.bf16.mxu0 0
    %2263 = vmatpush1.bf16.msra.mxu0 %v458
    %2264 = vmatprep.subr.bf16.mxu0 0
    %2265 = vmatpush1.bf16.msra.mxu0 0
    %2266 = vmatprep.subr.bf16.mxu0 0
    %2267 = vmatpush1.bf16.msra.mxu0 0
    %2268 = vmatprep.subr.bf16.mxu0 0
    %2269 = vmatpush1.bf16.msra.mxu0 0
    %2270 = vmatprep.subr.bf16.mxu0 0
    %2271 = vmatpush1.bf16.msra.mxu0 0
    %2272 = vmatprep.subr.bf16.mxu0 0
    %2273 = vmatpush1.bf16.msra.mxu0 0
    %2274 = vmatprep.subr.bf16.mxu0 0
    %2275 = vmatpush1.bf16.msra.mxu0 0
    %2276 = vmatprep.subr.bf16.mxu0 0
    %2277 = vmatpush1.bf16.msra.mxu0 0
    %2278 = vmatprep.subr.bf16.mxu0 0
    %2279 = vmatpush1.bf16.msra.mxu0 0
    %2280 = vmatprep.subr.bf16.mxu0 0
    %2281 = vmatpush1.bf16.msra.mxu0 0
    %2282 = vmatprep.subr.bf16.mxu0 0
    %2283 = vmatpush1.bf16.msra.mxu0 0
    %2284 = vmatprep.subr.bf16.mxu0 0
    %2285 = vmatpush1.bf16.msra.mxu0 0
    %2286 = vmatprep.subr.bf16.mxu0 0
    %2287 = vmatpush1.bf16.msra.mxu0 0
    %2288 = vmatprep.subr.bf16.mxu0 0
    %2289 = vmatpush1.bf16.msra.mxu0 0
    %2290 = vmatprep.subr.bf16.mxu0 0
    %2291 = vmatpush1.bf16.msra.mxu0 0
    %2292 = vmatprep.subr.bf16.mxu0 0
    %2293 = vmatpush1.bf16.msra.mxu0 0
    %2294 = vmatprep.mubr.bf16.mxu0 0
    %2295 = vmatmul.mubr.bf16.gmra.mrb[0].mxu0 %v2260
    %v2296 = vpop.f32.mrb[0].mxu0
    %v2297 = vadd.f32 0.0, %v2296
    %v2298 = vpop.f32.mrb[0].mxu0
    %v2299 = vpop.f32.mrb[0].mxu0
    %v2300 = vadd.f32 0.0, %v2299
    %v2301 = vpop.f32.mrb[0].mxu0
    %2302 = vdwg.mxu0
    %v2303 = vadd.f32 %v2253, %v2297
    %v2304 = vadd.f32 %v2254, %v2300
    %v2305 = vld [vmem:[%s2205 + $0x2] sm:$0xff]
    %v2306 = vld [vmem:[%s2205 + $0xa] sm:$0x3f]
    %v2307 = vpack.c.bf16 %v2306, %v2305
    %v2309 = vsel %vm91, %v2307, 0
    %2311 = vmatprep.subr.bf16.mxu0 0
    %2312 = vmatpush1.bf16.msra.mxu0 %v510
    %2313 = vmatprep.subr.bf16.mxu0 0
    %2314 = vmatpush1.bf16.msra.mxu0 0
    %2315 = vmatprep.subr.bf16.mxu0 0
    %2316 = vmatpush1.bf16.msra.mxu0 0
    %2317 = vmatprep.subr.bf16.mxu0 0
    %2318 = vmatpush1.bf16.msra.mxu0 0
    %2319 = vmatprep.subr.bf16.mxu0 0
    %2320 = vmatpush1.bf16.msra.mxu0 0
    %2321 = vmatprep.subr.bf16.mxu0 0
    %2322 = vmatpush1.bf16.msra.mxu0 0
    %2323 = vmatprep.subr.bf16.mxu0 0
    %2324 = vmatpush1.bf16.msra.mxu0 0
    %2325 = vmatprep.subr.bf16.mxu0 0
    %2326 = vmatpush1.bf16.msra.mxu0 0
    %2327 = vmatprep.subr.bf16.mxu0 0
    %2328 = vmatpush1.bf16.msra.mxu0 0
    %2329 = vmatprep.subr.bf16.mxu0 0
    %2330 = vmatpush1.bf16.msra.mxu0 0
    %2331 = vmatprep.subr.bf16.mxu0 0
    %2332 = vmatpush1.bf16.msra.mxu0 0
    %2333 = vmatprep.subr.bf16.mxu0 0
    %2334 = vmatpush1.bf16.msra.mxu0 0
    %2335 = vmatprep.subr.bf16.mxu0 0
    %2336 = vmatpush1.bf16.msra.mxu0 0
    %2337 = vmatprep.subr.bf16.mxu0 0
    %2338 = vmatpush1.bf16.msra.mxu0 0
    %2339 = vmatprep.subr.bf16.mxu0 0
    %2340 = vmatpush1.bf16.msra.mxu0 0
    %2341 = vmatprep.subr.bf16.mxu0 0
    %2342 = vmatpush1.bf16.msra.mxu0 0
    %2343 = vmatprep.mubr.bf16.mxu0 0
    %2344 = vmatmul.mubr.bf16.gmra.mrb[0].mxu0 %v2309
    %v2345 = vpop.f32.mrb[0].mxu0
    %v2346 = vadd.f32 0.0, %v2345
    %v2347 = vpop.f32.mrb[0].mxu0
    %v2348 = vpop.f32.mrb[0].mxu0
    %v2349 = vadd.f32 0.0, %v2348
    %v2350 = vpop.f32.mrb[0].mxu0
    %2351 = vdwg.mxu0
    %v2352 = vadd.f32 %v2303, %v2346
    %v2353 = vadd.f32 %v2304, %v2349
    %v2354 = vadd.f32 %v2352, %v559
    %v2355 = vadd.f32 %v2353, %v559
    %v2356 = vmax.f32 %v2354, 0.0
    %v2357 = vmax.f32 %v2355, 0.0
    %s2358 = scalar_lea.vmem [#allocation2], 64
    %2359 = vst.msk [vmem:[%s2358] sm:$0xff] %vm565, %v2356
    %2360 = vst.msk [vmem:[%s2358 + $0x8] sm:$0x3f] %vm567, %v2357
    %v2361 = vld [vmem:[%s2205] sm:$0xff]
    %v2362 = vld [vmem:[%s2205 + $0x8] sm:$0x3f]
    %v2363 = vpack.c.bf16 %v2362, %v2361
    %v2364 = vld [vmem:[%s2255] sm:$0xff]
    %v2365 = vld [vmem:[%s2255 + $0x8] sm:$0x3f]
    %v2366 = vpack.c.bf16 %v2365, %v2364
    %v2368 = vsel %vm91, %v2366, 0
    %2370 = vmatprep.subr.bf16.mxu0 0
    %2371 = vmatpush1.bf16.msra.mxu0 %v97
    %2372 = vmatprep.subr.bf16.mxu0 0
    %2373 = vmatpush1.bf16.msra.mxu0 0
    %2374 = vmatprep.subr.bf16.mxu0 0
    %2375 = vmatpush1.bf16.msra.mxu0 0
    %2376 = vmatprep.subr.bf16.mxu0 0
    %2377 = vmatpush1.bf16.msra.mxu0 0
    %2378 = vmatprep.subr.bf16.mxu0 0
    %2379 = vmatpush1.bf16.msra.mxu0 0
    %2380 = vmatprep.subr.bf16.mxu0 0
    %2381 = vmatpush1.bf16.msra.mxu0 0
    %2382 = vmatprep.subr.bf16.mxu0 0
    %2383 = vmatpush1.bf16.msra.mxu0 0
    %2384 = vmatprep.subr.bf16.mxu0 0
    %2385 = vmatpush1.bf16.msra.mxu0 0
    %2386 = vmatprep.subr.bf16.mxu0 0
    %2387 = vmatpush1.bf16.msra.mxu0 0
    %2388 = vmatprep.subr.bf16.mxu0 0
    %2389 = vmatpush1.bf16.msra.mxu0 0
    %2390 = vmatprep.subr.bf16.mxu0 0
    %2391 = vmatpush1.bf16.msra.mxu0 0
    %2392 = vmatprep.subr.bf16.mxu0 0
    %2393 = vmatpush1.bf16.msra.mxu0 0
    %2394 = vmatprep.subr.bf16.mxu0 0
    %2395 = vmatpush1.bf16.msra.mxu0 0
    %2396 = vmatprep.subr.bf16.mxu0 0
    %2397 = vmatpush1.bf16.msra.mxu0 0
    %2398 = vmatprep.subr.bf16.mxu0 0
    %2399 = vmatpush1.bf16.msra.mxu0 0
    %2400 = vmatprep.subr.bf16.mxu0 0
    %2401 = vmatpush1.bf16.msra.mxu0 0
    %2402 = vmatprep.mubr.bf16.mxu0 0
    %2403 = vmatmul.mubr.bf16.gmra.mrb[0].mxu0 %v2368
    %v2404 = vpop.f32.mrb[0].mxu0
    %v2405 = vadd.f32 0.0, %v2404
    %v2406 = vpop.f32.mrb[0].mxu0
    %v2407 = vpop.f32.mrb[0].mxu0
    %v2408 = vadd.f32 0.0, %v2407
    %v2409 = vpop.f32.mrb[0].mxu0
    %2410 = vdwg.mxu0
    %v2412 = vsel %vm91, %v2363, 0
    %2414 = vmatprep.subr.bf16.mxu0 0
    %2415 = vmatpush1.bf16.msra.mxu0 %v144
    %2416 = vmatprep.subr.bf16.mxu0 0
    %2417 = vmatpush1.bf16.msra.mxu0 0
    %2418 = vmatprep.subr.bf16.mxu0 0
    %2419 = vmatpush1.bf16.msra.mxu0 0
    %2420 = vmatprep.subr.bf16.mxu0 0
    %2421 = vmatpush1.bf16.msra.mxu0 0
    %2422 = vmatprep.subr.bf16.mxu0 0
    %2423 = vmatpush1.bf16.msra.mxu0 0
    %2424 = vmatprep.subr.bf16.mxu0 0
    %2425 = vmatpush1.bf16.msra.mxu0 0
    %2426 = vmatprep.subr.bf16.mxu0 0
    %2427 = vmatpush1.bf16.msra.mxu0 0
    %2428 = vmatprep.subr.bf16.mxu0 0
    %2429 = vmatpush1.bf16.msra.mxu0 0
    %2430 = vmatprep.subr.bf16.mxu0 0
    %2431 = vmatpush1.bf16.msra.mxu0 0
    %2432 = vmatprep.subr.bf16.mxu0 0
    %2433 = vmatpush1.bf16.msra.mxu0 0
    %2434 = vmatprep.subr.bf16.mxu0 0
    %2435 = vmatpush1.bf16.msra.mxu0 0
    %2436 = vmatprep.subr.bf16.mxu0 0
    %2437 = vmatpush1.bf16.msra.mxu0 0
    %2438 = vmatprep.subr.bf16.mxu0 0
    %2439 = vmatpush1.bf16.msra.mxu0 0
    %2440 = vmatprep.subr.bf16.mxu0 0
    %2441 = vmatpush1.bf16.msra.mxu0 0
    %2442 = vmatprep.subr.bf16.mxu0 0
    %2443 = vmatpush1.bf16.msra.mxu0 0
    %2444 = vmatprep.subr.bf16.mxu0 0
    %2445 = vmatpush1.bf16.msra.mxu0 0
    %2446 = vmatprep.mubr.bf16.mxu0 0
    %2447 = vmatmul.mubr.bf16.gmra.mrb[0].mxu0 %v2412
    %v2448 = vpop.f32.mrb[0].mxu0
    %v2449 = vadd.f32 %v2405, %v2448
    %v2450 = vpop.f32.mrb[0].mxu0
    %v2451 = vpop.f32.mrb[0].mxu0
    %v2452 = vadd.f32 %v2408, %v2451
    %v2453 = vpop.f32.mrb[0].mxu0
    %2454 = vdwg.mxu0
    %v2455 = vld [vmem:[%s2205 + $0x2] sm:$0xff]
    %v2456 = vld [vmem:[%s2205 + $0xa] sm:$0x3f]
    %v2457 = vpack.c.bf16 %v2456, %v2455
    %v2459 = vsel %vm91, %v2457, 0
    %2461 = vmatprep.subr.bf16.mxu0 0
    %2462 = vmatpush1.bf16.msra.mxu0 %v194
    %2463 = vmatprep.subr.bf16.mxu0 0
    %2464 = vmatpush1.bf16.msra.mxu0 0
    %2465 = vmatprep.subr.bf16.mxu0 0
    %2466 = vmatpush1.bf16.msra.mxu0 0
    %2467 = vmatprep.subr.bf16.mxu0 0
    %2468 = vmatpush1.bf16.msra.mxu0 0
    %2469 = vmatprep.subr.bf16.mxu0 0
    %2470 = vmatpush1.bf16.msra.mxu0 0
    %2471 = vmatprep.subr.bf16.mxu0 0
    %2472 = vmatpush1.bf16.msra.mxu0 0
    %2473 = vmatprep.subr.bf16.mxu0 0
    %2474 = vmatpush1.bf16.msra.mxu0 0
    %2475 = vmatprep.subr.bf16.mxu0 0
    %2476 = vmatpush1.bf16.msra.mxu0 0
    %2477 = vmatprep.subr.bf16.mxu0 0
    %2478 = vmatpush1.bf16.msra.mxu0 0
    %2479 = vmatprep.subr.bf16.mxu0 0
    %2480 = vmatpush1.bf16.msra.mxu0 0
    %2481 = vmatprep.subr.bf16.mxu0 0
    %2482 = vmatpush1.bf16.msra.mxu0 0
    %2483 = vmatprep.subr.bf16.mxu0 0
    %2484 = vmatpush1.bf16.msra.mxu0 0
    %2485 = vmatprep.subr.bf16.mxu0 0
    %2486 = vmatpush1.bf16.msra.mxu0 0
    %2487 = vmatprep.subr.bf16.mxu0 0
    %2488 = vmatpush1.bf16.msra.mxu0 0
    %2489 = vmatprep.subr.bf16.mxu0 0
    %2490 = vmatpush1.bf16.msra.mxu0 0
    %2491 = vmatprep.subr.bf16.mxu0 0
    %2492 = vmatpush1.bf16.msra.mxu0 0
    %2493 = vmatprep.mubr.bf16.mxu0 0
    %2494 = vmatmul.mubr.bf16.gmra.mrb[0].mxu0 %v2459
    %v2495 = vpop.f32.mrb[0].mxu0
    %v2496 = vadd.f32 0.0, %v2495
    %v2497 = vpop.f32.mrb[0].mxu0
    %v2498 = vpop.f32.mrb[0].mxu0
    %v2499 = vadd.f32 0.0, %v2498
    %v2500 = vpop.f32.mrb[0].mxu0
    %2501 = vdwg.mxu0
    %v2502 = vadd.f32 %v2449, %v2496
    %v2503 = vadd.f32 %v2452, %v2499
    %s2504 = scalar_lea.vmem %s0, 336
    %v2505 = vld [vmem:[%s2504] sm:$0xff]
    %v2506 = vld [vmem:[%s2504 + $0x8] sm:$0x3f]
    %v2507 = vpack.c.bf16 %v2506, %v2505
    %v2509 = vsel %vm91, %v2507, 0
    %2511 = vmatprep.subr.bf16.mxu0 0
    %2512 = vmatpush1.bf16.msra.mxu0 %v247
    %2513 = vmatprep.subr.bf16.mxu0 0
    %2514 = vmatpush1.bf16.msra.mxu0 0
    %2515 = vmatprep.subr.bf16.mxu0 0
    %2516 = vmatpush1.bf16.msra.mxu0 0
    %2517 = vmatprep.subr.bf16.mxu0 0
    %2518 = vmatpush1.bf16.msra.mxu0 0
    %2519 = vmatprep.subr.bf16.mxu0 0
    %2520 = vmatpush1.bf16.msra.mxu0 0
    %2521 = vmatprep.subr.bf16.mxu0 0
    %2522 = vmatpush1.bf16.msra.mxu0 0
    %2523 = vmatprep.subr.bf16.mxu0 0
    %2524 = vmatpush1.bf16.msra.mxu0 0
    %2525 = vmatprep.subr.bf16.mxu0 0
    %2526 = vmatpush1.bf16.msra.mxu0 0
    %2527 = vmatprep.subr.bf16.mxu0 0
    %2528 = vmatpush1.bf16.msra.mxu0 0
    %2529 = vmatprep.subr.bf16.mxu0 0
    %2530 = vmatpush1.bf16.msra.mxu0 0
    %2531 = vmatprep.subr.bf16.mxu0 0
    %2532 = vmatpush1.bf16.msra.mxu0 0
    %2533 = vmatprep.subr.bf16.mxu0 0
    %2534 = vmatpush1.bf16.msra.mxu0 0
    %2535 = vmatprep.subr.bf16.mxu0 0
    %2536 = vmatpush1.bf16.msra.mxu0 0
    %2537 = vmatprep.subr.bf16.mxu0 0
    %2538 = vmatpush1.bf16.msra.mxu0 0
    %2539 = vmatprep.subr.bf16.mxu0 0
    %2540 = vmatpush1.bf16.msra.mxu0 0
    %2541 = vmatprep.subr.bf16.mxu0 0
    %2542 = vmatpush1.bf16.msra.mxu0 0
    %2543 = vmatprep.mubr.bf16.mxu0 0
    %2544 = vmatmul.mubr.bf16.gmra.mrb[0].mxu0 %v2509
    %v2545 = vpop.f32.mrb[0].mxu0
    %v2546 = vadd.f32 0.0, %v2545
    %v2547 = vpop.f32.mrb[0].mxu0
    %v2548 = vpop.f32.mrb[0].mxu0
    %v2549 = vadd.f32 0.0, %v2548
    %v2550 = vpop.f32.mrb[0].mxu0
    %2551 = vdwg.mxu0
    %v2552 = vadd.f32 %v2502, %v2546
    %v2553 = vadd.f32 %v2503, %v2549
    %s2554 = scalar_lea.vmem %s0, 464
    %v2555 = vld [vmem:[%s2554] sm:$0xff]
    %v2556 = vld [vmem:[%s2554 + $0x8] sm:$0x3f]
    %v2557 = vpack.c.bf16 %v2556, %v2555
    %v2559 = vsel %vm91, %v2557, 0
    %2561 = vmatprep.subr.bf16.mxu0 0
    %2562 = vmatpush1.bf16.msra.mxu0 %v300
    %2563 = vmatprep.subr.bf16.mxu0 0
    %2564 = vmatpush1.bf16.msra.mxu0 0
    %2565 = vmatprep.subr.bf16.mxu0 0
    %2566 = vmatpush1.bf16.msra.mxu0 0
    %2567 = vmatprep.subr.bf16.mxu0 0
    %2568 = vmatpush1.bf16.msra.mxu0 0
    %2569 = vmatprep.subr.bf16.mxu0 0
    %2570 = vmatpush1.bf16.msra.mxu0 0
    %2571 = vmatprep.subr.bf16.mxu0 0
    %2572 = vmatpush1.bf16.msra.mxu0 0
    %2573 = vmatprep.subr.bf16.mxu0 0
    %2574 = vmatpush1.bf16.msra.mxu0 0
    %2575 = vmatprep.subr.bf16.mxu0 0
    %2576 = vmatpush1.bf16.msra.mxu0 0
    %2577 = vmatprep.subr.bf16.mxu0 0
    %2578 = vmatpush1.bf16.msra.mxu0 0
    %2579 = vmatprep.subr.bf16.mxu0 0
    %2580 = vmatpush1.bf16.msra.mxu0 0
    %2581 = vmatprep.subr.bf16.mxu0 0
    %2582 = vmatpush1.bf16.msra.mxu0 0
    %2583 = vmatprep.subr.bf16.mxu0 0
    %2584 = vmatpush1.bf16.msra.mxu0 0
    %2585 = vmatprep.subr.bf16.mxu0 0
    %2586 = vmatpush1.bf16.msra.mxu0 0
    %2587 = vmatprep.subr.bf16.mxu0 0
    %2588 = vmatpush1.bf16.msra.mxu0 0
    %2589 = vmatprep.subr.bf16.mxu0 0
    %2590 = vmatpush1.bf16.msra.mxu0 0
    %2591 = vmatprep.subr.bf16.mxu0 0
    %2592 = vmatpush1.bf16.msra.mxu0 0
    %2593 = vmatprep.mubr.bf16.mxu0 0
    %2594 = vmatmul.mubr.bf16.gmra.mrb[0].mxu0 %v2559
    %v2595 = vpop.f32.mrb[0].mxu0
    %v2596 = vadd.f32 0.0, %v2595
    %v2597 = vpop.f32.mrb[0].mxu0
    %v2598 = vpop.f32.mrb[0].mxu0
    %v2599 = vadd.f32 0.0, %v2598
    %v2600 = vpop.f32.mrb[0].mxu0
    %2601 = vdwg.mxu0
    %v2602 = vadd.f32 %v2552, %v2596
    %v2603 = vadd.f32 %v2553, %v2599
    %v2604 = vld [vmem:[%s2504 + $0x2] sm:$0xff]
    %v2605 = vld [vmem:[%s2504 + $0xa] sm:$0x3f]
    %v2606 = vpack.c.bf16 %v2605, %v2604
    %v2608 = vsel %vm91, %v2606, 0
    %2610 = vmatprep.subr.bf16.mxu0 0
    %2611 = vmatpush1.bf16.msra.mxu0 %v352
    %2612 = vmatprep.subr.bf16.mxu0 0
    %2613 = vmatpush1.bf16.msra.mxu0 0
    %2614 = vmatprep.subr.bf16.mxu0 0
    %2615 = vmatpush1.bf16.msra.mxu0 0
    %2616 = vmatprep.subr.bf16.mxu0 0
    %2617 = vmatpush1.bf16.msra.mxu0 0
    %2618 = vmatprep.subr.bf16.mxu0 0
    %2619 = vmatpush1.bf16.msra.mxu0 0
    %2620 = vmatprep.subr.bf16.mxu0 0
    %2621 = vmatpush1.bf16.msra.mxu0 0
    %2622 = vmatprep.subr.bf16.mxu0 0
    %2623 = vmatpush1.bf16.msra.mxu0 0
    %2624 = vmatprep.subr.bf16.mxu0 0
    %2625 = vmatpush1.bf16.msra.mxu0 0
    %2626 = vmatprep.subr.bf16.mxu0 0
    %2627 = vmatpush1.bf16.msra.mxu0 0
    %2628 = vmatprep.subr.bf16.mxu0 0
    %2629 = vmatpush1.bf16.msra.mxu0 0
    %2630 = vmatprep.subr.bf16.mxu0 0
    %2631 = vmatpush1.bf16.msra.mxu0 0
    %2632 = vmatprep.subr.bf16.mxu0 0
    %2633 = vmatpush1.bf16.msra.mxu0 0
    %2634 = vmatprep.subr.bf16.mxu0 0
    %2635 = vmatpush1.bf16.msra.mxu0 0
    %2636 = vmatprep.subr.bf16.mxu0 0
    %2637 = vmatpush1.bf16.msra.mxu0 0
    %2638 = vmatprep.subr.bf16.mxu0 0
    %2639 = vmatpush1.bf16.msra.mxu0 0
    %2640 = vmatprep.subr.bf16.mxu0 0
    %2641 = vmatpush1.bf16.msra.mxu0 0
    %2642 = vmatprep.mubr.bf16.mxu0 0
    %2643 = vmatmul.mubr.bf16.gmra.mrb[0].mxu0 %v2608
    %v2644 = vpop.f32.mrb[0].mxu0
    %v2645 = vadd.f32 0.0, %v2644
    %v2646 = vpop.f32.mrb[0].mxu0
    %v2647 = vpop.f32.mrb[0].mxu0
    %v2648 = vadd.f32 0.0, %v2647
    %v2649 = vpop.f32.mrb[0].mxu0
    %2650 = vdwg.mxu0
    %v2651 = vadd.f32 %v2602, %v2645
    %v2652 = vadd.f32 %v2603, %v2648
    %s2653 = scalar_lea.vmem %s0, 96
    %v2654 = vld [vmem:[%s2653] sm:$0xff]
    %v2655 = vld [vmem:[%s2653 + $0x8] sm:$0x3f]
    %v2656 = vpack.c.bf16 %v2655, %v2654
    %v2658 = vsel %vm91, %v2656, 0
    %2660 = vmatprep.subr.bf16.mxu0 0
    %2661 = vmatpush1.bf16.msra.mxu0 %v405
    %2662 = vmatprep.subr.bf16.mxu0 0
    %2663 = vmatpush1.bf16.msra.mxu0 0
    %2664 = vmatprep.subr.bf16.mxu0 0
    %2665 = vmatpush1.bf16.msra.mxu0 0
    %2666 = vmatprep.subr.bf16.mxu0 0
    %2667 = vmatpush1.bf16.msra.mxu0 0
    %2668 = vmatprep.subr.bf16.mxu0 0
    %2669 = vmatpush1.bf16.msra.mxu0 0
    %2670 = vmatprep.subr.bf16.mxu0 0
    %2671 = vmatpush1.bf16.msra.mxu0 0
    %2672 = vmatprep.subr.bf16.mxu0 0
    %2673 = vmatpush1.bf16.msra.mxu0 0
    %2674 = vmatprep.subr.bf16.mxu0 0
    %2675 = vmatpush1.bf16.msra.mxu0 0
    %2676 = vmatprep.subr.bf16.mxu0 0
    %2677 = vmatpush1.bf16.msra.mxu0 0
    %2678 = vmatprep.subr.bf16.mxu0 0
    %2679 = vmatpush1.bf16.msra.mxu0 0
    %2680 = vmatprep.subr.bf16.mxu0 0
    %2681 = vmatpush1.bf16.msra.mxu0 0
    %2682 = vmatprep.subr.bf16.mxu0 0
    %2683 = vmatpush1.bf16.msra.mxu0 0
    %2684 = vmatprep.subr.bf16.mxu0 0
    %2685 = vmatpush1.bf16.msra.mxu0 0
    %2686 = vmatprep.subr.bf16.mxu0 0
    %2687 = vmatpush1.bf16.msra.mxu0 0
    %2688 = vmatprep.subr.bf16.mxu0 0
    %2689 = vmatpush1.bf16.msra.mxu0 0
    %2690 = vmatprep.subr.bf16.mxu0 0
    %2691 = vmatpush1.bf16.msra.mxu0 0
    %2692 = vmatprep.mubr.bf16.mxu0 0
    %2693 = vmatmul.mubr.bf16.gmra.mrb[0].mxu0 %v2658
    %v2694 = vpop.f32.mrb[0].mxu0
    %v2695 = vadd.f32 0.0, %v2694
    %v2696 = vpop.f32.mrb[0].mxu0
    %v2697 = vpop.f32.mrb[0].mxu0
    %v2698 = vadd.f32 0.0, %v2697
    %v2699 = vpop.f32.mrb[0].mxu0
    %2700 = vdwg.mxu0
    %v2701 = vadd.f32 %v2651, %v2695
    %v2702 = vadd.f32 %v2652, %v2698
    %s2703 = scalar_lea.vmem %s0, 224
    %v2704 = vld [vmem:[%s2703] sm:$0xff]
    %v2705 = vld [vmem:[%s2703 + $0x8] sm:$0x3f]
    %v2706 = vpack.c.bf16 %v2705, %v2704
    %v2708 = vsel %vm91, %v2706, 0
    %2710 = vmatprep.subr.bf16.mxu0 0
    %2711 = vmatpush1.bf16.msra.mxu0 %v458
    %2712 = vmatprep.subr.bf16.mxu0 0
    %2713 = vmatpush1.bf16.msra.mxu0 0
    %2714 = vmatprep.subr.bf16.mxu0 0
    %2715 = vmatpush1.bf16.msra.mxu0 0
    %2716 = vmatprep.subr.bf16.mxu0 0
    %2717 = vmatpush1.bf16.msra.mxu0 0
    %2718 = vmatprep.subr.bf16.mxu0 0
    %2719 = vmatpush1.bf16.msra.mxu0 0
    %2720 = vmatprep.subr.bf16.mxu0 0
    %2721 = vmatpush1.bf16.msra.mxu0 0
    %2722 = vmatprep.subr.bf16.mxu0 0
    %2723 = vmatpush1.bf16.msra.mxu0 0
    %2724 = vmatprep.subr.bf16.mxu0 0
    %2725 = vmatpush1.bf16.msra.mxu0 0
    %2726 = vmatprep.subr.bf16.mxu0 0
    %2727 = vmatpush1.bf16.msra.mxu0 0
    %2728 = vmatprep.subr.bf16.mxu0 0
    %2729 = vmatpush1.bf16.msra.mxu0 0
    %2730 = vmatprep.subr.bf16.mxu0 0
    %2731 = vmatpush1.bf16.msra.mxu0 0
    %2732 = vmatprep.subr.bf16.mxu0 0
    %2733 = vmatpush1.bf16.msra.mxu0 0
    %2734 = vmatprep.subr.bf16.mxu0 0
    %2735 = vmatpush1.bf16.msra.mxu0 0
    %2736 = vmatprep.subr.bf16.mxu0 0
    %2737 = vmatpush1.bf16.msra.mxu0 0
    %2738 = vmatprep.subr.bf16.mxu0 0
    %2739 = vmatpush1.bf16.msra.mxu0 0
    %2740 = vmatprep.subr.bf16.mxu0 0
    %2741 = vmatpush1.bf16.msra.mxu0 0
    %2742 = vmatprep.mubr.bf16.mxu0 0
    %2743 = vmatmul.mubr.bf16.gmra.mrb[0].mxu0 %v2708
    %v2744 = vpop.f32.mrb[0].mxu0
    %v2745 = vadd.f32 0.0, %v2744
    %v2746 = vpop.f32.mrb[0].mxu0
    %v2747 = vpop.f32.mrb[0].mxu0
    %v2748 = vadd.f32 0.0, %v2747
    %v2749 = vpop.f32.mrb[0].mxu0
    %2750 = vdwg.mxu0
    %v2751 = vadd.f32 %v2701, %v2745
    %v2752 = vadd.f32 %v2702, %v2748
    %v2753 = vld [vmem:[%s2653 + $0x2] sm:$0xff]
    %v2754 = vld [vmem:[%s2653 + $0xa] sm:$0x3f]
    %v2755 = vpack.c.bf16 %v2754, %v2753
    %v2757 = vsel %vm91, %v2755, 0
    %2759 = vmatprep.subr.bf16.mxu0 0
    %2760 = vmatpush1.bf16.msra.mxu0 %v510
    %2761 = vmatprep.subr.bf16.mxu0 0
    %2762 = vmatpush1.bf16.msra.mxu0 0
    %2763 = vmatprep.subr.bf16.mxu0 0
    %2764 = vmatpush1.bf16.msra.mxu0 0
    %2765 = vmatprep.subr.bf16.mxu0 0
    %2766 = vmatpush1.bf16.msra.mxu0 0
    %2767 = vmatprep.subr.bf16.mxu0 0
    %2768 = vmatpush1.bf16.msra.mxu0 0
    %2769 = vmatprep.subr.bf16.mxu0 0
    %2770 = vmatpush1.bf16.msra.mxu0 0
    %2771 = vmatprep.subr.bf16.mxu0 0
    %2772 = vmatpush1.bf16.msra.mxu0 0
    %2773 = vmatprep.subr.bf16.mxu0 0
    %2774 = vmatpush1.bf16.msra.mxu0 0
    %2775 = vmatprep.subr.bf16.mxu0 0
    %2776 = vmatpush1.bf16.msra.mxu0 0
    %2777 = vmatprep.subr.bf16.mxu0 0
    %2778 = vmatpush1.bf16.msra.mxu0 0
    %2779 = vmatprep.subr.bf16.mxu0 0
    %2780 = vmatpush1.bf16.msra.mxu0 0
    %2781 = vmatprep.subr.bf16.mxu0 0
    %2782 = vmatpush1.bf16.msra.mxu0 0
    %2783 = vmatprep.subr.bf16.mxu0 0
    %2784 = vmatpush1.bf16.msra.mxu0 0
    %2785 = vmatprep.subr.bf16.mxu0 0
    %2786 = vmatpush1.bf16.msra.mxu0 0
    %2787 = vmatprep.subr.bf16.mxu0 0
    %2788 = vmatpush1.bf16.msra.mxu0 0
    %2789 = vmatprep.subr.bf16.mxu0 0
    %2790 = vmatpush1.bf16.msra.mxu0 0
    %2791 = vmatprep.mubr.bf16.mxu0 0
    %2792 = vmatmul.mubr.bf16.gmra.mrb[0].mxu0 %v2757
    %v2793 = vpop.f32.mrb[0].mxu0
    %v2794 = vadd.f32 0.0, %v2793
    %v2795 = vpop.f32.mrb[0].mxu0
    %v2796 = vpop.f32.mrb[0].mxu0
    %v2797 = vadd.f32 0.0, %v2796
    %v2798 = vpop.f32.mrb[0].mxu0
    %2799 = vdwg.mxu0
    %v2800 = vadd.f32 %v2751, %v2794
    %v2801 = vadd.f32 %v2752, %v2797
    %v2802 = vadd.f32 %v2800, %v559
    %v2803 = vadd.f32 %v2801, %v559
    %v2804 = vmax.f32 %v2802, 0.0
    %v2805 = vmax.f32 %v2803, 0.0
    %s2806 = scalar_lea.vmem [#allocation2], 80
    %2807 = vst.msk [vmem:[%s2806] sm:$0xff] %vm565, %v2804
    %2808 = vst.msk [vmem:[%s2806 + $0x8] sm:$0x3f] %vm567, %v2805
    %v2809 = vld [vmem:[%s2653] sm:$0xff]
    %v2810 = vld [vmem:[%s2653 + $0x8] sm:$0x3f]
    %v2811 = vpack.c.bf16 %v2810, %v2809
    %v2812 = vld [vmem:[%s2703] sm:$0xff]
    %v2813 = vld [vmem:[%s2703 + $0x8] sm:$0x3f]
    %v2814 = vpack.c.bf16 %v2813, %v2812
    %v2816 = vsel %vm91, %v2814, 0
    %2818 = vmatprep.subr.bf16.mxu0 0
    %2819 = vmatpush1.bf16.msra.mxu0 %v97
    %2820 = vmatprep.subr.bf16.mxu0 0
    %2821 = vmatpush1.bf16.msra.mxu0 0
    %2822 = vmatprep.subr.bf16.mxu0 0
    %2823 = vmatpush1.bf16.msra.mxu0 0
    %2824 = vmatprep.subr.bf16.mxu0 0
    %2825 = vmatpush1.bf16.msra.mxu0 0
    %2826 = vmatprep.subr.bf16.mxu0 0
    %2827 = vmatpush1.bf16.msra.mxu0 0
    %2828 = vmatprep.subr.bf16.mxu0 0
    %2829 = vmatpush1.bf16.msra.mxu0 0
    %2830 = vmatprep.subr.bf16.mxu0 0
    %2831 = vmatpush1.bf16.msra.mxu0 0
    %2832 = vmatprep.subr.bf16.mxu0 0
    %2833 = vmatpush1.bf16.msra.mxu0 0
    %2834 = vmatprep.subr.bf16.mxu0 0
    %2835 = vmatpush1.bf16.msra.mxu0 0
    %2836 = vmatprep.subr.bf16.mxu0 0
    %2837 = vmatpush1.bf16.msra.mxu0 0
    %2838 = vmatprep.subr.bf16.mxu0 0
    %2839 = vmatpush1.bf16.msra.mxu0 0
    %2840 = vmatprep.subr.bf16.mxu0 0
    %2841 = vmatpush1.bf16.msra.mxu0 0
    %2842 = vmatprep.subr.bf16.mxu0 0
    %2843 = vmatpush1.bf16.msra.mxu0 0
    %2844 = vmatprep.subr.bf16.mxu0 0
    %2845 = vmatpush1.bf16.msra.mxu0 0
    %2846 = vmatprep.subr.bf16.mxu0 0
    %2847 = vmatpush1.bf16.msra.mxu0 0
    %2848 = vmatprep.subr.bf16.mxu0 0
    %2849 = vmatpush1.bf16.msra.mxu0 0
    %2850 = vmatprep.mubr.bf16.mxu0 0
    %2851 = vmatmul.mubr.bf16.gmra.mrb[0].mxu0 %v2816
    %v2852 = vpop.f32.mrb[0].mxu0
    %v2853 = vadd.f32 0.0, %v2852
    %v2854 = vpop.f32.mrb[0].mxu0
    %v2855 = vpop.f32.mrb[0].mxu0
    %v2856 = vadd.f32 0.0, %v2855
    %v2857 = vpop.f32.mrb[0].mxu0
    %2858 = vdwg.mxu0
    %v2860 = vsel %vm91, %v2811, 0
    %2862 = vmatprep.subr.bf16.mxu0 0
    %2863 = vmatpush1.bf16.msra.mxu0 %v144
    %2864 = vmatprep.subr.bf16.mxu0 0
    %2865 = vmatpush1.bf16.msra.mxu0 0
    %2866 = vmatprep.subr.bf16.mxu0 0
    %2867 = vmatpush1.bf16.msra.mxu0 0
    %2868 = vmatprep.subr.bf16.mxu0 0
    %2869 = vmatpush1.bf16.msra.mxu0 0
    %2870 = vmatprep.subr.bf16.mxu0 0
    %2871 = vmatpush1.bf16.msra.mxu0 0
    %2872 = vmatprep.subr.bf16.mxu0 0
    %2873 = vmatpush1.bf16.msra.mxu0 0
    %2874 = vmatprep.subr.bf16.mxu0 0
    %2875 = vmatpush1.bf16.msra.mxu0 0
    %2876 = vmatprep.subr.bf16.mxu0 0
    %2877 = vmatpush1.bf16.msra.mxu0 0
    %2878 = vmatprep.subr.bf16.mxu0 0
    %2879 = vmatpush1.bf16.msra.mxu0 0
    %2880 = vmatprep.subr.bf16.mxu0 0
    %2881 = vmatpush1.bf16.msra.mxu0 0
    %2882 = vmatprep.subr.bf16.mxu0 0
    %2883 = vmatpush1.bf16.msra.mxu0 0
    %2884 = vmatprep.subr.bf16.mxu0 0
    %2885 = vmatpush1.bf16.msra.mxu0 0
    %2886 = vmatprep.subr.bf16.mxu0 0
    %2887 = vmatpush1.bf16.msra.mxu0 0
    %2888 = vmatprep.subr.bf16.mxu0 0
    %2889 = vmatpush1.bf16.msra.mxu0 0
    %2890 = vmatprep.subr.bf16.mxu0 0
    %2891 = vmatpush1.bf16.msra.mxu0 0
    %2892 = vmatprep.subr.bf16.mxu0 0
    %2893 = vmatpush1.bf16.msra.mxu0 0
    %2894 = vmatprep.mubr.bf16.mxu0 0
    %2895 = vmatmul.mubr.bf16.gmra.mrb[0].mxu0 %v2860
    %v2896 = vpop.f32.mrb[0].mxu0
    %v2897 = vadd.f32 %v2853, %v2896
    %v2898 = vpop.f32.mrb[0].mxu0
    %v2899 = vpop.f32.mrb[0].mxu0
    %v2900 = vadd.f32 %v2856, %v2899
    %v2901 = vpop.f32.mrb[0].mxu0
    %2902 = vdwg.mxu0
    %v2903 = vld [vmem:[%s2653 + $0x2] sm:$0xff]
    %v2904 = vld [vmem:[%s2653 + $0xa] sm:$0x3f]
    %v2905 = vpack.c.bf16 %v2904, %v2903
    %v2907 = vsel %vm91, %v2905, 0
    %2909 = vmatprep.subr.bf16.mxu0 0
    %2910 = vmatpush1.bf16.msra.mxu0 %v194
    %2911 = vmatprep.subr.bf16.mxu0 0
    %2912 = vmatpush1.bf16.msra.mxu0 0
    %2913 = vmatprep.subr.bf16.mxu0 0
    %2914 = vmatpush1.bf16.msra.mxu0 0
    %2915 = vmatprep.subr.bf16.mxu0 0
    %2916 = vmatpush1.bf16.msra.mxu0 0
    %2917 = vmatprep.subr.bf16.mxu0 0
    %2918 = vmatpush1.bf16.msra.mxu0 0
    %2919 = vmatprep.subr.bf16.mxu0 0
    %2920 = vmatpush1.bf16.msra.mxu0 0
    %2921 = vmatprep.subr.bf16.mxu0 0
    %2922 = vmatpush1.bf16.msra.mxu0 0
    %2923 = vmatprep.subr.bf16.mxu0 0
    %2924 = vmatpush1.bf16.msra.mxu0 0
    %2925 = vmatprep.subr.bf16.mxu0 0
    %2926 = vmatpush1.bf16.msra.mxu0 0
    %2927 = vmatprep.subr.bf16.mxu0 0
    %2928 = vmatpush1.bf16.msra.mxu0 0
    %2929 = vmatprep.subr.bf16.mxu0 0
    %2930 = vmatpush1.bf16.msra.mxu0 0
    %2931 = vmatprep.subr.bf16.mxu0 0
    %2932 = vmatpush1.bf16.msra.mxu0 0
    %2933 = vmatprep.subr.bf16.mxu0 0
    %2934 = vmatpush1.bf16.msra.mxu0 0
    %2935 = vmatprep.subr.bf16.mxu0 0
    %2936 = vmatpush1.bf16.msra.mxu0 0
    %2937 = vmatprep.subr.bf16.mxu0 0
    %2938 = vmatpush1.bf16.msra.mxu0 0
    %2939 = vmatprep.subr.bf16.mxu0 0
    %2940 = vmatpush1.bf16.msra.mxu0 0
    %2941 = vmatprep.mubr.bf16.mxu0 0
    %2942 = vmatmul.mubr.bf16.gmra.mrb[0].mxu0 %v2907
    %v2943 = vpop.f32.mrb[0].mxu0
    %v2944 = vadd.f32 0.0, %v2943
    %v2945 = vpop.f32.mrb[0].mxu0
    %v2946 = vpop.f32.mrb[0].mxu0
    %v2947 = vadd.f32 0.0, %v2946
    %v2948 = vpop.f32.mrb[0].mxu0
    %2949 = vdwg.mxu0
    %v2950 = vadd.f32 %v2897, %v2944
    %v2951 = vadd.f32 %v2900, %v2947
    %s2952 = scalar_lea.vmem %s0, 352
    %v2953 = vld [vmem:[%s2952] sm:$0xff]
    %v2954 = vld [vmem:[%s2952 + $0x8] sm:$0x3f]
    %v2955 = vpack.c.bf16 %v2954, %v2953
    %v2957 = vsel %vm91, %v2955, 0
    %2959 = vmatprep.subr.bf16.mxu0 0
    %2960 = vmatpush1.bf16.msra.mxu0 %v247
    %2961 = vmatprep.subr.bf16.mxu0 0
    %2962 = vmatpush1.bf16.msra.mxu0 0
    %2963 = vmatprep.subr.bf16.mxu0 0
    %2964 = vmatpush1.bf16.msra.mxu0 0
    %2965 = vmatprep.subr.bf16.mxu0 0
    %2966 = vmatpush1.bf16.msra.mxu0 0
    %2967 = vmatprep.subr.bf16.mxu0 0
    %2968 = vmatpush1.bf16.msra.mxu0 0
    %2969 = vmatprep.subr.bf16.mxu0 0
    %2970 = vmatpush1.bf16.msra.mxu0 0
    %2971 = vmatprep.subr.bf16.mxu0 0
    %2972 = vmatpush1.bf16.msra.mxu0 0
    %2973 = vmatprep.subr.bf16.mxu0 0
    %2974 = vmatpush1.bf16.msra.mxu0 0
    %2975 = vmatprep.subr.bf16.mxu0 0
    %2976 = vmatpush1.bf16.msra.mxu0 0
    %2977 = vmatprep.subr.bf16.mxu0 0
    %2978 = vmatpush1.bf16.msra.mxu0 0
    %2979 = vmatprep.subr.bf16.mxu0 0
    %2980 = vmatpush1.bf16.msra.mxu0 0
    %2981 = vmatprep.subr.bf16.mxu0 0
    %2982 = vmatpush1.bf16.msra.mxu0 0
    %2983 = vmatprep.subr.bf16.mxu0 0
    %2984 = vmatpush1.bf16.msra.mxu0 0
    %2985 = vmatprep.subr.bf16.mxu0 0
    %2986 = vmatpush1.bf16.msra.mxu0 0
    %2987 = vmatprep.subr.bf16.mxu0 0
    %2988 = vmatpush1.bf16.msra.mxu0 0
    %2989 = vmatprep.subr.bf16.mxu0 0
    %2990 = vmatpush1.bf16.msra.mxu0 0
    %2991 = vmatprep.mubr.bf16.mxu0 0
    %2992 = vmatmul.mubr.bf16.gmra.mrb[0].mxu0 %v2957
    %v2993 = vpop.f32.mrb[0].mxu0
    %v2994 = vadd.f32 0.0, %v2993
    %v2995 = vpop.f32.mrb[0].mxu0
    %v2996 = vpop.f32.mrb[0].mxu0
    %v2997 = vadd.f32 0.0, %v2996
    %v2998 = vpop.f32.mrb[0].mxu0
    %2999 = vdwg.mxu0
    %v3000 = vadd.f32 %v2950, %v2994
    %v3001 = vadd.f32 %v2951, %v2997
    %s3002 = scalar_lea.vmem %s0, 480
    %v3003 = vld [vmem:[%s3002] sm:$0xff]
    %v3004 = vld [vmem:[%s3002 + $0x8] sm:$0x3f]
    %v3005 = vpack.c.bf16 %v3004, %v3003
    %v3007 = vsel %vm91, %v3005, 0
    %3009 = vmatprep.subr.bf16.mxu0 0
    %3010 = vmatpush1.bf16.msra.mxu0 %v300
    %3011 = vmatprep.subr.bf16.mxu0 0
    %3012 = vmatpush1.bf16.msra.mxu0 0
    %3013 = vmatprep.subr.bf16.mxu0 0
    %3014 = vmatpush1.bf16.msra.mxu0 0
    %3015 = vmatprep.subr.bf16.mxu0 0
    %3016 = vmatpush1.bf16.msra.mxu0 0
    %3017 = vmatprep.subr.bf16.mxu0 0
    %3018 = vmatpush1.bf16.msra.mxu0 0
    %3019 = vmatprep.subr.bf16.mxu0 0
    %3020 = vmatpush1.bf16.msra.mxu0 0
    %3021 = vmatprep.subr.bf16.mxu0 0
    %3022 = vmatpush1.bf16.msra.mxu0 0
    %3023 = vmatprep.subr.bf16.mxu0 0
    %3024 = vmatpush1.bf16.msra.mxu0 0
    %3025 = vmatprep.subr.bf16.mxu0 0
    %3026 = vmatpush1.bf16.msra.mxu0 0
    %3027 = vmatprep.subr.bf16.mxu0 0
    %3028 = vmatpush1.bf16.msra.mxu0 0
    %3029 = vmatprep.subr.bf16.mxu0 0
    %3030 = vmatpush1.bf16.msra.mxu0 0
    %3031 = vmatprep.subr.bf16.mxu0 0
    %3032 = vmatpush1.bf16.msra.mxu0 0
    %3033 = vmatprep.subr.bf16.mxu0 0
    %3034 = vmatpush1.bf16.msra.mxu0 0
    %3035 = vmatprep.subr.bf16.mxu0 0
    %3036 = vmatpush1.bf16.msra.mxu0 0
    %3037 = vmatprep.subr.bf16.mxu0 0
    %3038 = vmatpush1.bf16.msra.mxu0 0
    %3039 = vmatprep.subr.bf16.mxu0 0
    %3040 = vmatpush1.bf16.msra.mxu0 0
    %3041 = vmatprep.mubr.bf16.mxu0 0
    %3042 = vmatmul.mubr.bf16.gmra.mrb[0].mxu0 %v3007
    %v3043 = vpop.f32.mrb[0].mxu0
    %v3044 = vadd.f32 0.0, %v3043
    %v3045 = vpop.f32.mrb[0].mxu0
    %v3046 = vpop.f32.mrb[0].mxu0
    %v3047 = vadd.f32 0.0, %v3046
    %v3048 = vpop.f32.mrb[0].mxu0
    %3049 = vdwg.mxu0
    %v3050 = vadd.f32 %v3000, %v3044
    %v3051 = vadd.f32 %v3001, %v3047
    %v3052 = vld [vmem:[%s2952 + $0x2] sm:$0xff]
    %v3053 = vld [vmem:[%s2952 + $0xa] sm:$0x3f]
    %v3054 = vpack.c.bf16 %v3053, %v3052
    %v3056 = vsel %vm91, %v3054, 0
    %3058 = vmatprep.subr.bf16.mxu0 0
    %3059 = vmatpush1.bf16.msra.mxu0 %v352
    %3060 = vmatprep.subr.bf16.mxu0 0
    %3061 = vmatpush1.bf16.msra.mxu0 0
    %3062 = vmatprep.subr.bf16.mxu0 0
    %3063 = vmatpush1.bf16.msra.mxu0 0
    %3064 = vmatprep.subr.bf16.mxu0 0
    %3065 = vmatpush1.bf16.msra.mxu0 0
    %3066 = vmatprep.subr.bf16.mxu0 0
    %3067 = vmatpush1.bf16.msra.mxu0 0
    %3068 = vmatprep.subr.bf16.mxu0 0
    %3069 = vmatpush1.bf16.msra.mxu0 0
    %3070 = vmatprep.subr.bf16.mxu0 0
    %3071 = vmatpush1.bf16.msra.mxu0 0
    %3072 = vmatprep.subr.bf16.mxu0 0
    %3073 = vmatpush1.bf16.msra.mxu0 0
    %3074 = vmatprep.subr.bf16.mxu0 0
    %3075 = vmatpush1.bf16.msra.mxu0 0
    %3076 = vmatprep.subr.bf16.mxu0 0
    %3077 = vmatpush1.bf16.msra.mxu0 0
    %3078 = vmatprep.subr.bf16.mxu0 0
    %3079 = vmatpush1.bf16.msra.mxu0 0
    %3080 = vmatprep.subr.bf16.mxu0 0
    %3081 = vmatpush1.bf16.msra.mxu0 0
    %3082 = vmatprep.subr.bf16.mxu0 0
    %3083 = vmatpush1.bf16.msra.mxu0 0
    %3084 = vmatprep.subr.bf16.mxu0 0
    %3085 = vmatpush1.bf16.msra.mxu0 0
    %3086 = vmatprep.subr.bf16.mxu0 0
    %3087 = vmatpush1.bf16.msra.mxu0 0
    %3088 = vmatprep.subr.bf16.mxu0 0
    %3089 = vmatpush1.bf16.msra.mxu0 0
    %3090 = vmatprep.mubr.bf16.mxu0 0
    %3091 = vmatmul.mubr.bf16.gmra.mrb[0].mxu0 %v3056
    %v3092 = vpop.f32.mrb[0].mxu0
    %v3093 = vadd.f32 0.0, %v3092
    %v3094 = vpop.f32.mrb[0].mxu0
    %v3095 = vpop.f32.mrb[0].mxu0
    %v3096 = vadd.f32 0.0, %v3095
    %v3097 = vpop.f32.mrb[0].mxu0
    %3098 = vdwg.mxu0
    %v3099 = vadd.f32 %v3050, %v3093
    %v3100 = vadd.f32 %v3051, %v3096
    %s3101 = scalar_lea.vmem %s0, 112
    %v3102 = vld [vmem:[%s3101] sm:$0xff]
    %v3103 = vld [vmem:[%s3101 + $0x8] sm:$0x3f]
    %v3104 = vpack.c.bf16 %v3103, %v3102
    %v3106 = vsel %vm91, %v3104, 0
    %3108 = vmatprep.subr.bf16.mxu0 0
    %3109 = vmatpush1.bf16.msra.mxu0 %v405
    %3110 = vmatprep.subr.bf16.mxu0 0
    %3111 = vmatpush1.bf16.msra.mxu0 0
    %3112 = vmatprep.subr.bf16.mxu0 0
    %3113 = vmatpush1.bf16.msra.mxu0 0
    %3114 = vmatprep.subr.bf16.mxu0 0
    %3115 = vmatpush1.bf16.msra.mxu0 0
    %3116 = vmatprep.subr.bf16.mxu0 0
    %3117 = vmatpush1.bf16.msra.mxu0 0
    %3118 = vmatprep.subr.bf16.mxu0 0
    %3119 = vmatpush1.bf16.msra.mxu0 0
    %3120 = vmatprep.subr.bf16.mxu0 0
    %3121 = vmatpush1.bf16.msra.mxu0 0
    %3122 = vmatprep.subr.bf16.mxu0 0
    %3123 = vmatpush1.bf16.msra.mxu0 0
    %3124 = vmatprep.subr.bf16.mxu0 0
    %3125 = vmatpush1.bf16.msra.mxu0 0
    %3126 = vmatprep.subr.bf16.mxu0 0
    %3127 = vmatpush1.bf16.msra.mxu0 0
    %3128 = vmatprep.subr.bf16.mxu0 0
    %3129 = vmatpush1.bf16.msra.mxu0 0
    %3130 = vmatprep.subr.bf16.mxu0 0
    %3131 = vmatpush1.bf16.msra.mxu0 0
    %3132 = vmatprep.subr.bf16.mxu0 0
    %3133 = vmatpush1.bf16.msra.mxu0 0
    %3134 = vmatprep.subr.bf16.mxu0 0
    %3135 = vmatpush1.bf16.msra.mxu0 0
    %3136 = vmatprep.subr.bf16.mxu0 0
    %3137 = vmatpush1.bf16.msra.mxu0 0
    %3138 = vmatprep.subr.bf16.mxu0 0
    %3139 = vmatpush1.bf16.msra.mxu0 0
    %3140 = vmatprep.mubr.bf16.mxu0 0
    %3141 = vmatmul.mubr.bf16.gmra.mrb[0].mxu0 %v3106
    %v3142 = vpop.f32.mrb[0].mxu0
    %v3143 = vadd.f32 0.0, %v3142
    %v3144 = vpop.f32.mrb[0].mxu0
    %v3145 = vpop.f32.mrb[0].mxu0
    %v3146 = vadd.f32 0.0, %v3145
    %v3147 = vpop.f32.mrb[0].mxu0
    %3148 = vdwg.mxu0
    %v3149 = vadd.f32 %v3099, %v3143
    %v3150 = vadd.f32 %v3100, %v3146
    %s3151 = scalar_lea.vmem %s0, 240
    %v3152 = vld [vmem:[%s3151] sm:$0xff]
    %v3153 = vld [vmem:[%s3151 + $0x8] sm:$0x3f]
    %v3154 = vpack.c.bf16 %v3153, %v3152
    %v3156 = vsel %vm91, %v3154, 0
    %3158 = vmatprep.subr.bf16.mxu0 0
    %3159 = vmatpush1.bf16.msra.mxu0 %v458
    %3160 = vmatprep.subr.bf16.mxu0 0
    %3161 = vmatpush1.bf16.msra.mxu0 0
    %3162 = vmatprep.subr.bf16.mxu0 0
    %3163 = vmatpush1.bf16.msra.mxu0 0
    %3164 = vmatprep.subr.bf16.mxu0 0
    %3165 = vmatpush1.bf16.msra.mxu0 0
    %3166 = vmatprep.subr.bf16.mxu0 0
    %3167 = vmatpush1.bf16.msra.mxu0 0
    %3168 = vmatprep.subr.bf16.mxu0 0
    %3169 = vmatpush1.bf16.msra.mxu0 0
    %3170 = vmatprep.subr.bf16.mxu0 0
    %3171 = vmatpush1.bf16.msra.mxu0 0
    %3172 = vmatprep.subr.bf16.mxu0 0
    %3173 = vmatpush1.bf16.msra.mxu0 0
    %3174 = vmatprep.subr.bf16.mxu0 0
    %3175 = vmatpush1.bf16.msra.mxu0 0
    %3176 = vmatprep.subr.bf16.mxu0 0
    %3177 = vmatpush1.bf16.msra.mxu0 0
    %3178 = vmatprep.subr.bf16.mxu0 0
    %3179 = vmatpush1.bf16.msra.mxu0 0
    %3180 = vmatprep.subr.bf16.mxu0 0
    %3181 = vmatpush1.bf16.msra.mxu0 0
    %3182 = vmatprep.subr.bf16.mxu0 0
    %3183 = vmatpush1.bf16.msra.mxu0 0
    %3184 = vmatprep.subr.bf16.mxu0 0
    %3185 = vmatpush1.bf16.msra.mxu0 0
    %3186 = vmatprep.subr.bf16.mxu0 0
    %3187 = vmatpush1.bf16.msra.mxu0 0
    %3188 = vmatprep.subr.bf16.mxu0 0
    %3189 = vmatpush1.bf16.msra.mxu0 0
    %3190 = vmatprep.mubr.bf16.mxu0 0
    %3191 = vmatmul.mubr.bf16.gmra.mrb[0].mxu0 %v3156
    %v3192 = vpop.f32.mrb[0].mxu0
    %v3193 = vadd.f32 0.0, %v3192
    %v3194 = vpop.f32.mrb[0].mxu0
    %v3195 = vpop.f32.mrb[0].mxu0
    %v3196 = vadd.f32 0.0, %v3195
    %v3197 = vpop.f32.mrb[0].mxu0
    %3198 = vdwg.mxu0
    %v3199 = vadd.f32 %v3149, %v3193
    %v3200 = vadd.f32 %v3150, %v3196
    %v3201 = vld [vmem:[%s3101 + $0x2] sm:$0xff]
    %v3202 = vld [vmem:[%s3101 + $0xa] sm:$0x3f]
    %v3203 = vpack.c.bf16 %v3202, %v3201
    %v3205 = vsel %vm91, %v3203, 0
    %3207 = vmatprep.subr.bf16.mxu0 0
    %3208 = vmatpush1.bf16.msra.mxu0 %v510
    %3209 = vmatprep.subr.bf16.mxu0 0
    %3210 = vmatpush1.bf16.msra.mxu0 0
    %3211 = vmatprep.subr.bf16.mxu0 0
    %3212 = vmatpush1.bf16.msra.mxu0 0
    %3213 = vmatprep.subr.bf16.mxu0 0
    %3214 = vmatpush1.bf16.msra.mxu0 0
    %3215 = vmatprep.subr.bf16.mxu0 0
    %3216 = vmatpush1.bf16.msra.mxu0 0
    %3217 = vmatprep.subr.bf16.mxu0 0
    %3218 = vmatpush1.bf16.msra.mxu0 0
    %3219 = vmatprep.subr.bf16.mxu0 0
    %3220 = vmatpush1.bf16.msra.mxu0 0
    %3221 = vmatprep.subr.bf16.mxu0 0
    %3222 = vmatpush1.bf16.msra.mxu0 0
    %3223 = vmatprep.subr.bf16.mxu0 0
    %3224 = vmatpush1.bf16.msra.mxu0 0
    %3225 = vmatprep.subr.bf16.mxu0 0
    %3226 = vmatpush1.bf16.msra.mxu0 0
    %3227 = vmatprep.subr.bf16.mxu0 0
    %3228 = vmatpush1.bf16.msra.mxu0 0
    %3229 = vmatprep.subr.bf16.mxu0 0
    %3230 = vmatpush1.bf16.msra.mxu0 0
    %3231 = vmatprep.subr.bf16.mxu0 0
    %3232 = vmatpush1.bf16.msra.mxu0 0
    %3233 = vmatprep.subr.bf16.mxu0 0
    %3234 = vmatpush1.bf16.msra.mxu0 0
    %3235 = vmatprep.subr.bf16.mxu0 0
    %3236 = vmatpush1.bf16.msra.mxu0 0
    %3237 = vmatprep.subr.bf16.mxu0 0
    %3238 = vmatpush1.bf16.msra.mxu0 0
    %3239 = vmatprep.mubr.bf16.mxu0 0
    %3240 = vmatmul.mubr.bf16.gmra.mrb[0].mxu0 %v3205
    %v3241 = vpop.f32.mrb[0].mxu0
    %v3242 = vadd.f32 0.0, %v3241
    %v3243 = vpop.f32.mrb[0].mxu0
    %v3244 = vpop.f32.mrb[0].mxu0
    %v3245 = vadd.f32 0.0, %v3244
    %v3246 = vpop.f32.mrb[0].mxu0
    %3247 = vdwg.mxu0
    %v3248 = vadd.f32 %v3199, %v3242
    %v3249 = vadd.f32 %v3200, %v3245
    %v3250 = vadd.f32 %v3248, %v559
    %v3251 = vadd.f32 %v3249, %v559
    %v3252 = vmax.f32 %v3250, 0.0
    %v3253 = vmax.f32 %v3251, 0.0
    %s3254 = scalar_lea.vmem [#allocation2], 96
    %3255 = vst.msk [vmem:[%s3254] sm:$0xff] %vm565, %v3252
    %3256 = vst.msk [vmem:[%s3254 + $0x8] sm:$0x3f] %vm567, %v3253
    %v3257 = vld [vmem:[%s3] sm:$0xf]
    %s3258 = scalar_lea.vmem %s3, 4
    %v3259 = vld [vmem:[%s3258] sm:$0xf]
    %s3260 = scalar_lea.vmem %s3, 8
    %v3261 = vld [vmem:[%s3260] sm:$0xf]
    %s3262 = scalar_lea.vmem %s3, 12
    %v3263 = vld [vmem:[%s3262] sm:$0xf]
    %s3264 = scalar_lea.vmem %s3, 16
    %v3265 = vld [vmem:[%s3264] sm:$0xf]
    %s3266 = scalar_lea.vmem %s3, 20
    %v3267 = vld [vmem:[%s3266] sm:$0xf]
    %s3268 = scalar_lea.vmem %s3, 24
    %v3269 = vld [vmem:[%s3268] sm:$0xf]
    %s3270 = scalar_lea.vmem %s3, 28
    %v3271 = vld [vmem:[%s3270] sm:$0xf]
    %s3272 = scalar_lea.vmem %s3, 32
    %v3273 = vld [vmem:[%s3272] sm:$0xf]
    %v3274 = vld [vmem:[%s4] sm:$0x1]
    %v3275 = vld [vmem:[#allocation2] sm:$0xff]
    %v3276 = vld [vmem:[#allocation2 + $0x8] sm:$0x3]
    %v3277 = vpack.c.bf16 %v3276, %v3275
    %v3278 = vld [vmem:[#allocation2 + $0x2] sm:$0xff]
    %v3279 = vld [vmem:[#allocation2 + $0xa] sm:$0x3]
    %v3280 = vpack.c.bf16 %v3279, %v3278
    %v3282 = vsel %vm565, %v3280, 0
    %vm3284 = vcmask 1043456
    %v3286 = vsel %vm3284, %v3259, 0
    %3288 = vmatprep.subr.bf16.mxu0 0
    %3289 = vmatpush1.bf16.msra.mxu0 %v3286
    %3290 = vmatprep.subr.bf16.mxu0 0
    %3291 = vmatpush1.bf16.msra.mxu0 0
    %3292 = vmatprep.subr.bf16.mxu0 0
    %3293 = vmatpush1.bf16.msra.mxu0 0
    %3294 = vmatprep.subr.bf16.mxu0 0
    %3295 = vmatpush1.bf16.msra.mxu0 0
    %3296 = vmatprep.subr.bf16.mxu0 0
    %3297 = vmatpush1.bf16.msra.mxu0 0
    %3298 = vmatprep.subr.bf16.mxu0 0
    %3299 = vmatpush1.bf16.msra.mxu0 0
    %3300 = vmatprep.subr.bf16.mxu0 0
    %3301 = vmatpush1.bf16.msra.mxu0 0
    %3302 = vmatprep.subr.bf16.mxu0 0
    %3303 = vmatpush1.bf16.msra.mxu0 0
    %3304 = vmatprep.subr.bf16.mxu0 0
    %3305 = vmatpush1.bf16.msra.mxu0 0
    %3306 = vmatprep.subr.bf16.mxu0 0
    %3307 = vmatpush1.bf16.msra.mxu0 0
    %3308 = vmatprep.subr.bf16.mxu0 0
    %3309 = vmatpush1.bf16.msra.mxu0 0
    %3310 = vmatprep.subr.bf16.mxu0 0
    %3311 = vmatpush1.bf16.msra.mxu0 0
    %3312 = vmatprep.subr.bf16.mxu0 0
    %3313 = vmatpush1.bf16.msra.mxu0 0
    %3314 = vmatprep.subr.bf16.mxu0 0
    %3315 = vmatpush1.bf16.msra.mxu0 0
    %3316 = vmatprep.subr.bf16.mxu0 0
    %3317 = vmatpush1.bf16.msra.mxu0 0
    %3318 = vmatprep.subr.bf16.mxu0 0
    %3319 = vmatpush1.bf16.msra.mxu0 0
    %3320 = vmatprep.mubr.bf16.mxu0 0
    %3321 = vmatmul.mubr.bf16.gmra.mrb[0].mxu0 %v3282
    %v3322 = vpop.f32.mrb[0].mxu0
    %v3323 = vadd.f32 0.0, %v3322
    %v3324 = vpop.f32.mrb[0].mxu0
    %v3325 = vpop.f32.mrb[0].mxu0
    %v3326 = vadd.f32 0.0, %v3325
    %v3327 = vpop.f32.mrb[0].mxu0
    %3328 = vdwg.mxu0
    %v3330 = vsel %vm565, %v3277, 0
    %v3333 = vsel %vm3284, %v3257, 0
    %3335 = vmatprep.subr.bf16.mxu0 0
    %3336 = vmatpush1.bf16.msra.mxu0 %v3333
    %3337 = vmatprep.subr.bf16.mxu0 0
    %3338 = vmatpush1.bf16.msra.mxu0 0
    %3339 = vmatprep.subr.bf16.mxu0 0
    %3340 = vmatpush1.bf16.msra.mxu0 0
    %3341 = vmatprep.subr.bf16.mxu0 0
    %3342 = vmatpush1.bf16.msra.mxu0 0
    %3343 = vmatprep.subr.bf16.mxu0 0
    %3344 = vmatpush1.bf16.msra.mxu0 0
    %3345 = vmatprep.subr.bf16.mxu0 0
    %3346 = vmatpush1.bf16.msra.mxu0 0
    %3347 = vmatprep.subr.bf16.mxu0 0
    %3348 = vmatpush1.bf16.msra.mxu0 0
    %3349 = vmatprep.subr.bf16.mxu0 0
    %3350 = vmatpush1.bf16.msra.mxu0 0
    %3351 = vmatprep.subr.bf16.mxu0 0
    %3352 = vmatpush1.bf16.msra.mxu0 0
    %3353 = vmatprep.subr.bf16.mxu0 0
    %3354 = vmatpush1.bf16.msra.mxu0 0
    %3355 = vmatprep.subr.bf16.mxu0 0
    %3356 = vmatpush1.bf16.msra.mxu0 0
    %3357 = vmatprep.subr.bf16.mxu0 0
    %3358 = vmatpush1.bf16.msra.mxu0 0
    %3359 = vmatprep.subr.bf16.mxu0 0
    %3360 = vmatpush1.bf16.msra.mxu0 0
    %3361 = vmatprep.subr.bf16.mxu0 0
    %3362 = vmatpush1.bf16.msra.mxu0 0
    %3363 = vmatprep.subr.bf16.mxu0 0
    %3364 = vmatpush1.bf16.msra.mxu0 0
    %3365 = vmatprep.subr.bf16.mxu0 0
    %3366 = vmatpush1.bf16.msra.mxu0 0
    %3367 = vmatprep.mubr.bf16.mxu0 0
    %3368 = vmatmul.mubr.bf16.gmra.mrb[0].mxu0 %v3330
    %v3369 = vpop.f32.mrb[0].mxu0
    %v3370 = vadd.f32 %v3323, %v3369
    %v3371 = vpop.f32.mrb[0].mxu0
    %v3372 = vpop.f32.mrb[0].mxu0
    %v3373 = vadd.f32 %v3326, %v3372
    %v3374 = vpop.f32.mrb[0].mxu0
    %3375 = vdwg.mxu0
    %v3376 = vld [vmem:[#allocation2 + $0x4] sm:$0xff]
    %v3377 = vld [vmem:[#allocation2 + $0xc] sm:$0x3]
    %v3378 = vpack.c.bf16 %v3377, %v3376
    %v3380 = vsel %vm565, %v3378, 0
    %v3383 = vsel %vm3284, %v3261, 0
    %3385 = vmatprep.subr.bf16.mxu0 0
    %3386 = vmatpush1.bf16.msra.mxu0 %v3383
    %3387 = vmatprep.subr.bf16.mxu0 0
    %3388 = vmatpush1.bf16.msra.mxu0 0
    %3389 = vmatprep.subr.bf16.mxu0 0
    %3390 = vmatpush1.bf16.msra.mxu0 0
    %3391 = vmatprep.subr.bf16.mxu0 0
    %3392 = vmatpush1.bf16.msra.mxu0 0
    %3393 = vmatprep.subr.bf16.mxu0 0
    %3394 = vmatpush1.bf16.msra.mxu0 0
    %3395 = vmatprep.subr.bf16.mxu0 0
    %3396 = vmatpush1.bf16.msra.mxu0 0
    %3397 = vmatprep.subr.bf16.mxu0 0
    %3398 = vmatpush1.bf16.msra.mxu0 0
    %3399 = vmatprep.subr.bf16.mxu0 0
    %3400 = vmatpush1.bf16.msra.mxu0 0
    %3401 = vmatprep.subr.bf16.mxu0 0
    %3402 = vmatpush1.bf16.msra.mxu0 0
    %3403 = vmatprep.subr.bf16.mxu0 0
    %3404 = vmatpush1.bf16.msra.mxu0 0
    %3405 = vmatprep.subr.bf16.mxu0 0
    %3406 = vmatpush1.bf16.msra.mxu0 0
    %3407 = vmatprep.subr.bf16.mxu0 0
    %3408 = vmatpush1.bf16.msra.mxu0 0
    %3409 = vmatprep.subr.bf16.mxu0 0
    %3410 = vmatpush1.bf16.msra.mxu0 0
    %3411 = vmatprep.subr.bf16.mxu0 0
    %3412 = vmatpush1.bf16.msra.mxu0 0
    %3413 = vmatprep.subr.bf16.mxu0 0
    %3414 = vmatpush1.bf16.msra.mxu0 0
    %3415 = vmatprep.subr.bf16.mxu0 0
    %3416 = vmatpush1.bf16.msra.mxu0 0
    %3417 = vmatprep.mubr.bf16.mxu0 0
    %3418 = vmatmul.mubr.bf16.gmra.mrb[0].mxu0 %v3380
    %v3419 = vpop.f32.mrb[0].mxu0
    %v3420 = vadd.f32 0.0, %v3419
    %v3421 = vpop.f32.mrb[0].mxu0
    %v3422 = vpop.f32.mrb[0].mxu0
    %v3423 = vadd.f32 0.0, %v3422
    %v3424 = vpop.f32.mrb[0].mxu0
    %3425 = vdwg.mxu0
    %v3426 = vadd.f32 %v3370, %v3420
    %v3427 = vadd.f32 %v3373, %v3423
    %v3428 = vld [vmem:[%s1014] sm:$0xff]
    %v3429 = vld [vmem:[%s1014 + $0x8] sm:$0x3]
    %v3430 = vpack.c.bf16 %v3429, %v3428
    %v3432 = vsel %vm565, %v3430, 0
    %v3435 = vsel %vm3284, %v3263, 0
    %3437 = vmatprep.subr.bf16.mxu0 0
    %3438 = vmatpush1.bf16.msra.mxu0 %v3435
    %3439 = vmatprep.subr.bf16.mxu0 0
    %3440 = vmatpush1.bf16.msra.mxu0 0
    %3441 = vmatprep.subr.bf16.mxu0 0
    %3442 = vmatpush1.bf16.msra.mxu0 0
    %3443 = vmatprep.subr.bf16.mxu0 0
    %3444 = vmatpush1.bf16.msra.mxu0 0
    %3445 = vmatprep.subr.bf16.mxu0 0
    %3446 = vmatpush1.bf16.msra.mxu0 0
    %3447 = vmatprep.subr.bf16.mxu0 0
    %3448 = vmatpush1.bf16.msra.mxu0 0
    %3449 = vmatprep.subr.bf16.mxu0 0
    %3450 = vmatpush1.bf16.msra.mxu0 0
    %3451 = vmatprep.subr.bf16.mxu0 0
    %3452 = vmatpush1.bf16.msra.mxu0 0
    %3453 = vmatprep.subr.bf16.mxu0 0
    %3454 = vmatpush1.bf16.msra.mxu0 0
    %3455 = vmatprep.subr.bf16.mxu0 0
    %3456 = vmatpush1.bf16.msra.mxu0 0
    %3457 = vmatprep.subr.bf16.mxu0 0
    %3458 = vmatpush1.bf16.msra.mxu0 0
    %3459 = vmatprep.subr.bf16.mxu0 0
    %3460 = vmatpush1.bf16.msra.mxu0 0
    %3461 = vmatprep.subr.bf16.mxu0 0
    %3462 = vmatpush1.bf16.msra.mxu0 0
    %3463 = vmatprep.subr.bf16.mxu0 0
    %3464 = vmatpush1.bf16.msra.mxu0 0
    %3465 = vmatprep.subr.bf16.mxu0 0
    %3466 = vmatpush1.bf16.msra.mxu0 0
    %3467 = vmatprep.subr.bf16.mxu0 0
    %3468 = vmatpush1.bf16.msra.mxu0 0
    %3469 = vmatprep.mubr.bf16.mxu0 0
    %3470 = vmatmul.mubr.bf16.gmra.mrb[0].mxu0 %v3432
    %v3471 = vpop.f32.mrb[0].mxu0
    %v3472 = vadd.f32 0.0, %v3471
    %v3473 = vpop.f32.mrb[0].mxu0
    %v3474 = vpop.f32.mrb[0].mxu0
    %v3475 = vadd.f32 0.0, %v3474
    %v3476 = vpop.f32.mrb[0].mxu0
    %3477 = vdwg.mxu0
    %v3478 = vadd.f32 %v3426, %v3472
    %v3479 = vadd.f32 %v3427, %v3475
    %v3480 = vld [vmem:[%s1014 + $0x2] sm:$0xff]
    %v3481 = vld [vmem:[%s1014 + $0xa] sm:$0x3]
    %v3482 = vpack.c.bf16 %v3481, %v3480
    %v3484 = vsel %vm565, %v3482, 0
    %v3487 = vsel %vm3284, %v3265, 0
    %3489 = vmatprep.subr.bf16.mxu0 0
    %3490 = vmatpush1.bf16.msra.mxu0 %v3487
    %3491 = vmatprep.subr.bf16.mxu0 0
    %3492 = vmatpush1.bf16.msra.mxu0 0
    %3493 = vmatprep.subr.bf16.mxu0 0
    %3494 = vmatpush1.bf16.msra.mxu0 0
    %3495 = vmatprep.subr.bf16.mxu0 0
    %3496 = vmatpush1.bf16.msra.mxu0 0
    %3497 = vmatprep.subr.bf16.mxu0 0
    %3498 = vmatpush1.bf16.msra.mxu0 0
    %3499 = vmatprep.subr.bf16.mxu0 0
    %3500 = vmatpush1.bf16.msra.mxu0 0
    %3501 = vmatprep.subr.bf16.mxu0 0
    %3502 = vmatpush1.bf16.msra.mxu0 0
    %3503 = vmatprep.subr.bf16.mxu0 0
    %3504 = vmatpush1.bf16.msra.mxu0 0
    %3505 = vmatprep.subr.bf16.mxu0 0
    %3506 = vmatpush1.bf16.msra.mxu0 0
    %3507 = vmatprep.subr.bf16.mxu0 0
    %3508 = vmatpush1.bf16.msra.mxu0 0
    %3509 = vmatprep.subr.bf16.mxu0 0
    %3510 = vmatpush1.bf16.msra.mxu0 0
    %3511 = vmatprep.subr.bf16.mxu0 0
    %3512 = vmatpush1.bf16.msra.mxu0 0
    %3513 = vmatprep.subr.bf16.mxu0 0
    %3514 = vmatpush1.bf16.msra.mxu0 0
    %3515 = vmatprep.subr.bf16.mxu0 0
    %3516 = vmatpush1.bf16.msra.mxu0 0
    %3517 = vmatprep.subr.bf16.mxu0 0
    %3518 = vmatpush1.bf16.msra.mxu0 0
    %3519 = vmatprep.subr.bf16.mxu0 0
    %3520 = vmatpush1.bf16.msra.mxu0 0
    %3521 = vmatprep.mubr.bf16.mxu0 0
    %3522 = vmatmul.mubr.bf16.gmra.mrb[0].mxu0 %v3484
    %v3523 = vpop.f32.mrb[0].mxu0
    %v3524 = vadd.f32 0.0, %v3523
    %v3525 = vpop.f32.mrb[0].mxu0
    %v3526 = vpop.f32.mrb[0].mxu0
    %v3527 = vadd.f32 0.0, %v3526
    %v3528 = vpop.f32.mrb[0].mxu0
    %3529 = vdwg.mxu0
    %v3530 = vadd.f32 %v3478, %v3524
    %v3531 = vadd.f32 %v3479, %v3527
    %v3532 = vld [vmem:[%s1014 + $0x4] sm:$0xff]
    %v3533 = vld [vmem:[%s1014 + $0xc] sm:$0x3]
    %v3534 = vpack.c.bf16 %v3533, %v3532
    %v3536 = vsel %vm565, %v3534, 0
    %v3539 = vsel %vm3284, %v3267, 0
    %3541 = vmatprep.subr.bf16.mxu0 0
    %3542 = vmatpush1.bf16.msra.mxu0 %v3539
    %3543 = vmatprep.subr.bf16.mxu0 0
    %3544 = vmatpush1.bf16.msra.mxu0 0
    %3545 = vmatprep.subr.bf16.mxu0 0
    %3546 = vmatpush1.bf16.msra.mxu0 0
    %3547 = vmatprep.subr.bf16.mxu0 0
    %3548 = vmatpush1.bf16.msra.mxu0 0
    %3549 = vmatprep.subr.bf16.mxu0 0
    %3550 = vmatpush1.bf16.msra.mxu0 0
    %3551 = vmatprep.subr.bf16.mxu0 0
    %3552 = vmatpush1.bf16.msra.mxu0 0
    %3553 = vmatprep.subr.bf16.mxu0 0
    %3554 = vmatpush1.bf16.msra.mxu0 0
    %3555 = vmatprep.subr.bf16.mxu0 0
    %3556 = vmatpush1.bf16.msra.mxu0 0
    %3557 = vmatprep.subr.bf16.mxu0 0
    %3558 = vmatpush1.bf16.msra.mxu0 0
    %3559 = vmatprep.subr.bf16.mxu0 0
    %3560 = vmatpush1.bf16.msra.mxu0 0
    %3561 = vmatprep.subr.bf16.mxu0 0
    %3562 = vmatpush1.bf16.msra.mxu0 0
    %3563 = vmatprep.subr.bf16.mxu0 0
    %3564 = vmatpush1.bf16.msra.mxu0 0
    %3565 = vmatprep.subr.bf16.mxu0 0
    %3566 = vmatpush1.bf16.msra.mxu0 0
    %3567 = vmatprep.subr.bf16.mxu0 0
    %3568 = vmatpush1.bf16.msra.mxu0 0
    %3569 = vmatprep.subr.bf16.mxu0 0
    %3570 = vmatpush1.bf16.msra.mxu0 0
    %3571 = vmatprep.subr.bf16.mxu0 0
    %3572 = vmatpush1.bf16.msra.mxu0 0
    %3573 = vmatprep.mubr.bf16.mxu0 0
    %3574 = vmatmul.mubr.bf16.gmra.mrb[0].mxu0 %v3536
    %v3575 = vpop.f32.mrb[0].mxu0
    %v3576 = vadd.f32 0.0, %v3575
    %v3577 = vpop.f32.mrb[0].mxu0
    %v3578 = vpop.f32.mrb[0].mxu0
    %v3579 = vadd.f32 0.0, %v3578
    %v3580 = vpop.f32.mrb[0].mxu0
    %3581 = vdwg.mxu0
    %v3582 = vadd.f32 %v3530, %v3576
    %v3583 = vadd.f32 %v3531, %v3579
    %v3584 = vld [vmem:[%s1462] sm:$0xff]
    %v3585 = vld [vmem:[%s1462 + $0x8] sm:$0x3]
    %v3586 = vpack.c.bf16 %v3585, %v3584
    %v3588 = vsel %vm565, %v3586, 0
    %v3591 = vsel %vm3284, %v3269, 0
    %3593 = vmatprep.subr.bf16.mxu0 0
    %3594 = vmatpush1.bf16.msra.mxu0 %v3591
    %3595 = vmatprep.subr.bf16.mxu0 0
    %3596 = vmatpush1.bf16.msra.mxu0 0
    %3597 = vmatprep.subr.bf16.mxu0 0
    %3598 = vmatpush1.bf16.msra.mxu0 0
    %3599 = vmatprep.subr.bf16.mxu0 0
    %3600 = vmatpush1.bf16.msra.mxu0 0
    %3601 = vmatprep.subr.bf16.mxu0 0
    %3602 = vmatpush1.bf16.msra.mxu0 0
    %3603 = vmatprep.subr.bf16.mxu0 0
    %3604 = vmatpush1.bf16.msra.mxu0 0
    %3605 = vmatprep.subr.bf16.mxu0 0
    %3606 = vmatpush1.bf16.msra.mxu0 0
    %3607 = vmatprep.subr.bf16.mxu0 0
    %3608 = vmatpush1.bf16.msra.mxu0 0
    %3609 = vmatprep.subr.bf16.mxu0 0
    %3610 = vmatpush1.bf16.msra.mxu0 0
    %3611 = vmatprep.subr.bf16.mxu0 0
    %3612 = vmatpush1.bf16.msra.mxu0 0
    %3613 = vmatprep.subr.bf16.mxu0 0
    %3614 = vmatpush1.bf16.msra.mxu0 0
    %3615 = vmatprep.subr.bf16.mxu0 0
    %3616 = vmatpush1.bf16.msra.mxu0 0
    %3617 = vmatprep.subr.bf16.mxu0 0
    %3618 = vmatpush1.bf16.msra.mxu0 0
    %3619 = vmatprep.subr.bf16.mxu0 0
    %3620 = vmatpush1.bf16.msra.mxu0 0
    %3621 = vmatprep.subr.bf16.mxu0 0
    %3622 = vmatpush1.bf16.msra.mxu0 0
    %3623 = vmatprep.subr.bf16.mxu0 0
    %3624 = vmatpush1.bf16.msra.mxu0 0
    %3625 = vmatprep.mubr.bf16.mxu0 0
    %3626 = vmatmul.mubr.bf16.gmra.mrb[0].mxu0 %v3588
    %v3627 = vpop.f32.mrb[0].mxu0
    %v3628 = vadd.f32 0.0, %v3627
    %v3629 = vpop.f32.mrb[0].mxu0
    %v3630 = vpop.f32.mrb[0].mxu0
    %v3631 = vadd.f32 0.0, %v3630
    %v3632 = vpop.f32.mrb[0].mxu0
    %3633 = vdwg.mxu0
    %v3634 = vadd.f32 %v3582, %v3628
    %v3635 = vadd.f32 %v3583, %v3631
    %v3636 = vld [vmem:[%s1462 + $0x2] sm:$0xff]
    %v3637 = vld [vmem:[%s1462 + $0xa] sm:$0x3]
    %v3638 = vpack.c.bf16 %v3637, %v3636
    %v3640 = vsel %vm565, %v3638, 0
    %v3643 = vsel %vm3284, %v3271, 0
    %3645 = vmatprep.subr.bf16.mxu0 0
    %3646 = vmatpush1.bf16.msra.mxu0 %v3643
    %3647 = vmatprep.subr.bf16.mxu0 0
    %3648 = vmatpush1.bf16.msra.mxu0 0
    %3649 = vmatprep.subr.bf16.mxu0 0
    %3650 = vmatpush1.bf16.msra.mxu0 0
    %3651 = vmatprep.subr.bf16.mxu0 0
    %3652 = vmatpush1.bf16.msra.mxu0 0
    %3653 = vmatprep.subr.bf16.mxu0 0
    %3654 = vmatpush1.bf16.msra.mxu0 0
    %3655 = vmatprep.subr.bf16.mxu0 0
    %3656 = vmatpush1.bf16.msra.mxu0 0
    %3657 = vmatprep.subr.bf16.mxu0 0
    %3658 = vmatpush1.bf16.msra.mxu0 0
    %3659 = vmatprep.subr.bf16.mxu0 0
    %3660 = vmatpush1.bf16.msra.mxu0 0
    %3661 = vmatprep.subr.bf16.mxu0 0
    %3662 = vmatpush1.bf16.msra.mxu0 0
    %3663 = vmatprep.subr.bf16.mxu0 0
    %3664 = vmatpush1.bf16.msra.mxu0 0
    %3665 = vmatprep.subr.bf16.mxu0 0
    %3666 = vmatpush1.bf16.msra.mxu0 0
    %3667 = vmatprep.subr.bf16.mxu0 0
    %3668 = vmatpush1.bf16.msra.mxu0 0
    %3669 = vmatprep.subr.bf16.mxu0 0
    %3670 = vmatpush1.bf16.msra.mxu0 0
    %3671 = vmatprep.subr.bf16.mxu0 0
    %3672 = vmatpush1.bf16.msra.mxu0 0
    %3673 = vmatprep.subr.bf16.mxu0 0
    %3674 = vmatpush1.bf16.msra.mxu0 0
    %3675 = vmatprep.subr.bf16.mxu0 0
    %3676 = vmatpush1.bf16.msra.mxu0 0
    %3677 = vmatprep.mubr.bf16.mxu0 0
    %3678 = vmatmul.mubr.bf16.gmra.mrb[0].mxu0 %v3640
    %v3679 = vpop.f32.mrb[0].mxu0
    %v3680 = vadd.f32 0.0, %v3679
    %v3681 = vpop.f32.mrb[0].mxu0
    %v3682 = vpop.f32.mrb[0].mxu0
    %v3683 = vadd.f32 0.0, %v3682
    %v3684 = vpop.f32.mrb[0].mxu0
    %3685 = vdwg.mxu0
    %v3686 = vadd.f32 %v3634, %v3680
    %v3687 = vadd.f32 %v3635, %v3683
    %v3688 = vld [vmem:[%s1462 + $0x4] sm:$0xff]
    %v3689 = vld [vmem:[%s1462 + $0xc] sm:$0x3]
    %v3690 = vpack.c.bf16 %v3689, %v3688
    %v3692 = vsel %vm565, %v3690, 0
    %v3695 = vsel %vm3284, %v3273, 0
    %3697 = vmatprep.subr.bf16.mxu0 0
    %3698 = vmatpush1.bf16.msra.mxu0 %v3695
    %3699 = vmatprep.subr.bf16.mxu0 0
    %3700 = vmatpush1.bf16.msra.mxu0 0
    %3701 = vmatprep.subr.bf16.mxu0 0
    %3702 = vmatpush1.bf16.msra.mxu0 0
    %3703 = vmatprep.subr.bf16.mxu0 0
    %3704 = vmatpush1.bf16.msra.mxu0 0
    %3705 = vmatprep.subr.bf16.mxu0 0
    %3706 = vmatpush1.bf16.msra.mxu0 0
    %3707 = vmatprep.subr.bf16.mxu0 0
    %3708 = vmatpush1.bf16.msra.mxu0 0
    %3709 = vmatprep.subr.bf16.mxu0 0
    %3710 = vmatpush1.bf16.msra.mxu0 0
    %3711 = vmatprep.subr.bf16.mxu0 0
    %3712 = vmatpush1.bf16.msra.mxu0 0
    %3713 = vmatprep.subr.bf16.mxu0 0
    %3714 = vmatpush1.bf16.msra.mxu0 0
    %3715 = vmatprep.subr.bf16.mxu0 0
    %3716 = vmatpush1.bf16.msra.mxu0 0
    %3717 = vmatprep.subr.bf16.mxu0 0
    %3718 = vmatpush1.bf16.msra.mxu0 0
    %3719 = vmatprep.subr.bf16.mxu0 0
    %3720 = vmatpush1.bf16.msra.mxu0 0
    %3721 = vmatprep.subr.bf16.mxu0 0
    %3722 = vmatpush1.bf16.msra.mxu0 0
    %3723 = vmatprep.subr.bf16.mxu0 0
    %3724 = vmatpush1.bf16.msra.mxu0 0
    %3725 = vmatprep.subr.bf16.mxu0 0
    %3726 = vmatpush1.bf16.msra.mxu0 0
    %3727 = vmatprep.subr.bf16.mxu0 0
    %3728 = vmatpush1.bf16.msra.mxu0 0
    %3729 = vmatprep.mubr.bf16.mxu0 0
    %3730 = vmatmul.mubr.bf16.gmra.mrb[0].mxu0 %v3692
    %v3731 = vpop.f32.mrb[0].mxu0
    %v3732 = vadd.f32 0.0, %v3731
    %v3733 = vpop.f32.mrb[0].mxu0
    %v3734 = vpop.f32.mrb[0].mxu0
    %v3735 = vadd.f32 0.0, %v3734
    %v3736 = vpop.f32.mrb[0].mxu0
    %3737 = vdwg.mxu0
    %v3738 = vadd.f32 %v3686, %v3732
    %v3739 = vadd.f32 %v3687, %v3735
    %v3741 = vlaneseq
    %v3742 = vshrl.u32 %v3741, 7
    %v3743 = vsub.s32 0, %v3742
    %v3744 = vrot.slane %v3274, %v3743
    %v3746 = vadd.f32 %v3738, %v3744
    %v3747 = vadd.f32 %v3739, %v3744
    %v3748 = vmax.f32 %v3746, 0.0
    %v3749 = vmax.f32 %v3747, 0.0
    %3750 = vst.msk [vmem:[#allocation3] sm:$0xff] %vm565, %v3748
    %vm3751 = vcmask 58368
    %3752 = vst.msk [vmem:[#allocation3 + $0x8] sm:$0x3] %vm3751, %v3749
    %v3753 = vld [vmem:[%s1014] sm:$0xff]
    %v3754 = vld [vmem:[%s1014 + $0x8] sm:$0x3]
    %v3755 = vpack.c.bf16 %v3754, %v3753
    %v3756 = vld [vmem:[%s1014 + $0x2] sm:$0xff]
    %v3757 = vld [vmem:[%s1014 + $0xa] sm:$0x3]
    %v3758 = vpack.c.bf16 %v3757, %v3756
    %v3760 = vsel %vm565, %v3758, 0
    %3762 = vmatprep.subr.bf16.mxu0 0
    %3763 = vmatpush1.bf16.msra.mxu0 %v3286
    %3764 = vmatprep.subr.bf16.mxu0 0
    %3765 = vmatpush1.bf16.msra.mxu0 0
    %3766 = vmatprep.subr.bf16.mxu0 0
    %3767 = vmatpush1.bf16.msra.mxu0 0
    %3768 = vmatprep.subr.bf16.mxu0 0
    %3769 = vmatpush1.bf16.msra.mxu0 0
    %3770 = vmatprep.subr.bf16.mxu0 0
    %3771 = vmatpush1.bf16.msra.mxu0 0
    %3772 = vmatprep.subr.bf16.mxu0 0
    %3773 = vmatpush1.bf16.msra.mxu0 0
    %3774 = vmatprep.subr.bf16.mxu0 0
    %3775 = vmatpush1.bf16.msra.mxu0 0
    %3776 = vmatprep.subr.bf16.mxu0 0
    %3777 = vmatpush1.bf16.msra.mxu0 0
    %3778 = vmatprep.subr.bf16.mxu0 0
    %3779 = vmatpush1.bf16.msra.mxu0 0
    %3780 = vmatprep.subr.bf16.mxu0 0
    %3781 = vmatpush1.bf16.msra.mxu0 0
    %3782 = vmatprep.subr.bf16.mxu0 0
    %3783 = vmatpush1.bf16.msra.mxu0 0
    %3784 = vmatprep.subr.bf16.mxu0 0
    %3785 = vmatpush1.bf16.msra.mxu0 0
    %3786 = vmatprep.subr.bf16.mxu0 0
    %3787 = vmatpush1.bf16.msra.mxu0 0
    %3788 = vmatprep.subr.bf16.mxu0 0
    %3789 = vmatpush1.bf16.msra.mxu0 0
    %3790 = vmatprep.subr.bf16.mxu0 0
    %3791 = vmatpush1.bf16.msra.mxu0 0
    %3792 = vmatprep.subr.bf16.mxu0 0
    %3793 = vmatpush1.bf16.msra.mxu0 0
    %3794 = vmatprep.mubr.bf16.mxu0 0
    %3795 = vmatmul.mubr.bf16.gmra.mrb[0].mxu0 %v3760
    %v3796 = vpop.f32.mrb[0].mxu0
    %v3797 = vadd.f32 0.0, %v3796
    %v3798 = vpop.f32.mrb[0].mxu0
    %v3799 = vpop.f32.mrb[0].mxu0
    %v3800 = vadd.f32 0.0, %v3799
    %v3801 = vpop.f32.mrb[0].mxu0
    %3802 = vdwg.mxu0
    %v3804 = vsel %vm565, %v3755, 0
    %3806 = vmatprep.subr.bf16.mxu0 0
    %3807 = vmatpush1.bf16.msra.mxu0 %v3333
    %3808 = vmatprep.subr.bf16.mxu0 0
    %3809 = vmatpush1.bf16.msra.mxu0 0
    %3810 = vmatprep.subr.bf16.mxu0 0
    %3811 = vmatpush1.bf16.msra.mxu0 0
    %3812 = vmatprep.subr.bf16.mxu0 0
    %3813 = vmatpush1.bf16.msra.mxu0 0
    %3814 = vmatprep.subr.bf16.mxu0 0
    %3815 = vmatpush1.bf16.msra.mxu0 0
    %3816 = vmatprep.subr.bf16.mxu0 0
    %3817 = vmatpush1.bf16.msra.mxu0 0
    %3818 = vmatprep.subr.bf16.mxu0 0
    %3819 = vmatpush1.bf16.msra.mxu0 0
    %3820 = vmatprep.subr.bf16.mxu0 0
    %3821 = vmatpush1.bf16.msra.mxu0 0
    %3822 = vmatprep.subr.bf16.mxu0 0
    %3823 = vmatpush1.bf16.msra.mxu0 0
    %3824 = vmatprep.subr.bf16.mxu0 0
    %3825 = vmatpush1.bf16.msra.mxu0 0
    %3826 = vmatprep.subr.bf16.mxu0 0
    %3827 = vmatpush1.bf16.msra.mxu0 0
    %3828 = vmatprep.subr.bf16.mxu0 0
    %3829 = vmatpush1.bf16.msra.mxu0 0
    %3830 = vmatprep.subr.bf16.mxu0 0
    %3831 = vmatpush1.bf16.msra.mxu0 0
    %3832 = vmatprep.subr.bf16.mxu0 0
    %3833 = vmatpush1.bf16.msra.mxu0 0
    %3834 = vmatprep.subr.bf16.mxu0 0
    %3835 = vmatpush1.bf16.msra.mxu0 0
    %3836 = vmatprep.subr.bf16.mxu0 0
    %3837 = vmatpush1.bf16.msra.mxu0 0
    %3838 = vmatprep.mubr.bf16.mxu0 0
    %3839 = vmatmul.mubr.bf16.gmra.mrb[0].mxu0 %v3804
    %v3840 = vpop.f32.mrb[0].mxu0
    %v3841 = vadd.f32 %v3797, %v3840
    %v3842 = vpop.f32.mrb[0].mxu0
    %v3843 = vpop.f32.mrb[0].mxu0
    %v3844 = vadd.f32 %v3800, %v3843
    %v3845 = vpop.f32.mrb[0].mxu0
    %3846 = vdwg.mxu0
    %v3847 = vld [vmem:[%s1014 + $0x4] sm:$0xff]
    %v3848 = vld [vmem:[%s1014 + $0xc] sm:$0x3]
    %v3849 = vpack.c.bf16 %v3848, %v3847
    %v3851 = vsel %vm565, %v3849, 0
    %3853 = vmatprep.subr.bf16.mxu0 0
    %3854 = vmatpush1.bf16.msra.mxu0 %v3383
    %3855 = vmatprep.subr.bf16.mxu0 0
    %3856 = vmatpush1.bf16.msra.mxu0 0
    %3857 = vmatprep.subr.bf16.mxu0 0
    %3858 = vmatpush1.bf16.msra.mxu0 0
    %3859 = vmatprep.subr.bf16.mxu0 0
    %3860 = vmatpush1.bf16.msra.mxu0 0
    %3861 = vmatprep.subr.bf16.mxu0 0
    %3862 = vmatpush1.bf16.msra.mxu0 0
    %3863 = vmatprep.subr.bf16.mxu0 0
    %3864 = vmatpush1.bf16.msra.mxu0 0
    %3865 = vmatprep.subr.bf16.mxu0 0
    %3866 = vmatpush1.bf16.msra.mxu0 0
    %3867 = vmatprep.subr.bf16.mxu0 0
    %3868 = vmatpush1.bf16.msra.mxu0 0
    %3869 = vmatprep.subr.bf16.mxu0 0
    %3870 = vmatpush1.bf16.msra.mxu0 0
    %3871 = vmatprep.subr.bf16.mxu0 0
    %3872 = vmatpush1.bf16.msra.mxu0 0
    %3873 = vmatprep.subr.bf16.mxu0 0
    %3874 = vmatpush1.bf16.msra.mxu0 0
    %3875 = vmatprep.subr.bf16.mxu0 0
    %3876 = vmatpush1.bf16.msra.mxu0 0
    %3877 = vmatprep.subr.bf16.mxu0 0
    %3878 = vmatpush1.bf16.msra.mxu0 0
    %3879 = vmatprep.subr.bf16.mxu0 0
    %3880 = vmatpush1.bf16.msra.mxu0 0
    %3881 = vmatprep.subr.bf16.mxu0 0
    %3882 = vmatpush1.bf16.msra.mxu0 0
    %3883 = vmatprep.subr.bf16.mxu0 0
    %3884 = vmatpush1.bf16.msra.mxu0 0
    %3885 = vmatprep.mubr.bf16.mxu0 0
    %3886 = vmatmul.mubr.bf16.gmra.mrb[0].mxu0 %v3851
    %v3887 = vpop.f32.mrb[0].mxu0
    %v3888 = vadd.f32 0.0, %v3887
    %v3889 = vpop.f32.mrb[0].mxu0
    %v3890 = vpop.f32.mrb[0].mxu0
    %v3891 = vadd.f32 0.0, %v3890
    %v3892 = vpop.f32.mrb[0].mxu0
    %3893 = vdwg.mxu0
    %v3894 = vadd.f32 %v3841, %v3888
    %v3895 = vadd.f32 %v3844, %v3891
    %v3896 = vld [vmem:[%s1462] sm:$0xff]
    %v3897 = vld [vmem:[%s1462 + $0x8] sm:$0x3]
    %v3898 = vpack.c.bf16 %v3897, %v3896
    %v3900 = vsel %vm565, %v3898, 0
    %3902 = vmatprep.subr.bf16.mxu0 0
    %3903 = vmatpush1.bf16.msra.mxu0 %v3435
    %3904 = vmatprep.subr.bf16.mxu0 0
    %3905 = vmatpush1.bf16.msra.mxu0 0
    %3906 = vmatprep.subr.bf16.mxu0 0
    %3907 = vmatpush1.bf16.msra.mxu0 0
    %3908 = vmatprep.subr.bf16.mxu0 0
    %3909 = vmatpush1.bf16.msra.mxu0 0
    %3910 = vmatprep.subr.bf16.mxu0 0
    %3911 = vmatpush1.bf16.msra.mxu0 0
    %3912 = vmatprep.subr.bf16.mxu0 0
    %3913 = vmatpush1.bf16.msra.mxu0 0
    %3914 = vmatprep.subr.bf16.mxu0 0
    %3915 = vmatpush1.bf16.msra.mxu0 0
    %3916 = vmatprep.subr.bf16.mxu0 0
    %3917 = vmatpush1.bf16.msra.mxu0 0
    %3918 = vmatprep.subr.bf16.mxu0 0
    %3919 = vmatpush1.bf16.msra.mxu0 0
    %3920 = vmatprep.subr.bf16.mxu0 0
    %3921 = vmatpush1.bf16.msra.mxu0 0
    %3922 = vmatprep.subr.bf16.mxu0 0
    %3923 = vmatpush1.bf16.msra.mxu0 0
    %3924 = vmatprep.subr.bf16.mxu0 0
    %3925 = vmatpush1.bf16.msra.mxu0 0
    %3926 = vmatprep.subr.bf16.mxu0 0
    %3927 = vmatpush1.bf16.msra.mxu0 0
    %3928 = vmatprep.subr.bf16.mxu0 0
    %3929 = vmatpush1.bf16.msra.mxu0 0
    %3930 = vmatprep.subr.bf16.mxu0 0
    %3931 = vmatpush1.bf16.msra.mxu0 0
    %3932 = vmatprep.subr.bf16.mxu0 0
    %3933 = vmatpush1.bf16.msra.mxu0 0
    %3934 = vmatprep.mubr.bf16.mxu0 0
    %3935 = vmatmul.mubr.bf16.gmra.mrb[0].mxu0 %v3900
    %v3936 = vpop.f32.mrb[0].mxu0
    %v3937 = vadd.f32 0.0, %v3936
    %v3938 = vpop.f32.mrb[0].mxu0
    %v3939 = vpop.f32.mrb[0].mxu0
    %v3940 = vadd.f32 0.0, %v3939
    %v3941 = vpop.f32.mrb[0].mxu0
    %3942 = vdwg.mxu0
    %v3943 = vadd.f32 %v3894, %v3937
    %v3944 = vadd.f32 %v3895, %v3940
    %v3945 = vld [vmem:[%s1462 + $0x2] sm:$0xff]
    %v3946 = vld [vmem:[%s1462 + $0xa] sm:$0x3]
    %v3947 = vpack.c.bf16 %v3946, %v3945
    %v3949 = vsel %vm565, %v3947, 0
    %3951 = vmatprep.subr.bf16.mxu0 0
    %3952 = vmatpush1.bf16.msra.mxu0 %v3487
    %3953 = vmatprep.subr.bf16.mxu0 0
    %3954 = vmatpush1.bf16.msra.mxu0 0
    %3955 = vmatprep.subr.bf16.mxu0 0
    %3956 = vmatpush1.bf16.msra.mxu0 0
    %3957 = vmatprep.subr.bf16.mxu0 0
    %3958 = vmatpush1.bf16.msra.mxu0 0
    %3959 = vmatprep.subr.bf16.mxu0 0
    %3960 = vmatpush1.bf16.msra.mxu0 0
    %3961 = vmatprep.subr.bf16.mxu0 0
    %3962 = vmatpush1.bf16.msra.mxu0 0
    %3963 = vmatprep.subr.bf16.mxu0 0
    %3964 = vmatpush1.bf16.msra.mxu0 0
    %3965 = vmatprep.subr.bf16.mxu0 0
    %3966 = vmatpush1.bf16.msra.mxu0 0
    %3967 = vmatprep.subr.bf16.mxu0 0
    %3968 = vmatpush1.bf16.msra.mxu0 0
    %3969 = vmatprep.subr.bf16.mxu0 0
    %3970 = vmatpush1.bf16.msra.mxu0 0
    %3971 = vmatprep.subr.bf16.mxu0 0
    %3972 = vmatpush1.bf16.msra.mxu0 0
    %3973 = vmatprep.subr.bf16.mxu0 0
    %3974 = vmatpush1.bf16.msra.mxu0 0
    %3975 = vmatprep.subr.bf16.mxu0 0
    %3976 = vmatpush1.bf16.msra.mxu0 0
    %3977 = vmatprep.subr.bf16.mxu0 0
    %3978 = vmatpush1.bf16.msra.mxu0 0
    %3979 = vmatprep.subr.bf16.mxu0 0
    %3980 = vmatpush1.bf16.msra.mxu0 0
    %3981 = vmatprep.subr.bf16.mxu0 0
    %3982 = vmatpush1.bf16.msra.mxu0 0
    %3983 = vmatprep.mubr.bf16.mxu0 0
    %3984 = vmatmul.mubr.bf16.gmra.mrb[0].mxu0 %v3949
    %v3985 = vpop.f32.mrb[0].mxu0
    %v3986 = vadd.f32 0.0, %v3985
    %v3987 = vpop.f32.mrb[0].mxu0
    %v3988 = vpop.f32.mrb[0].mxu0
    %v3989 = vadd.f32 0.0, %v3988
    %v3990 = vpop.f32.mrb[0].mxu0
    %3991 = vdwg.mxu0
    %v3992 = vadd.f32 %v3943, %v3986
    %v3993 = vadd.f32 %v3944, %v3989
    %v3994 = vld [vmem:[%s1462 + $0x4] sm:$0xff]
    %v3995 = vld [vmem:[%s1462 + $0xc] sm:$0x3]
    %v3996 = vpack.c.bf16 %v3995, %v3994
    %v3998 = vsel %vm565, %v3996, 0
    %4000 = vmatprep.subr.bf16.mxu0 0
    %4001 = vmatpush1.bf16.msra.mxu0 %v3539
    %4002 = vmatprep.subr.bf16.mxu0 0
    %4003 = vmatpush1.bf16.msra.mxu0 0
    %4004 = vmatprep.subr.bf16.mxu0 0
    %4005 = vmatpush1.bf16.msra.mxu0 0
    %4006 = vmatprep.subr.bf16.mxu0 0
    %4007 = vmatpush1.bf16.msra.mxu0 0
    %4008 = vmatprep.subr.bf16.mxu0 0
    %4009 = vmatpush1.bf16.msra.mxu0 0
    %4010 = vmatprep.subr.bf16.mxu0 0
    %4011 = vmatpush1.bf16.msra.mxu0 0
    %4012 = vmatprep.subr.bf16.mxu0 0
    %4013 = vmatpush1.bf16.msra.mxu0 0
    %4014 = vmatprep.subr.bf16.mxu0 0
    %4015 = vmatpush1.bf16.msra.mxu0 0
    %4016 = vmatprep.subr.bf16.mxu0 0
    %4017 = vmatpush1.bf16.msra.mxu0 0
    %4018 = vmatprep.subr.bf16.mxu0 0
    %4019 = vmatpush1.bf16.msra.mxu0 0
    %4020 = vmatprep.subr.bf16.mxu0 0
    %4021 = vmatpush1.bf16.msra.mxu0 0
    %4022 = vmatprep.subr.bf16.mxu0 0
    %4023 = vmatpush1.bf16.msra.mxu0 0
    %4024 = vmatprep.subr.bf16.mxu0 0
    %4025 = vmatpush1.bf16.msra.mxu0 0
    %4026 = vmatprep.subr.bf16.mxu0 0
    %4027 = vmatpush1.bf16.msra.mxu0 0
    %4028 = vmatprep.subr.bf16.mxu0 0
    %4029 = vmatpush1.bf16.msra.mxu0 0
    %4030 = vmatprep.subr.bf16.mxu0 0
    %4031 = vmatpush1.bf16.msra.mxu0 0
    %4032 = vmatprep.mubr.bf16.mxu0 0
    %4033 = vmatmul.mubr.bf16.gmra.mrb[0].mxu0 %v3998
    %v4034 = vpop.f32.mrb[0].mxu0
    %v4035 = vadd.f32 0.0, %v4034
    %v4036 = vpop.f32.mrb[0].mxu0
    %v4037 = vpop.f32.mrb[0].mxu0
    %v4038 = vadd.f32 0.0, %v4037
    %v4039 = vpop.f32.mrb[0].mxu0
    %4040 = vdwg.mxu0
    %v4041 = vadd.f32 %v3992, %v4035
    %v4042 = vadd.f32 %v3993, %v4038
    %v4043 = vld [vmem:[%s1910] sm:$0xff]
    %v4044 = vld [vmem:[%s1910 + $0x8] sm:$0x3]
    %v4045 = vpack.c.bf16 %v4044, %v4043
    %v4047 = vsel %vm565, %v4045, 0
    %4049 = vmatprep.subr.bf16.mxu0 0
    %4050 = vmatpush1.bf16.msra.mxu0 %v3591
    %4051 = vmatprep.subr.bf16.mxu0 0
    %4052 = vmatpush1.bf16.msra.mxu0 0
    %4053 = vmatprep.subr.bf16.mxu0 0
    %4054 = vmatpush1.bf16.msra.mxu0 0
    %4055 = vmatprep.subr.bf16.mxu0 0
    %4056 = vmatpush1.bf16.msra.mxu0 0
    %4057 = vmatprep.subr.bf16.mxu0 0
    %4058 = vmatpush1.bf16.msra.mxu0 0
    %4059 = vmatprep.subr.bf16.mxu0 0
    %4060 = vmatpush1.bf16.msra.mxu0 0
    %4061 = vmatprep.subr.bf16.mxu0 0
    %4062 = vmatpush1.bf16.msra.mxu0 0
    %4063 = vmatprep.subr.bf16.mxu0 0
    %4064 = vmatpush1.bf16.msra.mxu0 0
    %4065 = vmatprep.subr.bf16.mxu0 0
    %4066 = vmatpush1.bf16.msra.mxu0 0
    %4067 = vmatprep.subr.bf16.mxu0 0
    %4068 = vmatpush1.bf16.msra.mxu0 0
    %4069 = vmatprep.subr.bf16.mxu0 0
    %4070 = vmatpush1.bf16.msra.mxu0 0
    %4071 = vmatprep.subr.bf16.mxu0 0
    %4072 = vmatpush1.bf16.msra.mxu0 0
    %4073 = vmatprep.subr.bf16.mxu0 0
    %4074 = vmatpush1.bf16.msra.mxu0 0
    %4075 = vmatprep.subr.bf16.mxu0 0
    %4076 = vmatpush1.bf16.msra.mxu0 0
    %4077 = vmatprep.subr.bf16.mxu0 0
    %4078 = vmatpush1.bf16.msra.mxu0 0
    %4079 = vmatprep.subr.bf16.mxu0 0
    %4080 = vmatpush1.bf16.msra.mxu0 0
    %4081 = vmatprep.mubr.bf16.mxu0 0
    %4082 = vmatmul.mubr.bf16.gmra.mrb[0].mxu0 %v4047
    %v4083 = vpop.f32.mrb[0].mxu0
    %v4084 = vadd.f32 0.0, %v4083
    %v4085 = vpop.f32.mrb[0].mxu0
    %v4086 = vpop.f32.mrb[0].mxu0
    %v4087 = vadd.f32 0.0, %v4086
    %v4088 = vpop.f32.mrb[0].mxu0
    %4089 = vdwg.mxu0
    %v4090 = vadd.f32 %v4041, %v4084
    %v4091 = vadd.f32 %v4042, %v4087
    %v4092 = vld [vmem:[%s1910 + $0x2] sm:$0xff]
    %v4093 = vld [vmem:[%s1910 + $0xa] sm:$0x3]
    %v4094 = vpack.c.bf16 %v4093, %v4092
    %v4096 = vsel %vm565, %v4094, 0
    %4098 = vmatprep.subr.bf16.mxu0 0
    %4099 = vmatpush1.bf16.msra.mxu0 %v3643
    %4100 = vmatprep.subr.bf16.mxu0 0
    %4101 = vmatpush1.bf16.msra.mxu0 0
    %4102 = vmatprep.subr.bf16.mxu0 0
    %4103 = vmatpush1.bf16.msra.mxu0 0
    %4104 = vmatprep.subr.bf16.mxu0 0
    %4105 = vmatpush1.bf16.msra.mxu0 0
    %4106 = vmatprep.subr.bf16.mxu0 0
    %4107 = vmatpush1.bf16.msra.mxu0 0
    %4108 = vmatprep.subr.bf16.mxu0 0
    %4109 = vmatpush1.bf16.msra.mxu0 0
    %4110 = vmatprep.subr.bf16.mxu0 0
    %4111 = vmatpush1.bf16.msra.mxu0 0
    %4112 = vmatprep.subr.bf16.mxu0 0
    %4113 = vmatpush1.bf16.msra.mxu0 0
    %4114 = vmatprep.subr.bf16.mxu0 0
    %4115 = vmatpush1.bf16.msra.mxu0 0
    %4116 = vmatprep.subr.bf16.mxu0 0
    %4117 = vmatpush1.bf16.msra.mxu0 0
    %4118 = vmatprep.subr.bf16.mxu0 0
    %4119 = vmatpush1.bf16.msra.mxu0 0
    %4120 = vmatprep.subr.bf16.mxu0 0
    %4121 = vmatpush1.bf16.msra.mxu0 0
    %4122 = vmatprep.subr.bf16.mxu0 0
    %4123 = vmatpush1.bf16.msra.mxu0 0
    %4124 = vmatprep.subr.bf16.mxu0 0
    %4125 = vmatpush1.bf16.msra.mxu0 0
    %4126 = vmatprep.subr.bf16.mxu0 0
    %4127 = vmatpush1.bf16.msra.mxu0 0
    %4128 = vmatprep.subr.bf16.mxu0 0
    %4129 = vmatpush1.bf16.msra.mxu0 0
    %4130 = vmatprep.mubr.bf16.mxu0 0
    %4131 = vmatmul.mubr.bf16.gmra.mrb[0].mxu0 %v4096
    %v4132 = vpop.f32.mrb[0].mxu0
    %v4133 = vadd.f32 0.0, %v4132
    %v4134 = vpop.f32.mrb[0].mxu0
    %v4135 = vpop.f32.mrb[0].mxu0
    %v4136 = vadd.f32 0.0, %v4135
    %v4137 = vpop.f32.mrb[0].mxu0
    %4138 = vdwg.mxu0
    %v4139 = vadd.f32 %v4090, %v4133
    %v4140 = vadd.f32 %v4091, %v4136
    %v4141 = vld [vmem:[%s1910 + $0x4] sm:$0xff]
    %v4142 = vld [vmem:[%s1910 + $0xc] sm:$0x3]
    %v4143 = vpack.c.bf16 %v4142, %v4141
    %v4145 = vsel %vm565, %v4143, 0
    %4147 = vmatprep.subr.bf16.mxu0 0
    %4148 = vmatpush1.bf16.msra.mxu0 %v3695
    %4149 = vmatprep.subr.bf16.mxu0 0
    %4150 = vmatpush1.bf16.msra.mxu0 0
    %4151 = vmatprep.subr.bf16.mxu0 0
    %4152 = vmatpush1.bf16.msra.mxu0 0
    %4153 = vmatprep.subr.bf16.mxu0 0
    %4154 = vmatpush1.bf16.msra.mxu0 0
    %4155 = vmatprep.subr.bf16.mxu0 0
    %4156 = vmatpush1.bf16.msra.mxu0 0
    %4157 = vmatprep.subr.bf16.mxu0 0
    %4158 = vmatpush1.bf16.msra.mxu0 0
    %4159 = vmatprep.subr.bf16.mxu0 0
    %4160 = vmatpush1.bf16.msra.mxu0 0
    %4161 = vmatprep.subr.bf16.mxu0 0
    %4162 = vmatpush1.bf16.msra.mxu0 0
    %4163 = vmatprep.subr.bf16.mxu0 0
    %4164 = vmatpush1.bf16.msra.mxu0 0
    %4165 = vmatprep.subr.bf16.mxu0 0
    %4166 = vmatpush1.bf16.msra.mxu0 0
    %4167 = vmatprep.subr.bf16.mxu0 0
    %4168 = vmatpush1.bf16.msra.mxu0 0
    %4169 = vmatprep.subr.bf16.mxu0 0
    %4170 = vmatpush1.bf16.msra.mxu0 0
    %4171 = vmatprep.subr.bf16.mxu0 0
    %4172 = vmatpush1.bf16.msra.mxu0 0
    %4173 = vmatprep.subr.bf16.mxu0 0
    %4174 = vmatpush1.bf16.msra.mxu0 0
    %4175 = vmatprep.subr.bf16.mxu0 0
    %4176 = vmatpush1.bf16.msra.mxu0 0
    %4177 = vmatprep.subr.bf16.mxu0 0
    %4178 = vmatpush1.bf16.msra.mxu0 0
    %4179 = vmatprep.mubr.bf16.mxu0 0
    %4180 = vmatmul.mubr.bf16.gmra.mrb[0].mxu0 %v4145
    %v4181 = vpop.f32.mrb[0].mxu0
    %v4182 = vadd.f32 0.0, %v4181
    %v4183 = vpop.f32.mrb[0].mxu0
    %v4184 = vpop.f32.mrb[0].mxu0
    %v4185 = vadd.f32 0.0, %v4184
    %v4186 = vpop.f32.mrb[0].mxu0
    %4187 = vdwg.mxu0
    %v4188 = vadd.f32 %v4139, %v4182
    %v4189 = vadd.f32 %v4140, %v4185
    %v4190 = vadd.f32 %v4188, %v3744
    %v4191 = vadd.f32 %v4189, %v3744
    %v4192 = vmax.f32 %v4190, 0.0
    %v4193 = vmax.f32 %v4191, 0.0
    %s4194 = scalar_lea.vmem [#allocation3], 16
    %4195 = vst.msk [vmem:[%s4194] sm:$0xff] %vm565, %v4192
    %4196 = vst.msk [vmem:[%s4194 + $0x8] sm:$0x3] %vm3751, %v4193
    %v4197 = vld [vmem:[%s1462] sm:$0xff]
    %v4198 = vld [vmem:[%s1462 + $0x8] sm:$0x3]
    %v4199 = vpack.c.bf16 %v4198, %v4197
    %v4200 = vld [vmem:[%s1462 + $0x2] sm:$0xff]
    %v4201 = vld [vmem:[%s1462 + $0xa] sm:$0x3]
    %v4202 = vpack.c.bf16 %v4201, %v4200
    %v4204 = vsel %vm565, %v4202, 0
    %4206 = vmatprep.subr.bf16.mxu0 0
    %4207 = vmatpush1.bf16.msra.mxu0 %v3286
    %4208 = vmatprep.subr.bf16.mxu0 0
    %4209 = vmatpush1.bf16.msra.mxu0 0
    %4210 = vmatprep.subr.bf16.mxu0 0
    %4211 = vmatpush1.bf16.msra.mxu0 0
    %4212 = vmatprep.subr.bf16.mxu0 0
    %4213 = vmatpush1.bf16.msra.mxu0 0
    %4214 = vmatprep.subr.bf16.mxu0 0
    %4215 = vmatpush1.bf16.msra.mxu0 0
    %4216 = vmatprep.subr.bf16.mxu0 0
    %4217 = vmatpush1.bf16.msra.mxu0 0
    %4218 = vmatprep.subr.bf16.mxu0 0
    %4219 = vmatpush1.bf16.msra.mxu0 0
    %4220 = vmatprep.subr.bf16.mxu0 0
    %4221 = vmatpush1.bf16.msra.mxu0 0
    %4222 = vmatprep.subr.bf16.mxu0 0
    %4223 = vmatpush1.bf16.msra.mxu0 0
    %4224 = vmatprep.subr.bf16.mxu0 0
    %4225 = vmatpush1.bf16.msra.mxu0 0
    %4226 = vmatprep.subr.bf16.mxu0 0
    %4227 = vmatpush1.bf16.msra.mxu0 0
    %4228 = vmatprep.subr.bf16.mxu0 0
    %4229 = vmatpush1.bf16.msra.mxu0 0
    %4230 = vmatprep.subr.bf16.mxu0 0
    %4231 = vmatpush1.bf16.msra.mxu0 0
    %4232 = vmatprep.subr.bf16.mxu0 0
    %4233 = vmatpush1.bf16.msra.mxu0 0
    %4234 = vmatprep.subr.bf16.mxu0 0
    %4235 = vmatpush1.bf16.msra.mxu0 0
    %4236 = vmatprep.subr.bf16.mxu0 0
    %4237 = vmatpush1.bf16.msra.mxu0 0
    %4238 = vmatprep.mubr.bf16.mxu0 0
    %4239 = vmatmul.mubr.bf16.gmra.mrb[0].mxu0 %v4204
    %v4240 = vpop.f32.mrb[0].mxu0
    %v4241 = vadd.f32 0.0, %v4240
    %v4242 = vpop.f32.mrb[0].mxu0
    %v4243 = vpop.f32.mrb[0].mxu0
    %v4244 = vadd.f32 0.0, %v4243
    %v4245 = vpop.f32.mrb[0].mxu0
    %4246 = vdwg.mxu0
    %v4248 = vsel %vm565, %v4199, 0
    %4250 = vmatprep.subr.bf16.mxu0 0
    %4251 = vmatpush1.bf16.msra.mxu0 %v3333
    %4252 = vmatprep.subr.bf16.mxu0 0
    %4253 = vmatpush1.bf16.msra.mxu0 0
    %4254 = vmatprep.subr.bf16.mxu0 0
    %4255 = vmatpush1.bf16.msra.mxu0 0
    %4256 = vmatprep.subr.bf16.mxu0 0
    %4257 = vmatpush1.bf16.msra.mxu0 0
    %4258 = vmatprep.subr.bf16.mxu0 0
    %4259 = vmatpush1.bf16.msra.mxu0 0
    %4260 = vmatprep.subr.bf16.mxu0 0
    %4261 = vmatpush1.bf16.msra.mxu0 0
    %4262 = vmatprep.subr.bf16.mxu0 0
    %4263 = vmatpush1.bf16.msra.mxu0 0
    %4264 = vmatprep.subr.bf16.mxu0 0
    %4265 = vmatpush1.bf16.msra.mxu0 0
    %4266 = vmatprep.subr.bf16.mxu0 0
    %4267 = vmatpush1.bf16.msra.mxu0 0
    %4268 = vmatprep.subr.bf16.mxu0 0
    %4269 = vmatpush1.bf16.msra.mxu0 0
    %4270 = vmatprep.subr.bf16.mxu0 0
    %4271 = vmatpush1.bf16.msra.mxu0 0
    %4272 = vmatprep.subr.bf16.mxu0 0
    %4273 = vmatpush1.bf16.msra.mxu0 0
    %4274 = vmatprep.subr.bf16.mxu0 0
    %4275 = vmatpush1.bf16.msra.mxu0 0
    %4276 = vmatprep.subr.bf16.mxu0 0
    %4277 = vmatpush1.bf16.msra.mxu0 0
    %4278 = vmatprep.subr.bf16.mxu0 0
    %4279 = vmatpush1.bf16.msra.mxu0 0
    %4280 = vmatprep.subr.bf16.mxu0 0
    %4281 = vmatpush1.bf16.msra.mxu0 0
    %4282 = vmatprep.mubr.bf16.mxu0 0
    %4283 = vmatmul.mubr.bf16.gmra.mrb[0].mxu0 %v4248
    %v4284 = vpop.f32.mrb[0].mxu0
    %v4285 = vadd.f32 %v4241, %v4284
    %v4286 = vpop.f32.mrb[0].mxu0
    %v4287 = vpop.f32.mrb[0].mxu0
    %v4288 = vadd.f32 %v4244, %v4287
    %v4289 = vpop.f32.mrb[0].mxu0
    %4290 = vdwg.mxu0
    %v4291 = vld [vmem:[%s1462 + $0x4] sm:$0xff]
    %v4292 = vld [vmem:[%s1462 + $0xc] sm:$0x3]
    %v4293 = vpack.c.bf16 %v4292, %v4291
    %v4295 = vsel %vm565, %v4293, 0
    %4297 = vmatprep.subr.bf16.mxu0 0
    %4298 = vmatpush1.bf16.msra.mxu0 %v3383
    %4299 = vmatprep.subr.bf16.mxu0 0
    %4300 = vmatpush1.bf16.msra.mxu0 0
    %4301 = vmatprep.subr.bf16.mxu0 0
    %4302 = vmatpush1.bf16.msra.mxu0 0
    %4303 = vmatprep.subr.bf16.mxu0 0
    %4304 = vmatpush1.bf16.msra.mxu0 0
    %4305 = vmatprep.subr.bf16.mxu0 0
    %4306 = vmatpush1.bf16.msra.mxu0 0
    %4307 = vmatprep.subr.bf16.mxu0 0
    %4308 = vmatpush1.bf16.msra.mxu0 0
    %4309 = vmatprep.subr.bf16.mxu0 0
    %4310 = vmatpush1.bf16.msra.mxu0 0
    %4311 = vmatprep.subr.bf16.mxu0 0
    %4312 = vmatpush1.bf16.msra.mxu0 0
    %4313 = vmatprep.subr.bf16.mxu0 0
    %4314 = vmatpush1.bf16.msra.mxu0 0
    %4315 = vmatprep.subr.bf16.mxu0 0
    %4316 = vmatpush1.bf16.msra.mxu0 0
    %4317 = vmatprep.subr.bf16.mxu0 0
    %4318 = vmatpush1.bf16.msra.mxu0 0
    %4319 = vmatprep.subr.bf16.mxu0 0
    %4320 = vmatpush1.bf16.msra.mxu0 0
    %4321 = vmatprep.subr.bf16.mxu0 0
    %4322 = vmatpush1.bf16.msra.mxu0 0
    %4323 = vmatprep.subr.bf16.mxu0 0
    %4324 = vmatpush1.bf16.msra.mxu0 0
    %4325 = vmatprep.subr.bf16.mxu0 0
    %4326 = vmatpush1.bf16.msra.mxu0 0
    %4327 = vmatprep.subr.bf16.mxu0 0
    %4328 = vmatpush1.bf16.msra.mxu0 0
    %4329 = vmatprep.mubr.bf16.mxu0 0
    %4330 = vmatmul.mubr.bf16.gmra.mrb[0].mxu0 %v4295
    %v4331 = vpop.f32.mrb[0].mxu0
    %v4332 = vadd.f32 0.0, %v4331
    %v4333 = vpop.f32.mrb[0].mxu0
    %v4334 = vpop.f32.mrb[0].mxu0
    %v4335 = vadd.f32 0.0, %v4334
    %v4336 = vpop.f32.mrb[0].mxu0
    %4337 = vdwg.mxu0
    %v4338 = vadd.f32 %v4285, %v4332
    %v4339 = vadd.f32 %v4288, %v4335
    %v4340 = vld [vmem:[%s1910] sm:$0xff]
    %v4341 = vld [vmem:[%s1910 + $0x8] sm:$0x3]
    %v4342 = vpack.c.bf16 %v4341, %v4340
    %v4344 = vsel %vm565, %v4342, 0
    %4346 = vmatprep.subr.bf16.mxu0 0
    %4347 = vmatpush1.bf16.msra.mxu0 %v3435
    %4348 = vmatprep.subr.bf16.mxu0 0
    %4349 = vmatpush1.bf16.msra.mxu0 0
    %4350 = vmatprep.subr.bf16.mxu0 0
    %4351 = vmatpush1.bf16.msra.mxu0 0
    %4352 = vmatprep.subr.bf16.mxu0 0
    %4353 = vmatpush1.bf16.msra.mxu0 0
    %4354 = vmatprep.subr.bf16.mxu0 0
    %4355 = vmatpush1.bf16.msra.mxu0 0
    %4356 = vmatprep.subr.bf16.mxu0 0
    %4357 = vmatpush1.bf16.msra.mxu0 0
    %4358 = vmatprep.subr.bf16.mxu0 0
    %4359 = vmatpush1.bf16.msra.mxu0 0
    %4360 = vmatprep.subr.bf16.mxu0 0
    %4361 = vmatpush1.bf16.msra.mxu0 0
    %4362 = vmatprep.subr.bf16.mxu0 0
    %4363 = vmatpush1.bf16.msra.mxu0 0
    %4364 = vmatprep.subr.bf16.mxu0 0
    %4365 = vmatpush1.bf16.msra.mxu0 0
    %4366 = vmatprep.subr.bf16.mxu0 0
    %4367 = vmatpush1.bf16.msra.mxu0 0
    %4368 = vmatprep.subr.bf16.mxu0 0
    %4369 = vmatpush1.bf16.msra.mxu0 0
    %4370 = vmatprep.subr.bf16.mxu0 0
    %4371 = vmatpush1.bf16.msra.mxu0 0
    %4372 = vmatprep.subr.bf16.mxu0 0
    %4373 = vmatpush1.bf16.msra.mxu0 0
    %4374 = vmatprep.subr.bf16.mxu0 0
    %4375 = vmatpush1.bf16.msra.mxu0 0
    %4376 = vmatprep.subr.bf16.mxu0 0
    %4377 = vmatpush1.bf16.msra.mxu0 0
    %4378 = vmatprep.mubr.bf16.mxu0 0
    %4379 = vmatmul.mubr.bf16.gmra.mrb[0].mxu0 %v4344
    %v4380 = vpop.f32.mrb[0].mxu0
    %v4381 = vadd.f32 0.0, %v4380
    %v4382 = vpop.f32.mrb[0].mxu0
    %v4383 = vpop.f32.mrb[0].mxu0
    %v4384 = vadd.f32 0.0, %v4383
    %v4385 = vpop.f32.mrb[0].mxu0
    %4386 = vdwg.mxu0
    %v4387 = vadd.f32 %v4338, %v4381
    %v4388 = vadd.f32 %v4339, %v4384
    %v4389 = vld [vmem:[%s1910 + $0x2] sm:$0xff]
    %v4390 = vld [vmem:[%s1910 + $0xa] sm:$0x3]
    %v4391 = vpack.c.bf16 %v4390, %v4389
    %v4393 = vsel %vm565, %v4391, 0
    %4395 = vmatprep.subr.bf16.mxu0 0
    %4396 = vmatpush1.bf16.msra.mxu0 %v3487
    %4397 = vmatprep.subr.bf16.mxu0 0
    %4398 = vmatpush1.bf16.msra.mxu0 0
    %4399 = vmatprep.subr.bf16.mxu0 0
    %4400 = vmatpush1.bf16.msra.mxu0 0
    %4401 = vmatprep.subr.bf16.mxu0 0
    %4402 = vmatpush1.bf16.msra.mxu0 0
    %4403 = vmatprep.subr.bf16.mxu0 0
    %4404 = vmatpush1.bf16.msra.mxu0 0
    %4405 = vmatprep.subr.bf16.mxu0 0
    %4406 = vmatpush1.bf16.msra.mxu0 0
    %4407 = vmatprep.subr.bf16.mxu0 0
    %4408 = vmatpush1.bf16.msra.mxu0 0
    %4409 = vmatprep.subr.bf16.mxu0 0
    %4410 = vmatpush1.bf16.msra.mxu0 0
    %4411 = vmatprep.subr.bf16.mxu0 0
    %4412 = vmatpush1.bf16.msra.mxu0 0
    %4413 = vmatprep.subr.bf16.mxu0 0
    %4414 = vmatpush1.bf16.msra.mxu0 0
    %4415 = vmatprep.subr.bf16.mxu0 0
    %4416 = vmatpush1.bf16.msra.mxu0 0
    %4417 = vmatprep.subr.bf16.mxu0 0
    %4418 = vmatpush1.bf16.msra.mxu0 0
    %4419 = vmatprep.subr.bf16.mxu0 0
    %4420 = vmatpush1.bf16.msra.mxu0 0
    %4421 = vmatprep.subr.bf16.mxu0 0
    %4422 = vmatpush1.bf16.msra.mxu0 0
    %4423 = vmatprep.subr.bf16.mxu0 0
    %4424 = vmatpush1.bf16.msra.mxu0 0
    %4425 = vmatprep.subr.bf16.mxu0 0
    %4426 = vmatpush1.bf16.msra.mxu0 0
    %4427 = vmatprep.mubr.bf16.mxu0 0
    %4428 = vmatmul.mubr.bf16.gmra.mrb[0].mxu0 %v4393
    %v4429 = vpop.f32.mrb[0].mxu0
    %v4430 = vadd.f32 0.0, %v4429
    %v4431 = vpop.f32.mrb[0].mxu0
    %v4432 = vpop.f32.mrb[0].mxu0
    %v4433 = vadd.f32 0.0, %v4432
    %v4434 = vpop.f32.mrb[0].mxu0
    %4435 = vdwg.mxu0
    %v4436 = vadd.f32 %v4387, %v4430
    %v4437 = vadd.f32 %v4388, %v4433
    %v4438 = vld [vmem:[%s1910 + $0x4] sm:$0xff]
    %v4439 = vld [vmem:[%s1910 + $0xc] sm:$0x3]
    %v4440 = vpack.c.bf16 %v4439, %v4438
    %v4442 = vsel %vm565, %v4440, 0
    %4444 = vmatprep.subr.bf16.mxu0 0
    %4445 = vmatpush1.bf16.msra.mxu0 %v3539
    %4446 = vmatprep.subr.bf16.mxu0 0
    %4447 = vmatpush1.bf16.msra.mxu0 0
    %4448 = vmatprep.subr.bf16.mxu0 0
    %4449 = vmatpush1.bf16.msra.mxu0 0
    %4450 = vmatprep.subr.bf16.mxu0 0
    %4451 = vmatpush1.bf16.msra.mxu0 0
    %4452 = vmatprep.subr.bf16.mxu0 0
    %4453 = vmatpush1.bf16.msra.mxu0 0
    %4454 = vmatprep.subr.bf16.mxu0 0
    %4455 = vmatpush1.bf16.msra.mxu0 0
    %4456 = vmatprep.subr.bf16.mxu0 0
    %4457 = vmatpush1.bf16.msra.mxu0 0
    %4458 = vmatprep.subr.bf16.mxu0 0
    %4459 = vmatpush1.bf16.msra.mxu0 0
    %4460 = vmatprep.subr.bf16.mxu0 0
    %4461 = vmatpush1.bf16.msra.mxu0 0
    %4462 = vmatprep.subr.bf16.mxu0 0
    %4463 = vmatpush1.bf16.msra.mxu0 0
    %4464 = vmatprep.subr.bf16.mxu0 0
    %4465 = vmatpush1.bf16.msra.mxu0 0
    %4466 = vmatprep.subr.bf16.mxu0 0
    %4467 = vmatpush1.bf16.msra.mxu0 0
    %4468 = vmatprep.subr.bf16.mxu0 0
    %4469 = vmatpush1.bf16.msra.mxu0 0
    %4470 = vmatprep.subr.bf16.mxu0 0
    %4471 = vmatpush1.bf16.msra.mxu0 0
    %4472 = vmatprep.subr.bf16.mxu0 0
    %4473 = vmatpush1.bf16.msra.mxu0 0
    %4474 = vmatprep.subr.bf16.mxu0 0
    %4475 = vmatpush1.bf16.msra.mxu0 0
    %4476 = vmatprep.mubr.bf16.mxu0 0
    %4477 = vmatmul.mubr.bf16.gmra.mrb[0].mxu0 %v4442
    %v4478 = vpop.f32.mrb[0].mxu0
    %v4479 = vadd.f32 0.0, %v4478
    %v4480 = vpop.f32.mrb[0].mxu0
    %v4481 = vpop.f32.mrb[0].mxu0
    %v4482 = vadd.f32 0.0, %v4481
    %v4483 = vpop.f32.mrb[0].mxu0
    %4484 = vdwg.mxu0
    %v4485 = vadd.f32 %v4436, %v4479
    %v4486 = vadd.f32 %v4437, %v4482
    %v4487 = vld [vmem:[%s2358] sm:$0xff]
    %v4488 = vld [vmem:[%s2358 + $0x8] sm:$0x3]
    %v4489 = vpack.c.bf16 %v4488, %v4487
    %v4491 = vsel %vm565, %v4489, 0
    %4493 = vmatprep.subr.bf16.mxu0 0
    %4494 = vmatpush1.bf16.msra.mxu0 %v3591
    %4495 = vmatprep.subr.bf16.mxu0 0
    %4496 = vmatpush1.bf16.msra.mxu0 0
    %4497 = vmatprep.subr.bf16.mxu0 0
    %4498 = vmatpush1.bf16.msra.mxu0 0
    %4499 = vmatprep.subr.bf16.mxu0 0
    %4500 = vmatpush1.bf16.msra.mxu0 0
    %4501 = vmatprep.subr.bf16.mxu0 0
    %4502 = vmatpush1.bf16.msra.mxu0 0
    %4503 = vmatprep.subr.bf16.mxu0 0
    %4504 = vmatpush1.bf16.msra.mxu0 0
    %4505 = vmatprep.subr.bf16.mxu0 0
    %4506 = vmatpush1.bf16.msra.mxu0 0
    %4507 = vmatprep.subr.bf16.mxu0 0
    %4508 = vmatpush1.bf16.msra.mxu0 0
    %4509 = vmatprep.subr.bf16.mxu0 0
    %4510 = vmatpush1.bf16.msra.mxu0 0
    %4511 = vmatprep.subr.bf16.mxu0 0
    %4512 = vmatpush1.bf16.msra.mxu0 0
    %4513 = vmatprep.subr.bf16.mxu0 0
    %4514 = vmatpush1.bf16.msra.mxu0 0
    %4515 = vmatprep.subr.bf16.mxu0 0
    %4516 = vmatpush1.bf16.msra.mxu0 0
    %4517 = vmatprep.subr.bf16.mxu0 0
    %4518 = vmatpush1.bf16.msra.mxu0 0
    %4519 = vmatprep.subr.bf16.mxu0 0
    %4520 = vmatpush1.bf16.msra.mxu0 0
    %4521 = vmatprep.subr.bf16.mxu0 0
    %4522 = vmatpush1.bf16.msra.mxu0 0
    %4523 = vmatprep.subr.bf16.mxu0 0
    %4524 = vmatpush1.bf16.msra.mxu0 0
    %4525 = vmatprep.mubr.bf16.mxu0 0
    %4526 = vmatmul.mubr.bf16.gmra.mrb[0].mxu0 %v4491
    %v4527 = vpop.f32.mrb[0].mxu0
    %v4528 = vadd.f32 0.0, %v4527
    %v4529 = vpop.f32.mrb[0].mxu0
    %v4530 = vpop.f32.mrb[0].mxu0
    %v4531 = vadd.f32 0.0, %v4530
    %v4532 = vpop.f32.mrb[0].mxu0
    %4533 = vdwg.mxu0
    %v4534 = vadd.f32 %v4485, %v4528
    %v4535 = vadd.f32 %v4486, %v4531
    %v4536 = vld [vmem:[%s2358 + $0x2] sm:$0xff]
    %v4537 = vld [vmem:[%s2358 + $0xa] sm:$0x3]
    %v4538 = vpack.c.bf16 %v4537, %v4536
    %v4540 = vsel %vm565, %v4538, 0
    %4542 = vmatprep.subr.bf16.mxu0 0
    %4543 = vmatpush1.bf16.msra.mxu0 %v3643
    %4544 = vmatprep.subr.bf16.mxu0 0
    %4545 = vmatpush1.bf16.msra.mxu0 0
    %4546 = vmatprep.subr.bf16.mxu0 0
    %4547 = vmatpush1.bf16.msra.mxu0 0
    %4548 = vmatprep.subr.bf16.mxu0 0
    %4549 = vmatpush1.bf16.msra.mxu0 0
    %4550 = vmatprep.subr.bf16.mxu0 0
    %4551 = vmatpush1.bf16.msra.mxu0 0
    %4552 = vmatprep.subr.bf16.mxu0 0
    %4553 = vmatpush1.bf16.msra.mxu0 0
    %4554 = vmatprep.subr.bf16.mxu0 0
    %4555 = vmatpush1.bf16.msra.mxu0 0
    %4556 = vmatprep.subr.bf16.mxu0 0
    %4557 = vmatpush1.bf16.msra.mxu0 0
    %4558 = vmatprep.subr.bf16.mxu0 0
    %4559 = vmatpush1.bf16.msra.mxu0 0
    %4560 = vmatprep.subr.bf16.mxu0 0
    %4561 = vmatpush1.bf16.msra.mxu0 0
    %4562 = vmatprep.subr.bf16.mxu0 0
    %4563 = vmatpush1.bf16.msra.mxu0 0
    %4564 = vmatprep.subr.bf16.mxu0 0
    %4565 = vmatpush1.bf16.msra.mxu0 0
    %4566 = vmatprep.subr.bf16.mxu0 0
    %4567 = vmatpush1.bf16.msra.mxu0 0
    %4568 = vmatprep.subr.bf16.mxu0 0
    %4569 = vmatpush1.bf16.msra.mxu0 0
    %4570 = vmatprep.subr.bf16.mxu0 0
    %4571 = vmatpush1.bf16.msra.mxu0 0
    %4572 = vmatprep.subr.bf16.mxu0 0
    %4573 = vmatpush1.bf16.msra.mxu0 0
    %4574 = vmatprep.mubr.bf16.mxu0 0
    %4575 = vmatmul.mubr.bf16.gmra.mrb[0].mxu0 %v4540
    %v4576 = vpop.f32.mrb[0].mxu0
    %v4577 = vadd.f32 0.0, %v4576
    %v4578 = vpop.f32.mrb[0].mxu0
    %v4579 = vpop.f32.mrb[0].mxu0
    %v4580 = vadd.f32 0.0, %v4579
    %v4581 = vpop.f32.mrb[0].mxu0
    %4582 = vdwg.mxu0
    %v4583 = vadd.f32 %v4534, %v4577
    %v4584 = vadd.f32 %v4535, %v4580
    %v4585 = vld [vmem:[%s2358 + $0x4] sm:$0xff]
    %v4586 = vld [vmem:[%s2358 + $0xc] sm:$0x3]
    %v4587 = vpack.c.bf16 %v4586, %v4585
    %v4589 = vsel %vm565, %v4587, 0
    %4591 = vmatprep.subr.bf16.mxu0 0
    %4592 = vmatpush1.bf16.msra.mxu0 %v3695
    %4593 = vmatprep.subr.bf16.mxu0 0
    %4594 = vmatpush1.bf16.msra.mxu0 0
    %4595 = vmatprep.subr.bf16.mxu0 0
    %4596 = vmatpush1.bf16.msra.mxu0 0
    %4597 = vmatprep.subr.bf16.mxu0 0
    %4598 = vmatpush1.bf16.msra.mxu0 0
    %4599 = vmatprep.subr.bf16.mxu0 0
    %4600 = vmatpush1.bf16.msra.mxu0 0
    %4601 = vmatprep.subr.bf16.mxu0 0
    %4602 = vmatpush1.bf16.msra.mxu0 0
    %4603 = vmatprep.subr.bf16.mxu0 0
    %4604 = vmatpush1.bf16.msra.mxu0 0
    %4605 = vmatprep.subr.bf16.mxu0 0
    %4606 = vmatpush1.bf16.msra.mxu0 0
    %4607 = vmatprep.subr.bf16.mxu0 0
    %4608 = vmatpush1.bf16.msra.mxu0 0
    %4609 = vmatprep.subr.bf16.mxu0 0
    %4610 = vmatpush1.bf16.msra.mxu0 0
    %4611 = vmatprep.subr.bf16.mxu0 0
    %4612 = vmatpush1.bf16.msra.mxu0 0
    %4613 = vmatprep.subr.bf16.mxu0 0
    %4614 = vmatpush1.bf16.msra.mxu0 0
    %4615 = vmatprep.subr.bf16.mxu0 0
    %4616 = vmatpush1.bf16.msra.mxu0 0
    %4617 = vmatprep.subr.bf16.mxu0 0
    %4618 = vmatpush1.bf16.msra.mxu0 0
    %4619 = vmatprep.subr.bf16.mxu0 0
    %4620 = vmatpush1.bf16.msra.mxu0 0
    %4621 = vmatprep.subr.bf16.mxu0 0
    %4622 = vmatpush1.bf16.msra.mxu0 0
    %4623 = vmatprep.mubr.bf16.mxu0 0
    %4624 = vmatmul.mubr.bf16.gmra.mrb[0].mxu0 %v4589
    %v4625 = vpop.f32.mrb[0].mxu0
    %v4626 = vadd.f32 0.0, %v4625
    %v4627 = vpop.f32.mrb[0].mxu0
    %v4628 = vpop.f32.mrb[0].mxu0
    %v4629 = vadd.f32 0.0, %v4628
    %v4630 = vpop.f32.mrb[0].mxu0
    %4631 = vdwg.mxu0
    %v4632 = vadd.f32 %v4583, %v4626
    %v4633 = vadd.f32 %v4584, %v4629
    %v4634 = vadd.f32 %v4632, %v3744
    %v4635 = vadd.f32 %v4633, %v3744
    %v4636 = vmax.f32 %v4634, 0.0
    %v4637 = vmax.f32 %v4635, 0.0
    %s4638 = scalar_lea.vmem [#allocation3], 32
    %4639 = vst.msk [vmem:[%s4638] sm:$0xff] %vm565, %v4636
    %4640 = vst.msk [vmem:[%s4638 + $0x8] sm:$0x3] %vm3751, %v4637
    %v4641 = vld [vmem:[%s1910] sm:$0xff]
    %v4642 = vld [vmem:[%s1910 + $0x8] sm:$0x3]
    %v4643 = vpack.c.bf16 %v4642, %v4641
    %v4644 = vld [vmem:[%s1910 + $0x2] sm:$0xff]
    %v4645 = vld [vmem:[%s1910 + $0xa] sm:$0x3]
    %v4646 = vpack.c.bf16 %v4645, %v4644
    %v4648 = vsel %vm565, %v4646, 0
    %4650 = vmatprep.subr.bf16.mxu0 0
    %4651 = vmatpush1.bf16.msra.mxu0 %v3286
    %4652 = vmatprep.subr.bf16.mxu0 0
    %4653 = vmatpush1.bf16.msra.mxu0 0
    %4654 = vmatprep.subr.bf16.mxu0 0
    %4655 = vmatpush1.bf16.msra.mxu0 0
    %4656 = vmatprep.subr.bf16.mxu0 0
    %4657 = vmatpush1.bf16.msra.mxu0 0
    %4658 = vmatprep.subr.bf16.mxu0 0
    %4659 = vmatpush1.bf16.msra.mxu0 0
    %4660 = vmatprep.subr.bf16.mxu0 0
    %4661 = vmatpush1.bf16.msra.mxu0 0
    %4662 = vmatprep.subr.bf16.mxu0 0
    %4663 = vmatpush1.bf16.msra.mxu0 0
    %4664 = vmatprep.subr.bf16.mxu0 0
    %4665 = vmatpush1.bf16.msra.mxu0 0
    %4666 = vmatprep.subr.bf16.mxu0 0
    %4667 = vmatpush1.bf16.msra.mxu0 0
    %4668 = vmatprep.subr.bf16.mxu0 0
    %4669 = vmatpush1.bf16.msra.mxu0 0
    %4670 = vmatprep.subr.bf16.mxu0 0
    %4671 = vmatpush1.bf16.msra.mxu0 0
    %4672 = vmatprep.subr.bf16.mxu0 0
    %4673 = vmatpush1.bf16.msra.mxu0 0
    %4674 = vmatprep.subr.bf16.mxu0 0
    %4675 = vmatpush1.bf16.msra.mxu0 0
    %4676 = vmatprep.subr.bf16.mxu0 0
    %4677 = vmatpush1.bf16.msra.mxu0 0
    %4678 = vmatprep.subr.bf16.mxu0 0
    %4679 = vmatpush1.bf16.msra.mxu0 0
    %4680 = vmatprep.subr.bf16.mxu0 0
    %4681 = vmatpush1.bf16.msra.mxu0 0
    %4682 = vmatprep.mubr.bf16.mxu0 0
    %4683 = vmatmul.mubr.bf16.gmra.mrb[0].mxu0 %v4648
    %v4684 = vpop.f32.mrb[0].mxu0
    %v4685 = vadd.f32 0.0, %v4684
    %v4686 = vpop.f32.mrb[0].mxu0
    %v4687 = vpop.f32.mrb[0].mxu0
    %v4688 = vadd.f32 0.0, %v4687
    %v4689 = vpop.f32.mrb[0].mxu0
    %4690 = vdwg.mxu0
    %v4692 = vsel %vm565, %v4643, 0
    %4694 = vmatprep.subr.bf16.mxu0 0
    %4695 = vmatpush1.bf16.msra.mxu0 %v3333
    %4696 = vmatprep.subr.bf16.mxu0 0
    %4697 = vmatpush1.bf16.msra.mxu0 0
    %4698 = vmatprep.subr.bf16.mxu0 0
    %4699 = vmatpush1.bf16.msra.mxu0 0
    %4700 = vmatprep.subr.bf16.mxu0 0
    %4701 = vmatpush1.bf16.msra.mxu0 0
    %4702 = vmatprep.subr.bf16.mxu0 0
    %4703 = vmatpush1.bf16.msra.mxu0 0
    %4704 = vmatprep.subr.bf16.mxu0 0
    %4705 = vmatpush1.bf16.msra.mxu0 0
    %4706 = vmatprep.subr.bf16.mxu0 0
    %4707 = vmatpush1.bf16.msra.mxu0 0
    %4708 = vmatprep.subr.bf16.mxu0 0
    %4709 = vmatpush1.bf16.msra.mxu0 0
    %4710 = vmatprep.subr.bf16.mxu0 0
    %4711 = vmatpush1.bf16.msra.mxu0 0
    %4712 = vmatprep.subr.bf16.mxu0 0
    %4713 = vmatpush1.bf16.msra.mxu0 0
    %4714 = vmatprep.subr.bf16.mxu0 0
    %4715 = vmatpush1.bf16.msra.mxu0 0
    %4716 = vmatprep.subr.bf16.mxu0 0
    %4717 = vmatpush1.bf16.msra.mxu0 0
    %4718 = vmatprep.subr.bf16.mxu0 0
    %4719 = vmatpush1.bf16.msra.mxu0 0
    %4720 = vmatprep.subr.bf16.mxu0 0
    %4721 = vmatpush1.bf16.msra.mxu0 0
    %4722 = vmatprep.subr.bf16.mxu0 0
    %4723 = vmatpush1.bf16.msra.mxu0 0
    %4724 = vmatprep.subr.bf16.mxu0 0
    %4725 = vmatpush1.bf16.msra.mxu0 0
    %4726 = vmatprep.mubr.bf16.mxu0 0
    %4727 = vmatmul.mubr.bf16.gmra.mrb[0].mxu0 %v4692
    %v4728 = vpop.f32.mrb[0].mxu0
    %v4729 = vadd.f32 %v4685, %v4728
    %v4730 = vpop.f32.mrb[0].mxu0
    %v4731 = vpop.f32.mrb[0].mxu0
    %v4732 = vadd.f32 %v4688, %v4731
    %v4733 = vpop.f32.mrb[0].mxu0
    %4734 = vdwg.mxu0
    %v4735 = vld [vmem:[%s1910 + $0x4] sm:$0xff]
    %v4736 = vld [vmem:[%s1910 + $0xc] sm:$0x3]
    %v4737 = vpack.c.bf16 %v4736, %v4735
    %v4739 = vsel %vm565, %v4737, 0
    %4741 = vmatprep.subr.bf16.mxu0 0
    %4742 = vmatpush1.bf16.msra.mxu0 %v3383
    %4743 = vmatprep.subr.bf16.mxu0 0
    %4744 = vmatpush1.bf16.msra.mxu0 0
    %4745 = vmatprep.subr.bf16.mxu0 0
    %4746 = vmatpush1.bf16.msra.mxu0 0
    %4747 = vmatprep.subr.bf16.mxu0 0
    %4748 = vmatpush1.bf16.msra.mxu0 0
    %4749 = vmatprep.subr.bf16.mxu0 0
    %4750 = vmatpush1.bf16.msra.mxu0 0
    %4751 = vmatprep.subr.bf16.mxu0 0
    %4752 = vmatpush1.bf16.msra.mxu0 0
    %4753 = vmatprep.subr.bf16.mxu0 0
    %4754 = vmatpush1.bf16.msra.mxu0 0
    %4755 = vmatprep.subr.bf16.mxu0 0
    %4756 = vmatpush1.bf16.msra.mxu0 0
    %4757 = vmatprep.subr.bf16.mxu0 0
    %4758 = vmatpush1.bf16.msra.mxu0 0
    %4759 = vmatprep.subr.bf16.mxu0 0
    %4760 = vmatpush1.bf16.msra.mxu0 0
    %4761 = vmatprep.subr.bf16.mxu0 0
    %4762 = vmatpush1.bf16.msra.mxu0 0
    %4763 = vmatprep.subr.bf16.mxu0 0
    %4764 = vmatpush1.bf16.msra.mxu0 0
    %4765 = vmatprep.subr.bf16.mxu0 0
    %4766 = vmatpush1.bf16.msra.mxu0 0
    %4767 = vmatprep.subr.bf16.mxu0 0
    %4768 = vmatpush1.bf16.msra.mxu0 0
    %4769 = vmatprep.subr.bf16.mxu0 0
    %4770 = vmatpush1.bf16.msra.mxu0 0
    %4771 = vmatprep.subr.bf16.mxu0 0
    %4772 = vmatpush1.bf16.msra.mxu0 0
    %4773 = vmatprep.mubr.bf16.mxu0 0
    %4774 = vmatmul.mubr.bf16.gmra.mrb[0].mxu0 %v4739
    %v4775 = vpop.f32.mrb[0].mxu0
    %v4776 = vadd.f32 0.0, %v4775
    %v4777 = vpop.f32.mrb[0].mxu0
    %v4778 = vpop.f32.mrb[0].mxu0
    %v4779 = vadd.f32 0.0, %v4778
    %v4780 = vpop.f32.mrb[0].mxu0
    %4781 = vdwg.mxu0
    %v4782 = vadd.f32 %v4729, %v4776
    %v4783 = vadd.f32 %v4732, %v4779
    %v4784 = vld [vmem:[%s2358] sm:$0xff]
    %v4785 = vld [vmem:[%s2358 + $0x8] sm:$0x3]
    %v4786 = vpack.c.bf16 %v4785, %v4784
    %v4788 = vsel %vm565, %v4786, 0
    %4790 = vmatprep.subr.bf16.mxu0 0
    %4791 = vmatpush1.bf16.msra.mxu0 %v3435
    %4792 = vmatprep.subr.bf16.mxu0 0
    %4793 = vmatpush1.bf16.msra.mxu0 0
    %4794 = vmatprep.subr.bf16.mxu0 0
    %4795 = vmatpush1.bf16.msra.mxu0 0
    %4796 = vmatprep.subr.bf16.mxu0 0
    %4797 = vmatpush1.bf16.msra.mxu0 0
    %4798 = vmatprep.subr.bf16.mxu0 0
    %4799 = vmatpush1.bf16.msra.mxu0 0
    %4800 = vmatprep.subr.bf16.mxu0 0
    %4801 = vmatpush1.bf16.msra.mxu0 0
    %4802 = vmatprep.subr.bf16.mxu0 0
    %4803 = vmatpush1.bf16.msra.mxu0 0
    %4804 = vmatprep.subr.bf16.mxu0 0
    %4805 = vmatpush1.bf16.msra.mxu0 0
    %4806 = vmatprep.subr.bf16.mxu0 0
    %4807 = vmatpush1.bf16.msra.mxu0 0
    %4808 = vmatprep.subr.bf16.mxu0 0
    %4809 = vmatpush1.bf16.msra.mxu0 0
    %4810 = vmatprep.subr.bf16.mxu0 0
    %4811 = vmatpush1.bf16.msra.mxu0 0
    %4812 = vmatprep.subr.bf16.mxu0 0
    %4813 = vmatpush1.bf16.msra.mxu0 0
    %4814 = vmatprep.subr.bf16.mxu0 0
    %4815 = vmatpush1.bf16.msra.mxu0 0
    %4816 = vmatprep.subr.bf16.mxu0 0
    %4817 = vmatpush1.bf16.msra.mxu0 0
    %4818 = vmatprep.subr.bf16.mxu0 0
    %4819 = vmatpush1.bf16.msra.mxu0 0
    %4820 = vmatprep.subr.bf16.mxu0 0
    %4821 = vmatpush1.bf16.msra.mxu0 0
    %4822 = vmatprep.mubr.bf16.mxu0 0
    %4823 = vmatmul.mubr.bf16.gmra.mrb[0].mxu0 %v4788
    %v4824 = vpop.f32.mrb[0].mxu0
    %v4825 = vadd.f32 0.0, %v4824
    %v4826 = vpop.f32.mrb[0].mxu0
    %v4827 = vpop.f32.mrb[0].mxu0
    %v4828 = vadd.f32 0.0, %v4827
    %v4829 = vpop.f32.mrb[0].mxu0
    %4830 = vdwg.mxu0
    %v4831 = vadd.f32 %v4782, %v4825
    %v4832 = vadd.f32 %v4783, %v4828
    %v4833 = vld [vmem:[%s2358 + $0x2] sm:$0xff]
    %v4834 = vld [vmem:[%s2358 + $0xa] sm:$0x3]
    %v4835 = vpack.c.bf16 %v4834, %v4833
    %v4837 = vsel %vm565, %v4835, 0
    %4839 = vmatprep.subr.bf16.mxu0 0
    %4840 = vmatpush1.bf16.msra.mxu0 %v3487
    %4841 = vmatprep.subr.bf16.mxu0 0
    %4842 = vmatpush1.bf16.msra.mxu0 0
    %4843 = vmatprep.subr.bf16.mxu0 0
    %4844 = vmatpush1.bf16.msra.mxu0 0
    %4845 = vmatprep.subr.bf16.mxu0 0
    %4846 = vmatpush1.bf16.msra.mxu0 0
    %4847 = vmatprep.subr.bf16.mxu0 0
    %4848 = vmatpush1.bf16.msra.mxu0 0
    %4849 = vmatprep.subr.bf16.mxu0 0
    %4850 = vmatpush1.bf16.msra.mxu0 0
    %4851 = vmatprep.subr.bf16.mxu0 0
    %4852 = vmatpush1.bf16.msra.mxu0 0
    %4853 = vmatprep.subr.bf16.mxu0 0
    %4854 = vmatpush1.bf16.msra.mxu0 0
    %4855 = vmatprep.subr.bf16.mxu0 0
    %4856 = vmatpush1.bf16.msra.mxu0 0
    %4857 = vmatprep.subr.bf16.mxu0 0
    %4858 = vmatpush1.bf16.msra.mxu0 0
    %4859 = vmatprep.subr.bf16.mxu0 0
    %4860 = vmatpush1.bf16.msra.mxu0 0
    %4861 = vmatprep.subr.bf16.mxu0 0
    %4862 = vmatpush1.bf16.msra.mxu0 0
    %4863 = vmatprep.subr.bf16.mxu0 0
    %4864 = vmatpush1.bf16.msra.mxu0 0
    %4865 = vmatprep.subr.bf16.mxu0 0
    %4866 = vmatpush1.bf16.msra.mxu0 0
    %4867 = vmatprep.subr.bf16.mxu0 0
    %4868 = vmatpush1.bf16.msra.mxu0 0
    %4869 = vmatprep.subr.bf16.mxu0 0
    %4870 = vmatpush1.bf16.msra.mxu0 0
    %4871 = vmatprep.mubr.bf16.mxu0 0
    %4872 = vmatmul.mubr.bf16.gmra.mrb[0].mxu0 %v4837
    %v4873 = vpop.f32.mrb[0].mxu0
    %v4874 = vadd.f32 0.0, %v4873
    %v4875 = vpop.f32.mrb[0].mxu0
    %v4876 = vpop.f32.mrb[0].mxu0
    %v4877 = vadd.f32 0.0, %v4876
    %v4878 = vpop.f32.mrb[0].mxu0
    %4879 = vdwg.mxu0
    %v4880 = vadd.f32 %v4831, %v4874
    %v4881 = vadd.f32 %v4832, %v4877
    %v4882 = vld [vmem:[%s2358 + $0x4] sm:$0xff]
    %v4883 = vld [vmem:[%s2358 + $0xc] sm:$0x3]
    %v4884 = vpack.c.bf16 %v4883, %v4882
    %v4886 = vsel %vm565, %v4884, 0
    %4888 = vmatprep.subr.bf16.mxu0 0
    %4889 = vmatpush1.bf16.msra.mxu0 %v3539
    %4890 = vmatprep.subr.bf16.mxu0 0
    %4891 = vmatpush1.bf16.msra.mxu0 0
    %4892 = vmatprep.subr.bf16.mxu0 0
    %4893 = vmatpush1.bf16.msra.mxu0 0
    %4894 = vmatprep.subr.bf16.mxu0 0
    %4895 = vmatpush1.bf16.msra.mxu0 0
    %4896 = vmatprep.subr.bf16.mxu0 0
    %4897 = vmatpush1.bf16.msra.mxu0 0
    %4898 = vmatprep.subr.bf16.mxu0 0
    %4899 = vmatpush1.bf16.msra.mxu0 0
    %4900 = vmatprep.subr.bf16.mxu0 0
    %4901 = vmatpush1.bf16.msra.mxu0 0
    %4902 = vmatprep.subr.bf16.mxu0 0
    %4903 = vmatpush1.bf16.msra.mxu0 0
    %4904 = vmatprep.subr.bf16.mxu0 0
    %4905 = vmatpush1.bf16.msra.mxu0 0
    %4906 = vmatprep.subr.bf16.mxu0 0
    %4907 = vmatpush1.bf16.msra.mxu0 0
    %4908 = vmatprep.subr.bf16.mxu0 0
    %4909 = vmatpush1.bf16.msra.mxu0 0
    %4910 = vmatprep.subr.bf16.mxu0 0
    %4911 = vmatpush1.bf16.msra.mxu0 0
    %4912 = vmatprep.subr.bf16.mxu0 0
    %4913 = vmatpush1.bf16.msra.mxu0 0
    %4914 = vmatprep.subr.bf16.mxu0 0
    %4915 = vmatpush1.bf16.msra.mxu0 0
    %4916 = vmatprep.subr.bf16.mxu0 0
    %4917 = vmatpush1.bf16.msra.mxu0 0
    %4918 = vmatprep.subr.bf16.mxu0 0
    %4919 = vmatpush1.bf16.msra.mxu0 0
    %4920 = vmatprep.mubr.bf16.mxu0 0
    %4921 = vmatmul.mubr.bf16.gmra.mrb[0].mxu0 %v4886
    %v4922 = vpop.f32.mrb[0].mxu0
    %v4923 = vadd.f32 0.0, %v4922
    %v4924 = vpop.f32.mrb[0].mxu0
    %v4925 = vpop.f32.mrb[0].mxu0
    %v4926 = vadd.f32 0.0, %v4925
    %v4927 = vpop.f32.mrb[0].mxu0
    %4928 = vdwg.mxu0
    %v4929 = vadd.f32 %v4880, %v4923
    %v4930 = vadd.f32 %v4881, %v4926
    %v4931 = vld [vmem:[%s2806] sm:$0xff]
    %v4932 = vld [vmem:[%s2806 + $0x8] sm:$0x3]
    %v4933 = vpack.c.bf16 %v4932, %v4931
    %v4935 = vsel %vm565, %v4933, 0
    %4937 = vmatprep.subr.bf16.mxu0 0
    %4938 = vmatpush1.bf16.msra.mxu0 %v3591
    %4939 = vmatprep.subr.bf16.mxu0 0
    %4940 = vmatpush1.bf16.msra.mxu0 0
    %4941 = vmatprep.subr.bf16.mxu0 0
    %4942 = vmatpush1.bf16.msra.mxu0 0
    %4943 = vmatprep.subr.bf16.mxu0 0
    %4944 = vmatpush1.bf16.msra.mxu0 0
    %4945 = vmatprep.subr.bf16.mxu0 0
    %4946 = vmatpush1.bf16.msra.mxu0 0
    %4947 = vmatprep.subr.bf16.mxu0 0
    %4948 = vmatpush1.bf16.msra.mxu0 0
    %4949 = vmatprep.subr.bf16.mxu0 0
    %4950 = vmatpush1.bf16.msra.mxu0 0
    %4951 = vmatprep.subr.bf16.mxu0 0
    %4952 = vmatpush1.bf16.msra.mxu0 0
    %4953 = vmatprep.subr.bf16.mxu0 0
    %4954 = vmatpush1.bf16.msra.mxu0 0
    %4955 = vmatprep.subr.bf16.mxu0 0
    %4956 = vmatpush1.bf16.msra.mxu0 0
    %4957 = vmatprep.subr.bf16.mxu0 0
    %4958 = vmatpush1.bf16.msra.mxu0 0
    %4959 = vmatprep.subr.bf16.mxu0 0
    %4960 = vmatpush1.bf16.msra.mxu0 0
    %4961 = vmatprep.subr.bf16.mxu0 0
    %4962 = vmatpush1.bf16.msra.mxu0 0
    %4963 = vmatprep.subr.bf16.mxu0 0
    %4964 = vmatpush1.bf16.msra.mxu0 0
    %4965 = vmatprep.subr.bf16.mxu0 0
    %4966 = vmatpush1.bf16.msra.mxu0 0
    %4967 = vmatprep.subr.bf16.mxu0 0
    %4968 = vmatpush1.bf16.msra.mxu0 0
    %4969 = vmatprep.mubr.bf16.mxu0 0
    %4970 = vmatmul.mubr.bf16.gmra.mrb[0].mxu0 %v4935
    %v4971 = vpop.f32.mrb[0].mxu0
    %v4972 = vadd.f32 0.0, %v4971
    %v4973 = vpop.f32.mrb[0].mxu0
    %v4974 = vpop.f32.mrb[0].mxu0
    %v4975 = vadd.f32 0.0, %v4974
    %v4976 = vpop.f32.mrb[0].mxu0
    %4977 = vdwg.mxu0
    %v4978 = vadd.f32 %v4929, %v4972
    %v4979 = vadd.f32 %v4930, %v4975
    %v4980 = vld [vmem:[%s2806 + $0x2] sm:$0xff]
    %v4981 = vld [vmem:[%s2806 + $0xa] sm:$0x3]
    %v4982 = vpack.c.bf16 %v4981, %v4980
    %v4984 = vsel %vm565, %v4982, 0
    %4986 = vmatprep.subr.bf16.mxu0 0
    %4987 = vmatpush1.bf16.msra.mxu0 %v3643
    %4988 = vmatprep.subr.bf16.mxu0 0
    %4989 = vmatpush1.bf16.msra.mxu0 0
    %4990 = vmatprep.subr.bf16.mxu0 0
    %4991 = vmatpush1.bf16.msra.mxu0 0
    %4992 = vmatprep.subr.bf16.mxu0 0
    %4993 = vmatpush1.bf16.msra.mxu0 0
    %4994 = vmatprep.subr.bf16.mxu0 0
    %4995 = vmatpush1.bf16.msra.mxu0 0
    %4996 = vmatprep.subr.bf16.mxu0 0
    %4997 = vmatpush1.bf16.msra.mxu0 0
    %4998 = vmatprep.subr.bf16.mxu0 0
    %4999 = vmatpush1.bf16.msra.mxu0 0
    %5000 = vmatprep.subr.bf16.mxu0 0
    %5001 = vmatpush1.bf16.msra.mxu0 0
    %5002 = vmatprep.subr.bf16.mxu0 0
    %5003 = vmatpush1.bf16.msra.mxu0 0
    %5004 = vmatprep.subr.bf16.mxu0 0
    %5005 = vmatpush1.bf16.msra.mxu0 0
    %5006 = vmatprep.subr.bf16.mxu0 0
    %5007 = vmatpush1.bf16.msra.mxu0 0
    %5008 = vmatprep.subr.bf16.mxu0 0
    %5009 = vmatpush1.bf16.msra.mxu0 0
    %5010 = vmatprep.subr.bf16.mxu0 0
    %5011 = vmatpush1.bf16.msra.mxu0 0
    %5012 = vmatprep.subr.bf16.mxu0 0
    %5013 = vmatpush1.bf16.msra.mxu0 0
    %5014 = vmatprep.subr.bf16.mxu0 0
    %5015 = vmatpush1.bf16.msra.mxu0 0
    %5016 = vmatprep.subr.bf16.mxu0 0
    %5017 = vmatpush1.bf16.msra.mxu0 0
    %5018 = vmatprep.mubr.bf16.mxu0 0
    %5019 = vmatmul.mubr.bf16.gmra.mrb[0].mxu0 %v4984
    %v5020 = vpop.f32.mrb[0].mxu0
    %v5021 = vadd.f32 0.0, %v5020
    %v5022 = vpop.f32.mrb[0].mxu0
    %v5023 = vpop.f32.mrb[0].mxu0
    %v5024 = vadd.f32 0.0, %v5023
    %v5025 = vpop.f32.mrb[0].mxu0
    %5026 = vdwg.mxu0
    %v5027 = vadd.f32 %v4978, %v5021
    %v5028 = vadd.f32 %v4979, %v5024
    %v5029 = vld [vmem:[%s2806 + $0x4] sm:$0xff]
    %v5030 = vld [vmem:[%s2806 + $0xc] sm:$0x3]
    %v5031 = vpack.c.bf16 %v5030, %v5029
    %v5033 = vsel %vm565, %v5031, 0
    %5035 = vmatprep.subr.bf16.mxu0 0
    %5036 = vmatpush1.bf16.msra.mxu0 %v3695
    %5037 = vmatprep.subr.bf16.mxu0 0
    %5038 = vmatpush1.bf16.msra.mxu0 0
    %5039 = vmatprep.subr.bf16.mxu0 0
    %5040 = vmatpush1.bf16.msra.mxu0 0
    %5041 = vmatprep.subr.bf16.mxu0 0
    %5042 = vmatpush1.bf16.msra.mxu0 0
    %5043 = vmatprep.subr.bf16.mxu0 0
    %5044 = vmatpush1.bf16.msra.mxu0 0
    %5045 = vmatprep.subr.bf16.mxu0 0
    %5046 = vmatpush1.bf16.msra.mxu0 0
    %5047 = vmatprep.subr.bf16.mxu0 0
    %5048 = vmatpush1.bf16.msra.mxu0 0
    %5049 = vmatprep.subr.bf16.mxu0 0
    %5050 = vmatpush1.bf16.msra.mxu0 0
    %5051 = vmatprep.subr.bf16.mxu0 0
    %5052 = vmatpush1.bf16.msra.mxu0 0
    %5053 = vmatprep.subr.bf16.mxu0 0
    %5054 = vmatpush1.bf16.msra.mxu0 0
    %5055 = vmatprep.subr.bf16.mxu0 0
    %5056 = vmatpush1.bf16.msra.mxu0 0
    %5057 = vmatprep.subr.bf16.mxu0 0
    %5058 = vmatpush1.bf16.msra.mxu0 0
    %5059 = vmatprep.subr.bf16.mxu0 0
    %5060 = vmatpush1.bf16.msra.mxu0 0
    %5061 = vmatprep.subr.bf16.mxu0 0
    %5062 = vmatpush1.bf16.msra.mxu0 0
    %5063 = vmatprep.subr.bf16.mxu0 0
    %5064 = vmatpush1.bf16.msra.mxu0 0
    %5065 = vmatprep.subr.bf16.mxu0 0
    %5066 = vmatpush1.bf16.msra.mxu0 0
    %5067 = vmatprep.mubr.bf16.mxu0 0
    %5068 = vmatmul.mubr.bf16.gmra.mrb[0].mxu0 %v5033
    %v5069 = vpop.f32.mrb[0].mxu0
    %v5070 = vadd.f32 0.0, %v5069
    %v5071 = vpop.f32.mrb[0].mxu0
    %v5072 = vpop.f32.mrb[0].mxu0
    %v5073 = vadd.f32 0.0, %v5072
    %v5074 = vpop.f32.mrb[0].mxu0
    %5075 = vdwg.mxu0
    %v5076 = vadd.f32 %v5027, %v5070
    %v5077 = vadd.f32 %v5028, %v5073
    %v5078 = vadd.f32 %v5076, %v3744
    %v5079 = vadd.f32 %v5077, %v3744
    %v5080 = vmax.f32 %v5078, 0.0
    %v5081 = vmax.f32 %v5079, 0.0
    %s5082 = scalar_lea.vmem [#allocation3], 48
    %5083 = vst.msk [vmem:[%s5082] sm:$0xff] %vm565, %v5080
    %5084 = vst.msk [vmem:[%s5082 + $0x8] sm:$0x3] %vm3751, %v5081
    %v5085 = vld [vmem:[%s2358] sm:$0xff]
    %v5086 = vld [vmem:[%s2358 + $0x8] sm:$0x3]
    %v5087 = vpack.c.bf16 %v5086, %v5085
    %v5088 = vld [vmem:[%s2358 + $0x2] sm:$0xff]
    %v5089 = vld [vmem:[%s2358 + $0xa] sm:$0x3]
    %v5090 = vpack.c.bf16 %v5089, %v5088
    %v5092 = vsel %vm565, %v5090, 0
    %5094 = vmatprep.subr.bf16.mxu0 0
    %5095 = vmatpush1.bf16.msra.mxu0 %v3286
    %5096 = vmatprep.subr.bf16.mxu0 0
    %5097 = vmatpush1.bf16.msra.mxu0 0
    %5098 = vmatprep.subr.bf16.mxu0 0
    %5099 = vmatpush1.bf16.msra.mxu0 0
    %5100 = vmatprep.subr.bf16.mxu0 0
    %5101 = vmatpush1.bf16.msra.mxu0 0
    %5102 = vmatprep.subr.bf16.mxu0 0
    %5103 = vmatpush1.bf16.msra.mxu0 0
    %5104 = vmatprep.subr.bf16.mxu0 0
    %5105 = vmatpush1.bf16.msra.mxu0 0
    %5106 = vmatprep.subr.bf16.mxu0 0
    %5107 = vmatpush1.bf16.msra.mxu0 0
    %5108 = vmatprep.subr.bf16.mxu0 0
    %5109 = vmatpush1.bf16.msra.mxu0 0
    %5110 = vmatprep.subr.bf16.mxu0 0
    %5111 = vmatpush1.bf16.msra.mxu0 0
    %5112 = vmatprep.subr.bf16.mxu0 0
    %5113 = vmatpush1.bf16.msra.mxu0 0
    %5114 = vmatprep.subr.bf16.mxu0 0
    %5115 = vmatpush1.bf16.msra.mxu0 0
    %5116 = vmatprep.subr.bf16.mxu0 0
    %5117 = vmatpush1.bf16.msra.mxu0 0
    %5118 = vmatprep.subr.bf16.mxu0 0
    %5119 = vmatpush1.bf16.msra.mxu0 0
    %5120 = vmatprep.subr.bf16.mxu0 0
    %5121 = vmatpush1.bf16.msra.mxu0 0
    %5122 = vmatprep.subr.bf16.mxu0 0
    %5123 = vmatpush1.bf16.msra.mxu0 0
    %5124 = vmatprep.subr.bf16.mxu0 0
    %5125 = vmatpush1.bf16.msra.mxu0 0
    %5126 = vmatprep.mubr.bf16.mxu0 0
    %5127 = vmatmul.mubr.bf16.gmra.mrb[0].mxu0 %v5092
    %v5128 = vpop.f32.mrb[0].mxu0
    %v5129 = vadd.f32 0.0, %v5128
    %v5130 = vpop.f32.mrb[0].mxu0
    %v5131 = vpop.f32.mrb[0].mxu0
    %v5132 = vadd.f32 0.0, %v5131
    %v5133 = vpop.f32.mrb[0].mxu0
    %5134 = vdwg.mxu0
    %v5136 = vsel %vm565, %v5087, 0
    %5138 = vmatprep.subr.bf16.mxu0 0
    %5139 = vmatpush1.bf16.msra.mxu0 %v3333
    %5140 = vmatprep.subr.bf16.mxu0 0
    %5141 = vmatpush1.bf16.msra.mxu0 0
    %5142 = vmatprep.subr.bf16.mxu0 0
    %5143 = vmatpush1.bf16.msra.mxu0 0
    %5144 = vmatprep.subr.bf16.mxu0 0
    %5145 = vmatpush1.bf16.msra.mxu0 0
    %5146 = vmatprep.subr.bf16.mxu0 0
    %5147 = vmatpush1.bf16.msra.mxu0 0
    %5148 = vmatprep.subr.bf16.mxu0 0
    %5149 = vmatpush1.bf16.msra.mxu0 0
    %5150 = vmatprep.subr.bf16.mxu0 0
    %5151 = vmatpush1.bf16.msra.mxu0 0
    %5152 = vmatprep.subr.bf16.mxu0 0
    %5153 = vmatpush1.bf16.msra.mxu0 0
    %5154 = vmatprep.subr.bf16.mxu0 0
    %5155 = vmatpush1.bf16.msra.mxu0 0
    %5156 = vmatprep.subr.bf16.mxu0 0
    %5157 = vmatpush1.bf16.msra.mxu0 0
    %5158 = vmatprep.subr.bf16.mxu0 0
    %5159 = vmatpush1.bf16.msra.mxu0 0
    %5160 = vmatprep.subr.bf16.mxu0 0
    %5161 = vmatpush1.bf16.msra.mxu0 0
    %5162 = vmatprep.subr.bf16.mxu0 0
    %5163 = vmatpush1.bf16.msra.mxu0 0
    %5164 = vmatprep.subr.bf16.mxu0 0
    %5165 = vmatpush1.bf16.msra.mxu0 0
    %5166 = vmatprep.subr.bf16.mxu0 0
    %5167 = vmatpush1.bf16.msra.mxu0 0
    %5168 = vmatprep.subr.bf16.mxu0 0
    %5169 = vmatpush1.bf16.msra.mxu0 0
    %5170 = vmatprep.mubr.bf16.mxu0 0
    %5171 = vmatmul.mubr.bf16.gmra.mrb[0].mxu0 %v5136
    %v5172 = vpop.f32.mrb[0].mxu0
    %v5173 = vadd.f32 %v5129, %v5172
    %v5174 = vpop.f32.mrb[0].mxu0
    %v5175 = vpop.f32.mrb[0].mxu0
    %v5176 = vadd.f32 %v5132, %v5175
    %v5177 = vpop.f32.mrb[0].mxu0
    %5178 = vdwg.mxu0
    %v5179 = vld [vmem:[%s2358 + $0x4] sm:$0xff]
    %v5180 = vld [vmem:[%s2358 + $0xc] sm:$0x3]
    %v5181 = vpack.c.bf16 %v5180, %v5179
    %v5183 = vsel %vm565, %v5181, 0
    %5185 = vmatprep.subr.bf16.mxu0 0
    %5186 = vmatpush1.bf16.msra.mxu0 %v3383
    %5187 = vmatprep.subr.bf16.mxu0 0
    %5188 = vmatpush1.bf16.msra.mxu0 0
    %5189 = vmatprep.subr.bf16.mxu0 0
    %5190 = vmatpush1.bf16.msra.mxu0 0
    %5191 = vmatprep.subr.bf16.mxu0 0
    %5192 = vmatpush1.bf16.msra.mxu0 0
    %5193 = vmatprep.subr.bf16.mxu0 0
    %5194 = vmatpush1.bf16.msra.mxu0 0
    %5195 = vmatprep.subr.bf16.mxu0 0
    %5196 = vmatpush1.bf16.msra.mxu0 0
    %5197 = vmatprep.subr.bf16.mxu0 0
    %5198 = vmatpush1.bf16.msra.mxu0 0
    %5199 = vmatprep.subr.bf16.mxu0 0
    %5200 = vmatpush1.bf16.msra.mxu0 0
    %5201 = vmatprep.subr.bf16.mxu0 0
    %5202 = vmatpush1.bf16.msra.mxu0 0
    %5203 = vmatprep.subr.bf16.mxu0 0
    %5204 = vmatpush1.bf16.msra.mxu0 0
    %5205 = vmatprep.subr.bf16.mxu0 0
    %5206 = vmatpush1.bf16.msra.mxu0 0
    %5207 = vmatprep.subr.bf16.mxu0 0
    %5208 = vmatpush1.bf16.msra.mxu0 0
    %5209 = vmatprep.subr.bf16.mxu0 0
    %5210 = vmatpush1.bf16.msra.mxu0 0
    %5211 = vmatprep.subr.bf16.mxu0 0
    %5212 = vmatpush1.bf16.msra.mxu0 0
    %5213 = vmatprep.subr.bf16.mxu0 0
    %5214 = vmatpush1.bf16.msra.mxu0 0
    %5215 = vmatprep.subr.bf16.mxu0 0
    %5216 = vmatpush1.bf16.msra.mxu0 0
    %5217 = vmatprep.mubr.bf16.mxu0 0
    %5218 = vmatmul.mubr.bf16.gmra.mrb[0].mxu0 %v5183
    %v5219 = vpop.f32.mrb[0].mxu0
    %v5220 = vadd.f32 0.0, %v5219
    %v5221 = vpop.f32.mrb[0].mxu0
    %v5222 = vpop.f32.mrb[0].mxu0
    %v5223 = vadd.f32 0.0, %v5222
    %v5224 = vpop.f32.mrb[0].mxu0
    %5225 = vdwg.mxu0
    %v5226 = vadd.f32 %v5173, %v5220
    %v5227 = vadd.f32 %v5176, %v5223
    %v5228 = vld [vmem:[%s2806] sm:$0xff]
    %v5229 = vld [vmem:[%s2806 + $0x8] sm:$0x3]
    %v5230 = vpack.c.bf16 %v5229, %v5228
    %v5232 = vsel %vm565, %v5230, 0
    %5234 = vmatprep.subr.bf16.mxu0 0
    %5235 = vmatpush1.bf16.msra.mxu0 %v3435
    %5236 = vmatprep.subr.bf16.mxu0 0
    %5237 = vmatpush1.bf16.msra.mxu0 0
    %5238 = vmatprep.subr.bf16.mxu0 0
    %5239 = vmatpush1.bf16.msra.mxu0 0
    %5240 = vmatprep.subr.bf16.mxu0 0
    %5241 = vmatpush1.bf16.msra.mxu0 0
    %5242 = vmatprep.subr.bf16.mxu0 0
    %5243 = vmatpush1.bf16.msra.mxu0 0
    %5244 = vmatprep.subr.bf16.mxu0 0
    %5245 = vmatpush1.bf16.msra.mxu0 0
    %5246 = vmatprep.subr.bf16.mxu0 0
    %5247 = vmatpush1.bf16.msra.mxu0 0
    %5248 = vmatprep.subr.bf16.mxu0 0
    %5249 = vmatpush1.bf16.msra.mxu0 0
    %5250 = vmatprep.subr.bf16.mxu0 0
    %5251 = vmatpush1.bf16.msra.mxu0 0
    %5252 = vmatprep.subr.bf16.mxu0 0
    %5253 = vmatpush1.bf16.msra.mxu0 0
    %5254 = vmatprep.subr.bf16.mxu0 0
    %5255 = vmatpush1.bf16.msra.mxu0 0
    %5256 = vmatprep.subr.bf16.mxu0 0
    %5257 = vmatpush1.bf16.msra.mxu0 0
    %5258 = vmatprep.subr.bf16.mxu0 0
    %5259 = vmatpush1.bf16.msra.mxu0 0
    %5260 = vmatprep.subr.bf16.mxu0 0
    %5261 = vmatpush1.bf16.msra.mxu0 0
    %5262 = vmatprep.subr.bf16.mxu0 0
    %5263 = vmatpush1.bf16.msra.mxu0 0
    %5264 = vmatprep.subr.bf16.mxu0 0
    %5265 = vmatpush1.bf16.msra.mxu0 0
    %5266 = vmatprep.mubr.bf16.mxu0 0
    %5267 = vmatmul.mubr.bf16.gmra.mrb[0].mxu0 %v5232
    %v5268 = vpop.f32.mrb[0].mxu0
    %v5269 = vadd.f32 0.0, %v5268
    %v5270 = vpop.f32.mrb[0].mxu0
    %v5271 = vpop.f32.mrb[0].mxu0
    %v5272 = vadd.f32 0.0, %v5271
    %v5273 = vpop.f32.mrb[0].mxu0
    %5274 = vdwg.mxu0
    %v5275 = vadd.f32 %v5226, %v5269
    %v5276 = vadd.f32 %v5227, %v5272
    %v5277 = vld [vmem:[%s2806 + $0x2] sm:$0xff]
    %v5278 = vld [vmem:[%s2806 + $0xa] sm:$0x3]
    %v5279 = vpack.c.bf16 %v5278, %v5277
    %v5281 = vsel %vm565, %v5279, 0
    %5283 = vmatprep.subr.bf16.mxu0 0
    %5284 = vmatpush1.bf16.msra.mxu0 %v3487
    %5285 = vmatprep.subr.bf16.mxu0 0
    %5286 = vmatpush1.bf16.msra.mxu0 0
    %5287 = vmatprep.subr.bf16.mxu0 0
    %5288 = vmatpush1.bf16.msra.mxu0 0
    %5289 = vmatprep.subr.bf16.mxu0 0
    %5290 = vmatpush1.bf16.msra.mxu0 0
    %5291 = vmatprep.subr.bf16.mxu0 0
    %5292 = vmatpush1.bf16.msra.mxu0 0
    %5293 = vmatprep.subr.bf16.mxu0 0
    %5294 = vmatpush1.bf16.msra.mxu0 0
    %5295 = vmatprep.subr.bf16.mxu0 0
    %5296 = vmatpush1.bf16.msra.mxu0 0
    %5297 = vmatprep.subr.bf16.mxu0 0
    %5298 = vmatpush1.bf16.msra.mxu0 0
    %5299 = vmatprep.subr.bf16.mxu0 0
    %5300 = vmatpush1.bf16.msra.mxu0 0
    %5301 = vmatprep.subr.bf16.mxu0 0
    %5302 = vmatpush1.bf16.msra.mxu0 0
    %5303 = vmatprep.subr.bf16.mxu0 0
    %5304 = vmatpush1.bf16.msra.mxu0 0
    %5305 = vmatprep.subr.bf16.mxu0 0
    %5306 = vmatpush1.bf16.msra.mxu0 0
    %5307 = vmatprep.subr.bf16.mxu0 0
    %5308 = vmatpush1.bf16.msra.mxu0 0
    %5309 = vmatprep.subr.bf16.mxu0 0
    %5310 = vmatpush1.bf16.msra.mxu0 0
    %5311 = vmatprep.subr.bf16.mxu0 0
    %5312 = vmatpush1.bf16.msra.mxu0 0
    %5313 = vmatprep.subr.bf16.mxu0 0
    %5314 = vmatpush1.bf16.msra.mxu0 0
    %5315 = vmatprep.mubr.bf16.mxu0 0
    %5316 = vmatmul.mubr.bf16.gmra.mrb[0].mxu0 %v5281
    %v5317 = vpop.f32.mrb[0].mxu0
    %v5318 = vadd.f32 0.0, %v5317
    %v5319 = vpop.f32.mrb[0].mxu0
    %v5320 = vpop.f32.mrb[0].mxu0
    %v5321 = vadd.f32 0.0, %v5320
    %v5322 = vpop.f32.mrb[0].mxu0
    %5323 = vdwg.mxu0
    %v5324 = vadd.f32 %v5275, %v5318
    %v5325 = vadd.f32 %v5276, %v5321
    %v5326 = vld [vmem:[%s2806 + $0x4] sm:$0xff]
    %v5327 = vld [vmem:[%s2806 + $0xc] sm:$0x3]
    %v5328 = vpack.c.bf16 %v5327, %v5326
    %v5330 = vsel %vm565, %v5328, 0
    %5332 = vmatprep.subr.bf16.mxu0 0
    %5333 = vmatpush1.bf16.msra.mxu0 %v3539
    %5334 = vmatprep.subr.bf16.mxu0 0
    %5335 = vmatpush1.bf16.msra.mxu0 0
    %5336 = vmatprep.subr.bf16.mxu0 0
    %5337 = vmatpush1.bf16.msra.mxu0 0
    %5338 = vmatprep.subr.bf16.mxu0 0
    %5339 = vmatpush1.bf16.msra.mxu0 0
    %5340 = vmatprep.subr.bf16.mxu0 0
    %5341 = vmatpush1.bf16.msra.mxu0 0
    %5342 = vmatprep.subr.bf16.mxu0 0
    %5343 = vmatpush1.bf16.msra.mxu0 0
    %5344 = vmatprep.subr.bf16.mxu0 0
    %5345 = vmatpush1.bf16.msra.mxu0 0
    %5346 = vmatprep.subr.bf16.mxu0 0
    %5347 = vmatpush1.bf16.msra.mxu0 0
    %5348 = vmatprep.subr.bf16.mxu0 0
    %5349 = vmatpush1.bf16.msra.mxu0 0
    %5350 = vmatprep.subr.bf16.mxu0 0
    %5351 = vmatpush1.bf16.msra.mxu0 0
    %5352 = vmatprep.subr.bf16.mxu0 0
    %5353 = vmatpush1.bf16.msra.mxu0 0
    %5354 = vmatprep.subr.bf16.mxu0 0
    %5355 = vmatpush1.bf16.msra.mxu0 0
    %5356 = vmatprep.subr.bf16.mxu0 0
    %5357 = vmatpush1.bf16.msra.mxu0 0
    %5358 = vmatprep.subr.bf16.mxu0 0
    %5359 = vmatpush1.bf16.msra.mxu0 0
    %5360 = vmatprep.subr.bf16.mxu0 0
    %5361 = vmatpush1.bf16.msra.mxu0 0
    %5362 = vmatprep.subr.bf16.mxu0 0
    %5363 = vmatpush1.bf16.msra.mxu0 0
    %5364 = vmatprep.mubr.bf16.mxu0 0
    %5365 = vmatmul.mubr.bf16.gmra.mrb[0].mxu0 %v5330
    %v5366 = vpop.f32.mrb[0].mxu0
    %v5367 = vadd.f32 0.0, %v5366
    %v5368 = vpop.f32.mrb[0].mxu0
    %v5369 = vpop.f32.mrb[0].mxu0
    %v5370 = vadd.f32 0.0, %v5369
    %v5371 = vpop.f32.mrb[0].mxu0
    %5372 = vdwg.mxu0
    %v5373 = vadd.f32 %v5324, %v5367
    %v5374 = vadd.f32 %v5325, %v5370
    %v5375 = vld [vmem:[%s3254] sm:$0xff]
    %v5376 = vld [vmem:[%s3254 + $0x8] sm:$0x3]
    %v5377 = vpack.c.bf16 %v5376, %v5375
    %v5379 = vsel %vm565, %v5377, 0
    %5381 = vmatprep.subr.bf16.mxu0 0
    %5382 = vmatpush1.bf16.msra.mxu0 %v3591
    %5383 = vmatprep.subr.bf16.mxu0 0
    %5384 = vmatpush1.bf16.msra.mxu0 0
    %5385 = vmatprep.subr.bf16.mxu0 0
    %5386 = vmatpush1.bf16.msra.mxu0 0
    %5387 = vmatprep.subr.bf16.mxu0 0
    %5388 = vmatpush1.bf16.msra.mxu0 0
    %5389 = vmatprep.subr.bf16.mxu0 0
    %5390 = vmatpush1.bf16.msra.mxu0 0
    %5391 = vmatprep.subr.bf16.mxu0 0
    %5392 = vmatpush1.bf16.msra.mxu0 0
    %5393 = vmatprep.subr.bf16.mxu0 0
    %5394 = vmatpush1.bf16.msra.mxu0 0
    %5395 = vmatprep.subr.bf16.mxu0 0
    %5396 = vmatpush1.bf16.msra.mxu0 0
    %5397 = vmatprep.subr.bf16.mxu0 0
    %5398 = vmatpush1.bf16.msra.mxu0 0
    %5399 = vmatprep.subr.bf16.mxu0 0
    %5400 = vmatpush1.bf16.msra.mxu0 0
    %5401 = vmatprep.subr.bf16.mxu0 0
    %5402 = vmatpush1.bf16.msra.mxu0 0
    %5403 = vmatprep.subr.bf16.mxu0 0
    %5404 = vmatpush1.bf16.msra.mxu0 0
    %5405 = vmatprep.subr.bf16.mxu0 0
    %5406 = vmatpush1.bf16.msra.mxu0 0
    %5407 = vmatprep.subr.bf16.mxu0 0
    %5408 = vmatpush1.bf16.msra.mxu0 0
    %5409 = vmatprep.subr.bf16.mxu0 0
    %5410 = vmatpush1.bf16.msra.mxu0 0
    %5411 = vmatprep.subr.bf16.mxu0 0
    %5412 = vmatpush1.bf16.msra.mxu0 0
    %5413 = vmatprep.mubr.bf16.mxu0 0
    %5414 = vmatmul.mubr.bf16.gmra.mrb[0].mxu0 %v5379
    %v5415 = vpop.f32.mrb[0].mxu0
    %v5416 = vadd.f32 0.0, %v5415
    %v5417 = vpop.f32.mrb[0].mxu0
    %v5418 = vpop.f32.mrb[0].mxu0
    %v5419 = vadd.f32 0.0, %v5418
    %v5420 = vpop.f32.mrb[0].mxu0
    %5421 = vdwg.mxu0
    %v5422 = vadd.f32 %v5373, %v5416
    %v5423 = vadd.f32 %v5374, %v5419
    %v5424 = vld [vmem:[%s3254 + $0x2] sm:$0xff]
    %v5425 = vld [vmem:[%s3254 + $0xa] sm:$0x3]
    %v5426 = vpack.c.bf16 %v5425, %v5424
    %v5428 = vsel %vm565, %v5426, 0
    %5430 = vmatprep.subr.bf16.mxu0 0
    %5431 = vmatpush1.bf16.msra.mxu0 %v3643
    %5432 = vmatprep.subr.bf16.mxu0 0
    %5433 = vmatpush1.bf16.msra.mxu0 0
    %5434 = vmatprep.subr.bf16.mxu0 0
    %5435 = vmatpush1.bf16.msra.mxu0 0
    %5436 = vmatprep.subr.bf16.mxu0 0
    %5437 = vmatpush1.bf16.msra.mxu0 0
    %5438 = vmatprep.subr.bf16.mxu0 0
    %5439 = vmatpush1.bf16.msra.mxu0 0
    %5440 = vmatprep.subr.bf16.mxu0 0
    %5441 = vmatpush1.bf16.msra.mxu0 0
    %5442 = vmatprep.subr.bf16.mxu0 0
    %5443 = vmatpush1.bf16.msra.mxu0 0
    %5444 = vmatprep.subr.bf16.mxu0 0
    %5445 = vmatpush1.bf16.msra.mxu0 0
    %5446 = vmatprep.subr.bf16.mxu0 0
    %5447 = vmatpush1.bf16.msra.mxu0 0
    %5448 = vmatprep.subr.bf16.mxu0 0
    %5449 = vmatpush1.bf16.msra.mxu0 0
    %5450 = vmatprep.subr.bf16.mxu0 0
    %5451 = vmatpush1.bf16.msra.mxu0 0
    %5452 = vmatprep.subr.bf16.mxu0 0
    %5453 = vmatpush1.bf16.msra.mxu0 0
    %5454 = vmatprep.subr.bf16.mxu0 0
    %5455 = vmatpush1.bf16.msra.mxu0 0
    %5456 = vmatprep.subr.bf16.mxu0 0
    %5457 = vmatpush1.bf16.msra.mxu0 0
    %5458 = vmatprep.subr.bf16.mxu0 0
    %5459 = vmatpush1.bf16.msra.mxu0 0
    %5460 = vmatprep.subr.bf16.mxu0 0
    %5461 = vmatpush1.bf16.msra.mxu0 0
    %5462 = vmatprep.mubr.bf16.mxu0 0
    %5463 = vmatmul.mubr.bf16.gmra.mrb[0].mxu0 %v5428
    %v5464 = vpop.f32.mrb[0].mxu0
    %v5465 = vadd.f32 0.0, %v5464
    %v5466 = vpop.f32.mrb[0].mxu0
    %v5467 = vpop.f32.mrb[0].mxu0
    %v5468 = vadd.f32 0.0, %v5467
    %v5469 = vpop.f32.mrb[0].mxu0
    %5470 = vdwg.mxu0
    %v5471 = vadd.f32 %v5422, %v5465
    %v5472 = vadd.f32 %v5423, %v5468
    %v5473 = vld [vmem:[%s3254 + $0x4] sm:$0xff]
    %v5474 = vld [vmem:[%s3254 + $0xc] sm:$0x3]
    %v5475 = vpack.c.bf16 %v5474, %v5473
    %v5477 = vsel %vm565, %v5475, 0
    %5479 = vmatprep.subr.bf16.mxu0 0
    %5480 = vmatpush1.bf16.msra.mxu0 %v3695
    %5481 = vmatprep.subr.bf16.mxu0 0
    %5482 = vmatpush1.bf16.msra.mxu0 0
    %5483 = vmatprep.subr.bf16.mxu0 0
    %5484 = vmatpush1.bf16.msra.mxu0 0
    %5485 = vmatprep.subr.bf16.mxu0 0
    %5486 = vmatpush1.bf16.msra.mxu0 0
    %5487 = vmatprep.subr.bf16.mxu0 0
    %5488 = vmatpush1.bf16.msra.mxu0 0
    %5489 = vmatprep.subr.bf16.mxu0 0
    %5490 = vmatpush1.bf16.msra.mxu0 0
    %5491 = vmatprep.subr.bf16.mxu0 0
    %5492 = vmatpush1.bf16.msra.mxu0 0
    %5493 = vmatprep.subr.bf16.mxu0 0
    %5494 = vmatpush1.bf16.msra.mxu0 0
    %5495 = vmatprep.subr.bf16.mxu0 0
    %5496 = vmatpush1.bf16.msra.mxu0 0
    %5497 = vmatprep.subr.bf16.mxu0 0
    %5498 = vmatpush1.bf16.msra.mxu0 0
    %5499 = vmatprep.subr.bf16.mxu0 0
    %5500 = vmatpush1.bf16.msra.mxu0 0
    %5501 = vmatprep.subr.bf16.mxu0 0
    %5502 = vmatpush1.bf16.msra.mxu0 0
    %5503 = vmatprep.subr.bf16.mxu0 0
    %5504 = vmatpush1.bf16.msra.mxu0 0
    %5505 = vmatprep.subr.bf16.mxu0 0
    %5506 = vmatpush1.bf16.msra.mxu0 0
    %5507 = vmatprep.subr.bf16.mxu0 0
    %5508 = vmatpush1.bf16.msra.mxu0 0
    %5509 = vmatprep.subr.bf16.mxu0 0
    %5510 = vmatpush1.bf16.msra.mxu0 0
    %5511 = vmatprep.mubr.bf16.mxu0 0
    %5512 = vmatmul.mubr.bf16.gmra.mrb[0].mxu0 %v5477
    %v5513 = vpop.f32.mrb[0].mxu0
    %v5514 = vadd.f32 0.0, %v5513
    %v5515 = vpop.f32.mrb[0].mxu0
    %v5516 = vpop.f32.mrb[0].mxu0
    %v5517 = vadd.f32 0.0, %v5516
    %v5518 = vpop.f32.mrb[0].mxu0
    %5519 = vdwg.mxu0
    %v5520 = vadd.f32 %v5471, %v5514
    %v5521 = vadd.f32 %v5472, %v5517
    %v5522 = vadd.f32 %v5520, %v3744
    %v5523 = vadd.f32 %v5521, %v3744
    %v5524 = vmax.f32 %v5522, 0.0
    %v5525 = vmax.f32 %v5523, 0.0
    %s5526 = scalar_lea.vmem [#allocation3], 64
    %5527 = vst.msk [vmem:[%s5526] sm:$0xff] %vm565, %v5524
    %5528 = vst.msk [vmem:[%s5526 + $0x8] sm:$0x3] %vm3751, %v5525
    %v5529 = vld [vmem:[#allocation3] sm:$0x3]
    %v5530 = vld [vmem:[%s5] sm:$0xf]
    %v5531 = vpack.c.bf16 %v5529, %v5529
    %v5532 = vld [vmem:[#allocation3 + $0x2] sm:$0x3]
    %s5533 = scalar_lea.vmem %s5, 4
    %v5534 = vld [vmem:[%s5533] sm:$0xf]
    %v5535 = vpack.c.bf16 %v5532, %v5532
    %v5537 = vsel %vm565, %v5535, 0
    %v5540 = vsel %vm3284, %v5534, 0
    %5542 = vmatprep.subr.bf16.mxu0 0
    %5543 = vmatpush1.bf16.msra.mxu0 %v5540
    %5544 = vmatprep.subr.bf16.mxu0 0
    %5545 = vmatpush1.bf16.msra.mxu0 0
    %5546 = vmatprep.subr.bf16.mxu0 0
    %5547 = vmatpush1.bf16.msra.mxu0 0
    %5548 = vmatprep.subr.bf16.mxu0 0
    %5549 = vmatpush1.bf16.msra.mxu0 0
    %5550 = vmatprep.subr.bf16.mxu0 0
    %5551 = vmatpush1.bf16.msra.mxu0 0
    %5552 = vmatprep.subr.bf16.mxu0 0
    %5553 = vmatpush1.bf16.msra.mxu0 0
    %5554 = vmatprep.subr.bf16.mxu0 0
    %5555 = vmatpush1.bf16.msra.mxu0 0
    %5556 = vmatprep.subr.bf16.mxu0 0
    %5557 = vmatpush1.bf16.msra.mxu0 0
    %5558 = vmatprep.subr.bf16.mxu0 0
    %5559 = vmatpush1.bf16.msra.mxu0 0
    %5560 = vmatprep.subr.bf16.mxu0 0
    %5561 = vmatpush1.bf16.msra.mxu0 0
    %5562 = vmatprep.subr.bf16.mxu0 0
    %5563 = vmatpush1.bf16.msra.mxu0 0
    %5564 = vmatprep.subr.bf16.mxu0 0
    %5565 = vmatpush1.bf16.msra.mxu0 0
    %5566 = vmatprep.subr.bf16.mxu0 0
    %5567 = vmatpush1.bf16.msra.mxu0 0
    %5568 = vmatprep.subr.bf16.mxu0 0
    %5569 = vmatpush1.bf16.msra.mxu0 0
    %5570 = vmatprep.subr.bf16.mxu0 0
    %5571 = vmatpush1.bf16.msra.mxu0 0
    %5572 = vmatprep.subr.bf16.mxu0 0
    %5573 = vmatpush1.bf16.msra.mxu0 0
    %5574 = vmatprep.mubr.bf16.mxu0 0
    %5575 = vmatmul.mubr.bf16.gmra.mrb[0].mxu0 %v5537
    %v5576 = vpop.f32.mrb[0].mxu0
    %v5577 = vadd.f32 0.0, %v5576
    %v5578 = vpop.f32.mrb[0].mxu0
    %v5579 = vpop.f32.mrb[0].mxu0
    %v5580 = vpop.f32.mrb[0].mxu0
    %5581 = vdwg.mxu0
    %v5583 = vsel %vm565, %v5531, 0
    %v5586 = vsel %vm3284, %v5530, 0
    %5588 = vmatprep.subr.bf16.mxu0 0
    %5589 = vmatpush1.bf16.msra.mxu0 %v5586
    %5590 = vmatprep.subr.bf16.mxu0 0
    %5591 = vmatpush1.bf16.msra.mxu0 0
    %5592 = vmatprep.subr.bf16.mxu0 0
    %5593 = vmatpush1.bf16.msra.mxu0 0
    %5594 = vmatprep.subr.bf16.mxu0 0
    %5595 = vmatpush1.bf16.msra.mxu0 0
    %5596 = vmatprep.subr.bf16.mxu0 0
    %5597 = vmatpush1.bf16.msra.mxu0 0
    %5598 = vmatprep.subr.bf16.mxu0 0
    %5599 = vmatpush1.bf16.msra.mxu0 0
    %5600 = vmatprep.subr.bf16.mxu0 0
    %5601 = vmatpush1.bf16.msra.mxu0 0
    %5602 = vmatprep.subr.bf16.mxu0 0
    %5603 = vmatpush1.bf16.msra.mxu0 0
    %5604 = vmatprep.subr.bf16.mxu0 0
    %5605 = vmatpush1.bf16.msra.mxu0 0
    %5606 = vmatprep.subr.bf16.mxu0 0
    %5607 = vmatpush1.bf16.msra.mxu0 0
    %5608 = vmatprep.subr.bf16.mxu0 0
    %5609 = vmatpush1.bf16.msra.mxu0 0
    %5610 = vmatprep.subr.bf16.mxu0 0
    %5611 = vmatpush1.bf16.msra.mxu0 0
    %5612 = vmatprep.subr.bf16.mxu0 0
    %5613 = vmatpush1.bf16.msra.mxu0 0
    %5614 = vmatprep.subr.bf16.mxu0 0
    %5615 = vmatpush1.bf16.msra.mxu0 0
    %5616 = vmatprep.subr.bf16.mxu0 0
    %5617 = vmatpush1.bf16.msra.mxu0 0
    %5618 = vmatprep.subr.bf16.mxu0 0
    %5619 = vmatpush1.bf16.msra.mxu0 0
    %5620 = vmatprep.mubr.bf16.mxu0 0
    %5621 = vmatmul.mubr.bf16.gmra.mrb[0].mxu0 %v5583
    %v5622 = vpop.f32.mrb[0].mxu0
    %v5623 = vadd.f32 %v5577, %v5622
    %v5624 = vpop.f32.mrb[0].mxu0
    %v5625 = vpop.f32.mrb[0].mxu0
    %v5626 = vpop.f32.mrb[0].mxu0
    %5627 = vdwg.mxu0
    %v5628 = vld [vmem:[#allocation3 + $0x4] sm:$0x3]
    %s5629 = scalar_lea.vmem %s5, 8
    %v5630 = vld [vmem:[%s5629] sm:$0xf]
    %v5631 = vpack.c.bf16 %v5628, %v5628
    %v5633 = vsel %vm565, %v5631, 0
    %v5636 = vsel %vm3284, %v5630, 0
    %5638 = vmatprep.subr.bf16.mxu0 0
    %5639 = vmatpush1.bf16.msra.mxu0 %v5636
    %5640 = vmatprep.subr.bf16.mxu0 0
    %5641 = vmatpush1.bf16.msra.mxu0 0
    %5642 = vmatprep.subr.bf16.mxu0 0
    %5643 = vmatpush1.bf16.msra.mxu0 0
    %5644 = vmatprep.subr.bf16.mxu0 0
    %5645 = vmatpush1.bf16.msra.mxu0 0
    %5646 = vmatprep.subr.bf16.mxu0 0
    %5647 = vmatpush1.bf16.msra.mxu0 0
    %5648 = vmatprep.subr.bf16.mxu0 0
    %5649 = vmatpush1.bf16.msra.mxu0 0
    %5650 = vmatprep.subr.bf16.mxu0 0
    %5651 = vmatpush1.bf16.msra.mxu0 0
    %5652 = vmatprep.subr.bf16.mxu0 0
    %5653 = vmatpush1.bf16.msra.mxu0 0
    %5654 = vmatprep.subr.bf16.mxu0 0
    %5655 = vmatpush1.bf16.msra.mxu0 0
    %5656 = vmatprep.subr.bf16.mxu0 0
    %5657 = vmatpush1.bf16.msra.mxu0 0
    %5658 = vmatprep.subr.bf16.mxu0 0
    %5659 = vmatpush1.bf16.msra.mxu0 0
    %5660 = vmatprep.subr.bf16.mxu0 0
    %5661 = vmatpush1.bf16.msra.mxu0 0
    %5662 = vmatprep.subr.bf16.mxu0 0
    %5663 = vmatpush1.bf16.msra.mxu0 0
    %5664 = vmatprep.subr.bf16.mxu0 0
    %5665 = vmatpush1.bf16.msra.mxu0 0
    %5666 = vmatprep.subr.bf16.mxu0 0
    %5667 = vmatpush1.bf16.msra.mxu0 0
    %5668 = vmatprep.subr.bf16.mxu0 0
    %5669 = vmatpush1.bf16.msra.mxu0 0
    %5670 = vmatprep.mubr.bf16.mxu0 0
    %5671 = vmatmul.mubr.bf16.gmra.mrb[0].mxu0 %v5633
    %v5672 = vpop.f32.mrb[0].mxu0
    %v5673 = vadd.f32 0.0, %v5672
    %v5674 = vpop.f32.mrb[0].mxu0
    %v5675 = vpop.f32.mrb[0].mxu0
    %v5676 = vpop.f32.mrb[0].mxu0
    %5677 = vdwg.mxu0
    %v5678 = vadd.f32 %v5623, %v5673
    %v5679 = vld [vmem:[#allocation3 + $0x6] sm:$0x3]
    %s5680 = scalar_lea.vmem %s5, 12
    %v5681 = vld [vmem:[%s5680] sm:$0xf]
    %v5682 = vpack.c.bf16 %v5679, %v5679
    %v5684 = vsel %vm565, %v5682, 0
    %v5687 = vsel %vm3284, %v5681, 0
    %5689 = vmatprep.subr.bf16.mxu0 0
    %5690 = vmatpush1.bf16.msra.mxu0 %v5687
    %5691 = vmatprep.subr.bf16.mxu0 0
    %5692 = vmatpush1.bf16.msra.mxu0 0
    %5693 = vmatprep.subr.bf16.mxu0 0
    %5694 = vmatpush1.bf16.msra.mxu0 0
    %5695 = vmatprep.subr.bf16.mxu0 0
    %5696 = vmatpush1.bf16.msra.mxu0 0
    %5697 = vmatprep.subr.bf16.mxu0 0
    %5698 = vmatpush1.bf16.msra.mxu0 0
    %5699 = vmatprep.subr.bf16.mxu0 0
    %5700 = vmatpush1.bf16.msra.mxu0 0
    %5701 = vmatprep.subr.bf16.mxu0 0
    %5702 = vmatpush1.bf16.msra.mxu0 0
    %5703 = vmatprep.subr.bf16.mxu0 0
    %5704 = vmatpush1.bf16.msra.mxu0 0
    %5705 = vmatprep.subr.bf16.mxu0 0
    %5706 = vmatpush1.bf16.msra.mxu0 0
    %5707 = vmatprep.subr.bf16.mxu0 0
    %5708 = vmatpush1.bf16.msra.mxu0 0
    %5709 = vmatprep.subr.bf16.mxu0 0
    %5710 = vmatpush1.bf16.msra.mxu0 0
    %5711 = vmatprep.subr.bf16.mxu0 0
    %5712 = vmatpush1.bf16.msra.mxu0 0
    %5713 = vmatprep.subr.bf16.mxu0 0
    %5714 = vmatpush1.bf16.msra.mxu0 0
    %5715 = vmatprep.subr.bf16.mxu0 0
    %5716 = vmatpush1.bf16.msra.mxu0 0
    %5717 = vmatprep.subr.bf16.mxu0 0
    %5718 = vmatpush1.bf16.msra.mxu0 0
    %5719 = vmatprep.subr.bf16.mxu0 0
    %5720 = vmatpush1.bf16.msra.mxu0 0
    %5721 = vmatprep.mubr.bf16.mxu0 0
    %5722 = vmatmul.mubr.bf16.gmra.mrb[0].mxu0 %v5684
    %v5723 = vpop.f32.mrb[0].mxu0
    %v5724 = vadd.f32 0.0, %v5723
    %v5725 = vpop.f32.mrb[0].mxu0
    %v5726 = vpop.f32.mrb[0].mxu0
    %v5727 = vpop.f32.mrb[0].mxu0
    %5728 = vdwg.mxu0
    %v5729 = vadd.f32 %v5678, %v5724
    %v5730 = vld [vmem:[#allocation3 + $0x8] sm:$0x3]
    %s5731 = scalar_lea.vmem %s5, 16
    %v5732 = vld [vmem:[%s5731] sm:$0xf]
    %v5733 = vpack.c.bf16 %v5730, %v5730
    %v5735 = vsel %vm565, %v5733, 0
    %v5738 = vsel %vm3284, %v5732, 0
    %5740 = vmatprep.subr.bf16.mxu0 0
    %5741 = vmatpush1.bf16.msra.mxu0 %v5738
    %5742 = vmatprep.subr.bf16.mxu0 0
    %5743 = vmatpush1.bf16.msra.mxu0 0
    %5744 = vmatprep.subr.bf16.mxu0 0
    %5745 = vmatpush1.bf16.msra.mxu0 0
    %5746 = vmatprep.subr.bf16.mxu0 0
    %5747 = vmatpush1.bf16.msra.mxu0 0
    %5748 = vmatprep.subr.bf16.mxu0 0
    %5749 = vmatpush1.bf16.msra.mxu0 0
    %5750 = vmatprep.subr.bf16.mxu0 0
    %5751 = vmatpush1.bf16.msra.mxu0 0
    %5752 = vmatprep.subr.bf16.mxu0 0
    %5753 = vmatpush1.bf16.msra.mxu0 0
    %5754 = vmatprep.subr.bf16.mxu0 0
    %5755 = vmatpush1.bf16.msra.mxu0 0
    %5756 = vmatprep.subr.bf16.mxu0 0
    %5757 = vmatpush1.bf16.msra.mxu0 0
    %5758 = vmatprep.subr.bf16.mxu0 0
    %5759 = vmatpush1.bf16.msra.mxu0 0
    %5760 = vmatprep.subr.bf16.mxu0 0
    %5761 = vmatpush1.bf16.msra.mxu0 0
    %5762 = vmatprep.subr.bf16.mxu0 0
    %5763 = vmatpush1.bf16.msra.mxu0 0
    %5764 = vmatprep.subr.bf16.mxu0 0
    %5765 = vmatpush1.bf16.msra.mxu0 0
    %5766 = vmatprep.subr.bf16.mxu0 0
    %5767 = vmatpush1.bf16.msra.mxu0 0
    %5768 = vmatprep.subr.bf16.mxu0 0
    %5769 = vmatpush1.bf16.msra.mxu0 0
    %5770 = vmatprep.subr.bf16.mxu0 0
    %5771 = vmatpush1.bf16.msra.mxu0 0
    %5772 = vmatprep.mubr.bf16.mxu0 0
    %5773 = vmatmul.mubr.bf16.gmra.mrb[0].mxu0 %v5735
    %v5774 = vpop.f32.mrb[0].mxu0
    %v5775 = vadd.f32 0.0, %v5774
    %v5776 = vpop.f32.mrb[0].mxu0
    %v5777 = vpop.f32.mrb[0].mxu0
    %v5778 = vpop.f32.mrb[0].mxu0
    %5779 = vdwg.mxu0
    %v5780 = vadd.f32 %v5729, %v5775
    %v5781 = vld [vmem:[%s4194] sm:$0x3]
    %s5782 = scalar_lea.vmem %s5, 20
    %v5783 = vld [vmem:[%s5782] sm:$0xf]
    %v5784 = vpack.c.bf16 %v5781, %v5781
    %v5786 = vsel %vm565, %v5784, 0
    %v5789 = vsel %vm3284, %v5783, 0
    %5791 = vmatprep.subr.bf16.mxu0 0
    %5792 = vmatpush1.bf16.msra.mxu0 %v5789
    %5793 = vmatprep.subr.bf16.mxu0 0
    %5794 = vmatpush1.bf16.msra.mxu0 0
    %5795 = vmatprep.subr.bf16.mxu0 0
    %5796 = vmatpush1.bf16.msra.mxu0 0
    %5797 = vmatprep.subr.bf16.mxu0 0
    %5798 = vmatpush1.bf16.msra.mxu0 0
    %5799 = vmatprep.subr.bf16.mxu0 0
    %5800 = vmatpush1.bf16.msra.mxu0 0
    %5801 = vmatprep.subr.bf16.mxu0 0
    %5802 = vmatpush1.bf16.msra.mxu0 0
    %5803 = vmatprep.subr.bf16.mxu0 0
    %5804 = vmatpush1.bf16.msra.mxu0 0
    %5805 = vmatprep.subr.bf16.mxu0 0
    %5806 = vmatpush1.bf16.msra.mxu0 0
    %5807 = vmatprep.subr.bf16.mxu0 0
    %5808 = vmatpush1.bf16.msra.mxu0 0
    %5809 = vmatprep.subr.bf16.mxu0 0
    %5810 = vmatpush1.bf16.msra.mxu0 0
    %5811 = vmatprep.subr.bf16.mxu0 0
    %5812 = vmatpush1.bf16.msra.mxu0 0
    %5813 = vmatprep.subr.bf16.mxu0 0
    %5814 = vmatpush1.bf16.msra.mxu0 0
    %5815 = vmatprep.subr.bf16.mxu0 0
    %5816 = vmatpush1.bf16.msra.mxu0 0
    %5817 = vmatprep.subr.bf16.mxu0 0
    %5818 = vmatpush1.bf16.msra.mxu0 0
    %5819 = vmatprep.subr.bf16.mxu0 0
    %5820 = vmatpush1.bf16.msra.mxu0 0
    %5821 = vmatprep.subr.bf16.mxu0 0
    %5822 = vmatpush1.bf16.msra.mxu0 0
    %5823 = vmatprep.mubr.bf16.mxu0 0
    %5824 = vmatmul.mubr.bf16.gmra.mrb[0].mxu0 %v5786
    %v5825 = vpop.f32.mrb[0].mxu0
    %v5826 = vadd.f32 0.0, %v5825
    %v5827 = vpop.f32.mrb[0].mxu0
    %v5828 = vpop.f32.mrb[0].mxu0
    %v5829 = vpop.f32.mrb[0].mxu0
    %5830 = vdwg.mxu0
    %v5831 = vadd.f32 %v5780, %v5826
    %v5832 = vld [vmem:[%s4194 + $0x2] sm:$0x3]
    %s5833 = scalar_lea.vmem %s5, 24
    %v5834 = vld [vmem:[%s5833] sm:$0xf]
    %v5835 = vpack.c.bf16 %v5832, %v5832
    %v5837 = vsel %vm565, %v5835, 0
    %v5840 = vsel %vm3284, %v5834, 0
    %5842 = vmatprep.subr.bf16.mxu0 0
    %5843 = vmatpush1.bf16.msra.mxu0 %v5840
    %5844 = vmatprep.subr.bf16.mxu0 0
    %5845 = vmatpush1.bf16.msra.mxu0 0
    %5846 = vmatprep.subr.bf16.mxu0 0
    %5847 = vmatpush1.bf16.msra.mxu0 0
    %5848 = vmatprep.subr.bf16.mxu0 0
    %5849 = vmatpush1.bf16.msra.mxu0 0
    %5850 = vmatprep.subr.bf16.mxu0 0
    %5851 = vmatpush1.bf16.msra.mxu0 0
    %5852 = vmatprep.subr.bf16.mxu0 0
    %5853 = vmatpush1.bf16.msra.mxu0 0
    %5854 = vmatprep.subr.bf16.mxu0 0
    %5855 = vmatpush1.bf16.msra.mxu0 0
    %5856 = vmatprep.subr.bf16.mxu0 0
    %5857 = vmatpush1.bf16.msra.mxu0 0
    %5858 = vmatprep.subr.bf16.mxu0 0
    %5859 = vmatpush1.bf16.msra.mxu0 0
    %5860 = vmatprep.subr.bf16.mxu0 0
    %5861 = vmatpush1.bf16.msra.mxu0 0
    %5862 = vmatprep.subr.bf16.mxu0 0
    %5863 = vmatpush1.bf16.msra.mxu0 0
    %5864 = vmatprep.subr.bf16.mxu0 0
    %5865 = vmatpush1.bf16.msra.mxu0 0
    %5866 = vmatprep.subr.bf16.mxu0 0
    %5867 = vmatpush1.bf16.msra.mxu0 0
    %5868 = vmatprep.subr.bf16.mxu0 0
    %5869 = vmatpush1.bf16.msra.mxu0 0
    %5870 = vmatprep.subr.bf16.mxu0 0
    %5871 = vmatpush1.bf16.msra.mxu0 0
    %5872 = vmatprep.subr.bf16.mxu0 0
    %5873 = vmatpush1.bf16.msra.mxu0 0
    %5874 = vmatprep.mubr.bf16.mxu0 0
    %5875 = vmatmul.mubr.bf16.gmra.mrb[0].mxu0 %v5837
    %v5876 = vpop.f32.mrb[0].mxu0
    %v5877 = vadd.f32 0.0, %v5876
    %v5878 = vpop.f32.mrb[0].mxu0
    %v5879 = vpop.f32.mrb[0].mxu0
    %v5880 = vpop.f32.mrb[0].mxu0
    %5881 = vdwg.mxu0
    %v5882 = vadd.f32 %v5831, %v5877
    %v5883 = vld [vmem:[%s4194 + $0x4] sm:$0x3]
    %s5884 = scalar_lea.vmem %s5, 28
    %v5885 = vld [vmem:[%s5884] sm:$0xf]
    %v5886 = vpack.c.bf16 %v5883, %v5883
    %v5888 = vsel %vm565, %v5886, 0
    %v5891 = vsel %vm3284, %v5885, 0
    %5893 = vmatprep.subr.bf16.mxu0 0
    %5894 = vmatpush1.bf16.msra.mxu0 %v5891
    %5895 = vmatprep.subr.bf16.mxu0 0
    %5896 = vmatpush1.bf16.msra.mxu0 0
    %5897 = vmatprep.subr.bf16.mxu0 0
    %5898 = vmatpush1.bf16.msra.mxu0 0
    %5899 = vmatprep.subr.bf16.mxu0 0
    %5900 = vmatpush1.bf16.msra.mxu0 0
    %5901 = vmatprep.subr.bf16.mxu0 0
    %5902 = vmatpush1.bf16.msra.mxu0 0
    %5903 = vmatprep.subr.bf16.mxu0 0
    %5904 = vmatpush1.bf16.msra.mxu0 0
    %5905 = vmatprep.subr.bf16.mxu0 0
    %5906 = vmatpush1.bf16.msra.mxu0 0
    %5907 = vmatprep.subr.bf16.mxu0 0
    %5908 = vmatpush1.bf16.msra.mxu0 0
    %5909 = vmatprep.subr.bf16.mxu0 0
    %5910 = vmatpush1.bf16.msra.mxu0 0
    %5911 = vmatprep.subr.bf16.mxu0 0
    %5912 = vmatpush1.bf16.msra.mxu0 0
    %5913 = vmatprep.subr.bf16.mxu0 0
    %5914 = vmatpush1.bf16.msra.mxu0 0
    %5915 = vmatprep.subr.bf16.mxu0 0
    %5916 = vmatpush1.bf16.msra.mxu0 0
    %5917 = vmatprep.subr.bf16.mxu0 0
    %5918 = vmatpush1.bf16.msra.mxu0 0
    %5919 = vmatprep.subr.bf16.mxu0 0
    %5920 = vmatpush1.bf16.msra.mxu0 0
    %5921 = vmatprep.subr.bf16.mxu0 0
    %5922 = vmatpush1.bf16.msra.mxu0 0
    %5923 = vmatprep.subr.bf16.mxu0 0
    %5924 = vmatpush1.bf16.msra.mxu0 0
    %5925 = vmatprep.mubr.bf16.mxu0 0
    %5926 = vmatmul.mubr.bf16.gmra.mrb[0].mxu0 %v5888
    %v5927 = vpop.f32.mrb[0].mxu0
    %v5928 = vadd.f32 0.0, %v5927
    %v5929 = vpop.f32.mrb[0].mxu0
    %v5930 = vpop.f32.mrb[0].mxu0
    %v5931 = vpop.f32.mrb[0].mxu0
    %5932 = vdwg.mxu0
    %v5933 = vadd.f32 %v5882, %v5928
    %v5934 = vld [vmem:[%s4194 + $0x6] sm:$0x3]
    %s5935 = scalar_lea.vmem %s5, 32
    %v5936 = vld [vmem:[%s5935] sm:$0xf]
    %v5937 = vpack.c.bf16 %v5934, %v5934
    %v5939 = vsel %vm565, %v5937, 0
    %v5942 = vsel %vm3284, %v5936, 0
    %5944 = vmatprep.subr.bf16.mxu0 0
    %5945 = vmatpush1.bf16.msra.mxu0 %v5942
    %5946 = vmatprep.subr.bf16.mxu0 0
    %5947 = vmatpush1.bf16.msra.mxu0 0
    %5948 = vmatprep.subr.bf16.mxu0 0
    %5949 = vmatpush1.bf16.msra.mxu0 0
    %5950 = vmatprep.subr.bf16.mxu0 0
    %5951 = vmatpush1.bf16.msra.mxu0 0
    %5952 = vmatprep.subr.bf16.mxu0 0
    %5953 = vmatpush1.bf16.msra.mxu0 0
    %5954 = vmatprep.subr.bf16.mxu0 0
    %5955 = vmatpush1.bf16.msra.mxu0 0
    %5956 = vmatprep.subr.bf16.mxu0 0
    %5957 = vmatpush1.bf16.msra.mxu0 0
    %5958 = vmatprep.subr.bf16.mxu0 0
    %5959 = vmatpush1.bf16.msra.mxu0 0
    %5960 = vmatprep.subr.bf16.mxu0 0
    %5961 = vmatpush1.bf16.msra.mxu0 0
    %5962 = vmatprep.subr.bf16.mxu0 0
    %5963 = vmatpush1.bf16.msra.mxu0 0
    %5964 = vmatprep.subr.bf16.mxu0 0
    %5965 = vmatpush1.bf16.msra.mxu0 0
    %5966 = vmatprep.subr.bf16.mxu0 0
    %5967 = vmatpush1.bf16.msra.mxu0 0
    %5968 = vmatprep.subr.bf16.mxu0 0
    %5969 = vmatpush1.bf16.msra.mxu0 0
    %5970 = vmatprep.subr.bf16.mxu0 0
    %5971 = vmatpush1.bf16.msra.mxu0 0
    %5972 = vmatprep.subr.bf16.mxu0 0
    %5973 = vmatpush1.bf16.msra.mxu0 0
    %5974 = vmatprep.subr.bf16.mxu0 0
    %5975 = vmatpush1.bf16.msra.mxu0 0
    %5976 = vmatprep.mubr.bf16.mxu0 0
    %5977 = vmatmul.mubr.bf16.gmra.mrb[0].mxu0 %v5939
    %v5978 = vpop.f32.mrb[0].mxu0
    %v5979 = vadd.f32 0.0, %v5978
    %v5980 = vpop.f32.mrb[0].mxu0
    %v5981 = vpop.f32.mrb[0].mxu0
    %v5982 = vpop.f32.mrb[0].mxu0
    %5983 = vdwg.mxu0
    %v5984 = vadd.f32 %v5933, %v5979
    %v5985 = vld [vmem:[%s4194 + $0x8] sm:$0x3]
    %s5986 = scalar_lea.vmem %s5, 36
    %v5987 = vld [vmem:[%s5986] sm:$0xf]
    %v5988 = vpack.c.bf16 %v5985, %v5985
    %v5990 = vsel %vm565, %v5988, 0
    %v5993 = vsel %vm3284, %v5987, 0
    %5995 = vmatprep.subr.bf16.mxu0 0
    %5996 = vmatpush1.bf16.msra.mxu0 %v5993
    %5997 = vmatprep.subr.bf16.mxu0 0
    %5998 = vmatpush1.bf16.msra.mxu0 0
    %5999 = vmatprep.subr.bf16.mxu0 0
    %6000 = vmatpush1.bf16.msra.mxu0 0
    %6001 = vmatprep.subr.bf16.mxu0 0
    %6002 = vmatpush1.bf16.msra.mxu0 0
    %6003 = vmatprep.subr.bf16.mxu0 0
    %6004 = vmatpush1.bf16.msra.mxu0 0
    %6005 = vmatprep.subr.bf16.mxu0 0
    %6006 = vmatpush1.bf16.msra.mxu0 0
    %6007 = vmatprep.subr.bf16.mxu0 0
    %6008 = vmatpush1.bf16.msra.mxu0 0
    %6009 = vmatprep.subr.bf16.mxu0 0
    %6010 = vmatpush1.bf16.msra.mxu0 0
    %6011 = vmatprep.subr.bf16.mxu0 0
    %6012 = vmatpush1.bf16.msra.mxu0 0
    %6013 = vmatprep.subr.bf16.mxu0 0
    %6014 = vmatpush1.bf16.msra.mxu0 0
    %6015 = vmatprep.subr.bf16.mxu0 0
    %6016 = vmatpush1.bf16.msra.mxu0 0
    %6017 = vmatprep.subr.bf16.mxu0 0
    %6018 = vmatpush1.bf16.msra.mxu0 0
    %6019 = vmatprep.subr.bf16.mxu0 0
    %6020 = vmatpush1.bf16.msra.mxu0 0
    %6021 = vmatprep.subr.bf16.mxu0 0
    %6022 = vmatpush1.bf16.msra.mxu0 0
    %6023 = vmatprep.subr.bf16.mxu0 0
    %6024 = vmatpush1.bf16.msra.mxu0 0
    %6025 = vmatprep.subr.bf16.mxu0 0
    %6026 = vmatpush1.bf16.msra.mxu0 0
    %6027 = vmatprep.mubr.bf16.mxu0 0
    %6028 = vmatmul.mubr.bf16.gmra.mrb[0].mxu0 %v5990
    %v6029 = vpop.f32.mrb[0].mxu0
    %v6030 = vadd.f32 0.0, %v6029
    %v6031 = vpop.f32.mrb[0].mxu0
    %v6032 = vpop.f32.mrb[0].mxu0
    %v6033 = vpop.f32.mrb[0].mxu0
    %6034 = vdwg.mxu0
    %v6035 = vadd.f32 %v5984, %v6030
    %v6036 = vld [vmem:[%s4638] sm:$0x3]
    %s6037 = scalar_lea.vmem %s5, 40
    %v6038 = vld [vmem:[%s6037] sm:$0xf]
    %v6039 = vpack.c.bf16 %v6036, %v6036
    %v6041 = vsel %vm565, %v6039, 0
    %v6044 = vsel %vm3284, %v6038, 0
    %6046 = vmatprep.subr.bf16.mxu0 0
    %6047 = vmatpush1.bf16.msra.mxu0 %v6044
    %6048 = vmatprep.subr.bf16.mxu0 0
    %6049 = vmatpush1.bf16.msra.mxu0 0
    %6050 = vmatprep.subr.bf16.mxu0 0
    %6051 = vmatpush1.bf16.msra.mxu0 0
    %6052 = vmatprep.subr.bf16.mxu0 0
    %6053 = vmatpush1.bf16.msra.mxu0 0
    %6054 = vmatprep.subr.bf16.mxu0 0
    %6055 = vmatpush1.bf16.msra.mxu0 0
    %6056 = vmatprep.subr.bf16.mxu0 0
    %6057 = vmatpush1.bf16.msra.mxu0 0
    %6058 = vmatprep.subr.bf16.mxu0 0
    %6059 = vmatpush1.bf16.msra.mxu0 0
    %6060 = vmatprep.subr.bf16.mxu0 0
    %6061 = vmatpush1.bf16.msra.mxu0 0
    %6062 = vmatprep.subr.bf16.mxu0 0
    %6063 = vmatpush1.bf16.msra.mxu0 0
    %6064 = vmatprep.subr.bf16.mxu0 0
    %6065 = vmatpush1.bf16.msra.mxu0 0
    %6066 = vmatprep.subr.bf16.mxu0 0
    %6067 = vmatpush1.bf16.msra.mxu0 0
    %6068 = vmatprep.subr.bf16.mxu0 0
    %6069 = vmatpush1.bf16.msra.mxu0 0
    %6070 = vmatprep.subr.bf16.mxu0 0
    %6071 = vmatpush1.bf16.msra.mxu0 0
    %6072 = vmatprep.subr.bf16.mxu0 0
    %6073 = vmatpush1.bf16.msra.mxu0 0
    %6074 = vmatprep.subr.bf16.mxu0 0
    %6075 = vmatpush1.bf16.msra.mxu0 0
    %6076 = vmatprep.subr.bf16.mxu0 0
    %6077 = vmatpush1.bf16.msra.mxu0 0
    %6078 = vmatprep.mubr.bf16.mxu0 0
    %6079 = vmatmul.mubr.bf16.gmra.mrb[0].mxu0 %v6041
    %v6080 = vpop.f32.mrb[0].mxu0
    %v6081 = vadd.f32 0.0, %v6080
    %v6082 = vpop.f32.mrb[0].mxu0
    %v6083 = vpop.f32.mrb[0].mxu0
    %v6084 = vpop.f32.mrb[0].mxu0
    %6085 = vdwg.mxu0
    %v6086 = vadd.f32 %v6035, %v6081
    %v6087 = vld [vmem:[%s4638 + $0x2] sm:$0x3]
    %s6088 = scalar_lea.vmem %s5, 44
    %v6089 = vld [vmem:[%s6088] sm:$0xf]
    %v6090 = vpack.c.bf16 %v6087, %v6087
    %v6092 = vsel %vm565, %v6090, 0
    %v6095 = vsel %vm3284, %v6089, 0
    %6097 = vmatprep.subr.bf16.mxu0 0
    %6098 = vmatpush1.bf16.msra.mxu0 %v6095
    %6099 = vmatprep.subr.bf16.mxu0 0
    %6100 = vmatpush1.bf16.msra.mxu0 0
    %6101 = vmatprep.subr.bf16.mxu0 0
    %6102 = vmatpush1.bf16.msra.mxu0 0
    %6103 = vmatprep.subr.bf16.mxu0 0
    %6104 = vmatpush1.bf16.msra.mxu0 0
    %6105 = vmatprep.subr.bf16.mxu0 0
    %6106 = vmatpush1.bf16.msra.mxu0 0
    %6107 = vmatprep.subr.bf16.mxu0 0
    %6108 = vmatpush1.bf16.msra.mxu0 0
    %6109 = vmatprep.subr.bf16.mxu0 0
    %6110 = vmatpush1.bf16.msra.mxu0 0
    %6111 = vmatprep.subr.bf16.mxu0 0
    %6112 = vmatpush1.bf16.msra.mxu0 0
    %6113 = vmatprep.subr.bf16.mxu0 0
    %6114 = vmatpush1.bf16.msra.mxu0 0
    %6115 = vmatprep.subr.bf16.mxu0 0
    %6116 = vmatpush1.bf16.msra.mxu0 0
    %6117 = vmatprep.subr.bf16.mxu0 0
    %6118 = vmatpush1.bf16.msra.mxu0 0
    %6119 = vmatprep.subr.bf16.mxu0 0
    %6120 = vmatpush1.bf16.msra.mxu0 0
    %6121 = vmatprep.subr.bf16.mxu0 0
    %6122 = vmatpush1.bf16.msra.mxu0 0
    %6123 = vmatprep.subr.bf16.mxu0 0
    %6124 = vmatpush1.bf16.msra.mxu0 0
    %6125 = vmatprep.subr.bf16.mxu0 0
    %6126 = vmatpush1.bf16.msra.mxu0 0
    %6127 = vmatprep.subr.bf16.mxu0 0
    %6128 = vmatpush1.bf16.msra.mxu0 0
    %6129 = vmatprep.mubr.bf16.mxu0 0
    %6130 = vmatmul.mubr.bf16.gmra.mrb[0].mxu0 %v6092
    %v6131 = vpop.f32.mrb[0].mxu0
    %v6132 = vadd.f32 0.0, %v6131
    %v6133 = vpop.f32.mrb[0].mxu0
    %v6134 = vpop.f32.mrb[0].mxu0
    %v6135 = vpop.f32.mrb[0].mxu0
    %6136 = vdwg.mxu0
    %v6137 = vadd.f32 %v6086, %v6132
    %v6138 = vld [vmem:[%s4638 + $0x4] sm:$0x3]
    %s6139 = scalar_lea.vmem %s5, 48
    %v6140 = vld [vmem:[%s6139] sm:$0xf]
    %v6141 = vpack.c.bf16 %v6138, %v6138
    %v6143 = vsel %vm565, %v6141, 0
    %v6146 = vsel %vm3284, %v6140, 0
    %6148 = vmatprep.subr.bf16.mxu0 0
    %6149 = vmatpush1.bf16.msra.mxu0 %v6146
    %6150 = vmatprep.subr.bf16.mxu0 0
    %6151 = vmatpush1.bf16.msra.mxu0 0
    %6152 = vmatprep.subr.bf16.mxu0 0
    %6153 = vmatpush1.bf16.msra.mxu0 0
    %6154 = vmatprep.subr.bf16.mxu0 0
    %6155 = vmatpush1.bf16.msra.mxu0 0
    %6156 = vmatprep.subr.bf16.mxu0 0
    %6157 = vmatpush1.bf16.msra.mxu0 0
    %6158 = vmatprep.subr.bf16.mxu0 0
    %6159 = vmatpush1.bf16.msra.mxu0 0
    %6160 = vmatprep.subr.bf16.mxu0 0
    %6161 = vmatpush1.bf16.msra.mxu0 0
    %6162 = vmatprep.subr.bf16.mxu0 0
    %6163 = vmatpush1.bf16.msra.mxu0 0
    %6164 = vmatprep.subr.bf16.mxu0 0
    %6165 = vmatpush1.bf16.msra.mxu0 0
    %6166 = vmatprep.subr.bf16.mxu0 0
    %6167 = vmatpush1.bf16.msra.mxu0 0
    %6168 = vmatprep.subr.bf16.mxu0 0
    %6169 = vmatpush1.bf16.msra.mxu0 0
    %6170 = vmatprep.subr.bf16.mxu0 0
    %6171 = vmatpush1.bf16.msra.mxu0 0
    %6172 = vmatprep.subr.bf16.mxu0 0
    %6173 = vmatpush1.bf16.msra.mxu0 0
    %6174 = vmatprep.subr.bf16.mxu0 0
    %6175 = vmatpush1.bf16.msra.mxu0 0
    %6176 = vmatprep.subr.bf16.mxu0 0
    %6177 = vmatpush1.bf16.msra.mxu0 0
    %6178 = vmatprep.subr.bf16.mxu0 0
    %6179 = vmatpush1.bf16.msra.mxu0 0
    %6180 = vmatprep.mubr.bf16.mxu0 0
    %6181 = vmatmul.mubr.bf16.gmra.mrb[0].mxu0 %v6143
    %v6182 = vpop.f32.mrb[0].mxu0
    %v6183 = vadd.f32 0.0, %v6182
    %v6184 = vpop.f32.mrb[0].mxu0
    %v6185 = vpop.f32.mrb[0].mxu0
    %v6186 = vpop.f32.mrb[0].mxu0
    %6187 = vdwg.mxu0
    %v6188 = vadd.f32 %v6137, %v6183
    %v6189 = vld [vmem:[%s4638 + $0x6] sm:$0x3]
    %s6190 = scalar_lea.vmem %s5, 52
    %v6191 = vld [vmem:[%s6190] sm:$0xf]
    %v6192 = vpack.c.bf16 %v6189, %v6189
    %v6194 = vsel %vm565, %v6192, 0
    %v6197 = vsel %vm3284, %v6191, 0
    %6199 = vmatprep.subr.bf16.mxu0 0
    %6200 = vmatpush1.bf16.msra.mxu0 %v6197
    %6201 = vmatprep.subr.bf16.mxu0 0
    %6202 = vmatpush1.bf16.msra.mxu0 0
    %6203 = vmatprep.subr.bf16.mxu0 0
    %6204 = vmatpush1.bf16.msra.mxu0 0
    %6205 = vmatprep.subr.bf16.mxu0 0
    %6206 = vmatpush1.bf16.msra.mxu0 0
    %6207 = vmatprep.subr.bf16.mxu0 0
    %6208 = vmatpush1.bf16.msra.mxu0 0
    %6209 = vmatprep.subr.bf16.mxu0 0
    %6210 = vmatpush1.bf16.msra.mxu0 0
    %6211 = vmatprep.subr.bf16.mxu0 0
    %6212 = vmatpush1.bf16.msra.mxu0 0
    %6213 = vmatprep.subr.bf16.mxu0 0
    %6214 = vmatpush1.bf16.msra.mxu0 0
    %6215 = vmatprep.subr.bf16.mxu0 0
    %6216 = vmatpush1.bf16.msra.mxu0 0
    %6217 = vmatprep.subr.bf16.mxu0 0
    %6218 = vmatpush1.bf16.msra.mxu0 0
    %6219 = vmatprep.subr.bf16.mxu0 0
    %6220 = vmatpush1.bf16.msra.mxu0 0
    %6221 = vmatprep.subr.bf16.mxu0 0
    %6222 = vmatpush1.bf16.msra.mxu0 0
    %6223 = vmatprep.subr.bf16.mxu0 0
    %6224 = vmatpush1.bf16.msra.mxu0 0
    %6225 = vmatprep.subr.bf16.mxu0 0
    %6226 = vmatpush1.bf16.msra.mxu0 0
    %6227 = vmatprep.subr.bf16.mxu0 0
    %6228 = vmatpush1.bf16.msra.mxu0 0
    %6229 = vmatprep.subr.bf16.mxu0 0
    %6230 = vmatpush1.bf16.msra.mxu0 0
    %6231 = vmatprep.mubr.bf16.mxu0 0
    %6232 = vmatmul.mubr.bf16.gmra.mrb[0].mxu0 %v6194
    %v6233 = vpop.f32.mrb[0].mxu0
    %v6234 = vadd.f32 0.0, %v6233
    %v6235 = vpop.f32.mrb[0].mxu0
    %v6236 = vpop.f32.mrb[0].mxu0
    %v6237 = vpop.f32.mrb[0].mxu0
    %6238 = vdwg.mxu0
    %v6239 = vadd.f32 %v6188, %v6234
    %v6240 = vld [vmem:[%s4638 + $0x8] sm:$0x3]
    %s6241 = scalar_lea.vmem %s5, 56
    %v6242 = vld [vmem:[%s6241] sm:$0xf]
    %v6243 = vpack.c.bf16 %v6240, %v6240
    %v6245 = vsel %vm565, %v6243, 0
    %v6248 = vsel %vm3284, %v6242, 0
    %6250 = vmatprep.subr.bf16.mxu0 0
    %6251 = vmatpush1.bf16.msra.mxu0 %v6248
    %6252 = vmatprep.subr.bf16.mxu0 0
    %6253 = vmatpush1.bf16.msra.mxu0 0
    %6254 = vmatprep.subr.bf16.mxu0 0
    %6255 = vmatpush1.bf16.msra.mxu0 0
    %6256 = vmatprep.subr.bf16.mxu0 0
    %6257 = vmatpush1.bf16.msra.mxu0 0
    %6258 = vmatprep.subr.bf16.mxu0 0
    %6259 = vmatpush1.bf16.msra.mxu0 0
    %6260 = vmatprep.subr.bf16.mxu0 0
    %6261 = vmatpush1.bf16.msra.mxu0 0
    %6262 = vmatprep.subr.bf16.mxu0 0
    %6263 = vmatpush1.bf16.msra.mxu0 0
    %6264 = vmatprep.subr.bf16.mxu0 0
    %6265 = vmatpush1.bf16.msra.mxu0 0
    %6266 = vmatprep.subr.bf16.mxu0 0
    %6267 = vmatpush1.bf16.msra.mxu0 0
    %6268 = vmatprep.subr.bf16.mxu0 0
    %6269 = vmatpush1.bf16.msra.mxu0 0
    %6270 = vmatprep.subr.bf16.mxu0 0
    %6271 = vmatpush1.bf16.msra.mxu0 0
    %6272 = vmatprep.subr.bf16.mxu0 0
    %6273 = vmatpush1.bf16.msra.mxu0 0
    %6274 = vmatprep.subr.bf16.mxu0 0
    %6275 = vmatpush1.bf16.msra.mxu0 0
    %6276 = vmatprep.subr.bf16.mxu0 0
    %6277 = vmatpush1.bf16.msra.mxu0 0
    %6278 = vmatprep.subr.bf16.mxu0 0
    %6279 = vmatpush1.bf16.msra.mxu0 0
    %6280 = vmatprep.subr.bf16.mxu0 0
    %6281 = vmatpush1.bf16.msra.mxu0 0
    %6282 = vmatprep.mubr.bf16.mxu0 0
    %6283 = vmatmul.mubr.bf16.gmra.mrb[0].mxu0 %v6245
    %v6284 = vpop.f32.mrb[0].mxu0
    %v6285 = vadd.f32 0.0, %v6284
    %v6286 = vpop.f32.mrb[0].mxu0
    %v6287 = vpop.f32.mrb[0].mxu0
    %v6288 = vpop.f32.mrb[0].mxu0
    %6289 = vdwg.mxu0
    %v6290 = vadd.f32 %v6239, %v6285
    %v6291 = vld [vmem:[%s5082] sm:$0x3]
    %s6292 = scalar_lea.vmem %s5, 60
    %v6293 = vld [vmem:[%s6292] sm:$0xf]
    %v6294 = vpack.c.bf16 %v6291, %v6291
    %v6296 = vsel %vm565, %v6294, 0
    %v6299 = vsel %vm3284, %v6293, 0
    %6301 = vmatprep.subr.bf16.mxu0 0
    %6302 = vmatpush1.bf16.msra.mxu0 %v6299
    %6303 = vmatprep.subr.bf16.mxu0 0
    %6304 = vmatpush1.bf16.msra.mxu0 0
    %6305 = vmatprep.subr.bf16.mxu0 0
    %6306 = vmatpush1.bf16.msra.mxu0 0
    %6307 = vmatprep.subr.bf16.mxu0 0
    %6308 = vmatpush1.bf16.msra.mxu0 0
    %6309 = vmatprep.subr.bf16.mxu0 0
    %6310 = vmatpush1.bf16.msra.mxu0 0
    %6311 = vmatprep.subr.bf16.mxu0 0
    %6312 = vmatpush1.bf16.msra.mxu0 0
    %6313 = vmatprep.subr.bf16.mxu0 0
    %6314 = vmatpush1.bf16.msra.mxu0 0
    %6315 = vmatprep.subr.bf16.mxu0 0
    %6316 = vmatpush1.bf16.msra.mxu0 0
    %6317 = vmatprep.subr.bf16.mxu0 0
    %6318 = vmatpush1.bf16.msra.mxu0 0
    %6319 = vmatprep.subr.bf16.mxu0 0
    %6320 = vmatpush1.bf16.msra.mxu0 0
    %6321 = vmatprep.subr.bf16.mxu0 0
    %6322 = vmatpush1.bf16.msra.mxu0 0
    %6323 = vmatprep.subr.bf16.mxu0 0
    %6324 = vmatpush1.bf16.msra.mxu0 0
    %6325 = vmatprep.subr.bf16.mxu0 0
    %6326 = vmatpush1.bf16.msra.mxu0 0
    %6327 = vmatprep.subr.bf16.mxu0 0
    %6328 = vmatpush1.bf16.msra.mxu0 0
    %6329 = vmatprep.subr.bf16.mxu0 0
    %6330 = vmatpush1.bf16.msra.mxu0 0
    %6331 = vmatprep.subr.bf16.mxu0 0
    %6332 = vmatpush1.bf16.msra.mxu0 0
    %6333 = vmatprep.mubr.bf16.mxu0 0
    %6334 = vmatmul.mubr.bf16.gmra.mrb[0].mxu0 %v6296
    %v6335 = vpop.f32.mrb[0].mxu0
    %v6336 = vadd.f32 0.0, %v6335
    %v6337 = vpop.f32.mrb[0].mxu0
    %v6338 = vpop.f32.mrb[0].mxu0
    %v6339 = vpop.f32.mrb[0].mxu0
    %6340 = vdwg.mxu0
    %v6341 = vadd.f32 %v6290, %v6336
    %v6342 = vld [vmem:[%s5082 + $0x2] sm:$0x3]
    %s6343 = scalar_lea.vmem %s5, 64
    %v6344 = vld [vmem:[%s6343] sm:$0xf]
    %v6345 = vpack.c.bf16 %v6342, %v6342
    %v6347 = vsel %vm565, %v6345, 0
    %v6350 = vsel %vm3284, %v6344, 0
    %6352 = vmatprep.subr.bf16.mxu0 0
    %6353 = vmatpush1.bf16.msra.mxu0 %v6350
    %6354 = vmatprep.subr.bf16.mxu0 0
    %6355 = vmatpush1.bf16.msra.mxu0 0
    %6356 = vmatprep.subr.bf16.mxu0 0
    %6357 = vmatpush1.bf16.msra.mxu0 0
    %6358 = vmatprep.subr.bf16.mxu0 0
    %6359 = vmatpush1.bf16.msra.mxu0 0
    %6360 = vmatprep.subr.bf16.mxu0 0
    %6361 = vmatpush1.bf16.msra.mxu0 0
    %6362 = vmatprep.subr.bf16.mxu0 0
    %6363 = vmatpush1.bf16.msra.mxu0 0
    %6364 = vmatprep.subr.bf16.mxu0 0
    %6365 = vmatpush1.bf16.msra.mxu0 0
    %6366 = vmatprep.subr.bf16.mxu0 0
    %6367 = vmatpush1.bf16.msra.mxu0 0
    %6368 = vmatprep.subr.bf16.mxu0 0
    %6369 = vmatpush1.bf16.msra.mxu0 0
    %6370 = vmatprep.subr.bf16.mxu0 0
    %6371 = vmatpush1.bf16.msra.mxu0 0
    %6372 = vmatprep.subr.bf16.mxu0 0
    %6373 = vmatpush1.bf16.msra.mxu0 0
    %6374 = vmatprep.subr.bf16.mxu0 0
    %6375 = vmatpush1.bf16.msra.mxu0 0
    %6376 = vmatprep.subr.bf16.mxu0 0
    %6377 = vmatpush1.bf16.msra.mxu0 0
    %6378 = vmatprep.subr.bf16.mxu0 0
    %6379 = vmatpush1.bf16.msra.mxu0 0
    %6380 = vmatprep.subr.bf16.mxu0 0
    %6381 = vmatpush1.bf16.msra.mxu0 0
    %6382 = vmatprep.subr.bf16.mxu0 0
    %6383 = vmatpush1.bf16.msra.mxu0 0
    %6384 = vmatprep.mubr.bf16.mxu0 0
    %6385 = vmatmul.mubr.bf16.gmra.mrb[0].mxu0 %v6347
    %v6386 = vpop.f32.mrb[0].mxu0
    %v6387 = vadd.f32 0.0, %v6386
    %v6388 = vpop.f32.mrb[0].mxu0
    %v6389 = vpop.f32.mrb[0].mxu0
    %v6390 = vpop.f32.mrb[0].mxu0
    %6391 = vdwg.mxu0
    %v6392 = vadd.f32 %v6341, %v6387
    %v6393 = vld [vmem:[%s5082 + $0x4] sm:$0x3]
    %s6394 = scalar_lea.vmem %s5, 68
    %v6395 = vld [vmem:[%s6394] sm:$0xf]
    %v6396 = vpack.c.bf16 %v6393, %v6393
    %v6398 = vsel %vm565, %v6396, 0
    %v6401 = vsel %vm3284, %v6395, 0
    %6403 = vmatprep.subr.bf16.mxu0 0
    %6404 = vmatpush1.bf16.msra.mxu0 %v6401
    %6405 = vmatprep.subr.bf16.mxu0 0
    %6406 = vmatpush1.bf16.msra.mxu0 0
    %6407 = vmatprep.subr.bf16.mxu0 0
    %6408 = vmatpush1.bf16.msra.mxu0 0
    %6409 = vmatprep.subr.bf16.mxu0 0
    %6410 = vmatpush1.bf16.msra.mxu0 0
    %6411 = vmatprep.subr.bf16.mxu0 0
    %6412 = vmatpush1.bf16.msra.mxu0 0
    %6413 = vmatprep.subr.bf16.mxu0 0
    %6414 = vmatpush1.bf16.msra.mxu0 0
    %6415 = vmatprep.subr.bf16.mxu0 0
    %6416 = vmatpush1.bf16.msra.mxu0 0
    %6417 = vmatprep.subr.bf16.mxu0 0
    %6418 = vmatpush1.bf16.msra.mxu0 0
    %6419 = vmatprep.subr.bf16.mxu0 0
    %6420 = vmatpush1.bf16.msra.mxu0 0
    %6421 = vmatprep.subr.bf16.mxu0 0
    %6422 = vmatpush1.bf16.msra.mxu0 0
    %6423 = vmatprep.subr.bf16.mxu0 0
    %6424 = vmatpush1.bf16.msra.mxu0 0
    %6425 = vmatprep.subr.bf16.mxu0 0
    %6426 = vmatpush1.bf16.msra.mxu0 0
    %6427 = vmatprep.subr.bf16.mxu0 0
    %6428 = vmatpush1.bf16.msra.mxu0 0
    %6429 = vmatprep.subr.bf16.mxu0 0
    %6430 = vmatpush1.bf16.msra.mxu0 0
    %6431 = vmatprep.subr.bf16.mxu0 0
    %6432 = vmatpush1.bf16.msra.mxu0 0
    %6433 = vmatprep.subr.bf16.mxu0 0
    %6434 = vmatpush1.bf16.msra.mxu0 0
    %6435 = vmatprep.mubr.bf16.mxu0 0
    %6436 = vmatmul.mubr.bf16.gmra.mrb[0].mxu0 %v6398
    %v6437 = vpop.f32.mrb[0].mxu0
    %v6438 = vadd.f32 0.0, %v6437
    %v6439 = vpop.f32.mrb[0].mxu0
    %v6440 = vpop.f32.mrb[0].mxu0
    %v6441 = vpop.f32.mrb[0].mxu0
    %6442 = vdwg.mxu0
    %v6443 = vadd.f32 %v6392, %v6438
    %v6444 = vld [vmem:[%s5082 + $0x6] sm:$0x3]
    %s6445 = scalar_lea.vmem %s5, 72
    %v6446 = vld [vmem:[%s6445] sm:$0xf]
    %v6447 = vpack.c.bf16 %v6444, %v6444
    %v6449 = vsel %vm565, %v6447, 0
    %v6452 = vsel %vm3284, %v6446, 0
    %6454 = vmatprep.subr.bf16.mxu0 0
    %6455 = vmatpush1.bf16.msra.mxu0 %v6452
    %6456 = vmatprep.subr.bf16.mxu0 0
    %6457 = vmatpush1.bf16.msra.mxu0 0
    %6458 = vmatprep.subr.bf16.mxu0 0
    %6459 = vmatpush1.bf16.msra.mxu0 0
    %6460 = vmatprep.subr.bf16.mxu0 0
    %6461 = vmatpush1.bf16.msra.mxu0 0
    %6462 = vmatprep.subr.bf16.mxu0 0
    %6463 = vmatpush1.bf16.msra.mxu0 0
    %6464 = vmatprep.subr.bf16.mxu0 0
    %6465 = vmatpush1.bf16.msra.mxu0 0
    %6466 = vmatprep.subr.bf16.mxu0 0
    %6467 = vmatpush1.bf16.msra.mxu0 0
    %6468 = vmatprep.subr.bf16.mxu0 0
    %6469 = vmatpush1.bf16.msra.mxu0 0
    %6470 = vmatprep.subr.bf16.mxu0 0
    %6471 = vmatpush1.bf16.msra.mxu0 0
    %6472 = vmatprep.subr.bf16.mxu0 0
    %6473 = vmatpush1.bf16.msra.mxu0 0
    %6474 = vmatprep.subr.bf16.mxu0 0
    %6475 = vmatpush1.bf16.msra.mxu0 0
    %6476 = vmatprep.subr.bf16.mxu0 0
    %6477 = vmatpush1.bf16.msra.mxu0 0
    %6478 = vmatprep.subr.bf16.mxu0 0
    %6479 = vmatpush1.bf16.msra.mxu0 0
    %6480 = vmatprep.subr.bf16.mxu0 0
    %6481 = vmatpush1.bf16.msra.mxu0 0
    %6482 = vmatprep.subr.bf16.mxu0 0
    %6483 = vmatpush1.bf16.msra.mxu0 0
    %6484 = vmatprep.subr.bf16.mxu0 0
    %6485 = vmatpush1.bf16.msra.mxu0 0
    %6486 = vmatprep.mubr.bf16.mxu0 0
    %6487 = vmatmul.mubr.bf16.gmra.mrb[0].mxu0 %v6449
    %v6488 = vpop.f32.mrb[0].mxu0
    %v6489 = vadd.f32 0.0, %v6488
    %v6490 = vpop.f32.mrb[0].mxu0
    %v6491 = vpop.f32.mrb[0].mxu0
    %v6492 = vpop.f32.mrb[0].mxu0
    %6493 = vdwg.mxu0
    %v6494 = vadd.f32 %v6443, %v6489
    %v6495 = vld [vmem:[%s5082 + $0x8] sm:$0x3]
    %s6496 = scalar_lea.vmem %s5, 76
    %v6497 = vld [vmem:[%s6496] sm:$0xf]
    %v6498 = vpack.c.bf16 %v6495, %v6495
    %v6500 = vsel %vm565, %v6498, 0
    %v6503 = vsel %vm3284, %v6497, 0
    %6505 = vmatprep.subr.bf16.mxu0 0
    %6506 = vmatpush1.bf16.msra.mxu0 %v6503
    %6507 = vmatprep.subr.bf16.mxu0 0
    %6508 = vmatpush1.bf16.msra.mxu0 0
    %6509 = vmatprep.subr.bf16.mxu0 0
    %6510 = vmatpush1.bf16.msra.mxu0 0
    %6511 = vmatprep.subr.bf16.mxu0 0
    %6512 = vmatpush1.bf16.msra.mxu0 0
    %6513 = vmatprep.subr.bf16.mxu0 0
    %6514 = vmatpush1.bf16.msra.mxu0 0
    %6515 = vmatprep.subr.bf16.mxu0 0
    %6516 = vmatpush1.bf16.msra.mxu0 0
    %6517 = vmatprep.subr.bf16.mxu0 0
    %6518 = vmatpush1.bf16.msra.mxu0 0
    %6519 = vmatprep.subr.bf16.mxu0 0
    %6520 = vmatpush1.bf16.msra.mxu0 0
    %6521 = vmatprep.subr.bf16.mxu0 0
    %6522 = vmatpush1.bf16.msra.mxu0 0
    %6523 = vmatprep.subr.bf16.mxu0 0
    %6524 = vmatpush1.bf16.msra.mxu0 0
    %6525 = vmatprep.subr.bf16.mxu0 0
    %6526 = vmatpush1.bf16.msra.mxu0 0
    %6527 = vmatprep.subr.bf16.mxu0 0
    %6528 = vmatpush1.bf16.msra.mxu0 0
    %6529 = vmatprep.subr.bf16.mxu0 0
    %6530 = vmatpush1.bf16.msra.mxu0 0
    %6531 = vmatprep.subr.bf16.mxu0 0
    %6532 = vmatpush1.bf16.msra.mxu0 0
    %6533 = vmatprep.subr.bf16.mxu0 0
    %6534 = vmatpush1.bf16.msra.mxu0 0
    %6535 = vmatprep.subr.bf16.mxu0 0
    %6536 = vmatpush1.bf16.msra.mxu0 0
    %6537 = vmatprep.mubr.bf16.mxu0 0
    %6538 = vmatmul.mubr.bf16.gmra.mrb[0].mxu0 %v6500
    %v6539 = vpop.f32.mrb[0].mxu0
    %v6540 = vadd.f32 0.0, %v6539
    %v6541 = vpop.f32.mrb[0].mxu0
    %v6542 = vpop.f32.mrb[0].mxu0
    %v6543 = vpop.f32.mrb[0].mxu0
    %6544 = vdwg.mxu0
    %v6545 = vadd.f32 %v6494, %v6540
    %v6546 = vld [vmem:[%s5526] sm:$0x3]
    %s6547 = scalar_lea.vmem %s5, 80
    %v6548 = vld [vmem:[%s6547] sm:$0xf]
    %v6549 = vpack.c.bf16 %v6546, %v6546
    %v6551 = vsel %vm565, %v6549, 0
    %v6554 = vsel %vm3284, %v6548, 0
    %6556 = vmatprep.subr.bf16.mxu0 0
    %6557 = vmatpush1.bf16.msra.mxu0 %v6554
    %6558 = vmatprep.subr.bf16.mxu0 0
    %6559 = vmatpush1.bf16.msra.mxu0 0
    %6560 = vmatprep.subr.bf16.mxu0 0
    %6561 = vmatpush1.bf16.msra.mxu0 0
    %6562 = vmatprep.subr.bf16.mxu0 0
    %6563 = vmatpush1.bf16.msra.mxu0 0
    %6564 = vmatprep.subr.bf16.mxu0 0
    %6565 = vmatpush1.bf16.msra.mxu0 0
    %6566 = vmatprep.subr.bf16.mxu0 0
    %6567 = vmatpush1.bf16.msra.mxu0 0
    %6568 = vmatprep.subr.bf16.mxu0 0
    %6569 = vmatpush1.bf16.msra.mxu0 0
    %6570 = vmatprep.subr.bf16.mxu0 0
    %6571 = vmatpush1.bf16.msra.mxu0 0
    %6572 = vmatprep.subr.bf16.mxu0 0
    %6573 = vmatpush1.bf16.msra.mxu0 0
    %6574 = vmatprep.subr.bf16.mxu0 0
    %6575 = vmatpush1.bf16.msra.mxu0 0
    %6576 = vmatprep.subr.bf16.mxu0 0
    %6577 = vmatpush1.bf16.msra.mxu0 0
    %6578 = vmatprep.subr.bf16.mxu0 0
    %6579 = vmatpush1.bf16.msra.mxu0 0
    %6580 = vmatprep.subr.bf16.mxu0 0
    %6581 = vmatpush1.bf16.msra.mxu0 0
    %6582 = vmatprep.subr.bf16.mxu0 0
    %6583 = vmatpush1.bf16.msra.mxu0 0
    %6584 = vmatprep.subr.bf16.mxu0 0
    %6585 = vmatpush1.bf16.msra.mxu0 0
    %6586 = vmatprep.subr.bf16.mxu0 0
    %6587 = vmatpush1.bf16.msra.mxu0 0
    %6588 = vmatprep.mubr.bf16.mxu0 0
    %6589 = vmatmul.mubr.bf16.gmra.mrb[0].mxu0 %v6551
    %v6590 = vpop.f32.mrb[0].mxu0
    %v6591 = vadd.f32 0.0, %v6590
    %v6592 = vpop.f32.mrb[0].mxu0
    %v6593 = vpop.f32.mrb[0].mxu0
    %v6594 = vpop.f32.mrb[0].mxu0
    %6595 = vdwg.mxu0
    %v6596 = vadd.f32 %v6545, %v6591
    %v6597 = vld [vmem:[%s5526 + $0x2] sm:$0x3]
    %s6598 = scalar_lea.vmem %s5, 84
    %v6599 = vld [vmem:[%s6598] sm:$0xf]
    %v6600 = vpack.c.bf16 %v6597, %v6597
    %v6602 = vsel %vm565, %v6600, 0
    %v6605 = vsel %vm3284, %v6599, 0
    %6607 = vmatprep.subr.bf16.mxu0 0
    %6608 = vmatpush1.bf16.msra.mxu0 %v6605
    %6609 = vmatprep.subr.bf16.mxu0 0
    %6610 = vmatpush1.bf16.msra.mxu0 0
    %6611 = vmatprep.subr.bf16.mxu0 0
    %6612 = vmatpush1.bf16.msra.mxu0 0
    %6613 = vmatprep.subr.bf16.mxu0 0
    %6614 = vmatpush1.bf16.msra.mxu0 0
    %6615 = vmatprep.subr.bf16.mxu0 0
    %6616 = vmatpush1.bf16.msra.mxu0 0
    %6617 = vmatprep.subr.bf16.mxu0 0
    %6618 = vmatpush1.bf16.msra.mxu0 0
    %6619 = vmatprep.subr.bf16.mxu0 0
    %6620 = vmatpush1.bf16.msra.mxu0 0
    %6621 = vmatprep.subr.bf16.mxu0 0
    %6622 = vmatpush1.bf16.msra.mxu0 0
    %6623 = vmatprep.subr.bf16.mxu0 0
    %6624 = vmatpush1.bf16.msra.mxu0 0
    %6625 = vmatprep.subr.bf16.mxu0 0
    %6626 = vmatpush1.bf16.msra.mxu0 0
    %6627 = vmatprep.subr.bf16.mxu0 0
    %6628 = vmatpush1.bf16.msra.mxu0 0
    %6629 = vmatprep.subr.bf16.mxu0 0
    %6630 = vmatpush1.bf16.msra.mxu0 0
    %6631 = vmatprep.subr.bf16.mxu0 0
    %6632 = vmatpush1.bf16.msra.mxu0 0
    %6633 = vmatprep.subr.bf16.mxu0 0
    %6634 = vmatpush1.bf16.msra.mxu0 0
    %6635 = vmatprep.subr.bf16.mxu0 0
    %6636 = vmatpush1.bf16.msra.mxu0 0
    %6637 = vmatprep.subr.bf16.mxu0 0
    %6638 = vmatpush1.bf16.msra.mxu0 0
    %6639 = vmatprep.mubr.bf16.mxu0 0
    %6640 = vmatmul.mubr.bf16.gmra.mrb[0].mxu0 %v6602
    %v6641 = vpop.f32.mrb[0].mxu0
    %v6642 = vadd.f32 0.0, %v6641
    %v6643 = vpop.f32.mrb[0].mxu0
    %v6644 = vpop.f32.mrb[0].mxu0
    %v6645 = vpop.f32.mrb[0].mxu0
    %6646 = vdwg.mxu0
    %v6647 = vadd.f32 %v6596, %v6642
    %v6648 = vld [vmem:[%s5526 + $0x4] sm:$0x3]
    %s6649 = scalar_lea.vmem %s5, 88
    %v6650 = vld [vmem:[%s6649] sm:$0xf]
    %v6651 = vpack.c.bf16 %v6648, %v6648
    %v6653 = vsel %vm565, %v6651, 0
    %v6656 = vsel %vm3284, %v6650, 0
    %6658 = vmatprep.subr.bf16.mxu0 0
    %6659 = vmatpush1.bf16.msra.mxu0 %v6656
    %6660 = vmatprep.subr.bf16.mxu0 0
    %6661 = vmatpush1.bf16.msra.mxu0 0
    %6662 = vmatprep.subr.bf16.mxu0 0
    %6663 = vmatpush1.bf16.msra.mxu0 0
    %6664 = vmatprep.subr.bf16.mxu0 0
    %6665 = vmatpush1.bf16.msra.mxu0 0
    %6666 = vmatprep.subr.bf16.mxu0 0
    %6667 = vmatpush1.bf16.msra.mxu0 0
    %6668 = vmatprep.subr.bf16.mxu0 0
    %6669 = vmatpush1.bf16.msra.mxu0 0
    %6670 = vmatprep.subr.bf16.mxu0 0
    %6671 = vmatpush1.bf16.msra.mxu0 0
    %6672 = vmatprep.subr.bf16.mxu0 0
    %6673 = vmatpush1.bf16.msra.mxu0 0
    %6674 = vmatprep.subr.bf16.mxu0 0
    %6675 = vmatpush1.bf16.msra.mxu0 0
    %6676 = vmatprep.subr.bf16.mxu0 0
    %6677 = vmatpush1.bf16.msra.mxu0 0
    %6678 = vmatprep.subr.bf16.mxu0 0
    %6679 = vmatpush1.bf16.msra.mxu0 0
    %6680 = vmatprep.subr.bf16.mxu0 0
    %6681 = vmatpush1.bf16.msra.mxu0 0
    %6682 = vmatprep.subr.bf16.mxu0 0
    %6683 = vmatpush1.bf16.msra.mxu0 0
    %6684 = vmatprep.subr.bf16.mxu0 0
    %6685 = vmatpush1.bf16.msra.mxu0 0
    %6686 = vmatprep.subr.bf16.mxu0 0
    %6687 = vmatpush1.bf16.msra.mxu0 0
    %6688 = vmatprep.subr.bf16.mxu0 0
    %6689 = vmatpush1.bf16.msra.mxu0 0
    %6690 = vmatprep.mubr.bf16.mxu0 0
    %6691 = vmatmul.mubr.bf16.gmra.mrb[0].mxu0 %v6653
    %v6692 = vpop.f32.mrb[0].mxu0
    %v6693 = vadd.f32 0.0, %v6692
    %v6694 = vpop.f32.mrb[0].mxu0
    %v6695 = vpop.f32.mrb[0].mxu0
    %v6696 = vpop.f32.mrb[0].mxu0
    %6697 = vdwg.mxu0
    %v6698 = vadd.f32 %v6647, %v6693
    %v6699 = vld [vmem:[%s5526 + $0x6] sm:$0x3]
    %s6700 = scalar_lea.vmem %s5, 92
    %v6701 = vld [vmem:[%s6700] sm:$0xf]
    %v6702 = vpack.c.bf16 %v6699, %v6699
    %v6704 = vsel %vm565, %v6702, 0
    %v6707 = vsel %vm3284, %v6701, 0
    %6709 = vmatprep.subr.bf16.mxu0 0
    %6710 = vmatpush1.bf16.msra.mxu0 %v6707
    %6711 = vmatprep.subr.bf16.mxu0 0
    %6712 = vmatpush1.bf16.msra.mxu0 0
    %6713 = vmatprep.subr.bf16.mxu0 0
    %6714 = vmatpush1.bf16.msra.mxu0 0
    %6715 = vmatprep.subr.bf16.mxu0 0
    %6716 = vmatpush1.bf16.msra.mxu0 0
    %6717 = vmatprep.subr.bf16.mxu0 0
    %6718 = vmatpush1.bf16.msra.mxu0 0
    %6719 = vmatprep.subr.bf16.mxu0 0
    %6720 = vmatpush1.bf16.msra.mxu0 0
    %6721 = vmatprep.subr.bf16.mxu0 0
    %6722 = vmatpush1.bf16.msra.mxu0 0
    %6723 = vmatprep.subr.bf16.mxu0 0
    %6724 = vmatpush1.bf16.msra.mxu0 0
    %6725 = vmatprep.subr.bf16.mxu0 0
    %6726 = vmatpush1.bf16.msra.mxu0 0
    %6727 = vmatprep.subr.bf16.mxu0 0
    %6728 = vmatpush1.bf16.msra.mxu0 0
    %6729 = vmatprep.subr.bf16.mxu0 0
    %6730 = vmatpush1.bf16.msra.mxu0 0
    %6731 = vmatprep.subr.bf16.mxu0 0
    %6732 = vmatpush1.bf16.msra.mxu0 0
    %6733 = vmatprep.subr.bf16.mxu0 0
    %6734 = vmatpush1.bf16.msra.mxu0 0
    %6735 = vmatprep.subr.bf16.mxu0 0
    %6736 = vmatpush1.bf16.msra.mxu0 0
    %6737 = vmatprep.subr.bf16.mxu0 0
    %6738 = vmatpush1.bf16.msra.mxu0 0
    %6739 = vmatprep.subr.bf16.mxu0 0
    %6740 = vmatpush1.bf16.msra.mxu0 0
    %6741 = vmatprep.mubr.bf16.mxu0 0
    %6742 = vmatmul.mubr.bf16.gmra.mrb[0].mxu0 %v6704
    %v6743 = vpop.f32.mrb[0].mxu0
    %v6744 = vadd.f32 0.0, %v6743
    %v6745 = vpop.f32.mrb[0].mxu0
    %v6746 = vpop.f32.mrb[0].mxu0
    %v6747 = vpop.f32.mrb[0].mxu0
    %6748 = vdwg.mxu0
    %v6749 = vadd.f32 %v6698, %v6744
    %v6750 = vld [vmem:[%s5526 + $0x8] sm:$0x3]
    %s6751 = scalar_lea.vmem %s5, 96
    %v6752 = vld [vmem:[%s6751] sm:$0xf]
    %v6753 = vpack.c.bf16 %v6750, %v6750
    %v6755 = vsel %vm565, %v6753, 0
    %v6758 = vsel %vm3284, %v6752, 0
    %6760 = vmatprep.subr.bf16.mxu0 0
    %6761 = vmatpush1.bf16.msra.mxu0 %v6758
    %6762 = vmatprep.subr.bf16.mxu0 0
    %6763 = vmatpush1.bf16.msra.mxu0 0
    %6764 = vmatprep.subr.bf16.mxu0 0
    %6765 = vmatpush1.bf16.msra.mxu0 0
    %6766 = vmatprep.subr.bf16.mxu0 0
    %6767 = vmatpush1.bf16.msra.mxu0 0
    %6768 = vmatprep.subr.bf16.mxu0 0
    %6769 = vmatpush1.bf16.msra.mxu0 0
    %6770 = vmatprep.subr.bf16.mxu0 0
    %6771 = vmatpush1.bf16.msra.mxu0 0
    %6772 = vmatprep.subr.bf16.mxu0 0
    %6773 = vmatpush1.bf16.msra.mxu0 0
    %6774 = vmatprep.subr.bf16.mxu0 0
    %6775 = vmatpush1.bf16.msra.mxu0 0
    %6776 = vmatprep.subr.bf16.mxu0 0
    %6777 = vmatpush1.bf16.msra.mxu0 0
    %6778 = vmatprep.subr.bf16.mxu0 0
    %6779 = vmatpush1.bf16.msra.mxu0 0
    %6780 = vmatprep.subr.bf16.mxu0 0
    %6781 = vmatpush1.bf16.msra.mxu0 0
    %6782 = vmatprep.subr.bf16.mxu0 0
    %6783 = vmatpush1.bf16.msra.mxu0 0
    %6784 = vmatprep.subr.bf16.mxu0 0
    %6785 = vmatpush1.bf16.msra.mxu0 0
    %6786 = vmatprep.subr.bf16.mxu0 0
    %6787 = vmatpush1.bf16.msra.mxu0 0
    %6788 = vmatprep.subr.bf16.mxu0 0
    %6789 = vmatpush1.bf16.msra.mxu0 0
    %6790 = vmatprep.subr.bf16.mxu0 0
    %6791 = vmatpush1.bf16.msra.mxu0 0
    %6792 = vmatprep.mubr.bf16.mxu0 0
    %6793 = vmatmul.mubr.bf16.gmra.mrb[0].mxu0 %v6755
    %v6794 = vpop.f32.mrb[0].mxu0
    %v6795 = vadd.f32 0.0, %v6794
    %v6796 = vpop.f32.mrb[0].mxu0
    %v6797 = vpop.f32.mrb[0].mxu0
    %v6798 = vpop.f32.mrb[0].mxu0
    %6799 = vdwg.mxu0
    %v6800 = vadd.f32 %v6749, %v6795
    %v6801 = vld [vmem:[%s6] sm:$0x1]
    %v6803 = vlaneseq
    %v6804 = vshrl.u32 %v6803, 7
    %v6805 = vsub.s32 0, %v6804
    %v6806 = vrot.slane %v6801, %v6805
    %v6808 = vadd.f32 %v6800, %v6806
    %vm6809 = vcmask 254976
    %v6810 = vsel %vm6809, %v6808, 0.0
    %6811 = vadd.xlane.f32.xlu0 %v6810
    %v6812 = vpop.xlane.xlu0 %6811
    %v6813 = vrcp.pop 32.0
    %v6814 = vmul.f32 %v6812, %v6813
    %v6815 = vsub.f32 %v6808, %v6814
    %v6816 = vmul.f32 %v6815, %v6815
    %v6817 = vsel %vm6809, %v6816, 0.0
    %6818 = vadd.xlane.f32.xlu0 %v6817
    %v6819 = vpop.xlane.xlu0 %6818
    %v6820 = vmul.f32 %v6819, %v6813
    %v6821 = vadd.f32 %v6820, 1e-05
    %v6822 = vrsqrt.pop %v6821
    %v6823 = vmul.f32 %v6815, %v6822
    %v6824 = vld [vmem:[%s7] sm:$0x1]
    %v6826 = vlaneseq
    %v6827 = vshrl.u32 %v6826, 7
    %v6828 = vsub.s32 0, %v6827
    %v6829 = vrot.slane %v6824, %v6828
    %v6831 = vmul.f32 %v6823, %v6829
    %v6832 = vld [vmem:[%s8] sm:$0x1]
    %v6834 = vlaneseq
    %v6835 = vshrl.u32 %v6834, 7
    %v6836 = vsub.s32 0, %v6835
    %v6837 = vrot.slane %v6832, %v6836
    %v6839 = vadd.f32 %v6831, %v6837
    %v6840 = vld [vmem:[%s9] sm:$0xf]
    %v6841 = vld [vmem:[%s9 + $0x4] sm:$0xf]
    %v6842 = vld [vmem:[%s9 + $0x8] sm:$0xf]
    %v6843 = vld [vmem:[%s9 + $0xc] sm:$0xf]
    %v6844 = vpack.c.bf16 %v6839, %v6839
    %v6845 = vld [vmem:[%s10] sm:$0x1]
    %v6847 = vlaneseq
    %v6848 = vshrl.u32 %v6847, 7
    %v6849 = vsub.s32 0, %v6848
    %v6850 = vrot.slane %v6845, %v6849
    %v6856 = vunpack.c.l.b16 %v6840
    %v6857 = vunpack.c.l.b16 %v6841
    %v6858 = vunpack.c.l.b16 %v6842
    %v6859 = vunpack.c.l.b16 %v6843
    %v6860 = vpack.c.b16 %v6857, %v6856
    %v6861 = vpack.c.b16 %v6859, %v6858
    %vm6864 = vcmask 261120
    %v6866 = vsel %vm6864, %v6844, 0
    %6868 = vmatprep.subr.bf16.mxu0 0
    %6869 = vmatpush1.bf16.msra.mxu0 %v6860
    %6870 = vmatprep.subr.bf16.mxu0 0
    %6871 = vmatpush1.bf16.msra.mxu0 %v6861
    %6872 = vmatprep.subr.bf16.mxu0 0
    %6873 = vmatpush1.bf16.msra.mxu0 0
    %6874 = vmatprep.subr.bf16.mxu0 0
    %6875 = vmatpush1.bf16.msra.mxu0 0
    %6876 = vmatprep.subr.bf16.mxu0 0
    %6877 = vmatpush1.bf16.msra.mxu0 0
    %6878 = vmatprep.subr.bf16.mxu0 0
    %6879 = vmatpush1.bf16.msra.mxu0 0
    %6880 = vmatprep.subr.bf16.mxu0 0
    %6881 = vmatpush1.bf16.msra.mxu0 0
    %6882 = vmatprep.subr.bf16.mxu0 0
    %6883 = vmatpush1.bf16.msra.mxu0 0
    %6884 = vmatprep.subr.bf16.mxu0 0
    %6885 = vmatpush1.bf16.msra.mxu0 0
    %6886 = vmatprep.subr.bf16.mxu0 0
    %6887 = vmatpush1.bf16.msra.mxu0 0
    %6888 = vmatprep.subr.bf16.mxu0 0
    %6889 = vmatpush1.bf16.msra.mxu0 0
    %6890 = vmatprep.subr.bf16.mxu0 0
    %6891 = vmatpush1.bf16.msra.mxu0 0
    %6892 = vmatprep.subr.bf16.mxu0 0
    %6893 = vmatpush1.bf16.msra.mxu0 0
    %6894 = vmatprep.subr.bf16.mxu0 0
    %6895 = vmatpush1.bf16.msra.mxu0 0
    %6896 = vmatprep.subr.bf16.mxu0 0
    %6897 = vmatpush1.bf16.msra.mxu0 0
    %6898 = vmatprep.subr.bf16.mxu0 0
    %6899 = vmatpush1.bf16.msra.mxu0 0
    %6900 = vmatprep.mubr.bf16.mxu0 0
    %6901 = vmatmul.mubr.bf16.gmra.mrb[0].mxu0 %v6866
    %v6902 = vpop.f32.mrb[0].mxu0
    %v6903 = vadd.f32 %v6850, %v6902
    %v6904 = vpop.f32.mrb[0].mxu0
    %v6905 = vpop.f32.mrb[0].mxu0
    %v6906 = vpop.f32.mrb[0].mxu0
    %6907 = vdwg.mxu0
    %v6908 = vmax.f32 %v6903, 0.0
    %v6909 = vld [vmem:[%s11] sm:$0xf]
    %v6910 = vld [vmem:[%s11 + $0x4] sm:$0xf]
    %v6911 = vld [vmem:[%s11 + $0x8] sm:$0xf]
    %v6912 = vld [vmem:[%s11 + $0xc] sm:$0xf]
    %v6913 = vpack.c.bf16 %v6908, %v6908
    %v6914 = vld [vmem:[%s12] sm:$0x1]
    %v6916 = vlaneseq
    %v6917 = vshrl.u32 %v6916, 7
    %v6918 = vsub.s32 0, %v6917
    %v6919 = vrot.slane %v6914, %v6918
    %v6925 = vunpack.c.l.b16 %v6909
    %v6926 = vunpack.c.l.b16 %v6910
    %v6927 = vunpack.c.l.b16 %v6911
    %v6928 = vunpack.c.l.b16 %v6912
    %v6929 = vpack.c.b16 %v6926, %v6925
    %v6930 = vpack.c.b16 %v6928, %v6927
    %v6934 = vsel %vm6864, %v6913, 0
    %6936 = vmatprep.subr.bf16.mxu0 0
    %6937 = vmatpush1.bf16.msra.mxu0 %v6929
    %6938 = vmatprep.subr.bf16.mxu0 0
    %6939 = vmatpush1.bf16.msra.mxu0 %v6930
    %6940 = vmatprep.subr.bf16.mxu0 0
    %6941 = vmatpush1.bf16.msra.mxu0 0
    %6942 = vmatprep.subr.bf16.mxu0 0
    %6943 = vmatpush1.bf16.msra.mxu0 0
    %6944 = vmatprep.subr.bf16.mxu0 0
    %6945 = vmatpush1.bf16.msra.mxu0 0
    %6946 = vmatprep.subr.bf16.mxu0 0
    %6947 = vmatpush1.bf16.msra.mxu0 0
    %6948 = vmatprep.subr.bf16.mxu0 0
    %6949 = vmatpush1.bf16.msra.mxu0 0
    %6950 = vmatprep.subr.bf16.mxu0 0
    %6951 = vmatpush1.bf16.msra.mxu0 0
    %6952 = vmatprep.subr.bf16.mxu0 0
    %6953 = vmatpush1.bf16.msra.mxu0 0
    %6954 = vmatprep.subr.bf16.mxu0 0
    %6955 = vmatpush1.bf16.msra.mxu0 0
    %6956 = vmatprep.subr.bf16.mxu0 0
    %6957 = vmatpush1.bf16.msra.mxu0 0
    %6958 = vmatprep.subr.bf16.mxu0 0
    %6959 = vmatpush1.bf16.msra.mxu0 0
    %6960 = vmatprep.subr.bf16.mxu0 0
    %6961 = vmatpush1.bf16.msra.mxu0 0
    %6962 = vmatprep.subr.bf16.mxu0 0
    %6963 = vmatpush1.bf16.msra.mxu0 0
    %6964 = vmatprep.subr.bf16.mxu0 0
    %6965 = vmatpush1.bf16.msra.mxu0 0
    %6966 = vmatprep.subr.bf16.mxu0 0
    %6967 = vmatpush1.bf16.msra.mxu0 0
    %6968 = vmatprep.mubr.bf16.mxu0 0
    %6969 = vmatmul.mubr.bf16.gmra.mrb[0].mxu0 %v6934
    %v6970 = vpop.f32.mrb[0].mxu0
    %v6971 = vadd.f32 %v6919, %v6970
    %v6972 = vpop.f32.mrb[0].mxu0
    %v6973 = vpop.f32.mrb[0].mxu0
    %v6974 = vpop.f32.mrb[0].mxu0
    %6975 = vdwg.mxu0
    %v6976 = vmax.f32 %v6971, 0.0
    %v6977 = vld [vmem:[%s13] sm:$0xf]
    %v6978 = vld [vmem:[%s13 + $0x4] sm:$0xf]
    %v6979 = vld [vmem:[%s13 + $0x8] sm:$0xf]
    %v6980 = vld [vmem:[%s13 + $0xc] sm:$0xf]
    %v6981 = vpack.c.bf16 %v6976, %v6976
    %v6982 = vld [vmem:[%s14] sm:$0x1]
    %v6984 = vlaneseq
    %v6985 = vshrl.u32 %v6984, 7
    %v6986 = vsub.s32 0, %v6985
    %v6987 = vrot.slane %v6982, %v6986
    %v6993 = vunpack.c.l.b16 %v6977
    %v6994 = vunpack.c.l.b16 %v6978
    %v6995 = vunpack.c.l.b16 %v6979
    %v6996 = vunpack.c.l.b16 %v6980
    %v6997 = vpack.c.b16 %v6994, %v6993
    %v6998 = vpack.c.b16 %v6996, %v6995
    %v7002 = vsel %vm6864, %v6981, 0
    %7004 = vmatprep.subr.bf16.mxu0 0
    %7005 = vmatpush1.bf16.msra.mxu0 %v6997
    %7006 = vmatprep.subr.bf16.mxu0 0
    %7007 = vmatpush1.bf16.msra.mxu0 %v6998
    %7008 = vmatprep.subr.bf16.mxu0 0
    %7009 = vmatpush1.bf16.msra.mxu0 0
    %7010 = vmatprep.subr.bf16.mxu0 0
    %7011 = vmatpush1.bf16.msra.mxu0 0
    %7012 = vmatprep.subr.bf16.mxu0 0
    %7013 = vmatpush1.bf16.msra.mxu0 0
    %7014 = vmatprep.subr.bf16.mxu0 0
    %7015 = vmatpush1.bf16.msra.mxu0 0
    %7016 = vmatprep.subr.bf16.mxu0 0
    %7017 = vmatpush1.bf16.msra.mxu0 0
    %7018 = vmatprep.subr.bf16.mxu0 0
    %7019 = vmatpush1.bf16.msra.mxu0 0
    %7020 = vmatprep.subr.bf16.mxu0 0
    %7021 = vmatpush1.bf16.msra.mxu0 0
    %7022 = vmatprep.subr.bf16.mxu0 0
    %7023 = vmatpush1.bf16.msra.mxu0 0
    %7024 = vmatprep.subr.bf16.mxu0 0
    %7025 = vmatpush1.bf16.msra.mxu0 0
    %7026 = vmatprep.subr.bf16.mxu0 0
    %7027 = vmatpush1.bf16.msra.mxu0 0
    %7028 = vmatprep.subr.bf16.mxu0 0
    %7029 = vmatpush1.bf16.msra.mxu0 0
    %7030 = vmatprep.subr.bf16.mxu0 0
    %7031 = vmatpush1.bf16.msra.mxu0 0
    %7032 = vmatprep.subr.bf16.mxu0 0
    %7033 = vmatpush1.bf16.msra.mxu0 0
    %7034 = vmatprep.subr.bf16.mxu0 0
    %7035 = vmatpush1.bf16.msra.mxu0 0
    %7036 = vmatprep.mubr.bf16.mxu0 0
    %7037 = vmatmul.mubr.bf16.gmra.mrb[0].mxu0 %v7002
    %v7038 = vpop.f32.mrb[0].mxu0
    %v7039 = vadd.f32 %v6987, %v7038
    %v7040 = vpop.f32.mrb[0].mxu0
    %v7041 = vpop.f32.mrb[0].mxu0
    %v7042 = vpop.f32.mrb[0].mxu0
    %7043 = vdwg.mxu0
    %v7044 = vld [vmem:[%s15] sm:$0xf]
    %v7045 = vld [vmem:[%s15 + $0x4] sm:$0xf]
    %v7046 = vld [vmem:[%s15 + $0x8] sm:$0xf]
    %v7047 = vld [vmem:[%s15 + $0xc] sm:$0xf]
    %v7048 = vld [vmem:[%s16] sm:$0x1]
    %v7050 = vlaneseq
    %v7051 = vshrl.u32 %v7050, 7
    %v7052 = vsub.s32 0, %v7051
    %v7053 = vrot.slane %v7048, %v7052
    %v7059 = vunpack.c.l.b16 %v7044
    %v7060 = vunpack.c.l.b16 %v7045
    %v7061 = vunpack.c.l.b16 %v7046
    %v7062 = vunpack.c.l.b16 %v7047
    %v7063 = vpack.c.b16 %v7060, %v7059
    %v7064 = vpack.c.b16 %v7062, %v7061
    %7067 = vmatprep.subr.bf16.mxu0 0
    %7068 = vmatpush1.bf16.msra.mxu0 %v7063
    %7069 = vmatprep.subr.bf16.mxu0 0
    %7070 = vmatpush1.bf16.msra.mxu0 %v7064
    %7071 = vmatprep.subr.bf16.mxu0 0
    %7072 = vmatpush1.bf16.msra.mxu0 0
    %7073 = vmatprep.subr.bf16.mxu0 0
    %7074 = vmatpush1.bf16.msra.mxu0 0
    %7075 = vmatprep.subr.bf16.mxu0 0
    %7076 = vmatpush1.bf16.msra.mxu0 0
    %7077 = vmatprep.subr.bf16.mxu0 0
    %7078 = vmatpush1.bf16.msra.mxu0 0
    %7079 = vmatprep.subr.bf16.mxu0 0
    %7080 = vmatpush1.bf16.msra.mxu0 0
    %7081 = vmatprep.subr.bf16.mxu0 0
    %7082 = vmatpush1.bf16.msra.mxu0 0
    %7083 = vmatprep.subr.bf16.mxu0 0
    %7084 = vmatpush1.bf16.msra.mxu0 0
    %7085 = vmatprep.subr.bf16.mxu0 0
    %7086 = vmatpush1.bf16.msra.mxu0 0
    %7087 = vmatprep.subr.bf16.mxu0 0
    %7088 = vmatpush1.bf16.msra.mxu0 0
    %7089 = vmatprep.subr.bf16.mxu0 0
    %7090 = vmatpush1.bf16.msra.mxu0 0
    %7091 = vmatprep.subr.bf16.mxu0 0
    %7092 = vmatpush1.bf16.msra.mxu0 0
    %7093 = vmatprep.subr.bf16.mxu0 0
    %7094 = vmatpush1.bf16.msra.mxu0 0
    %7095 = vmatprep.subr.bf16.mxu0 0
    %7096 = vmatpush1.bf16.msra.mxu0 0
    %7097 = vmatprep.subr.bf16.mxu0 0
    %7098 = vmatpush1.bf16.msra.mxu0 0
    %7099 = vmatprep.mubr.bf16.mxu0 0
    %7100 = vmatmul.mubr.bf16.gmra.mrb[0].mxu0 %v7002
    %v7101 = vpop.f32.mrb[0].mxu0
    %v7102 = vadd.f32 %v7053, %v7101
    %v7103 = vpop.f32.mrb[0].mxu0
    %v7104 = vpop.f32.mrb[0].mxu0
    %v7105 = vpop.f32.mrb[0].mxu0
    %7106 = vdwg.mxu0
    %v7107 = vtanh.pop %v7102
    %v7108 = vadd.f32 %v7107, 1.0
    %v7109 = vmul.f32 %v7108, 6.0
    %v7110 = vadd.f32 %v7109, -10.0
    %v7111 = vmul.f32 %v7110, 1.442695
    %v7112 = vpow.pop %v7111
    %v7113 = vld [vmem:[%s17] sm:$0x3]
    %v7114 = vmul.f32 %v7113, %v7112
    %v7115 = vadd.f32 %v7039, %v7114
    %v7116 = vmul.f32 %v7113, -0.5
    %v7117 = vmul.f32 %v7116, %v7113
    %v7118 = vsub.f32 %v7117, %v7110
    %vm7119 = vcmask 25600
    %v7120 = vsel %vm7119, %v7118, 0.0
    %7121 = vadd.xlane.f32.xlu0 %v7120
    %v7122 = vpop.xlane.xlu0 %7121
    %v7123 = vsub.f32 %v7122, 3.675754
    %v7124 = vtanh.pop %v7039
    %v7125 = vtanh.pop %v7115
    %v7126 = vmul.f32 %v7125, %v7125
    %v7127 = vsub.f32 1.0, %v7126
    %v7128 = vmax.f32 %v7127, 0.0
    %v7129 = vadd.f32 %v7128, 1e-06
    %v7130 = vlog2.pop %v7129
    %v7131 = vmul.f32 %v7130, 0.6931472
    %v7132 = vsel %vm7119, %v7131, 0.0
    %7133 = vadd.xlane.f32.xlu0 %v7132
    %v7134 = vpop.xlane.xlu0 %7133
    %v7135 = vsub.f32 %v7123, %v7134
    %7136 = vst.msk [vmem:[#allocation4] sm:$0x3] %vm7119, %v7124
    %7137 = vst.msk [vmem:[#allocation6] sm:$0x3] %vm7119, %v7125
    %vm7138 = vcmask 1024
    %7139 = vst.msk [vmem:[%s20] sm:$0x3] %vm7138, %v7135
    %7140 = vst.msk [vmem:[#allocation8] sm:$0x3] %vm7119, %v7110
    // Predicated region
    $region74: #{actor_forward.1} parent=1 // pred_check
      _
    $region75: #{actor_forward.1} parent=1 // pred_check_branch
      %7142 = sbr.rel (0) target = $region77
    $region76: #{actor_forward.1} parent=1 // pred_region
      %s7144 = ssub.s32 32, 32
      %7145 = vsyncadd [#allocation5], %s7144
      %s7147 = sshll.u32 [#allocation4], 4
      %s7148 = int_to_ptr.vmem [resolvable:$true] %s7147
      %7150 = dma.vmem_to_hbm [thread:$0]  %s7148, 32, %s18, [#allocation5]
    $region77: #{actor_forward.1} parent=1 // pred_fallthru
      _
    // Predicated region
    $region78: #{actor_forward.1} parent=1 // pred_check
      _
    $region79: #{actor_forward.1} parent=1 // pred_check_branch
      %7152 = sbr.rel (0) target = $region81
    $region80: #{actor_forward.1} parent=1 // pred_region
      %s7154 = ssub.s32 32, 32
      %7155 = vsyncadd [#allocation7], %s7154
      %s7157 = sshll.u32 [#allocation6], 4
      %s7158 = int_to_ptr.vmem [resolvable:$true] %s7157
      %7160 = dma.vmem_to_hbm [thread:$0]  %s7158, 32, %s19, [#allocation7]
    $region81: #{actor_forward.1} parent=1 // pred_fallthru
      _
    // Predicated region
    $region82: #{actor_forward.1} parent=1 // pred_check
      _
    $region83: #{actor_forward.1} parent=1 // pred_check_branch
      %7162 = sbr.rel (0) target = $region85
    $region84: #{actor_forward.1} parent=1 // pred_region
      _
    $region85: #{actor_forward.1} parent=1 // pred_fallthru
      _
    // Predicated region
    $region86: #{actor_forward.1} parent=1 // pred_check
      _
    $region87: #{actor_forward.1} parent=1 // pred_check_branch
      %7164 = sbr.rel (0) target = $region89
    $region88: #{actor_forward.1} parent=1 // pred_region
      %s7166 = ssub.s32 32, 32
      %7167 = vsyncadd [#allocation7], %s7166
      %s7169 = sshll.u32 [#allocation8], 4
      %s7170 = int_to_ptr.vmem [resolvable:$true] %s7169
      %7172 = dma.vmem_to_hbm [thread:$0]  %s7170, 32, %s21, [#allocation7]
    $region89: #{actor_forward.1} parent=1 // pred_fallthru
      _
    // Predicated region
    $region90: #{actor_forward.1} parent=1 // pred_check
      _
    $region91: #{actor_forward.1} parent=1 // pred_check_branch
      %7174 = sbr.rel (0) target = $region93
    $region92: #{actor_forward.1} parent=1 // pred_region
      %7175 = dma.done [#allocation5], 32
    $region93: #{actor_forward.1} parent=1 // pred_fallthru
      _
    // Predicated region
    $region94: #{actor_forward.1} parent=1 // pred_check
      _
    $region95: #{actor_forward.1} parent=1 // pred_check_branch
      %7177 = sbr.rel (0) target = $region97
    $region96: #{actor_forward.1} parent=1 // pred_region
      %7178 = dma.done [#allocation7], 32
    $region97: #{actor_forward.1} parent=1 // pred_fallthru
      _
    // Predicated region
    $region98: #{actor_forward.1} parent=1 // pred_check
      _
    $region99: #{actor_forward.1} parent=1 // pred_check_branch
      %7180 = sbr.rel (0) target = $region101
    $region100: #{actor_forward.1} parent=1 // pred_region
      _
    $region101: #{actor_forward.1} parent=1 // pred_fallthru
      _
    // Predicated region
    $region102: #{actor_forward.1} parent=1 // pred_check
      _
    $region103: #{actor_forward.1} parent=1 // pred_check_branch
      %7182 = sbr.rel (0) target = $region105
    $region104: #{actor_forward.1} parent=1 // pred_region
      %7183 = dma.done [#allocation7], 32
    $region105: #{actor_forward.1} parent=1 // pred_fallthru
      _
    %7184 = vsyncpa [#allocation5], 1
    %7185 = vsyncpa [#allocation7], 1

</llo_original>
